<compile_context>
chip_gen: v5e
topology: v5e:2x2
jax: 0.10.0
libtpu: 0.0.40
codegen_flags: <defaults>
</compile_context>

<pallas_src>
import functools

import numpy as np
import jax
import jax.numpy as jnp
from jax.experimental import pallas as pl
from jax.experimental.pallas import tpu as pltpu

H0 = 14            # spatial size after the fc1 reshape
W0 = 14
C0 = 64            # channels after the fc1 reshape
C1 = 32            # deconv1 output channels
P = H0 * W0        # 196 packed rows (one per 2x2 output block)
PAD = 16           # zero-halo rows in the packed-plane scratches


# ------------------------------ fc1 + relu --------------------------------- #
def _fc1_kernel(z_ref, w_ref, b_ref, o_ref):
    h = jnp.dot(z_ref[...], w_ref[...], preferred_element_type=jnp.float32)
    h = jnp.maximum(h + b_ref[...], 0.0)
    o_ref[...] = h.astype(o_ref.dtype)


def fc1_relu(z, w, b, *, block_b=512):
    """z: (B, L) bf16; w: (L, 12544) bf16 (columns already NHWC-permuted)."""
    B, L = z.shape
    N = w.shape[1]
    bb = min(B, block_b)
    return pl.pallas_call(
        _fc1_kernel,
        out_shape=jax.ShapeDtypeStruct((B, N), jnp.bfloat16),
        grid=(pl.cdiv(B, bb),),
        in_specs=[
            pl.BlockSpec((bb, L), lambda i: (i, 0)),
            pl.BlockSpec((L, N), lambda i: (0, 0)),
            pl.BlockSpec((1, N), lambda i: (0, 0)),
        ],
        out_specs=pl.BlockSpec((bb, N), lambda i: (i, 0)),
        compiler_params=pltpu.CompilerParams(dimension_semantics=("parallel",)),
    )(z, w, b)


# --------------- fused deconv1 + relu + conv2 + sigmoid --------------------- #
def _decoder_tail_kernel(h_ref, wd_ref, bd_ref, wc_ref, bc_ref, o_ref,
                         xp_ref, ep_ref, op_ref, *, views):
    f32 = jnp.float32
    bf16 = jnp.bfloat16

    # refresh zero halos every step (safe under megacore splitting), then
    # copy this image's (196, 64) NHWC activation into the padded scratch.
    xp_ref[192:216, :] = jnp.zeros((24, C0), bf16)
    ep_ref[0:PAD, :] = jnp.zeros((PAD, C0), bf16)
    ep_ref[208:232, :] = jnp.zeros((24, C0), bf16)
    op_ref[0:PAD, :] = jnp.zeros((PAD, C0), bf16)
    op_ref[208:232, :] = jnp.zeros((24, C0), bf16)
    xp_ref[0:P, :] = h_ref[0]

    # masks killing the wrap-around of the +-1 (column-pair) row shifts
    col = jax.lax.broadcasted_iota(jnp.int32, (P, 1), 0) % W0
    m_first = jnp.where(col == 0, 0.0, 1.0).astype(bf16)
    m_last = jnp.where(col == W0 - 1, 0.0, 1.0).astype(bf16)

    # ---- deconv1 (stride-2 transposed conv) as 6 packed matmuls ----
    # packed plane row r = a*14 + b holds [out(2a(+1), 2b, :) | out(2a(+1), 2b+1, :)]
    x00 = xp_ref[0:P, :]                      # x[a, b]
    x01 = xp_ref[1:P + 1, :] * m_last         # x[a, b+1]
    x10 = xp_ref[W0:W0 + P, :]                # x[a+1, b]
    x11 = xp_ref[W0 + 1:W0 + 1 + P, :] * m_last   # x[a+1, b+1]

    bd = bd_ref[...]
    ep = (jnp.dot(x00, wd_ref[0], preferred_element_type=f32) +
          jnp.dot(x01, wd_ref[1], preferred_element_type=f32))
    ep_ref[PAD:PAD + P, :] = jnp.maximum(ep + bd, 0.0).astype(bf16)
    op = (jnp.dot(x00, wd_ref[2], preferred_element_type=f32) +
          jnp.dot(x01, wd_ref[3], preferred_element_type=f32) +
          jnp.dot(x10, wd_ref[4], preferred_element_type=f32) +
          jnp.dot(x11, wd_ref[5], preferred_element_type=f32))
    op_ref[PAD:PAD + P, :] = jnp.maximum(op + bd, 0.0).astype(bf16)

    # ---- conv2 (3x3, pad 1) + sigmoid directly on the packed planes ----
    acc = jnp.zeros((P, 4), f32)
    for i, (plane, rshift, cshift) in enumerate(views):
        src = ep_ref if plane == 0 else op_ref
        start = PAD + rshift + cshift
        v = src[start:start + P, :]
        if cshift == -1:
            v = v * m_first
        elif cshift == 1:
            v = v * m_last
        acc = acc + jnp.dot(v, wc_ref[i], preferred_element_type=f32)
    acc = acc + bc_ref[...]
    o_ref[0] = 1.0 / (1.0 + jnp.exp(-acc))    # sigmoid


def decoder_tail(h3, wd, bd, wc, bc, views):
    B = h3.shape[0]
    kernel = functools.partial(_decoder_tail_kernel, views=views)
    return pl.pallas_call(
        kernel,
        out_shape=jax.ShapeDtypeStruct((B, P, 4), jnp.float32),
        grid=(B,),
        in_specs=[
            pl.BlockSpec((1, P, C0), lambda b: (b, 0, 0)),
            pl.BlockSpec((6, C0, 2 * C1), lambda b: (0, 0, 0)),
            pl.BlockSpec((1, 2 * C1), lambda b: (0, 0)),
            pl.BlockSpec((12, 2 * C1, 4), lambda b: (0, 0, 0)),
            pl.BlockSpec((1, 4), lambda b: (0, 0)),
        ],
        out_specs=pl.BlockSpec((1, P, 4), lambda b: (b, 0, 0)),
        scratch_shapes=[
            pltpu.VMEM((216, C0), jnp.bfloat16),   # padded fc1 activation
            pltpu.VMEM((232, C0), jnp.bfloat16),   # even-row packed plane (+halo)
            pltpu.VMEM((232, C0), jnp.bfloat16),   # odd-row packed plane (+halo)
        ],
        compiler_params=pltpu.CompilerParams(dimension_semantics=("parallel",)),
    )(h3, wd, bd, wc, bc)


# ----------------------------- parameter prep ------------------------------ #
def init_params(key, latent_dim):
    """PyTorch-layout parameters."""
    ks = jax.random.split(key, 6)

    def rand(k, fan_in, shape):
        return jax.random.normal(k, shape, jnp.float32) / np.sqrt(fan_in)

    return {
        "fc1_w": rand(ks[0], latent_dim, (12544, latent_dim)),   # Linear (out, in)
        "fc1_b": 0.01 * jax.random.normal(ks[1], (12544,), jnp.float32),
        "de1_w": rand(ks[2], 64 * 9, (64, 32, 3, 3)),            # ConvT (in, out, kh, kw)
        "de1_b": 0.01 * jax.random.normal(ks[3], (32,), jnp.float32),
        "c2_w": rand(ks[4], 32 * 9, (1, 32, 3, 3)),              # Conv2d (out, in, kh, kw)
        "c2_b": 0.01 * jax.random.normal(ks[5], (1,), jnp.float32),
    }


def _conv2_packed_views_and_weights(w2):
    """12 (64, 4) weights for conv2 evaluated on the packed parity planes."""
    g = np.asarray(w2)[0]                                   # (32, 3, 3)
    even_map = {0: (1, -W0), 1: (0, 0), 2: (1, 0)}          # conv row u -> (plane, row shift)
    odd_map = {0: (0, 0), 1: (1, 0), 2: (0, W0)}            # plane: 0=even rows, 1=odd rows
    plane_rows = [(1, -W0), (0, 0), (1, 0), (0, W0)]
    views, weights = [], []
    for plane, rshift in plane_rows:
        s_even = [u for u, pr in even_map.items() if pr == (plane, rshift)]
        s_odd = [u for u, pr in odd_map.items() if pr == (plane, rshift)]
        for cs in (-1, 0, 1):
            w = np.zeros((2 * C1, 4), np.float32)
            for subset, c0 in ((s_even, 0), (s_odd, 2)):
                for u in subset:
                    if cs == -1:                             # pair b-1: only d[., 2b-1]
                        w[C1:, c0 + 0] += g[:, u, 0]
                    elif cs == 0:
                        w[:C1, c0 + 0] += g[:, u, 1]
                        w[C1:, c0 + 0] += g[:, u, 2]
                        w[:C1, c0 + 1] += g[:, u, 0]
                        w[C1:, c0 + 1] += g[:, u, 1]
                    else:                                    # pair b+1: only d[., 2b+2]
                        w[:C1, c0 + 1] += g[:, u, 2]
            views.append((plane, rshift, cs))
            weights.append(w)
    return tuple(views), np.stack(weights)                   # (12, 64, 4)


def prepare_params(p, latent_dim):
    """One-time packing / casting of the PyTorch-layout weights."""
    L = latent_dim
    # fc1: transpose + permute columns so the output is directly (h*w, c) NHWC.
    wf1 = np.asarray(p["fc1_w"]).reshape(C0, P, L).transpose(2, 1, 0).reshape(L, P * C0)
    bf1 = np.asarray(p["fc1_b"]).reshape(C0, P).T.reshape(1, P * C0)

    # deconv1: 6 packed (64, 64) matrices; wUV = weight[:, :, U, V]
    wd = np.asarray(p["de1_w"])
    zeros = np.zeros((C0, C1), np.float32)

    def tap(u, v):
        return wd[:, :, u, v]

    wd_packed = np.stack([
        np.concatenate([tap(1, 1), tap(1, 2)], axis=1),   # even rows, from x[a,b]
        np.concatenate([zeros, tap(1, 0)], axis=1),       # even rows, from x[a,b+1]
        np.concatenate([tap(2, 1), tap(2, 2)], axis=1),   # odd rows,  from x[a,b]
        np.concatenate([zeros, tap(2, 0)], axis=1),       # odd rows,  from x[a,b+1]
        np.concatenate([tap(0, 1), tap(0, 2)], axis=1),   # odd rows,  from x[a+1,b]
        np.concatenate([zeros, tap(0, 0)], axis=1),       # odd rows,  from x[a+1,b+1]
    ])                                                     # (6, 64, 64)
    bd = np.concatenate([np.asarray(p["de1_b"])] * 2).reshape(1, 2 * C1)

    views, wc_packed = _conv2_packed_views_and_weights(p["c2_w"])
    bc = np.full((1, 4), float(np.asarray(p["c2_b"])[0]), np.float32)

    prep = {
        "wf1": jnp.asarray(wf1, jnp.bfloat16),
        "bf1": jnp.asarray(bf1, jnp.float32),
        "wd": jnp.asarray(wd_packed, jnp.bfloat16),
        "bd": jnp.asarray(bd, jnp.float32),
        "wc": jnp.asarray(wc_packed, jnp.bfloat16),
        "bc": jnp.asarray(bc, jnp.float32),
    }
    return prep, views


# --------------------------------- forward --------------------------------- #
def decoder_forward(z, prep, views):
    B = z.shape[0]
    h = fc1_relu(z.astype(jnp.bfloat16), prep["wf1"], prep["bf1"])   # (B, 12544) bf16, NHWC order
    h3 = h.reshape(B, P, C0)                                         # free row-major reshape
    packed = decoder_tail(h3, prep["wd"], prep["bd"], prep["wc"], prep["bc"], views)
    # (B, 196, 4) -> (B, 1, 28, 28): unpack the 2x2 parity blocks (3 KB of XLA glue)
    out = packed.reshape(B, H0, W0, 2, 2).transpose(0, 1, 3, 2, 4)
    return out.reshape(B, 1, 2 * H0, 2 * W0)


# ------------------------------ pure-JAX reference ------------------------- #
def decoder_reference(z, p):
    B = z.shape[0]
    h = jnp.maximum(z @ p["fc1_w"].T + p["fc1_b"], 0.0)
    x = h.reshape(B, C0, H0, W0)
    # ConvTranspose2d(s=2, p=1, op=1) == dilated conv with the flipped kernel
    w_flip = jnp.flip(p["de1_w"], axis=(2, 3)).transpose(1, 0, 2, 3)   # (32, 64, 3, 3)
    y = jax.lax.conv_general_dilated(
        x, w_flip, window_strides=(1, 1), padding=((1, 2), (1, 2)),
        lhs_dilation=(2, 2), rhs_dilation=(1, 1),
        dimension_numbers=("NCHW", "OIHW", "NCHW"))
    y = jnp.maximum(y + p["de1_b"][None, :, None, None], 0.0)
    out = jax.lax.conv_general_dilated(
        y, p["c2_w"], window_strides=(1, 1), padding=((1, 1), (1, 1)),
        dimension_numbers=("NCHW", "OIHW", "NCHW"))
    out = out + p["c2_b"][None, :, None, None]
    return jax.nn.sigmoid(out)


if __name__ == "__main__":
    latent_dim = 32
    B = 2
    key = jax.random.PRNGKey(0)
    kz, kp = jax.random.split(key)
    z = jax.random.normal(kz, (B, latent_dim), jnp.float32)

    params = init_params(kp, latent_dim)
    prep, views = prepare_params(params, latent_dim)

    fwd = jax.jit(functools.partial(decoder_forward, views=views))
    out = jax.block_until_ready(fwd(z, prep))

    assert out.shape == (B, 1, 28, 28)
    assert bool(jnp.all(jnp.isfinite(out)))

    ref = jax.block_until_ready(decoder_reference(z, params))
    err = float(jnp.max(jnp.abs(out - ref)))
    assert err < 5e-2, f"max abs error vs reference: {err}"
    print("KERNEL_OK")
</pallas_src>

<mosaic_0001>
module attributes {stable_mosaic.version = 11 : i64} {
  func.func @_fc1_kernel(%arg0: i32, %arg1: memref<2x32xbf16, #tpu.memory_space<vmem>>, %arg2: memref<32x12544xbf16, #tpu.memory_space<vmem>>, %arg3: memref<1x12544xf32, #tpu.memory_space<vmem>>, %arg4: memref<2x12544xbf16, #tpu.memory_space<vmem>>) attributes {dimension_semantics = [#tpu.dimension_semantics<parallel>], iteration_bounds = array<i64: 1>, scalar_prefetch = 0 : i64, scratch_operands = 0 : i64, tpu.core_type = #tpu.core_type<tc>, window_params = [{transform_indices = @transform_0, window_bounds = array<i64: 2, 32>}, {pipeline_mode = #tpu.pipeline_mode<synchronous>, transform_indices = @transform_1, window_bounds = array<i64: 32, 12544>}, {pipeline_mode = #tpu.pipeline_mode<synchronous>, transform_indices = @transform_2, window_bounds = array<i64: 1, 12544>}, {transform_indices = @transform_3, window_bounds = array<i64: 2, 12544>}]} {
    %c0 = arith.constant 0 : index
    %c0_0 = arith.constant 0 : index
    %0 = vector.load %arg1[%c0, %c0_0] : memref<2x32xbf16, #tpu.memory_space<vmem>>, vector<2x32xbf16>
    %c0_1 = arith.constant 0 : index
    %c0_2 = arith.constant 0 : index
    %1 = vector.load %arg2[%c0_1, %c0_2] : memref<32x12544xbf16, #tpu.memory_space<vmem>>, vector<32x12544xbf16>
    %cst = arith.constant dense<0.000000e+00> : vector<2x12544xf32>
    %2 = tpu.matmul %0, %1, %cst {dimension_numbers = #tpu.dot_dimension_numbers<[1], [0], [0], [1], [0, 0, 1, 1], [], []>} : vector<2x32xbf16>, vector<32x12544xbf16>, vector<2x12544xf32> -> vector<2x12544xf32>
    %c0_3 = arith.constant 0 : index
    %c0_4 = arith.constant 0 : index
    %3 = vector.load %arg3[%c0_3, %c0_4] : memref<1x12544xf32, #tpu.memory_space<vmem>>, vector<1x12544xf32>
    %4 = vector.broadcast %3 : vector<1x12544xf32> to vector<2x12544xf32>
    %5 = arith.addf %2, %4 : vector<2x12544xf32>
    %cst_5 = arith.constant 0.000000e+00 : f32
    %6 = vector.broadcast %cst_5 : f32 to vector<2x12544xf32>
    %7 = arith.maximumf %5, %6 : vector<2x12544xf32>
    %8 = arith.truncf %7 : vector<2x12544xf32> to vector<2x12544xbf16>
    %c0_6 = arith.constant 0 : index
    %c0_7 = arith.constant 0 : index
    %9 = vector.load %arg4[%c0_6, %c0_7] : memref<2x12544xbf16, #tpu.memory_space<vmem>>, vector<2x12544xbf16>
    tpu.vector_store %arg4[%c0_6, %c0_7], %8 {strides = array<i32>} : memref<2x12544xbf16, #tpu.memory_space<vmem>>, vector<2x12544xbf16>,
    return
  }
  func.func @transform_0(%arg0: i32) -> (i32, i32) {
    %c0_i32 = arith.constant 0 : i32
    %c0_i32_0 = arith.constant 0 : i32
    return %arg0, %c0_i32 : i32, i32
  }
  func.func @transform_1(%arg0: i32) -> (i32, i32) {
    %c0_i32 = arith.constant 0 : i32
    %c0_i32_0 = arith.constant 0 : i32
    %c0_i32_1 = arith.constant 0 : i32
    return %c0_i32, %c0_i32_0 : i32, i32
  }
  func.func @transform_2(%arg0: i32) -> (i32, i32) {
    %c0_i32 = arith.constant 0 : i32
    %c0_i32_0 = arith.constant 0 : i32
    %c0_i32_1 = arith.constant 0 : i32
    return %c0_i32, %c0_i32_0 : i32, i32
  }
  func.func @transform_3(%arg0: i32) -> (i32, i32) {
    %c0_i32 = arith.constant 0 : i32
    %c0_i32_0 = arith.constant 0 : i32
    return %arg0, %c0_i32 : i32, i32
  }
}

module attributes {stable_mosaic.version = 11 : i64} {
  func.func @_decoder_tail_kernel(%arg0: i32, %arg1: memref<1x196x64xbf16, #tpu.memory_space<vmem>>, %arg2: memref<6x64x64xbf16, #tpu.memory_space<vmem>>, %arg3: memref<1x64xf32, #tpu.memory_space<vmem>>, %arg4: memref<12x64x4xbf16, #tpu.memory_space<vmem>>, %arg5: memref<1x4xf32, #tpu.memory_space<vmem>>, %arg6: memref<1x196x4xf32, #tpu.memory_space<vmem>>, %arg7: memref<216x64xbf16, #tpu.memory_space<vmem>>, %arg8: memref<232x64xbf16, #tpu.memory_space<vmem>>, %arg9: memref<232x64xbf16, #tpu.memory_space<vmem>>) attributes {dimension_semantics = [#tpu.dimension_semantics<parallel>], iteration_bounds = array<i64: 2>, scalar_prefetch = 0 : i64, scratch_operands = 3 : i64, tpu.core_type = #tpu.core_type<tc>, window_params = [{transform_indices = @transform_0, window_bounds = array<i64: 1, 196, 64>}, {pipeline_mode = #tpu.pipeline_mode<synchronous>, transform_indices = @transform_1, window_bounds = array<i64: 6, 64, 64>}, {pipeline_mode = #tpu.pipeline_mode<synchronous>, transform_indices = @transform_2, window_bounds = array<i64: 1, 64>}, {pipeline_mode = #tpu.pipeline_mode<synchronous>, transform_indices = @transform_3, window_bounds = array<i64: 12, 64, 4>}, {pipeline_mode = #tpu.pipeline_mode<synchronous>, transform_indices = @transform_4, window_bounds = array<i64: 1, 4>}, {transform_indices = @transform_5, window_bounds = array<i64: 1, 196, 4>}]} {
    %cst = arith.constant 0.000000e+00 : bf16
    %0 = vector.broadcast %cst : bf16 to vector<24x64xbf16>
    %c192 = arith.constant 192 : index
    %c0 = arith.constant 0 : index
    %1 = vector.load %arg7[%c192, %c0] : memref<216x64xbf16, #tpu.memory_space<vmem>>, vector<24x64xbf16>
    tpu.vector_store %arg7[%c192, %c0], %0 {strides = array<i32>} : memref<216x64xbf16, #tpu.memory_space<vmem>>, vector<24x64xbf16>,
    %cst_0 = arith.constant 0.000000e+00 : bf16
    %2 = vector.broadcast %cst_0 : bf16 to vector<16x64xbf16>
    %c0_1 = arith.constant 0 : index
    %c0_2 = arith.constant 0 : index
    %3 = vector.load %arg8[%c0_1, %c0_2] : memref<232x64xbf16, #tpu.memory_space<vmem>>, vector<16x64xbf16>
    tpu.vector_store %arg8[%c0_1, %c0_2], %2 {strides = array<i32>} : memref<232x64xbf16, #tpu.memory_space<vmem>>, vector<16x64xbf16>,
    %cst_3 = arith.constant 0.000000e+00 : bf16
    %4 = vector.broadcast %cst_3 : bf16 to vector<24x64xbf16>
    %c208 = arith.constant 208 : index
    %c0_4 = arith.constant 0 : index
    %5 = vector.load %arg8[%c208, %c0_4] : memref<232x64xbf16, #tpu.memory_space<vmem>>, vector<24x64xbf16>
    tpu.vector_store %arg8[%c208, %c0_4], %4 {strides = array<i32>} : memref<232x64xbf16, #tpu.memory_space<vmem>>, vector<24x64xbf16>,
    %cst_5 = arith.constant 0.000000e+00 : bf16
    %6 = vector.broadcast %cst_5 : bf16 to vector<16x64xbf16>
    %c0_6 = arith.constant 0 : index
    %c0_7 = arith.constant 0 : index
    %7 = vector.load %arg9[%c0_6, %c0_7] : memref<232x64xbf16, #tpu.memory_space<vmem>>, vector<16x64xbf16>
    tpu.vector_store %arg9[%c0_6, %c0_7], %6 {strides = array<i32>} : memref<232x64xbf16, #tpu.memory_space<vmem>>, vector<16x64xbf16>,
    %cst_8 = arith.constant 0.000000e+00 : bf16
    %8 = vector.broadcast %cst_8 : bf16 to vector<24x64xbf16>
    %c208_9 = arith.constant 208 : index
    %c0_10 = arith.constant 0 : index
    %9 = vector.load %arg9[%c208_9, %c0_10] : memref<232x64xbf16, #tpu.memory_space<vmem>>, vector<24x64xbf16>
    tpu.vector_store %arg9[%c208_9, %c0_10], %8 {strides = array<i32>} : memref<232x64xbf16, #tpu.memory_space<vmem>>, vector<24x64xbf16>,
    %c0_11 = arith.constant 0 : index
    %c0_12 = arith.constant 0 : index
    %c0_13 = arith.constant 0 : index
    %10 = vector.load %arg1[%c0_11, %c0_12, %c0_13] : memref<1x196x64xbf16, #tpu.memory_space<vmem>>, vector<1x196x64xbf16>
    %11 = vector.shape_cast %10 : vector<1x196x64xbf16> to vector<196x64xbf16>
    %c0_14 = arith.constant 0 : index
    %c0_15 = arith.constant 0 : index
    %12 = vector.load %arg7[%c0_14, %c0_15] : memref<216x64xbf16, #tpu.memory_space<vmem>>, vector<196x64xbf16>
    tpu.vector_store %arg7[%c0_14, %c0_15], %11 {strides = array<i32>} : memref<216x64xbf16, #tpu.memory_space<vmem>>, vector<196x64xbf16>,
    %13 = tpu.iota {dimensions = array<i32: 0>} : vector<196x1xi32>
    %c14_i32 = arith.constant 14 : i32
    %c0_i32 = arith.constant 0 : i32
    %14 = arith.cmpi eq, %c14_i32, %c0_i32 : i32
    %c1_i32 = arith.constant 1 : i32
    %15 = arith.select %14, %c1_i32, %c14_i32 : i32
    %16 = vector.broadcast %15 : i32 to vector<196x1xi32>
    %17 = arith.remsi %13, %16 : vector<196x1xi32>
    %c0_i32_16 = arith.constant 0 : i32
    %18 = vector.broadcast %c0_i32_16 : i32 to vector<196x1xi32>
    %19 = arith.cmpi ne, %17, %18 : vector<196x1xi32>
    %c0_i32_17 = arith.constant 0 : i32
    %20 = vector.broadcast %c0_i32_17 : i32 to vector<196x1xi32>
    %21 = arith.cmpi slt, %17, %20 : vector<196x1xi32>
    %c0_i32_18 = arith.constant 0 : i32
    %22 = arith.cmpi slt, %15, %c0_i32_18 : i32
    %23 = vector.broadcast %22 : i1 to vector<196x1xi1>
    %24 = vector.broadcast %23 : vector<196x1xi1> to vector<196x1xi1>
    %25 = arith.xori %21, %24 : vector<196x1xi1>
    %26 = arith.andi %25, %19 : vector<196x1xi1>
    %27 = vector.broadcast %15 : i32 to vector<196x1xi32>
    %28 = arith.addi %17, %27 : vector<196x1xi32>
    %29 = arith.select %26, %28, %17 : vector<196x1xi1>, vector<196x1xi32>
    %c0_i32_19 = arith.constant 0 : i32
    %30 = vector.broadcast %c0_i32_19 : i32 to vector<196x1xi32>
    %31 = arith.cmpi eq, %29, %30 : vector<196x1xi32>
    %cst_20 = arith.constant 0.000000e+00 : f32
    %cst_21 = arith.constant 1.000000e+00 : f32
    %32 = vector.broadcast %cst_20 : f32 to vector<196x1xf32>
    %33 = vector.broadcast %cst_21 : f32 to vector<196x1xf32>
    %34 = arith.select %31, %32, %33 : vector<196x1xi1>, vector<196x1xf32>
    %35 = arith.truncf %34 : vector<196x1xf32> to vector<196x1xbf16>
    %c13_i32 = arith.constant 13 : i32
    %36 = vector.broadcast %c13_i32 : i32 to vector<196x1xi32>
    %37 = arith.cmpi eq, %29, %36 : vector<196x1xi32>
    %cst_22 = arith.constant 0.000000e+00 : f32
    %cst_23 = arith.constant 1.000000e+00 : f32
    %38 = vector.broadcast %cst_22 : f32 to vector<196x1xf32>
    %39 = vector.broadcast %cst_23 : f32 to vector<196x1xf32>
    %40 = arith.select %37, %38, %39 : vector<196x1xi1>, vector<196x1xf32>
    %41 = arith.truncf %40 : vector<196x1xf32> to vector<196x1xbf16>
    %c0_24 = arith.constant 0 : index
    %c0_25 = arith.constant 0 : index
    %42 = vector.load %arg7[%c0_24, %c0_25] : memref<216x64xbf16, #tpu.memory_space<vmem>>, vector<196x64xbf16>
    %c1 = arith.constant 1 : index
    %c0_26 = arith.constant 0 : index
    %43 = vector.load %arg7[%c1, %c0_26] : memref<216x64xbf16, #tpu.memory_space<vmem>>, vector<196x64xbf16>
    %44 = vector.broadcast %41 : vector<196x1xbf16> to vector<196x64xbf16>
    %45 = arith.mulf %43, %44 : vector<196x64xbf16>
    %c14 = arith.constant 14 : index
    %c0_27 = arith.constant 0 : index
    %46 = vector.load %arg7[%c14, %c0_27] : memref<216x64xbf16, #tpu.memory_space<vmem>>, vector<196x64xbf16>
    %c15 = arith.constant 15 : index
    %c0_28 = arith.constant 0 : index
    %47 = vector.load %arg7[%c15, %c0_28] : memref<216x64xbf16, #tpu.memory_space<vmem>>, vector<196x64xbf16>
    %48 = vector.broadcast %41 : vector<196x1xbf16> to vector<196x64xbf16>
    %49 = arith.mulf %47, %48 : vector<196x64xbf16>
    %c0_29 = arith.constant 0 : index
    %c0_30 = arith.constant 0 : index
    %50 = vector.load %arg3[%c0_29, %c0_30] : memref<1x64xf32, #tpu.memory_space<vmem>>, vector<1x64xf32>
    %c0_31 = arith.constant 0 : index
    %c0_32 = arith.constant 0 : index
    %c0_33 = arith.constant 0 : index
    %51 = vector.load %arg2[%c0_31, %c0_32, %c0_33] : memref<6x64x64xbf16, #tpu.memory_space<vmem>>, vector<1x64x64xbf16>
    %52 = vector.shape_cast %51 : vector<1x64x64xbf16> to vector<64x64xbf16>
    %cst_34 = arith.constant dense<0.000000e+00> : vector<196x64xf32>
    %53 = tpu.matmul %42, %52, %cst_34 {dimension_numbers = #tpu.dot_dimension_numbers<[1], [0], [0], [1], [0, 0, 1, 1], [], []>} : vector<196x64xbf16>, vector<64x64xbf16>, vector<196x64xf32> -> vector<196x64xf32>
    %c1_35 = arith.constant 1 : index
    %c0_36 = arith.constant 0 : index
    %c0_37 = arith.constant 0 : index
    %54 = vector.load %arg2[%c1_35, %c0_36, %c0_37] : memref<6x64x64xbf16, #tpu.memory_space<vmem>>, vector<1x64x64xbf16>
    %55 = vector.shape_cast %54 : vector<1x64x64xbf16> to vector<64x64xbf16>
    %cst_38 = arith.constant dense<0.000000e+00> : vector<196x64xf32>
    %56 = tpu.matmul %45, %55, %cst_38 {dimension_numbers = #tpu.dot_dimension_numbers<[1], [0], [0], [1], [0, 0, 1, 1], [], []>} : vector<196x64xbf16>, vector<64x64xbf16>, vector<196x64xf32> -> vector<196x64xf32>
    %57 = arith.addf %53, %56 : vector<196x64xf32>
    %58 = vector.broadcast %50 : vector<1x64xf32> to vector<196x64xf32>
    %59 = arith.addf %57, %58 : vector<196x64xf32>
    %cst_39 = arith.constant 0.000000e+00 : f32
    %60 = vector.broadcast %cst_39 : f32 to vector<196x64xf32>
    %61 = arith.maximumf %59, %60 : vector<196x64xf32>
    %62 = arith.truncf %61 : vector<196x64xf32> to vector<196x64xbf16>
    %c16 = arith.constant 16 : index
    %c0_40 = arith.constant 0 : index
    %63 = vector.load %arg8[%c16, %c0_40] : memref<232x64xbf16, #tpu.memory_space<vmem>>, vector<196x64xbf16>
    tpu.vector_store %arg8[%c16, %c0_40], %62 {strides = array<i32>} : memref<232x64xbf16, #tpu.memory_space<vmem>>, vector<196x64xbf16>,
    %c2 = arith.constant 2 : index
    %c0_41 = arith.constant 0 : index
    %c0_42 = arith.constant 0 : index
    %64 = vector.load %arg2[%c2, %c0_41, %c0_42] : memref<6x64x64xbf16, #tpu.memory_space<vmem>>, vector<1x64x64xbf16>
    %65 = vector.shape_cast %64 : vector<1x64x64xbf16> to vector<64x64xbf16>
    %cst_43 = arith.constant dense<0.000000e+00> : vector<196x64xf32>
    %66 = tpu.matmul %42, %65, %cst_43 {dimension_numbers = #tpu.dot_dimension_numbers<[1], [0], [0], [1], [0, 0, 1, 1], [], []>} : vector<196x64xbf16>, vector<64x64xbf16>, vector<196x64xf32> -> vector<196x64xf32>
    %c3 = arith.constant 3 : index
    %c0_44 = arith.constant 0 : index
    %c0_45 = arith.constant 0 : index
    %67 = vector.load %arg2[%c3, %c0_44, %c0_45] : memref<6x64x64xbf16, #tpu.memory_space<vmem>>, vector<1x64x64xbf16>
    %68 = vector.shape_cast %67 : vector<1x64x64xbf16> to vector<64x64xbf16>
    %cst_46 = arith.constant dense<0.000000e+00> : vector<196x64xf32>
    %69 = tpu.matmul %45, %68, %cst_46 {dimension_numbers = #tpu.dot_dimension_numbers<[1], [0], [0], [1], [0, 0, 1, 1], [], []>} : vector<196x64xbf16>, vector<64x64xbf16>, vector<196x64xf32> -> vector<196x64xf32>
    %70 = arith.addf %66, %69 : vector<196x64xf32>
    %c4 = arith.constant 4 : index
    %c0_47 = arith.constant 0 : index
    %c0_48 = arith.constant 0 : index
    %71 = vector.load %arg2[%c4, %c0_47, %c0_48] : memref<6x64x64xbf16, #tpu.memory_space<vmem>>, vector<1x64x64xbf16>
    %72 = vector.shape_cast %71 : vector<1x64x64xbf16> to vector<64x64xbf16>
    %cst_49 = arith.constant dense<0.000000e+00> : vector<196x64xf32>
    %73 = tpu.matmul %46, %72, %cst_49 {dimension_numbers = #tpu.dot_dimension_numbers<[1], [0], [0], [1], [0, 0, 1, 1], [], []>} : vector<196x64xbf16>, vector<64x64xbf16>, vector<196x64xf32> -> vector<196x64xf32>
    %74 = arith.addf %70, %73 : vector<196x64xf32>
    %c5 = arith.constant 5 : index
    %c0_50 = arith.constant 0 : index
    %c0_51 = arith.constant 0 : index
    %75 = vector.load %arg2[%c5, %c0_50, %c0_51] : memref<6x64x64xbf16, #tpu.memory_space<vmem>>, vector<1x64x64xbf16>
    %76 = vector.shape_cast %75 : vector<1x64x64xbf16> to vector<64x64xbf16>
    %cst_52 = arith.constant dense<0.000000e+00> : vector<196x64xf32>
    %77 = tpu.matmul %49, %76, %cst_52 {dimension_numbers = #tpu.dot_dimension_numbers<[1], [0], [0], [1], [0, 0, 1, 1], [], []>} : vector<196x64xbf16>, vector<64x64xbf16>, vector<196x64xf32> -> vector<196x64xf32>
    %78 = arith.addf %74, %77 : vector<196x64xf32>
    %79 = vector.broadcast %50 : vector<1x64xf32> to vector<196x64xf32>
    %80 = arith.addf %78, %79 : vector<196x64xf32>
    %cst_53 = arith.constant 0.000000e+00 : f32
    %81 = vector.broadcast %cst_53 : f32 to vector<196x64xf32>
    %82 = arith.maximumf %80, %81 : vector<196x64xf32>
    %83 = arith.truncf %82 : vector<196x64xf32> to vector<196x64xbf16>
    %c16_54 = arith.constant 16 : index
    %c0_55 = arith.constant 0 : index
    %84 = vector.load %arg9[%c16_54, %c0_55] : memref<232x64xbf16, #tpu.memory_space<vmem>>, vector<196x64xbf16>
    tpu.vector_store %arg9[%c16_54, %c0_55], %83 {strides = array<i32>} : memref<232x64xbf16, #tpu.memory_space<vmem>>, vector<196x64xbf16>,
    %cst_56 = arith.constant 0.000000e+00 : f32
    %85 = vector.broadcast %cst_56 : f32 to vector<196x4xf32>
    %c1_57 = arith.constant 1 : index
    %c0_58 = arith.constant 0 : index
    %86 = vector.load %arg9[%c1_57, %c0_58] : memref<232x64xbf16, #tpu.memory_space<vmem>>, vector<196x64xbf16>
    %87 = vector.broadcast %35 : vector<196x1xbf16> to vector<196x64xbf16>
    %88 = arith.mulf %86, %87 : vector<196x64xbf16>
    %c0_59 = arith.constant 0 : index
    %c0_60 = arith.constant 0 : index
    %c0_61 = arith.constant 0 : index
    %89 = vector.load %arg4[%c0_59, %c0_60, %c0_61] : memref<12x64x4xbf16, #tpu.memory_space<vmem>>, vector<1x64x4xbf16>
    %90 = vector.shape_cast %89 : vector<1x64x4xbf16> to vector<64x4xbf16>
    %cst_62 = arith.constant dense<0.000000e+00> : vector<196x4xf32>
    %91 = tpu.matmul %88, %90, %cst_62 {dimension_numbers = #tpu.dot_dimension_numbers<[1], [0], [0], [1], [0, 0, 1, 1], [], []>} : vector<196x64xbf16>, vector<64x4xbf16>, vector<196x4xf32> -> vector<196x4xf32>
    %92 = arith.addf %85, %91 : vector<196x4xf32>
    %c2_63 = arith.constant 2 : index
    %c0_64 = arith.constant 0 : index
    %93 = vector.load %arg9[%c2_63, %c0_64] : memref<232x64xbf16, #tpu.memory_space<vmem>>, vector<196x64xbf16>
    %c1_65 = arith.constant 1 : index
    %c0_66 = arith.constant 0 : index
    %c0_67 = arith.constant 0 : index
    %94 = vector.load %arg4[%c1_65, %c0_66, %c0_67] : memref<12x64x4xbf16, #tpu.memory_space<vmem>>, vector<1x64x4xbf16>
    %95 = vector.shape_cast %94 : vector<1x64x4xbf16> to vector<64x4xbf16>
    %cst_68 = arith.constant dense<0.000000e+00> : vector<196x4xf32>
    %96 = tpu.matmul %93, %95, %cst_68 {dimension_numbers = #tpu.dot_dimension_numbers<[1], [0], [0], [1], [0, 0, 1, 1], [], []>} : vector<196x64xbf16>, vector<64x4xbf16>, vector<196x4xf32> -> vector<196x4xf32>
    %97 = arith.addf %92, %96 : vector<196x4xf32>
    %c3_69 = arith.constant 3 : index
    %c0_70 = arith.constant 0 : index
    %98 = vector.load %arg9[%c3_69, %c0_70] : memref<232x64xbf16, #tpu.memory_space<vmem>>, vector<196x64xbf16>
    %99 = vector.broadcast %41 : vector<196x1xbf16> to vector<196x64xbf16>
    %100 = arith.mulf %98, %99 : vector<196x64xbf16>
    %c2_71 = arith.constant 2 : index
    %c0_72 = arith.constant 0 : index
    %c0_73 = arith.constant 0 : index
    %101 = vector.load %arg4[%c2_71, %c0_72, %c0_73] : memref<12x64x4xbf16, #tpu.memory_space<vmem>>, vector<1x64x4xbf16>
    %102 = vector.shape_cast %101 : vector<1x64x4xbf16> to vector<64x4xbf16>
    %cst_74 = arith.constant dense<0.000000e+00> : vector<196x4xf32>
    %103 = tpu.matmul %100, %102, %cst_74 {dimension_numbers = #tpu.dot_dimension_numbers<[1], [0], [0], [1], [0, 0, 1, 1], [], []>} : vector<196x64xbf16>, vector<64x4xbf16>, vector<196x4xf32> -> vector<196x4xf32>
    %104 = arith.addf %97, %103 : vector<196x4xf32>
    %c15_75 = arith.constant 15 : index
    %c0_76 = arith.constant 0 : index
    %105 = vector.load %arg8[%c15_75, %c0_76] : memref<232x64xbf16, #tpu.memory_space<vmem>>, vector<196x64xbf16>
    %106 = vector.broadcast %35 : vector<196x1xbf16> to vector<196x64xbf16>
    %107 = arith.mulf %105, %106 : vector<196x64xbf16>
    %c3_77 = arith.constant 3 : index
    %c0_78 = arith.constant 0 : index
    %c0_79 = arith.constant 0 : index
    %108 = vector.load %arg4[%c3_77, %c0_78, %c0_79] : memref<12x64x4xbf16, #tpu.memory_space<vmem>>, vector<1x64x4xbf16>
    %109 = vector.shape_cast %108 : vector<1x64x4xbf16> to vector<64x4xbf16>
    %cst_80 = arith.constant dense<0.000000e+00> : vector<196x4xf32>
    %110 = tpu.matmul %107, %109, %cst_80 {dimension_numbers = #tpu.dot_dimension_numbers<[1], [0], [0], [1], [0, 0, 1, 1], [], []>} : vector<196x64xbf16>, vector<64x4xbf16>, vector<196x4xf32> -> vector<196x4xf32>
    %111 = arith.addf %104, %110 : vector<196x4xf32>
    %c16_81 = arith.constant 16 : index
    %c0_82 = arith.constant 0 : index
    %112 = vector.load %arg8[%c16_81, %c0_82] : memref<232x64xbf16, #tpu.memory_space<vmem>>, vector<196x64xbf16>
    %c4_83 = arith.constant 4 : index
    %c0_84 = arith.constant 0 : index
    %c0_85 = arith.constant 0 : index
    %113 = vector.load %arg4[%c4_83, %c0_84, %c0_85] : memref<12x64x4xbf16, #tpu.memory_space<vmem>>, vector<1x64x4xbf16>
    %114 = vector.shape_cast %113 : vector<1x64x4xbf16> to vector<64x4xbf16>
    %cst_86 = arith.constant dense<0.000000e+00> : vector<196x4xf32>
    %115 = tpu.matmul %112, %114, %cst_86 {dimension_numbers = #tpu.dot_dimension_numbers<[1], [0], [0], [1], [0, 0, 1, 1], [], []>} : vector<196x64xbf16>, vector<64x4xbf16>, vector<196x4xf32> -> vector<196x4xf32>
    %116 = arith.addf %111, %115 : vector<196x4xf32>
    %c17 = arith.constant 17 : index
    %c0_87 = arith.constant 0 : index
    %117 = vector.load %arg8[%c17, %c0_87] : memref<232x64xbf16, #tpu.memory_space<vmem>>, vector<196x64xbf16>
    %118 = vector.broadcast %41 : vector<196x1xbf16> to vector<196x64xbf16>
    %119 = arith.mulf %117, %118 : vector<196x64xbf16>
    %c5_88 = arith.constant 5 : index
    %c0_89 = arith.constant 0 : index
    %c0_90 = arith.constant 0 : index
    %120 = vector.load %arg4[%c5_88, %c0_89, %c0_90] : memref<12x64x4xbf16, #tpu.memory_space<vmem>>, vector<1x64x4xbf16>
    %121 = vector.shape_cast %120 : vector<1x64x4xbf16> to vector<64x4xbf16>
    %cst_91 = arith.constant dense<0.000000e+00> : vector<196x4xf32>
    %122 = tpu.matmul %119, %121, %cst_91 {dimension_numbers = #tpu.dot_dimension_numbers<[1], [0], [0], [1], [0, 0, 1, 1], [], []>} : vector<196x64xbf16>, vector<64x4xbf16>, vector<196x4xf32> -> vector<196x4xf32>
    %123 = arith.addf %116, %122 : vector<196x4xf32>
    %c15_92 = arith.constant 15 : index
    %c0_93 = arith.constant 0 : index
    %124 = vector.load %arg9[%c15_92, %c0_93] : memref<232x64xbf16, #tpu.memory_space<vmem>>, vector<196x64xbf16>
    %125 = vector.broadcast %35 : vector<196x1xbf16> to vector<196x64xbf16>
    %126 = arith.mulf %124, %125 : vector<196x64xbf16>
    %c6 = arith.constant 6 : index
    %c0_94 = arith.constant 0 : index
    %c0_95 = arith.constant 0 : index
    %127 = vector.load %arg4[%c6, %c0_94, %c0_95] : memref<12x64x4xbf16, #tpu.memory_space<vmem>>, vector<1x64x4xbf16>
    %128 = vector.shape_cast %127 : vector<1x64x4xbf16> to vector<64x4xbf16>
    %cst_96 = arith.constant dense<0.000000e+00> : vector<196x4xf32>
    %129 = tpu.matmul %126, %128, %cst_96 {dimension_numbers = #tpu.dot_dimension_numbers<[1], [0], [0], [1], [0, 0, 1, 1], [], []>} : vector<196x64xbf16>, vector<64x4xbf16>, vector<196x4xf32> -> vector<196x4xf32>
    %130 = arith.addf %123, %129 : vector<196x4xf32>
    %c16_97 = arith.constant 16 : index
    %c0_98 = arith.constant 0 : index
    %131 = vector.load %arg9[%c16_97, %c0_98] : memref<232x64xbf16, #tpu.memory_space<vmem>>, vector<196x64xbf16>
    %c7 = arith.constant 7 : index
    %c0_99 = arith.constant 0 : index
    %c0_100 = arith.constant 0 : index
    %132 = vector.load %arg4[%c7, %c0_99, %c0_100] : memref<12x64x4xbf16, #tpu.memory_space<vmem>>, vector<1x64x4xbf16>
    %133 = vector.shape_cast %132 : vector<1x64x4xbf16> to vector<64x4xbf16>
    %cst_101 = arith.constant dense<0.000000e+00> : vector<196x4xf32>
    %134 = tpu.matmul %131, %133, %cst_101 {dimension_numbers = #tpu.dot_dimension_numbers<[1], [0], [0], [1], [0, 0, 1, 1], [], []>} : vector<196x64xbf16>, vector<64x4xbf16>, vector<196x4xf32> -> vector<196x4xf32>
    %135 = arith.addf %130, %134 : vector<196x4xf32>
    %c17_102 = arith.constant 17 : index
    %c0_103 = arith.constant 0 : index
    %136 = vector.load %arg9[%c17_102, %c0_103] : memref<232x64xbf16, #tpu.memory_space<vmem>>, vector<196x64xbf16>
    %137 = vector.broadcast %41 : vector<196x1xbf16> to vector<196x64xbf16>
    %138 = arith.mulf %136, %137 : vector<196x64xbf16>
    %c8 = arith.constant 8 : index
    %c0_104 = arith.constant 0 : index
    %c0_105 = arith.constant 0 : index
    %139 = vector.load %arg4[%c8, %c0_104, %c0_105] : memref<12x64x4xbf16, #tpu.memory_space<vmem>>, vector<1x64x4xbf16>
    %140 = vector.shape_cast %139 : vector<1x64x4xbf16> to vector<64x4xbf16>
    %cst_106 = arith.constant dense<0.000000e+00> : vector<196x4xf32>
    %141 = tpu.matmul %138, %140, %cst_106 {dimension_numbers = #tpu.dot_dimension_numbers<[1], [0], [0], [1], [0, 0, 1, 1], [], []>} : vector<196x64xbf16>, vector<64x4xbf16>, vector<196x4xf32> -> vector<196x4xf32>
    %142 = arith.addf %135, %141 : vector<196x4xf32>
    %c29 = arith.constant 29 : index
    %c0_107 = arith.constant 0 : index
    %143 = vector.load %arg8[%c29, %c0_107] : memref<232x64xbf16, #tpu.memory_space<vmem>>, vector<196x64xbf16>
    %144 = vector.broadcast %35 : vector<196x1xbf16> to vector<196x64xbf16>
    %145 = arith.mulf %143, %144 : vector<196x64xbf16>
    %c9 = arith.constant 9 : index
    %c0_108 = arith.constant 0 : index
    %c0_109 = arith.constant 0 : index
    %146 = vector.load %arg4[%c9, %c0_108, %c0_109] : memref<12x64x4xbf16, #tpu.memory_space<vmem>>, vector<1x64x4xbf16>
    %147 = vector.shape_cast %146 : vector<1x64x4xbf16> to vector<64x4xbf16>
    %cst_110 = arith.constant dense<0.000000e+00> : vector<196x4xf32>
    %148 = tpu.matmul %145, %147, %cst_110 {dimension_numbers = #tpu.dot_dimension_numbers<[1], [0], [0], [1], [0, 0, 1, 1], [], []>} : vector<196x64xbf16>, vector<64x4xbf16>, vector<196x4xf32> -> vector<196x4xf32>
    %149 = arith.addf %142, %148 : vector<196x4xf32>
    %c30 = arith.constant 30 : index
    %c0_111 = arith.constant 0 : index
    %150 = vector.load %arg8[%c30, %c0_111] : memref<232x64xbf16, #tpu.memory_space<vmem>>, vector<196x64xbf16>
    %c10 = arith.constant 10 : index
    %c0_112 = arith.constant 0 : index
    %c0_113 = arith.constant 0 : index
    %151 = vector.load %arg4[%c10, %c0_112, %c0_113] : memref<12x64x4xbf16, #tpu.memory_space<vmem>>, vector<1x64x4xbf16>
    %152 = vector.shape_cast %151 : vector<1x64x4xbf16> to vector<64x4xbf16>
    %cst_114 = arith.constant dense<0.000000e+00> : vector<196x4xf32>
    %153 = tpu.matmul %150, %152, %cst_114 {dimension_numbers = #tpu.dot_dimension_numbers<[1], [0], [0], [1], [0, 0, 1, 1], [], []>} : vector<196x64xbf16>, vector<64x4xbf16>, vector<196x4xf32> -> vector<196x4xf32>
    %154 = arith.addf %149, %153 : vector<196x4xf32>
    %c31 = arith.constant 31 : index
    %c0_115 = arith.constant 0 : index
    %155 = vector.load %arg8[%c31, %c0_115] : memref<232x64xbf16, #tpu.memory_space<vmem>>, vector<196x64xbf16>
    %156 = vector.broadcast %41 : vector<196x1xbf16> to vector<196x64xbf16>
    %157 = arith.mulf %155, %156 : vector<196x64xbf16>
    %c11 = arith.constant 11 : index
    %c0_116 = arith.constant 0 : index
    %c0_117 = arith.constant 0 : index
    %158 = vector.load %arg4[%c11, %c0_116, %c0_117] : memref<12x64x4xbf16, #tpu.memory_space<vmem>>, vector<1x64x4xbf16>
    %159 = vector.shape_cast %158 : vector<1x64x4xbf16> to vector<64x4xbf16>
    %cst_118 = arith.constant dense<0.000000e+00> : vector<196x4xf32>
    %160 = tpu.matmul %157, %159, %cst_118 {dimension_numbers = #tpu.dot_dimension_numbers<[1], [0], [0], [1], [0, 0, 1, 1], [], []>} : vector<196x64xbf16>, vector<64x4xbf16>, vector<196x4xf32> -> vector<196x4xf32>
    %161 = arith.addf %154, %160 : vector<196x4xf32>
    %c0_119 = arith.constant 0 : index
    %c0_120 = arith.constant 0 : index
    %162 = vector.load %arg5[%c0_119, %c0_120] : memref<1x4xf32, #tpu.memory_space<vmem>>, vector<1x4xf32>
    %163 = vector.broadcast %162 : vector<1x4xf32> to vector<196x4xf32>
    %164 = arith.addf %161, %163 : vector<196x4xf32>
    %cst_121 = arith.constant 0.000000e+00 : f32
    %165 = vector.broadcast %cst_121 : f32 to vector<196x4xf32>
    %166 = arith.subf %165, %164 : vector<196x4xf32>
    %167 = math.exp %166 : vector<196x4xf32>
    %cst_122 = arith.constant 1.000000e+00 : f32
    %168 = vector.broadcast %cst_122 : f32 to vector<196x4xf32>
    %169 = arith.addf %168, %167 : vector<196x4xf32>
    %cst_123 = arith.constant 1.000000e+00 : f32
    %170 = vector.broadcast %cst_123 : f32 to vector<196x4xf32>
    %171 = arith.divf %170, %169 : vector<196x4xf32>
    %c0_124 = arith.constant 0 : index
    %c0_125 = arith.constant 0 : index
    %c0_126 = arith.constant 0 : index
    %172 = vector.load %arg6[%c0_124, %c0_125, %c0_126] : memref<1x196x4xf32, #tpu.memory_space<vmem>>, vector<1x196x4xf32>
    %173 = vector.shape_cast %172 : vector<1x196x4xf32> to vector<196x4xf32>
    %174 = vector.shape_cast %171 : vector<196x4xf32> to vector<1x196x4xf32>
    tpu.vector_store %arg6[%c0_124, %c0_125, %c0_126], %174 {strides = array<i32>} : memref<1x196x4xf32, #tpu.memory_space<vmem>>, vector<1x196x4xf32>,
    return
  }
  func.func @transform_0(%arg0: i32) -> (i32, i32, i32) {
    %c0_i32 = arith.constant 0 : i32
    %c0_i32_0 = arith.constant 0 : i32
    %c0_i32_1 = arith.constant 0 : i32
    return %arg0, %c0_i32, %c0_i32_0 : i32, i32, i32
  }
  func.func @transform_1(%arg0: i32) -> (i32, i32, i32) {
    %c0_i32 = arith.constant 0 : i32
    %c0_i32_0 = arith.constant 0 : i32
    %c0_i32_1 = arith.constant 0 : i32
    %c0_i32_2 = arith.constant 0 : i32
    return %c0_i32, %c0_i32_0, %c0_i32_1 : i32, i32, i32
  }
  func.func @transform_2(%arg0: i32) -> (i32, i32) {
    %c0_i32 = arith.constant 0 : i32
    %c0_i32_0 = arith.constant 0 : i32
    %c0_i32_1 = arith.constant 0 : i32
    return %c0_i32, %c0_i32_0 : i32, i32
  }
  func.func @transform_3(%arg0: i32) -> (i32, i32, i32) {
    %c0_i32 = arith.constant 0 : i32
    %c0_i32_0 = arith.constant 0 : i32
    %c0_i32_1 = arith.constant 0 : i32
    %c0_i32_2 = arith.constant 0 : i32
    return %c0_i32, %c0_i32_0, %c0_i32_1 : i32, i32, i32
  }
  func.func @transform_4(%arg0: i32) -> (i32, i32) {
    %c0_i32 = arith.constant 0 : i32
    %c0_i32_0 = arith.constant 0 : i32
    %c0_i32_1 = arith.constant 0 : i32
    return %c0_i32, %c0_i32_0 : i32, i32
  }
  func.func @transform_5(%arg0: i32) -> (i32, i32, i32) {
    %c0_i32 = arith.constant 0 : i32
    %c0_i32_0 = arith.constant 0 : i32
    %c0_i32_1 = arith.constant 0 : i32
    return %arg0, %c0_i32, %c0_i32_0 : i32, i32, i32
  }
}

</mosaic_0001>

<llo_original>
// kernel: decoder_forward.2
$region0: #{decoder_forward.2}
  #allocation0 [shape = 'u32[]', space=smem, size = 0x4, offset = 0x4, fixed_abs, tag = 'smem constant byte address 0x4 - core index']
  #allocation1 [shape = 'u32[72,128]{1,0:T(1,128)}', space=vmem, size = 0x9000, scoped, tag = 'internal scratch']
  %s0 = inlined_call_operand.vmem [shape: bf16[2,32], index: 0, kind: input, shape index: {}]
  %s1 = inlined_call_operand.hbm [shape: bf16[32,12544], index: 1, kind: input, shape index: {}]
  %s2 = inlined_call_operand.hbm [shape: f32[1,12544], index: 2, kind: input, shape index: {}]
  %s3 = inlined_call_operand.vmem [shape: bf16[2,12544], index: 3, kind: output, shape index: {}]
  %s4 = sld [smem:[#allocation0]]
  $region30: #{decoder_forward.2} parent=0
    _
  %s6 = ssub.s32 1, %s4
  %s7 = scalar_select 0, %s6, %s4
  $region1: #{decoder_forward.2} parent=0
    #allocation2 [shape = 'u8[802816]{0}', space=vmem, size = 0xc4000, scoped, tag = 'input window, operand 1, single buffered']
    #allocation3 [shape = 's32[1]{0}', space=sflag, size = 0x4, scoped, tag = 'scoped memory for decoder_forward.2']
    #allocation4 [shape = 'u8[50176]{0}', space=vmem, size = 0xc400, scoped, tag = 'input window, operand 2, single buffered']
    #allocation5 [shape = 's32[1]{0}', space=sflag, size = 0x4, scoped, tag = 'scoped memory for decoder_forward.2']
    %8 = vsyncpa [#allocation3], 0
    %9 = vsyncpa [#allocation5], 0
    // Predicated region
    $region2: #{decoder_forward.2} parent=1 // pred_check
      _
    $region3: #{decoder_forward.2} parent=1 // pred_check_branch
      %11 = sbr.rel (0) target = $region5
    $region4: #{decoder_forward.2} parent=1 // pred_region
      _
    $region5: #{decoder_forward.2} parent=1 // pred_fallthru
      _
    // Predicated region
    $region6: #{decoder_forward.2} parent=1 // pred_check
      _
    $region7: #{decoder_forward.2} parent=1 // pred_check_branch
      %13 = sbr.rel (0) target = $region9
    $region8: #{decoder_forward.2} parent=1 // pred_region
      %15 = vsyncadd [#allocation3], 0
      %s16 = sshll.u32 %s1, 4
      %s17 = int_to_ptr.hbm [resolvable:$true] %s16
      %s18 = sshll.u32 [#allocation2], 4
      %s19 = int_to_ptr.vmem [resolvable:$true] %s18
      %24 = dma.hbm_to_vmem [thread:$0]  %s17, 25088, %s19, [#allocation3], 6272, 6272, 392
    $region9: #{decoder_forward.2} parent=1 // pred_fallthru
      _
    // Predicated region
    $region10: #{decoder_forward.2} parent=1 // pred_check
      _
    $region11: #{decoder_forward.2} parent=1 // pred_check_branch
      %26 = sbr.rel (0) target = $region13
    $region12: #{decoder_forward.2} parent=1 // pred_region
      %28 = vsyncadd [#allocation5], 0
      %s30 = sshll.u32 %s2, 4
      %s31 = int_to_ptr.hbm [resolvable:$true] %s30
      %s32 = sshll.u32 [#allocation4], 4
      %s33 = int_to_ptr.vmem [resolvable:$true] %s32
      %35 = dma.hbm_to_vmem [thread:$0]  %s31, 1568, %s33, [#allocation5]
    $region13: #{decoder_forward.2} parent=1 // pred_fallthru
      _
    // Predicated region
    $region14: #{decoder_forward.2} parent=1 // pred_check
      _
    $region15: #{decoder_forward.2} parent=1 // pred_check_branch
      %37 = sbr.rel (0) target = $region17
    $region16: #{decoder_forward.2} parent=1 // pred_region
      %39 = dma.done [#allocation3], 25088
    $region17: #{decoder_forward.2} parent=1 // pred_fallthru
      _
    // Predicated region
    $region18: #{decoder_forward.2} parent=1 // pred_check
      _
    $region19: #{decoder_forward.2} parent=1 // pred_check_branch
      %41 = sbr.rel (0) target = $region21
    $region20: #{decoder_forward.2} parent=1 // pred_region
      %43 = dma.done [#allocation5], 1568
    $region21: #{decoder_forward.2} parent=1 // pred_fallthru
      _
    %v45 = vld [vmem:[%s0] sm:$0x1]
    %v46 = vld [vmem:[#allocation2] sm:$0xff]
    %v47 = vld [vmem:[#allocation2 + $0x8] sm:$0xff]
    %v48 = vld [vmem:[#allocation2 + $0x10] sm:$0xff]
    %v49 = vld [vmem:[#allocation2 + $0x18] sm:$0xff]
    %v50 = vld [vmem:[#allocation2 + $0x20] sm:$0xff]
    %v51 = vld [vmem:[#allocation2 + $0x28] sm:$0xff]
    %v52 = vld [vmem:[#allocation2 + $0x30] sm:$0xff]
    %v53 = vld [vmem:[#allocation2 + $0x38] sm:$0xff]
    %v54 = vld [vmem:[#allocation2 + $0x40] sm:$0xff]
    %v55 = vld [vmem:[#allocation2 + $0x48] sm:$0xff]
    %v56 = vld [vmem:[#allocation2 + $0x50] sm:$0xff]
    %v57 = vld [vmem:[#allocation2 + $0x58] sm:$0xff]
    %v58 = vld [vmem:[#allocation2 + $0x60] sm:$0xff]
    %v59 = vld [vmem:[#allocation2 + $0x68] sm:$0xff]
    %v60 = vld [vmem:[#allocation2 + $0x70] sm:$0xff]
    %v61 = vld [vmem:[#allocation2 + $0x78] sm:$0xff]
    %v62 = vld [vmem:[#allocation2 + $0x80] sm:$0xff]
    %v63 = vld [vmem:[#allocation2 + $0x88] sm:$0xff]
    %v64 = vld [vmem:[#allocation2 + $0x90] sm:$0xff]
    %v65 = vld [vmem:[#allocation2 + $0x98] sm:$0xff]
    %v66 = vld [vmem:[#allocation2 + $0xa0] sm:$0xff]
    %v67 = vld [vmem:[#allocation2 + $0xa8] sm:$0xff]
    %v68 = vld [vmem:[#allocation2 + $0xb0] sm:$0xff]
    %v69 = vld [vmem:[#allocation2 + $0xb8] sm:$0xff]
    %v70 = vld [vmem:[#allocation2 + $0xc0] sm:$0xff]
    %v71 = vld [vmem:[#allocation2 + $0xc8] sm:$0xff]
    %v72 = vld [vmem:[#allocation2 + $0xd0] sm:$0xff]
    %v73 = vld [vmem:[#allocation2 + $0xd8] sm:$0xff]
    %v74 = vld [vmem:[#allocation2 + $0xe0] sm:$0xff]
    %v75 = vld [vmem:[#allocation2 + $0xe8] sm:$0xff]
    %v76 = vld [vmem:[#allocation2 + $0xf0] sm:$0xff]
    %v77 = vld [vmem:[#allocation2 + $0xf8] sm:$0xff]
    %v78 = vld [vmem:[#allocation2 + $0x100] sm:$0xff]
    %v79 = vld [vmem:[#allocation2 + $0x108] sm:$0xff]
    %v80 = vld [vmem:[#allocation2 + $0x110] sm:$0xff]
    %v81 = vld [vmem:[#allocation2 + $0x118] sm:$0xff]
    %v82 = vld [vmem:[#allocation2 + $0x120] sm:$0xff]
    %v83 = vld [vmem:[#allocation2 + $0x128] sm:$0xff]
    %v84 = vld [vmem:[#allocation2 + $0x130] sm:$0xff]
    %v85 = vld [vmem:[#allocation2 + $0x138] sm:$0xff]
    %v86 = vld [vmem:[#allocation2 + $0x140] sm:$0xff]
    %v87 = vld [vmem:[#allocation2 + $0x148] sm:$0xff]
    %v88 = vld [vmem:[#allocation2 + $0x150] sm:$0xff]
    %v89 = vld [vmem:[#allocation2 + $0x158] sm:$0xff]
    %v90 = vld [vmem:[#allocation2 + $0x160] sm:$0xff]
    %v91 = vld [vmem:[#allocation2 + $0x168] sm:$0xff]
    %v92 = vld [vmem:[#allocation2 + $0x170] sm:$0xff]
    %v93 = vld [vmem:[#allocation2 + $0x178] sm:$0xff]
    %v94 = vld [vmem:[#allocation2 + $0x180] sm:$0xff]
    %v95 = vld [vmem:[#allocation2 + $0x188] sm:$0xff]
    %v96 = vld [vmem:[#allocation2 + $0x190] sm:$0xff]
    %v97 = vld [vmem:[#allocation2 + $0x198] sm:$0xff]
    %v98 = vld [vmem:[#allocation2 + $0x1a0] sm:$0xff]
    %v99 = vld [vmem:[#allocation2 + $0x1a8] sm:$0xff]
    %v100 = vld [vmem:[#allocation2 + $0x1b0] sm:$0xff]
    %v101 = vld [vmem:[#allocation2 + $0x1b8] sm:$0xff]
    %v102 = vld [vmem:[#allocation2 + $0x1c0] sm:$0xff]
    %v103 = vld [vmem:[#allocation2 + $0x1c8] sm:$0xff]
    %v104 = vld [vmem:[#allocation2 + $0x1d0] sm:$0xff]
    %v105 = vld [vmem:[#allocation2 + $0x1d8] sm:$0xff]
    %v106 = vld [vmem:[#allocation2 + $0x1e0] sm:$0xff]
    %v107 = vld [vmem:[#allocation2 + $0x1e8] sm:$0xff]
    %v108 = vld [vmem:[#allocation2 + $0x1f0] sm:$0xff]
    %v109 = vld [vmem:[#allocation2 + $0x1f8] sm:$0xff]
    %v110 = vld [vmem:[#allocation2 + $0x200] sm:$0xff]
    %v111 = vld [vmem:[#allocation2 + $0x208] sm:$0xff]
    %v112 = vld [vmem:[#allocation2 + $0x210] sm:$0xff]
    %v113 = vld [vmem:[#allocation2 + $0x218] sm:$0xff]
    %v114 = vld [vmem:[#allocation2 + $0x220] sm:$0xff]
    %v115 = vld [vmem:[#allocation2 + $0x228] sm:$0xff]
    %v116 = vld [vmem:[#allocation2 + $0x230] sm:$0xff]
    %v117 = vld [vmem:[#allocation2 + $0x238] sm:$0xff]
    %v118 = vld [vmem:[#allocation2 + $0x240] sm:$0xff]
    %v119 = vld [vmem:[#allocation2 + $0x248] sm:$0xff]
    %v120 = vld [vmem:[#allocation2 + $0x250] sm:$0xff]
    %v121 = vld [vmem:[#allocation2 + $0x258] sm:$0xff]
    %v122 = vld [vmem:[#allocation2 + $0x260] sm:$0xff]
    %v123 = vld [vmem:[#allocation2 + $0x268] sm:$0xff]
    %v124 = vld [vmem:[#allocation2 + $0x270] sm:$0xff]
    %v125 = vld [vmem:[#allocation2 + $0x278] sm:$0xff]
    %v126 = vld [vmem:[#allocation2 + $0x280] sm:$0xff]
    %v127 = vld [vmem:[#allocation2 + $0x288] sm:$0xff]
    %v128 = vld [vmem:[#allocation2 + $0x290] sm:$0xff]
    %v129 = vld [vmem:[#allocation2 + $0x298] sm:$0xff]
    %v130 = vld [vmem:[#allocation2 + $0x2a0] sm:$0xff]
    %v131 = vld [vmem:[#allocation2 + $0x2a8] sm:$0xff]
    %v132 = vld [vmem:[#allocation2 + $0x2b0] sm:$0xff]
    %v133 = vld [vmem:[#allocation2 + $0x2b8] sm:$0xff]
    %v134 = vld [vmem:[#allocation2 + $0x2c0] sm:$0xff]
    %v135 = vld [vmem:[#allocation2 + $0x2c8] sm:$0xff]
    %v136 = vld [vmem:[#allocation2 + $0x2d0] sm:$0xff]
    %v137 = vld [vmem:[#allocation2 + $0x2d8] sm:$0xff]
    %v138 = vld [vmem:[#allocation2 + $0x2e0] sm:$0xff]
    %v139 = vld [vmem:[#allocation2 + $0x2e8] sm:$0xff]
    %v140 = vld [vmem:[#allocation2 + $0x2f0] sm:$0xff]
    %v141 = vld [vmem:[#allocation2 + $0x2f8] sm:$0xff]
    %v142 = vld [vmem:[#allocation2 + $0x300] sm:$0xff]
    %v143 = vld [vmem:[#allocation2 + $0x308] sm:$0xff]
    %v144 = vld [vmem:[#allocation2 + $0x310] sm:$0xff]
    %v145 = vld [vmem:[#allocation2 + $0x318] sm:$0xff]
    %v146 = vld [vmem:[#allocation2 + $0x320] sm:$0xff]
    %v147 = vld [vmem:[#allocation2 + $0x328] sm:$0xff]
    %v148 = vld [vmem:[#allocation2 + $0x330] sm:$0xff]
    %v149 = vld [vmem:[#allocation2 + $0x338] sm:$0xff]
    %v150 = vld [vmem:[#allocation2 + $0x340] sm:$0xff]
    %v151 = vld [vmem:[#allocation2 + $0x348] sm:$0xff]
    %v152 = vld [vmem:[#allocation2 + $0x350] sm:$0xff]
    %v153 = vld [vmem:[#allocation2 + $0x358] sm:$0xff]
    %v154 = vld [vmem:[#allocation2 + $0x360] sm:$0xff]
    %v155 = vld [vmem:[#allocation2 + $0x368] sm:$0xff]
    %v156 = vld [vmem:[#allocation2 + $0x370] sm:$0xff]
    %v157 = vld [vmem:[#allocation2 + $0x378] sm:$0xff]
    %v158 = vld [vmem:[#allocation2 + $0x380] sm:$0xff]
    %v159 = vld [vmem:[#allocation2 + $0x388] sm:$0xff]
    %v160 = vld [vmem:[#allocation2 + $0x390] sm:$0xff]
    %v161 = vld [vmem:[#allocation2 + $0x398] sm:$0xff]
    %v162 = vld [vmem:[#allocation2 + $0x3a0] sm:$0xff]
    %v163 = vld [vmem:[#allocation2 + $0x3a8] sm:$0xff]
    %v164 = vld [vmem:[#allocation2 + $0x3b0] sm:$0xff]
    %v165 = vld [vmem:[#allocation2 + $0x3b8] sm:$0xff]
    %v166 = vld [vmem:[#allocation2 + $0x3c0] sm:$0xff]
    %v167 = vld [vmem:[#allocation2 + $0x3c8] sm:$0xff]
    %v168 = vld [vmem:[#allocation2 + $0x3d0] sm:$0xff]
    %v169 = vld [vmem:[#allocation2 + $0x3d8] sm:$0xff]
    %v170 = vld [vmem:[#allocation2 + $0x3e0] sm:$0xff]
    %v171 = vld [vmem:[#allocation2 + $0x3e8] sm:$0xff]
    %v172 = vld [vmem:[#allocation2 + $0x3f0] sm:$0xff]
    %v173 = vld [vmem:[#allocation2 + $0x3f8] sm:$0xff]
    %v174 = vld [vmem:[#allocation2 + $0x400] sm:$0xff]
    %v175 = vld [vmem:[#allocation2 + $0x408] sm:$0xff]
    %v176 = vld [vmem:[#allocation2 + $0x410] sm:$0xff]
    %v177 = vld [vmem:[#allocation2 + $0x418] sm:$0xff]
    %v178 = vld [vmem:[#allocation2 + $0x420] sm:$0xff]
    %v179 = vld [vmem:[#allocation2 + $0x428] sm:$0xff]
    %v180 = vld [vmem:[#allocation2 + $0x430] sm:$0xff]
    %v181 = vld [vmem:[#allocation2 + $0x438] sm:$0xff]
    %v182 = vld [vmem:[#allocation2 + $0x440] sm:$0xff]
    %v183 = vld [vmem:[#allocation2 + $0x448] sm:$0xff]
    %v184 = vld [vmem:[#allocation2 + $0x450] sm:$0xff]
    %v185 = vld [vmem:[#allocation2 + $0x458] sm:$0xff]
    %v186 = vld [vmem:[#allocation2 + $0x460] sm:$0xff]
    %v187 = vld [vmem:[#allocation2 + $0x468] sm:$0xff]
    %v188 = vld [vmem:[#allocation2 + $0x470] sm:$0xff]
    %v189 = vld [vmem:[#allocation2 + $0x478] sm:$0xff]
    %v190 = vld [vmem:[#allocation2 + $0x480] sm:$0xff]
    %v191 = vld [vmem:[#allocation2 + $0x488] sm:$0xff]
    %v192 = vld [vmem:[#allocation2 + $0x490] sm:$0xff]
    %v193 = vld [vmem:[#allocation2 + $0x498] sm:$0xff]
    %v194 = vld [vmem:[#allocation2 + $0x4a0] sm:$0xff]
    %v195 = vld [vmem:[#allocation2 + $0x4a8] sm:$0xff]
    %v196 = vld [vmem:[#allocation2 + $0x4b0] sm:$0xff]
    %v197 = vld [vmem:[#allocation2 + $0x4b8] sm:$0xff]
    %v198 = vld [vmem:[#allocation2 + $0x4c0] sm:$0xff]
    %v199 = vld [vmem:[#allocation2 + $0x4c8] sm:$0xff]
    %v200 = vld [vmem:[#allocation2 + $0x4d0] sm:$0xff]
    %v201 = vld [vmem:[#allocation2 + $0x4d8] sm:$0xff]
    %v202 = vld [vmem:[#allocation2 + $0x4e0] sm:$0xff]
    %v203 = vld [vmem:[#allocation2 + $0x4e8] sm:$0xff]
    %v204 = vld [vmem:[#allocation2 + $0x4f0] sm:$0xff]
    %v205 = vld [vmem:[#allocation2 + $0x4f8] sm:$0xff]
    %v206 = vld [vmem:[#allocation2 + $0x500] sm:$0xff]
    %v207 = vld [vmem:[#allocation2 + $0x508] sm:$0xff]
    %v208 = vld [vmem:[#allocation2 + $0x510] sm:$0xff]
    %v209 = vld [vmem:[#allocation2 + $0x518] sm:$0xff]
    %v210 = vld [vmem:[#allocation2 + $0x520] sm:$0xff]
    %v211 = vld [vmem:[#allocation2 + $0x528] sm:$0xff]
    %v212 = vld [vmem:[#allocation2 + $0x530] sm:$0xff]
    %v213 = vld [vmem:[#allocation2 + $0x538] sm:$0xff]
    %v214 = vld [vmem:[#allocation2 + $0x540] sm:$0xff]
    %v215 = vld [vmem:[#allocation2 + $0x548] sm:$0xff]
    %v216 = vld [vmem:[#allocation2 + $0x550] sm:$0xff]
    %v217 = vld [vmem:[#allocation2 + $0x558] sm:$0xff]
    %v218 = vld [vmem:[#allocation2 + $0x560] sm:$0xff]
    %v219 = vld [vmem:[#allocation2 + $0x568] sm:$0xff]
    %v220 = vld [vmem:[#allocation2 + $0x570] sm:$0xff]
    %v221 = vld [vmem:[#allocation2 + $0x578] sm:$0xff]
    %v222 = vld [vmem:[#allocation2 + $0x580] sm:$0xff]
    %v223 = vld [vmem:[#allocation2 + $0x588] sm:$0xff]
    %v224 = vld [vmem:[#allocation2 + $0x590] sm:$0xff]
    %v225 = vld [vmem:[#allocation2 + $0x598] sm:$0xff]
    %v226 = vld [vmem:[#allocation2 + $0x5a0] sm:$0xff]
    %v227 = vld [vmem:[#allocation2 + $0x5a8] sm:$0xff]
    %v228 = vld [vmem:[#allocation2 + $0x5b0] sm:$0xff]
    %v229 = vld [vmem:[#allocation2 + $0x5b8] sm:$0xff]
    %v230 = vld [vmem:[#allocation2 + $0x5c0] sm:$0xff]
    %v231 = vld [vmem:[#allocation2 + $0x5c8] sm:$0xff]
    %v232 = vld [vmem:[#allocation2 + $0x5d0] sm:$0xff]
    %v233 = vld [vmem:[#allocation2 + $0x5d8] sm:$0xff]
    %v234 = vld [vmem:[#allocation2 + $0x5e0] sm:$0xff]
    %v235 = vld [vmem:[#allocation2 + $0x5e8] sm:$0xff]
    %v236 = vld [vmem:[#allocation2 + $0x5f0] sm:$0xff]
    %v237 = vld [vmem:[#allocation2 + $0x5f8] sm:$0xff]
    %v238 = vld [vmem:[#allocation2 + $0x600] sm:$0xff]
    %v239 = vld [vmem:[#allocation2 + $0x608] sm:$0xff]
    %v240 = vld [vmem:[#allocation2 + $0x610] sm:$0xff]
    %v241 = vld [vmem:[#allocation2 + $0x618] sm:$0xff]
    %v242 = vld [vmem:[#allocation4] sm:$0xff]
    %v243 = vld [vmem:[#allocation4 + $0x8] sm:$0xff]
    %v244 = vld [vmem:[#allocation4 + $0x10] sm:$0xff]
    %v245 = vld [vmem:[#allocation4 + $0x18] sm:$0xff]
    %v246 = vld [vmem:[#allocation4 + $0x20] sm:$0xff]
    %v247 = vld [vmem:[#allocation4 + $0x28] sm:$0xff]
    %v248 = vld [vmem:[#allocation4 + $0x30] sm:$0xff]
    %v249 = vld [vmem:[#allocation4 + $0x38] sm:$0xff]
    %v250 = vld [vmem:[#allocation4 + $0x40] sm:$0xff]
    %v251 = vld [vmem:[#allocation4 + $0x48] sm:$0xff]
    %v252 = vld [vmem:[#allocation4 + $0x50] sm:$0xff]
    %v253 = vld [vmem:[#allocation4 + $0x58] sm:$0xff]
    %v254 = vld [vmem:[#allocation4 + $0x60] sm:$0x3]
    %v268 = vperm.slane %v242, 0
    %v269 = vperm.slane %v242, 1
    %v270 = vperm.slane %v242, 2
    %v271 = vperm.slane %v242, 3
    %v272 = vperm.slane %v242, 4
    %v273 = vperm.slane %v242, 5
    %v274 = vperm.slane %v242, 6
    %v275 = vperm.slane %v242, 7
    %v276 = vperm.slane %v243, 0
    %v277 = vperm.slane %v243, 1
    %v278 = vperm.slane %v243, 2
    %v279 = vperm.slane %v243, 3
    %v280 = vperm.slane %v243, 4
    %v281 = vperm.slane %v243, 5
    %v282 = vperm.slane %v243, 6
    %v283 = vperm.slane %v243, 7
    %v284 = vperm.slane %v244, 0
    %v285 = vperm.slane %v244, 1
    %v286 = vperm.slane %v244, 2
    %v287 = vperm.slane %v244, 3
    %v288 = vperm.slane %v244, 4
    %v289 = vperm.slane %v244, 5
    %v290 = vperm.slane %v244, 6
    %v291 = vperm.slane %v244, 7
    %v292 = vperm.slane %v245, 0
    %v293 = vperm.slane %v245, 1
    %v294 = vperm.slane %v245, 2
    %v295 = vperm.slane %v245, 3
    %v296 = vperm.slane %v245, 4
    %v297 = vperm.slane %v245, 5
    %v298 = vperm.slane %v245, 6
    %v299 = vperm.slane %v245, 7
    %v300 = vperm.slane %v246, 0
    %v301 = vperm.slane %v246, 1
    %v302 = vperm.slane %v246, 2
    %v303 = vperm.slane %v246, 3
    %v304 = vperm.slane %v246, 4
    %v305 = vperm.slane %v246, 5
    %v306 = vperm.slane %v246, 6
    %v307 = vperm.slane %v246, 7
    %v308 = vperm.slane %v247, 0
    %v309 = vperm.slane %v247, 1
    %v310 = vperm.slane %v247, 2
    %v311 = vperm.slane %v247, 3
    %v312 = vperm.slane %v247, 4
    %v313 = vperm.slane %v247, 5
    %v314 = vperm.slane %v247, 6
    %v315 = vperm.slane %v247, 7
    %v316 = vperm.slane %v248, 0
    %v317 = vperm.slane %v248, 1
    %v318 = vperm.slane %v248, 2
    %v319 = vperm.slane %v248, 3
    %v320 = vperm.slane %v248, 4
    %v321 = vperm.slane %v248, 5
    %v322 = vperm.slane %v248, 6
    %v323 = vperm.slane %v248, 7
    %v324 = vperm.slane %v249, 0
    %v325 = vperm.slane %v249, 1
    %v326 = vperm.slane %v249, 2
    %v327 = vperm.slane %v249, 3
    %v328 = vperm.slane %v249, 4
    %v329 = vperm.slane %v249, 5
    %v330 = vperm.slane %v249, 6
    %v331 = vperm.slane %v249, 7
    %v332 = vperm.slane %v250, 0
    %v333 = vperm.slane %v250, 1
    %v334 = vperm.slane %v250, 2
    %v335 = vperm.slane %v250, 3
    %v336 = vperm.slane %v250, 4
    %v337 = vperm.slane %v250, 5
    %v338 = vperm.slane %v250, 6
    %v339 = vperm.slane %v250, 7
    %v340 = vperm.slane %v251, 0
    %v341 = vperm.slane %v251, 1
    %v342 = vperm.slane %v251, 2
    %v343 = vperm.slane %v251, 3
    %v344 = vperm.slane %v251, 4
    %v345 = vperm.slane %v251, 5
    %v346 = vperm.slane %v251, 6
    %v347 = vperm.slane %v251, 7
    %v348 = vperm.slane %v252, 0
    %v349 = vperm.slane %v252, 1
    %v350 = vperm.slane %v252, 2
    %v351 = vperm.slane %v252, 3
    %v352 = vperm.slane %v252, 4
    %v353 = vperm.slane %v252, 5
    %v354 = vperm.slane %v252, 6
    %v355 = vperm.slane %v252, 7
    %v356 = vperm.slane %v253, 0
    %v357 = vperm.slane %v253, 1
    %v358 = vperm.slane %v253, 2
    %v359 = vperm.slane %v253, 3
    %v360 = vperm.slane %v253, 4
    %v361 = vperm.slane %v253, 5
    %v362 = vperm.slane %v253, 6
    %v363 = vperm.slane %v253, 7
    %v364 = vperm.slane %v254, 0
    %v365 = vperm.slane %v254, 1
    %v660 = vunpack.c.l.b16 %v46
    %v661 = vunpack.c.h.b16 %v46
    %v662 = vunpack.c.l.b16 %v47
    %v663 = vunpack.c.h.b16 %v47
    %v664 = vunpack.c.l.b16 %v48
    %v665 = vunpack.c.h.b16 %v48
    %v666 = vunpack.c.l.b16 %v49
    %v667 = vunpack.c.h.b16 %v49
    %v668 = vunpack.c.l.b16 %v50
    %v669 = vunpack.c.h.b16 %v50
    %v670 = vunpack.c.l.b16 %v51
    %v671 = vunpack.c.h.b16 %v51
    %v672 = vunpack.c.l.b16 %v52
    %v673 = vunpack.c.h.b16 %v52
    %v674 = vunpack.c.l.b16 %v53
    %v675 = vunpack.c.h.b16 %v53
    %v676 = vunpack.c.l.b16 %v54
    %v677 = vunpack.c.h.b16 %v54
    %v678 = vunpack.c.l.b16 %v55
    %v679 = vunpack.c.h.b16 %v55
    %v680 = vunpack.c.l.b16 %v56
    %v681 = vunpack.c.h.b16 %v56
    %v682 = vunpack.c.l.b16 %v57
    %v683 = vunpack.c.h.b16 %v57
    %v684 = vunpack.c.l.b16 %v58
    %v685 = vunpack.c.h.b16 %v58
    %v686 = vunpack.c.l.b16 %v59
    %v687 = vunpack.c.h.b16 %v59
    %v688 = vunpack.c.l.b16 %v60
    %v689 = vunpack.c.h.b16 %v60
    %v690 = vunpack.c.l.b16 %v61
    %v691 = vunpack.c.h.b16 %v61
    %v692 = vunpack.c.l.b16 %v62
    %v693 = vunpack.c.h.b16 %v62
    %v694 = vunpack.c.l.b16 %v63
    %v695 = vunpack.c.h.b16 %v63
    %v696 = vunpack.c.l.b16 %v64
    %v697 = vunpack.c.h.b16 %v64
    %v698 = vunpack.c.l.b16 %v65
    %v699 = vunpack.c.h.b16 %v65
    %v700 = vunpack.c.l.b16 %v66
    %v701 = vunpack.c.h.b16 %v66
    %v702 = vunpack.c.l.b16 %v67
    %v703 = vunpack.c.h.b16 %v67
    %v704 = vunpack.c.l.b16 %v68
    %v705 = vunpack.c.h.b16 %v68
    %v706 = vunpack.c.l.b16 %v69
    %v707 = vunpack.c.h.b16 %v69
    %v708 = vunpack.c.l.b16 %v70
    %v709 = vunpack.c.h.b16 %v70
    %v710 = vunpack.c.l.b16 %v71
    %v711 = vunpack.c.h.b16 %v71
    %v712 = vunpack.c.l.b16 %v72
    %v713 = vunpack.c.h.b16 %v72
    %v714 = vunpack.c.l.b16 %v73
    %v715 = vunpack.c.h.b16 %v73
    %v716 = vunpack.c.l.b16 %v74
    %v717 = vunpack.c.h.b16 %v74
    %v718 = vunpack.c.l.b16 %v75
    %v719 = vunpack.c.h.b16 %v75
    %v720 = vunpack.c.l.b16 %v76
    %v721 = vunpack.c.h.b16 %v76
    %v722 = vunpack.c.l.b16 %v77
    %v723 = vunpack.c.h.b16 %v77
    %v724 = vunpack.c.l.b16 %v78
    %v725 = vunpack.c.h.b16 %v78
    %v726 = vunpack.c.l.b16 %v79
    %v727 = vunpack.c.h.b16 %v79
    %v728 = vunpack.c.l.b16 %v80
    %v729 = vunpack.c.h.b16 %v80
    %v730 = vunpack.c.l.b16 %v81
    %v731 = vunpack.c.h.b16 %v81
    %v732 = vunpack.c.l.b16 %v82
    %v733 = vunpack.c.h.b16 %v82
    %v734 = vunpack.c.l.b16 %v83
    %v735 = vunpack.c.h.b16 %v83
    %v736 = vunpack.c.l.b16 %v84
    %v737 = vunpack.c.h.b16 %v84
    %v738 = vunpack.c.l.b16 %v85
    %v739 = vunpack.c.h.b16 %v85
    %v740 = vunpack.c.l.b16 %v86
    %v741 = vunpack.c.h.b16 %v86
    %v742 = vunpack.c.l.b16 %v87
    %v743 = vunpack.c.h.b16 %v87
    %v744 = vunpack.c.l.b16 %v88
    %v745 = vunpack.c.h.b16 %v88
    %v746 = vunpack.c.l.b16 %v89
    %v747 = vunpack.c.h.b16 %v89
    %v748 = vunpack.c.l.b16 %v90
    %v749 = vunpack.c.h.b16 %v90
    %v750 = vunpack.c.l.b16 %v91
    %v751 = vunpack.c.h.b16 %v91
    %v752 = vunpack.c.l.b16 %v92
    %v753 = vunpack.c.h.b16 %v92
    %v754 = vunpack.c.l.b16 %v93
    %v755 = vunpack.c.h.b16 %v93
    %v756 = vunpack.c.l.b16 %v94
    %v757 = vunpack.c.h.b16 %v94
    %v758 = vunpack.c.l.b16 %v95
    %v759 = vunpack.c.h.b16 %v95
    %v760 = vunpack.c.l.b16 %v96
    %v761 = vunpack.c.h.b16 %v96
    %v762 = vunpack.c.l.b16 %v97
    %v763 = vunpack.c.h.b16 %v97
    %v764 = vunpack.c.l.b16 %v98
    %v765 = vunpack.c.h.b16 %v98
    %v766 = vunpack.c.l.b16 %v99
    %v767 = vunpack.c.h.b16 %v99
    %v768 = vunpack.c.l.b16 %v100
    %v769 = vunpack.c.h.b16 %v100
    %v770 = vunpack.c.l.b16 %v101
    %v771 = vunpack.c.h.b16 %v101
    %v772 = vunpack.c.l.b16 %v102
    %v773 = vunpack.c.h.b16 %v102
    %v774 = vunpack.c.l.b16 %v103
    %v775 = vunpack.c.h.b16 %v103
    %v776 = vunpack.c.l.b16 %v104
    %v777 = vunpack.c.h.b16 %v104
    %v778 = vunpack.c.l.b16 %v105
    %v779 = vunpack.c.h.b16 %v105
    %v780 = vunpack.c.l.b16 %v106
    %v781 = vunpack.c.h.b16 %v106
    %v782 = vunpack.c.l.b16 %v107
    %v783 = vunpack.c.h.b16 %v107
    %v784 = vunpack.c.l.b16 %v108
    %v785 = vunpack.c.h.b16 %v108
    %v786 = vunpack.c.l.b16 %v109
    %v787 = vunpack.c.h.b16 %v109
    %v788 = vunpack.c.l.b16 %v110
    %v789 = vunpack.c.h.b16 %v110
    %v790 = vunpack.c.l.b16 %v111
    %v791 = vunpack.c.h.b16 %v111
    %v792 = vunpack.c.l.b16 %v112
    %v793 = vunpack.c.h.b16 %v112
    %v794 = vunpack.c.l.b16 %v113
    %v795 = vunpack.c.h.b16 %v113
    %v796 = vunpack.c.l.b16 %v114
    %v797 = vunpack.c.h.b16 %v114
    %v798 = vunpack.c.l.b16 %v115
    %v799 = vunpack.c.h.b16 %v115
    %v800 = vunpack.c.l.b16 %v116
    %v801 = vunpack.c.h.b16 %v116
    %v802 = vunpack.c.l.b16 %v117
    %v803 = vunpack.c.h.b16 %v117
    %v804 = vunpack.c.l.b16 %v118
    %v805 = vunpack.c.h.b16 %v118
    %v806 = vunpack.c.l.b16 %v119
    %v807 = vunpack.c.h.b16 %v119
    %v808 = vunpack.c.l.b16 %v120
    %v809 = vunpack.c.h.b16 %v120
    %v810 = vunpack.c.l.b16 %v121
    %v811 = vunpack.c.h.b16 %v121
    %v812 = vunpack.c.l.b16 %v122
    %v813 = vunpack.c.h.b16 %v122
    %v814 = vunpack.c.l.b16 %v123
    %v815 = vunpack.c.h.b16 %v123
    %v816 = vunpack.c.l.b16 %v124
    %v817 = vunpack.c.h.b16 %v124
    %v818 = vunpack.c.l.b16 %v125
    %v819 = vunpack.c.h.b16 %v125
    %v820 = vunpack.c.l.b16 %v126
    %v821 = vunpack.c.h.b16 %v126
    %v822 = vunpack.c.l.b16 %v127
    %v823 = vunpack.c.h.b16 %v127
    %v824 = vunpack.c.l.b16 %v128
    %v825 = vunpack.c.h.b16 %v128
    %v826 = vunpack.c.l.b16 %v129
    %v827 = vunpack.c.h.b16 %v129
    %v828 = vunpack.c.l.b16 %v130
    %v829 = vunpack.c.h.b16 %v130
    %v830 = vunpack.c.l.b16 %v131
    %v831 = vunpack.c.h.b16 %v131
    %v832 = vunpack.c.l.b16 %v132
    %v833 = vunpack.c.h.b16 %v132
    %v834 = vunpack.c.l.b16 %v133
    %v835 = vunpack.c.h.b16 %v133
    %v836 = vunpack.c.l.b16 %v134
    %v837 = vunpack.c.h.b16 %v134
    %v838 = vunpack.c.l.b16 %v135
    %v839 = vunpack.c.h.b16 %v135
    %v840 = vunpack.c.l.b16 %v136
    %v841 = vunpack.c.h.b16 %v136
    %v842 = vunpack.c.l.b16 %v137
    %v843 = vunpack.c.h.b16 %v137
    %v844 = vunpack.c.l.b16 %v138
    %v845 = vunpack.c.h.b16 %v138
    %v846 = vunpack.c.l.b16 %v139
    %v847 = vunpack.c.h.b16 %v139
    %v848 = vunpack.c.l.b16 %v140
    %v849 = vunpack.c.h.b16 %v140
    %v850 = vunpack.c.l.b16 %v141
    %v851 = vunpack.c.h.b16 %v141
    %v852 = vunpack.c.l.b16 %v142
    %v853 = vunpack.c.h.b16 %v142
    %v854 = vunpack.c.l.b16 %v143
    %v855 = vunpack.c.h.b16 %v143
    %v856 = vunpack.c.l.b16 %v144
    %v857 = vunpack.c.h.b16 %v144
    %v858 = vunpack.c.l.b16 %v145
    %v859 = vunpack.c.h.b16 %v145
    %v860 = vunpack.c.l.b16 %v146
    %v861 = vunpack.c.h.b16 %v146
    %v862 = vunpack.c.l.b16 %v147
    %v863 = vunpack.c.h.b16 %v147
    %v864 = vunpack.c.l.b16 %v148
    %v865 = vunpack.c.h.b16 %v148
    %v866 = vunpack.c.l.b16 %v149
    %v867 = vunpack.c.h.b16 %v149
    %v868 = vunpack.c.l.b16 %v150
    %v869 = vunpack.c.h.b16 %v150
    %v870 = vunpack.c.l.b16 %v151
    %v871 = vunpack.c.h.b16 %v151
    %v872 = vunpack.c.l.b16 %v152
    %v873 = vunpack.c.h.b16 %v152
    %v874 = vunpack.c.l.b16 %v153
    %v875 = vunpack.c.h.b16 %v153
    %v876 = vunpack.c.l.b16 %v154
    %v877 = vunpack.c.h.b16 %v154
    %v878 = vunpack.c.l.b16 %v155
    %v879 = vunpack.c.h.b16 %v155
    %v880 = vunpack.c.l.b16 %v156
    %v881 = vunpack.c.h.b16 %v156
    %v882 = vunpack.c.l.b16 %v157
    %v883 = vunpack.c.h.b16 %v157
    %v884 = vunpack.c.l.b16 %v158
    %v885 = vunpack.c.h.b16 %v158
    %v886 = vunpack.c.l.b16 %v159
    %v887 = vunpack.c.h.b16 %v159
    %v888 = vunpack.c.l.b16 %v160
    %v889 = vunpack.c.h.b16 %v160
    %v890 = vunpack.c.l.b16 %v161
    %v891 = vunpack.c.h.b16 %v161
    %v892 = vunpack.c.l.b16 %v162
    %v893 = vunpack.c.h.b16 %v162
    %v894 = vunpack.c.l.b16 %v163
    %v895 = vunpack.c.h.b16 %v163
    %v896 = vunpack.c.l.b16 %v164
    %v897 = vunpack.c.h.b16 %v164
    %v898 = vunpack.c.l.b16 %v165
    %v899 = vunpack.c.h.b16 %v165
    %v900 = vunpack.c.l.b16 %v166
    %v901 = vunpack.c.h.b16 %v166
    %v902 = vunpack.c.l.b16 %v167
    %v903 = vunpack.c.h.b16 %v167
    %v904 = vunpack.c.l.b16 %v168
    %v905 = vunpack.c.h.b16 %v168
    %v906 = vunpack.c.l.b16 %v169
    %v907 = vunpack.c.h.b16 %v169
    %v908 = vunpack.c.l.b16 %v170
    %v909 = vunpack.c.h.b16 %v170
    %v910 = vunpack.c.l.b16 %v171
    %v911 = vunpack.c.h.b16 %v171
    %v912 = vunpack.c.l.b16 %v172
    %v913 = vunpack.c.h.b16 %v172
    %v914 = vunpack.c.l.b16 %v173
    %v915 = vunpack.c.h.b16 %v173
    %v916 = vunpack.c.l.b16 %v174
    %v917 = vunpack.c.h.b16 %v174
    %v918 = vunpack.c.l.b16 %v175
    %v919 = vunpack.c.h.b16 %v175
    %v920 = vunpack.c.l.b16 %v176
    %v921 = vunpack.c.h.b16 %v176
    %v922 = vunpack.c.l.b16 %v177
    %v923 = vunpack.c.h.b16 %v177
    %v924 = vunpack.c.l.b16 %v178
    %v925 = vunpack.c.h.b16 %v178
    %v926 = vunpack.c.l.b16 %v179
    %v927 = vunpack.c.h.b16 %v179
    %v928 = vunpack.c.l.b16 %v180
    %v929 = vunpack.c.h.b16 %v180
    %v930 = vunpack.c.l.b16 %v181
    %v931 = vunpack.c.h.b16 %v181
    %v932 = vunpack.c.l.b16 %v182
    %v933 = vunpack.c.h.b16 %v182
    %v934 = vunpack.c.l.b16 %v183
    %v935 = vunpack.c.h.b16 %v183
    %v936 = vunpack.c.l.b16 %v184
    %v937 = vunpack.c.h.b16 %v184
    %v938 = vunpack.c.l.b16 %v185
    %v939 = vunpack.c.h.b16 %v185
    %v940 = vunpack.c.l.b16 %v186
    %v941 = vunpack.c.h.b16 %v186
    %v942 = vunpack.c.l.b16 %v187
    %v943 = vunpack.c.h.b16 %v187
    %v944 = vunpack.c.l.b16 %v188
    %v945 = vunpack.c.h.b16 %v188
    %v946 = vunpack.c.l.b16 %v189
    %v947 = vunpack.c.h.b16 %v189
    %v948 = vunpack.c.l.b16 %v190
    %v949 = vunpack.c.h.b16 %v190
    %v950 = vunpack.c.l.b16 %v191
    %v951 = vunpack.c.h.b16 %v191
    %v952 = vunpack.c.l.b16 %v192
    %v953 = vunpack.c.h.b16 %v192
    %v954 = vunpack.c.l.b16 %v193
    %v955 = vunpack.c.h.b16 %v193
    %v956 = vunpack.c.l.b16 %v194
    %v957 = vunpack.c.h.b16 %v194
    %v958 = vunpack.c.l.b16 %v195
    %v959 = vunpack.c.h.b16 %v195
    %v960 = vunpack.c.l.b16 %v196
    %v961 = vunpack.c.h.b16 %v196
    %v962 = vunpack.c.l.b16 %v197
    %v963 = vunpack.c.h.b16 %v197
    %v964 = vunpack.c.l.b16 %v198
    %v965 = vunpack.c.h.b16 %v198
    %v966 = vunpack.c.l.b16 %v199
    %v967 = vunpack.c.h.b16 %v199
    %v968 = vunpack.c.l.b16 %v200
    %v969 = vunpack.c.h.b16 %v200
    %v970 = vunpack.c.l.b16 %v201
    %v971 = vunpack.c.h.b16 %v201
    %v972 = vunpack.c.l.b16 %v202
    %v973 = vunpack.c.h.b16 %v202
    %v974 = vunpack.c.l.b16 %v203
    %v975 = vunpack.c.h.b16 %v203
    %v976 = vunpack.c.l.b16 %v204
    %v977 = vunpack.c.h.b16 %v204
    %v978 = vunpack.c.l.b16 %v205
    %v979 = vunpack.c.h.b16 %v205
    %v980 = vunpack.c.l.b16 %v206
    %v981 = vunpack.c.h.b16 %v206
    %v982 = vunpack.c.l.b16 %v207
    %v983 = vunpack.c.h.b16 %v207
    %v984 = vunpack.c.l.b16 %v208
    %v985 = vunpack.c.h.b16 %v208
    %v986 = vunpack.c.l.b16 %v209
    %v987 = vunpack.c.h.b16 %v209
    %v988 = vunpack.c.l.b16 %v210
    %v989 = vunpack.c.h.b16 %v210
    %v990 = vunpack.c.l.b16 %v211
    %v991 = vunpack.c.h.b16 %v211
    %v992 = vunpack.c.l.b16 %v212
    %v993 = vunpack.c.h.b16 %v212
    %v994 = vunpack.c.l.b16 %v213
    %v995 = vunpack.c.h.b16 %v213
    %v996 = vunpack.c.l.b16 %v214
    %v997 = vunpack.c.h.b16 %v214
    %v998 = vunpack.c.l.b16 %v215
    %v999 = vunpack.c.h.b16 %v215
    %v1000 = vunpack.c.l.b16 %v216
    %v1001 = vunpack.c.h.b16 %v216
    %v1002 = vunpack.c.l.b16 %v217
    %v1003 = vunpack.c.h.b16 %v217
    %v1004 = vunpack.c.l.b16 %v218
    %v1005 = vunpack.c.h.b16 %v218
    %v1006 = vunpack.c.l.b16 %v219
    %v1007 = vunpack.c.h.b16 %v219
    %v1008 = vunpack.c.l.b16 %v220
    %v1009 = vunpack.c.h.b16 %v220
    %v1010 = vunpack.c.l.b16 %v221
    %v1011 = vunpack.c.h.b16 %v221
    %v1012 = vunpack.c.l.b16 %v222
    %v1013 = vunpack.c.h.b16 %v222
    %v1014 = vunpack.c.l.b16 %v223
    %v1015 = vunpack.c.h.b16 %v223
    %v1016 = vunpack.c.l.b16 %v224
    %v1017 = vunpack.c.h.b16 %v224
    %v1018 = vunpack.c.l.b16 %v225
    %v1019 = vunpack.c.h.b16 %v225
    %v1020 = vunpack.c.l.b16 %v226
    %v1021 = vunpack.c.h.b16 %v226
    %v1022 = vunpack.c.l.b16 %v227
    %v1023 = vunpack.c.h.b16 %v227
    %v1024 = vunpack.c.l.b16 %v228
    %v1025 = vunpack.c.h.b16 %v228
    %v1026 = vunpack.c.l.b16 %v229
    %v1027 = vunpack.c.h.b16 %v229
    %v1028 = vunpack.c.l.b16 %v230
    %v1029 = vunpack.c.h.b16 %v230
    %v1030 = vunpack.c.l.b16 %v231
    %v1031 = vunpack.c.h.b16 %v231
    %v1032 = vunpack.c.l.b16 %v232
    %v1033 = vunpack.c.h.b16 %v232
    %v1034 = vunpack.c.l.b16 %v233
    %v1035 = vunpack.c.h.b16 %v233
    %v1036 = vunpack.c.l.b16 %v234
    %v1037 = vunpack.c.h.b16 %v234
    %v1038 = vunpack.c.l.b16 %v235
    %v1039 = vunpack.c.h.b16 %v235
    %v1040 = vunpack.c.l.b16 %v236
    %v1041 = vunpack.c.h.b16 %v236
    %v1042 = vunpack.c.l.b16 %v237
    %v1043 = vunpack.c.h.b16 %v237
    %v1044 = vunpack.c.l.b16 %v238
    %v1045 = vunpack.c.h.b16 %v238
    %v1046 = vunpack.c.l.b16 %v239
    %v1047 = vunpack.c.h.b16 %v239
    %v1048 = vunpack.c.l.b16 %v240
    %v1049 = vunpack.c.h.b16 %v240
    %v1050 = vunpack.c.l.b16 %v241
    %v1051 = vunpack.c.h.b16 %v241
    %v1052 = vpack.c.b16 %v758, %v660
    %v1053 = vpack.c.b16 %v759, %v661
    %v1054 = vpack.c.b16 %v760, %v662
    %v1055 = vpack.c.b16 %v761, %v663
    %v1056 = vpack.c.b16 %v762, %v664
    %v1057 = vpack.c.b16 %v763, %v665
    %v1058 = vpack.c.b16 %v764, %v666
    %v1059 = vpack.c.b16 %v765, %v667
    %v1060 = vpack.c.b16 %v766, %v668
    %v1061 = vpack.c.b16 %v767, %v669
    %v1062 = vpack.c.b16 %v768, %v670
    %v1063 = vpack.c.b16 %v769, %v671
    %v1064 = vpack.c.b16 %v770, %v672
    %v1065 = vpack.c.b16 %v771, %v673
    %v1066 = vpack.c.b16 %v772, %v674
    %v1067 = vpack.c.b16 %v773, %v675
    %v1068 = vpack.c.b16 %v774, %v676
    %v1069 = vpack.c.b16 %v775, %v677
    %v1070 = vpack.c.b16 %v776, %v678
    %v1071 = vpack.c.b16 %v777, %v679
    %v1072 = vpack.c.b16 %v778, %v680
    %v1073 = vpack.c.b16 %v779, %v681
    %v1074 = vpack.c.b16 %v780, %v682
    %v1075 = vpack.c.b16 %v781, %v683
    %v1076 = vpack.c.b16 %v782, %v684
    %v1077 = vpack.c.b16 %v783, %v685
    %v1078 = vpack.c.b16 %v784, %v686
    %v1079 = vpack.c.b16 %v785, %v687
    %v1080 = vpack.c.b16 %v786, %v688
    %v1081 = vpack.c.b16 %v787, %v689
    %v1082 = vpack.c.b16 %v788, %v690
    %v1083 = vpack.c.b16 %v789, %v691
    %v1084 = vpack.c.b16 %v790, %v692
    %v1085 = vpack.c.b16 %v791, %v693
    %v1086 = vpack.c.b16 %v792, %v694
    %v1087 = vpack.c.b16 %v793, %v695
    %v1088 = vpack.c.b16 %v794, %v696
    %v1089 = vpack.c.b16 %v795, %v697
    %v1090 = vpack.c.b16 %v796, %v698
    %v1091 = vpack.c.b16 %v797, %v699
    %v1092 = vpack.c.b16 %v798, %v700
    %v1093 = vpack.c.b16 %v799, %v701
    %v1094 = vpack.c.b16 %v800, %v702
    %v1095 = vpack.c.b16 %v801, %v703
    %v1096 = vpack.c.b16 %v802, %v704
    %v1097 = vpack.c.b16 %v803, %v705
    %v1098 = vpack.c.b16 %v804, %v706
    %v1099 = vpack.c.b16 %v805, %v707
    %v1100 = vpack.c.b16 %v806, %v708
    %v1101 = vpack.c.b16 %v807, %v709
    %v1102 = vpack.c.b16 %v808, %v710
    %v1103 = vpack.c.b16 %v809, %v711
    %v1104 = vpack.c.b16 %v810, %v712
    %v1105 = vpack.c.b16 %v811, %v713
    %v1106 = vpack.c.b16 %v812, %v714
    %v1107 = vpack.c.b16 %v813, %v715
    %v1108 = vpack.c.b16 %v814, %v716
    %v1109 = vpack.c.b16 %v815, %v717
    %v1110 = vpack.c.b16 %v816, %v718
    %v1111 = vpack.c.b16 %v817, %v719
    %v1112 = vpack.c.b16 %v818, %v720
    %v1113 = vpack.c.b16 %v819, %v721
    %v1114 = vpack.c.b16 %v820, %v722
    %v1115 = vpack.c.b16 %v821, %v723
    %v1116 = vpack.c.b16 %v822, %v724
    %v1117 = vpack.c.b16 %v823, %v725
    %v1118 = vpack.c.b16 %v824, %v726
    %v1119 = vpack.c.b16 %v825, %v727
    %v1120 = vpack.c.b16 %v826, %v728
    %v1121 = vpack.c.b16 %v827, %v729
    %v1122 = vpack.c.b16 %v828, %v730
    %v1123 = vpack.c.b16 %v829, %v731
    %v1124 = vpack.c.b16 %v830, %v732
    %v1125 = vpack.c.b16 %v831, %v733
    %v1126 = vpack.c.b16 %v832, %v734
    %v1127 = vpack.c.b16 %v833, %v735
    %v1128 = vpack.c.b16 %v834, %v736
    %v1129 = vpack.c.b16 %v835, %v737
    %v1130 = vpack.c.b16 %v836, %v738
    %v1131 = vpack.c.b16 %v837, %v739
    %v1132 = vpack.c.b16 %v838, %v740
    %v1133 = vpack.c.b16 %v839, %v741
    %v1134 = vpack.c.b16 %v840, %v742
    %v1135 = vpack.c.b16 %v841, %v743
    %v1136 = vpack.c.b16 %v842, %v744
    %v1137 = vpack.c.b16 %v843, %v745
    %v1138 = vpack.c.b16 %v844, %v746
    %v1139 = vpack.c.b16 %v845, %v747
    %v1140 = vpack.c.b16 %v846, %v748
    %v1141 = vpack.c.b16 %v847, %v749
    %v1142 = vpack.c.b16 %v848, %v750
    %v1143 = vpack.c.b16 %v849, %v751
    %v1144 = vpack.c.b16 %v850, %v752
    %v1145 = vpack.c.b16 %v851, %v753
    %v1146 = vpack.c.b16 %v852, %v754
    %v1147 = vpack.c.b16 %v853, %v755
    %v1148 = vpack.c.b16 %v854, %v756
    %v1149 = vpack.c.b16 %v855, %v757
    %v1150 = vpack.c.b16 %v954, %v856
    %v1151 = vpack.c.b16 %v955, %v857
    %v1152 = vpack.c.b16 %v956, %v858
    %v1153 = vpack.c.b16 %v957, %v859
    %v1154 = vpack.c.b16 %v958, %v860
    %v1155 = vpack.c.b16 %v959, %v861
    %v1156 = vpack.c.b16 %v960, %v862
    %v1157 = vpack.c.b16 %v961, %v863
    %v1158 = vpack.c.b16 %v962, %v864
    %v1159 = vpack.c.b16 %v963, %v865
    %v1160 = vpack.c.b16 %v964, %v866
    %v1161 = vpack.c.b16 %v965, %v867
    %v1162 = vpack.c.b16 %v966, %v868
    %v1163 = vpack.c.b16 %v967, %v869
    %v1164 = vpack.c.b16 %v968, %v870
    %v1165 = vpack.c.b16 %v969, %v871
    %v1166 = vpack.c.b16 %v970, %v872
    %v1167 = vpack.c.b16 %v971, %v873
    %v1168 = vpack.c.b16 %v972, %v874
    %v1169 = vpack.c.b16 %v973, %v875
    %v1170 = vpack.c.b16 %v974, %v876
    %v1171 = vpack.c.b16 %v975, %v877
    %v1172 = vpack.c.b16 %v976, %v878
    %v1173 = vpack.c.b16 %v977, %v879
    %v1174 = vpack.c.b16 %v978, %v880
    %v1175 = vpack.c.b16 %v979, %v881
    %v1176 = vpack.c.b16 %v980, %v882
    %v1177 = vpack.c.b16 %v981, %v883
    %v1178 = vpack.c.b16 %v982, %v884
    %v1179 = vpack.c.b16 %v983, %v885
    %v1180 = vpack.c.b16 %v984, %v886
    %v1181 = vpack.c.b16 %v985, %v887
    %v1182 = vpack.c.b16 %v986, %v888
    %v1183 = vpack.c.b16 %v987, %v889
    %v1184 = vpack.c.b16 %v988, %v890
    %v1185 = vpack.c.b16 %v989, %v891
    %v1186 = vpack.c.b16 %v990, %v892
    %v1187 = vpack.c.b16 %v991, %v893
    %v1188 = vpack.c.b16 %v992, %v894
    %v1189 = vpack.c.b16 %v993, %v895
    %v1190 = vpack.c.b16 %v994, %v896
    %v1191 = vpack.c.b16 %v995, %v897
    %v1192 = vpack.c.b16 %v996, %v898
    %v1193 = vpack.c.b16 %v997, %v899
    %v1194 = vpack.c.b16 %v998, %v900
    %v1195 = vpack.c.b16 %v999, %v901
    %v1196 = vpack.c.b16 %v1000, %v902
    %v1197 = vpack.c.b16 %v1001, %v903
    %v1198 = vpack.c.b16 %v1002, %v904
    %v1199 = vpack.c.b16 %v1003, %v905
    %v1200 = vpack.c.b16 %v1004, %v906
    %v1201 = vpack.c.b16 %v1005, %v907
    %v1202 = vpack.c.b16 %v1006, %v908
    %v1203 = vpack.c.b16 %v1007, %v909
    %v1204 = vpack.c.b16 %v1008, %v910
    %v1205 = vpack.c.b16 %v1009, %v911
    %v1206 = vpack.c.b16 %v1010, %v912
    %v1207 = vpack.c.b16 %v1011, %v913
    %v1208 = vpack.c.b16 %v1012, %v914
    %v1209 = vpack.c.b16 %v1013, %v915
    %v1210 = vpack.c.b16 %v1014, %v916
    %v1211 = vpack.c.b16 %v1015, %v917
    %v1212 = vpack.c.b16 %v1016, %v918
    %v1213 = vpack.c.b16 %v1017, %v919
    %v1214 = vpack.c.b16 %v1018, %v920
    %v1215 = vpack.c.b16 %v1019, %v921
    %v1216 = vpack.c.b16 %v1020, %v922
    %v1217 = vpack.c.b16 %v1021, %v923
    %v1218 = vpack.c.b16 %v1022, %v924
    %v1219 = vpack.c.b16 %v1023, %v925
    %v1220 = vpack.c.b16 %v1024, %v926
    %v1221 = vpack.c.b16 %v1025, %v927
    %v1222 = vpack.c.b16 %v1026, %v928
    %v1223 = vpack.c.b16 %v1027, %v929
    %v1224 = vpack.c.b16 %v1028, %v930
    %v1225 = vpack.c.b16 %v1029, %v931
    %v1226 = vpack.c.b16 %v1030, %v932
    %v1227 = vpack.c.b16 %v1031, %v933
    %v1228 = vpack.c.b16 %v1032, %v934
    %v1229 = vpack.c.b16 %v1033, %v935
    %v1230 = vpack.c.b16 %v1034, %v936
    %v1231 = vpack.c.b16 %v1035, %v937
    %v1232 = vpack.c.b16 %v1036, %v938
    %v1233 = vpack.c.b16 %v1037, %v939
    %v1234 = vpack.c.b16 %v1038, %v940
    %v1235 = vpack.c.b16 %v1039, %v941
    %v1236 = vpack.c.b16 %v1040, %v942
    %v1237 = vpack.c.b16 %v1041, %v943
    %v1238 = vpack.c.b16 %v1042, %v944
    %v1239 = vpack.c.b16 %v1043, %v945
    %v1240 = vpack.c.b16 %v1044, %v946
    %v1241 = vpack.c.b16 %v1045, %v947
    %v1242 = vpack.c.b16 %v1046, %v948
    %v1243 = vpack.c.b16 %v1047, %v949
    %v1244 = vpack.c.b16 %v1048, %v950
    %v1245 = vpack.c.b16 %v1049, %v951
    %v1246 = vpack.c.b16 %v1050, %v952
    %v1247 = vpack.c.b16 %v1051, %v953
    %vm1444 = vcmask 261120
    %v1446 = vsel %vm1444, %v45, 0
    %1448 = vmatpush.bf16.msra.mxu0 0
    %1449 = vmatpush.bf16.msra.mxu0 0
    %1450 = vmatpush.bf16.msra.mxu0 0
    %1451 = vmatpush.bf16.msra.mxu0 0
    %1452 = vmatpush.bf16.msra.mxu0 0
    %1453 = vmatpush.bf16.msra.mxu0 0
    %1454 = vmatpush.bf16.msra.mxu0 %v1150
    %1455 = vmatpush.bf16.msra.mxu0 %v1052
    %1456 = vmatmul.bf16.gmra.mxu0 %v1446
    %v1457 = vpop.f32.mrf.mxu0
    %v1458 = vadd.f32 %v268, %v1457
    %v1459 = vpop.f32.mrf.mxu0
    %1460 = vdwg.mxu0
    %1461 = vmatpush.bf16.msra.mxu0 0
    %1462 = vmatpush.bf16.msra.mxu0 0
    %1463 = vmatpush.bf16.msra.mxu0 0
    %1464 = vmatpush.bf16.msra.mxu0 0
    %1465 = vmatpush.bf16.msra.mxu0 0
    %1466 = vmatpush.bf16.msra.mxu0 0
    %1467 = vmatpush.bf16.msra.mxu0 %v1151
    %1468 = vmatpush.bf16.msra.mxu0 %v1053
    %1469 = vmatmul.bf16.gmra.mxu0 %v1446
    %v1470 = vpop.f32.mrf.mxu0
    %v1471 = vadd.f32 %v269, %v1470
    %v1472 = vpop.f32.mrf.mxu0
    %1473 = vdwg.mxu0
    %1474 = vmatpush.bf16.msra.mxu0 0
    %1475 = vmatpush.bf16.msra.mxu0 0
    %1476 = vmatpush.bf16.msra.mxu0 0
    %1477 = vmatpush.bf16.msra.mxu0 0
    %1478 = vmatpush.bf16.msra.mxu0 0
    %1479 = vmatpush.bf16.msra.mxu0 0
    %1480 = vmatpush.bf16.msra.mxu0 %v1152
    %1481 = vmatpush.bf16.msra.mxu0 %v1054
    %1482 = vmatmul.bf16.gmra.mxu0 %v1446
    %v1483 = vpop.f32.mrf.mxu0
    %v1484 = vadd.f32 %v270, %v1483
    %v1485 = vpop.f32.mrf.mxu0
    %1486 = vdwg.mxu0
    %1487 = vmatpush.bf16.msra.mxu0 0
    %1488 = vmatpush.bf16.msra.mxu0 0
    %1489 = vmatpush.bf16.msra.mxu0 0
    %1490 = vmatpush.bf16.msra.mxu0 0
    %1491 = vmatpush.bf16.msra.mxu0 0
    %1492 = vmatpush.bf16.msra.mxu0 0
    %1493 = vmatpush.bf16.msra.mxu0 %v1153
    %1494 = vmatpush.bf16.msra.mxu0 %v1055
    %1495 = vmatmul.bf16.gmra.mxu0 %v1446
    %v1496 = vpop.f32.mrf.mxu0
    %v1497 = vadd.f32 %v271, %v1496
    %v1498 = vpop.f32.mrf.mxu0
    %1499 = vdwg.mxu0
    %1500 = vmatpush.bf16.msra.mxu0 0
    %1501 = vmatpush.bf16.msra.mxu0 0
    %1502 = vmatpush.bf16.msra.mxu0 0
    %1503 = vmatpush.bf16.msra.mxu0 0
    %1504 = vmatpush.bf16.msra.mxu0 0
    %1505 = vmatpush.bf16.msra.mxu0 0
    %1506 = vmatpush.bf16.msra.mxu0 %v1154
    %1507 = vmatpush.bf16.msra.mxu0 %v1056
    %1508 = vmatmul.bf16.gmra.mxu0 %v1446
    %v1509 = vpop.f32.mrf.mxu0
    %v1510 = vadd.f32 %v272, %v1509
    %v1511 = vpop.f32.mrf.mxu0
    %1512 = vdwg.mxu0
    %1513 = vmatpush.bf16.msra.mxu0 0
    %1514 = vmatpush.bf16.msra.mxu0 0
    %1515 = vmatpush.bf16.msra.mxu0 0
    %1516 = vmatpush.bf16.msra.mxu0 0
    %1517 = vmatpush.bf16.msra.mxu0 0
    %1518 = vmatpush.bf16.msra.mxu0 0
    %1519 = vmatpush.bf16.msra.mxu0 %v1155
    %1520 = vmatpush.bf16.msra.mxu0 %v1057
    %1521 = vmatmul.bf16.gmra.mxu0 %v1446
    %v1522 = vpop.f32.mrf.mxu0
    %v1523 = vadd.f32 %v273, %v1522
    %v1524 = vpop.f32.mrf.mxu0
    %1525 = vdwg.mxu0
    %1526 = vmatpush.bf16.msra.mxu0 0
    %1527 = vmatpush.bf16.msra.mxu0 0
    %1528 = vmatpush.bf16.msra.mxu0 0
    %1529 = vmatpush.bf16.msra.mxu0 0
    %1530 = vmatpush.bf16.msra.mxu0 0
    %1531 = vmatpush.bf16.msra.mxu0 0
    %1532 = vmatpush.bf16.msra.mxu0 %v1156
    %1533 = vmatpush.bf16.msra.mxu0 %v1058
    %1534 = vmatmul.bf16.gmra.mxu0 %v1446
    %v1535 = vpop.f32.mrf.mxu0
    %v1536 = vadd.f32 %v274, %v1535
    %v1537 = vpop.f32.mrf.mxu0
    %1538 = vdwg.mxu0
    %1539 = vmatpush.bf16.msra.mxu0 0
    %1540 = vmatpush.bf16.msra.mxu0 0
    %1541 = vmatpush.bf16.msra.mxu0 0
    %1542 = vmatpush.bf16.msra.mxu0 0
    %1543 = vmatpush.bf16.msra.mxu0 0
    %1544 = vmatpush.bf16.msra.mxu0 0
    %1545 = vmatpush.bf16.msra.mxu0 %v1157
    %1546 = vmatpush.bf16.msra.mxu0 %v1059
    %1547 = vmatmul.bf16.gmra.mxu0 %v1446
    %v1548 = vpop.f32.mrf.mxu0
    %v1549 = vadd.f32 %v275, %v1548
    %v1550 = vpop.f32.mrf.mxu0
    %1551 = vdwg.mxu0
    %1552 = vmatpush.bf16.msra.mxu0 0
    %1553 = vmatpush.bf16.msra.mxu0 0
    %1554 = vmatpush.bf16.msra.mxu0 0
    %1555 = vmatpush.bf16.msra.mxu0 0
    %1556 = vmatpush.bf16.msra.mxu0 0
    %1557 = vmatpush.bf16.msra.mxu0 0
    %1558 = vmatpush.bf16.msra.mxu0 %v1158
    %1559 = vmatpush.bf16.msra.mxu0 %v1060
    %1560 = vmatmul.bf16.gmra.mxu0 %v1446
    %v1561 = vpop.f32.mrf.mxu0
    %v1562 = vadd.f32 %v276, %v1561
    %v1563 = vpop.f32.mrf.mxu0
    %1564 = vdwg.mxu0
    %1565 = vmatpush.bf16.msra.mxu0 0
    %1566 = vmatpush.bf16.msra.mxu0 0
    %1567 = vmatpush.bf16.msra.mxu0 0
    %1568 = vmatpush.bf16.msra.mxu0 0
    %1569 = vmatpush.bf16.msra.mxu0 0
    %1570 = vmatpush.bf16.msra.mxu0 0
    %1571 = vmatpush.bf16.msra.mxu0 %v1159
    %1572 = vmatpush.bf16.msra.mxu0 %v1061
    %1573 = vmatmul.bf16.gmra.mxu0 %v1446
    %v1574 = vpop.f32.mrf.mxu0
    %v1575 = vadd.f32 %v277, %v1574
    %v1576 = vpop.f32.mrf.mxu0
    %1577 = vdwg.mxu0
    %1578 = vmatpush.bf16.msra.mxu0 0
    %1579 = vmatpush.bf16.msra.mxu0 0
    %1580 = vmatpush.bf16.msra.mxu0 0
    %1581 = vmatpush.bf16.msra.mxu0 0
    %1582 = vmatpush.bf16.msra.mxu0 0
    %1583 = vmatpush.bf16.msra.mxu0 0
    %1584 = vmatpush.bf16.msra.mxu0 %v1160
    %1585 = vmatpush.bf16.msra.mxu0 %v1062
    %1586 = vmatmul.bf16.gmra.mxu0 %v1446
    %v1587 = vpop.f32.mrf.mxu0
    %v1588 = vadd.f32 %v278, %v1587
    %v1589 = vpop.f32.mrf.mxu0
    %1590 = vdwg.mxu0
    %1591 = vmatpush.bf16.msra.mxu0 0
    %1592 = vmatpush.bf16.msra.mxu0 0
    %1593 = vmatpush.bf16.msra.mxu0 0
    %1594 = vmatpush.bf16.msra.mxu0 0
    %1595 = vmatpush.bf16.msra.mxu0 0
    %1596 = vmatpush.bf16.msra.mxu0 0
    %1597 = vmatpush.bf16.msra.mxu0 %v1161
    %1598 = vmatpush.bf16.msra.mxu0 %v1063
    %1599 = vmatmul.bf16.gmra.mxu0 %v1446
    %v1600 = vpop.f32.mrf.mxu0
    %v1601 = vadd.f32 %v279, %v1600
    %v1602 = vpop.f32.mrf.mxu0
    %1603 = vdwg.mxu0
    %1604 = vmatpush.bf16.msra.mxu0 0
    %1605 = vmatpush.bf16.msra.mxu0 0
    %1606 = vmatpush.bf16.msra.mxu0 0
    %1607 = vmatpush.bf16.msra.mxu0 0
    %1608 = vmatpush.bf16.msra.mxu0 0
    %1609 = vmatpush.bf16.msra.mxu0 0
    %1610 = vmatpush.bf16.msra.mxu0 %v1162
    %1611 = vmatpush.bf16.msra.mxu0 %v1064
    %1612 = vmatmul.bf16.gmra.mxu0 %v1446
    %v1613 = vpop.f32.mrf.mxu0
    %v1614 = vadd.f32 %v280, %v1613
    %v1615 = vpop.f32.mrf.mxu0
    %1616 = vdwg.mxu0
    %1617 = vmatpush.bf16.msra.mxu0 0
    %1618 = vmatpush.bf16.msra.mxu0 0
    %1619 = vmatpush.bf16.msra.mxu0 0
    %1620 = vmatpush.bf16.msra.mxu0 0
    %1621 = vmatpush.bf16.msra.mxu0 0
    %1622 = vmatpush.bf16.msra.mxu0 0
    %1623 = vmatpush.bf16.msra.mxu0 %v1163
    %1624 = vmatpush.bf16.msra.mxu0 %v1065
    %1625 = vmatmul.bf16.gmra.mxu0 %v1446
    %v1626 = vpop.f32.mrf.mxu0
    %v1627 = vadd.f32 %v281, %v1626
    %v1628 = vpop.f32.mrf.mxu0
    %1629 = vdwg.mxu0
    %1630 = vmatpush.bf16.msra.mxu0 0
    %1631 = vmatpush.bf16.msra.mxu0 0
    %1632 = vmatpush.bf16.msra.mxu0 0
    %1633 = vmatpush.bf16.msra.mxu0 0
    %1634 = vmatpush.bf16.msra.mxu0 0
    %1635 = vmatpush.bf16.msra.mxu0 0
    %1636 = vmatpush.bf16.msra.mxu0 %v1164
    %1637 = vmatpush.bf16.msra.mxu0 %v1066
    %1638 = vmatmul.bf16.gmra.mxu0 %v1446
    %v1639 = vpop.f32.mrf.mxu0
    %v1640 = vadd.f32 %v282, %v1639
    %v1641 = vpop.f32.mrf.mxu0
    %1642 = vdwg.mxu0
    %1643 = vmatpush.bf16.msra.mxu0 0
    %1644 = vmatpush.bf16.msra.mxu0 0
    %1645 = vmatpush.bf16.msra.mxu0 0
    %1646 = vmatpush.bf16.msra.mxu0 0
    %1647 = vmatpush.bf16.msra.mxu0 0
    %1648 = vmatpush.bf16.msra.mxu0 0
    %1649 = vmatpush.bf16.msra.mxu0 %v1165
    %1650 = vmatpush.bf16.msra.mxu0 %v1067
    %1651 = vmatmul.bf16.gmra.mxu0 %v1446
    %v1652 = vpop.f32.mrf.mxu0
    %v1653 = vadd.f32 %v283, %v1652
    %v1654 = vpop.f32.mrf.mxu0
    %1655 = vdwg.mxu0
    %1656 = vmatpush.bf16.msra.mxu0 0
    %1657 = vmatpush.bf16.msra.mxu0 0
    %1658 = vmatpush.bf16.msra.mxu0 0
    %1659 = vmatpush.bf16.msra.mxu0 0
    %1660 = vmatpush.bf16.msra.mxu0 0
    %1661 = vmatpush.bf16.msra.mxu0 0
    %1662 = vmatpush.bf16.msra.mxu0 %v1166
    %1663 = vmatpush.bf16.msra.mxu0 %v1068
    %1664 = vmatmul.bf16.gmra.mxu0 %v1446
    %v1665 = vpop.f32.mrf.mxu0
    %v1666 = vadd.f32 %v284, %v1665
    %v1667 = vpop.f32.mrf.mxu0
    %1668 = vdwg.mxu0
    %1669 = vmatpush.bf16.msra.mxu0 0
    %1670 = vmatpush.bf16.msra.mxu0 0
    %1671 = vmatpush.bf16.msra.mxu0 0
    %1672 = vmatpush.bf16.msra.mxu0 0
    %1673 = vmatpush.bf16.msra.mxu0 0
    %1674 = vmatpush.bf16.msra.mxu0 0
    %1675 = vmatpush.bf16.msra.mxu0 %v1167
    %1676 = vmatpush.bf16.msra.mxu0 %v1069
    %1677 = vmatmul.bf16.gmra.mxu0 %v1446
    %v1678 = vpop.f32.mrf.mxu0
    %v1679 = vadd.f32 %v285, %v1678
    %v1680 = vpop.f32.mrf.mxu0
    %1681 = vdwg.mxu0
    %1682 = vmatpush.bf16.msra.mxu0 0
    %1683 = vmatpush.bf16.msra.mxu0 0
    %1684 = vmatpush.bf16.msra.mxu0 0
    %1685 = vmatpush.bf16.msra.mxu0 0
    %1686 = vmatpush.bf16.msra.mxu0 0
    %1687 = vmatpush.bf16.msra.mxu0 0
    %1688 = vmatpush.bf16.msra.mxu0 %v1168
    %1689 = vmatpush.bf16.msra.mxu0 %v1070
    %1690 = vmatmul.bf16.gmra.mxu0 %v1446
    %v1691 = vpop.f32.mrf.mxu0
    %v1692 = vadd.f32 %v286, %v1691
    %v1693 = vpop.f32.mrf.mxu0
    %1694 = vdwg.mxu0
    %1695 = vmatpush.bf16.msra.mxu0 0
    %1696 = vmatpush.bf16.msra.mxu0 0
    %1697 = vmatpush.bf16.msra.mxu0 0
    %1698 = vmatpush.bf16.msra.mxu0 0
    %1699 = vmatpush.bf16.msra.mxu0 0
    %1700 = vmatpush.bf16.msra.mxu0 0
    %1701 = vmatpush.bf16.msra.mxu0 %v1169
    %1702 = vmatpush.bf16.msra.mxu0 %v1071
    %1703 = vmatmul.bf16.gmra.mxu0 %v1446
    %v1704 = vpop.f32.mrf.mxu0
    %v1705 = vadd.f32 %v287, %v1704
    %v1706 = vpop.f32.mrf.mxu0
    %1707 = vdwg.mxu0
    %1708 = vmatpush.bf16.msra.mxu0 0
    %1709 = vmatpush.bf16.msra.mxu0 0
    %1710 = vmatpush.bf16.msra.mxu0 0
    %1711 = vmatpush.bf16.msra.mxu0 0
    %1712 = vmatpush.bf16.msra.mxu0 0
    %1713 = vmatpush.bf16.msra.mxu0 0
    %1714 = vmatpush.bf16.msra.mxu0 %v1170
    %1715 = vmatpush.bf16.msra.mxu0 %v1072
    %1716 = vmatmul.bf16.gmra.mxu0 %v1446
    %v1717 = vpop.f32.mrf.mxu0
    %v1718 = vadd.f32 %v288, %v1717
    %v1719 = vpop.f32.mrf.mxu0
    %1720 = vdwg.mxu0
    %1721 = vmatpush.bf16.msra.mxu0 0
    %1722 = vmatpush.bf16.msra.mxu0 0
    %1723 = vmatpush.bf16.msra.mxu0 0
    %1724 = vmatpush.bf16.msra.mxu0 0
    %1725 = vmatpush.bf16.msra.mxu0 0
    %1726 = vmatpush.bf16.msra.mxu0 0
    %1727 = vmatpush.bf16.msra.mxu0 %v1171
    %1728 = vmatpush.bf16.msra.mxu0 %v1073
    %1729 = vmatmul.bf16.gmra.mxu0 %v1446
    %v1730 = vpop.f32.mrf.mxu0
    %v1731 = vadd.f32 %v289, %v1730
    %v1732 = vpop.f32.mrf.mxu0
    %1733 = vdwg.mxu0
    %1734 = vmatpush.bf16.msra.mxu0 0
    %1735 = vmatpush.bf16.msra.mxu0 0
    %1736 = vmatpush.bf16.msra.mxu0 0
    %1737 = vmatpush.bf16.msra.mxu0 0
    %1738 = vmatpush.bf16.msra.mxu0 0
    %1739 = vmatpush.bf16.msra.mxu0 0
    %1740 = vmatpush.bf16.msra.mxu0 %v1172
    %1741 = vmatpush.bf16.msra.mxu0 %v1074
    %1742 = vmatmul.bf16.gmra.mxu0 %v1446
    %v1743 = vpop.f32.mrf.mxu0
    %v1744 = vadd.f32 %v290, %v1743
    %v1745 = vpop.f32.mrf.mxu0
    %1746 = vdwg.mxu0
    %1747 = vmatpush.bf16.msra.mxu0 0
    %1748 = vmatpush.bf16.msra.mxu0 0
    %1749 = vmatpush.bf16.msra.mxu0 0
    %1750 = vmatpush.bf16.msra.mxu0 0
    %1751 = vmatpush.bf16.msra.mxu0 0
    %1752 = vmatpush.bf16.msra.mxu0 0
    %1753 = vmatpush.bf16.msra.mxu0 %v1173
    %1754 = vmatpush.bf16.msra.mxu0 %v1075
    %1755 = vmatmul.bf16.gmra.mxu0 %v1446
    %v1756 = vpop.f32.mrf.mxu0
    %v1757 = vadd.f32 %v291, %v1756
    %v1758 = vpop.f32.mrf.mxu0
    %1759 = vdwg.mxu0
    %1760 = vmatpush.bf16.msra.mxu0 0
    %1761 = vmatpush.bf16.msra.mxu0 0
    %1762 = vmatpush.bf16.msra.mxu0 0
    %1763 = vmatpush.bf16.msra.mxu0 0
    %1764 = vmatpush.bf16.msra.mxu0 0
    %1765 = vmatpush.bf16.msra.mxu0 0
    %1766 = vmatpush.bf16.msra.mxu0 %v1174
    %1767 = vmatpush.bf16.msra.mxu0 %v1076
    %1768 = vmatmul.bf16.gmra.mxu0 %v1446
    %v1769 = vpop.f32.mrf.mxu0
    %v1770 = vadd.f32 %v292, %v1769
    %v1771 = vpop.f32.mrf.mxu0
    %1772 = vdwg.mxu0
    %1773 = vmatpush.bf16.msra.mxu0 0
    %1774 = vmatpush.bf16.msra.mxu0 0
    %1775 = vmatpush.bf16.msra.mxu0 0
    %1776 = vmatpush.bf16.msra.mxu0 0
    %1777 = vmatpush.bf16.msra.mxu0 0
    %1778 = vmatpush.bf16.msra.mxu0 0
    %1779 = vmatpush.bf16.msra.mxu0 %v1175
    %1780 = vmatpush.bf16.msra.mxu0 %v1077
    %1781 = vmatmul.bf16.gmra.mxu0 %v1446
    %v1782 = vpop.f32.mrf.mxu0
    %v1783 = vadd.f32 %v293, %v1782
    %v1784 = vpop.f32.mrf.mxu0
    %1785 = vdwg.mxu0
    %1786 = vmatpush.bf16.msra.mxu0 0
    %1787 = vmatpush.bf16.msra.mxu0 0
    %1788 = vmatpush.bf16.msra.mxu0 0
    %1789 = vmatpush.bf16.msra.mxu0 0
    %1790 = vmatpush.bf16.msra.mxu0 0
    %1791 = vmatpush.bf16.msra.mxu0 0
    %1792 = vmatpush.bf16.msra.mxu0 %v1176
    %1793 = vmatpush.bf16.msra.mxu0 %v1078
    %1794 = vmatmul.bf16.gmra.mxu0 %v1446
    %v1795 = vpop.f32.mrf.mxu0
    %v1796 = vadd.f32 %v294, %v1795
    %v1797 = vpop.f32.mrf.mxu0
    %1798 = vdwg.mxu0
    %1799 = vmatpush.bf16.msra.mxu0 0
    %1800 = vmatpush.bf16.msra.mxu0 0
    %1801 = vmatpush.bf16.msra.mxu0 0
    %1802 = vmatpush.bf16.msra.mxu0 0
    %1803 = vmatpush.bf16.msra.mxu0 0
    %1804 = vmatpush.bf16.msra.mxu0 0
    %1805 = vmatpush.bf16.msra.mxu0 %v1177
    %1806 = vmatpush.bf16.msra.mxu0 %v1079
    %1807 = vmatmul.bf16.gmra.mxu0 %v1446
    %v1808 = vpop.f32.mrf.mxu0
    %v1809 = vadd.f32 %v295, %v1808
    %v1810 = vpop.f32.mrf.mxu0
    %1811 = vdwg.mxu0
    %1812 = vmatpush.bf16.msra.mxu0 0
    %1813 = vmatpush.bf16.msra.mxu0 0
    %1814 = vmatpush.bf16.msra.mxu0 0
    %1815 = vmatpush.bf16.msra.mxu0 0
    %1816 = vmatpush.bf16.msra.mxu0 0
    %1817 = vmatpush.bf16.msra.mxu0 0
    %1818 = vmatpush.bf16.msra.mxu0 %v1178
    %1819 = vmatpush.bf16.msra.mxu0 %v1080
    %1820 = vmatmul.bf16.gmra.mxu0 %v1446
    %v1821 = vpop.f32.mrf.mxu0
    %v1822 = vadd.f32 %v296, %v1821
    %v1823 = vpop.f32.mrf.mxu0
    %1824 = vdwg.mxu0
    %1825 = vmatpush.bf16.msra.mxu0 0
    %1826 = vmatpush.bf16.msra.mxu0 0
    %1827 = vmatpush.bf16.msra.mxu0 0
    %1828 = vmatpush.bf16.msra.mxu0 0
    %1829 = vmatpush.bf16.msra.mxu0 0
    %1830 = vmatpush.bf16.msra.mxu0 0
    %1831 = vmatpush.bf16.msra.mxu0 %v1179
    %1832 = vmatpush.bf16.msra.mxu0 %v1081
    %1833 = vmatmul.bf16.gmra.mxu0 %v1446
    %v1834 = vpop.f32.mrf.mxu0
    %v1835 = vadd.f32 %v297, %v1834
    %v1836 = vpop.f32.mrf.mxu0
    %1837 = vdwg.mxu0
    %1838 = vmatpush.bf16.msra.mxu0 0
    %1839 = vmatpush.bf16.msra.mxu0 0
    %1840 = vmatpush.bf16.msra.mxu0 0
    %1841 = vmatpush.bf16.msra.mxu0 0
    %1842 = vmatpush.bf16.msra.mxu0 0
    %1843 = vmatpush.bf16.msra.mxu0 0
    %1844 = vmatpush.bf16.msra.mxu0 %v1180
    %1845 = vmatpush.bf16.msra.mxu0 %v1082
    %1846 = vmatmul.bf16.gmra.mxu0 %v1446
    %v1847 = vpop.f32.mrf.mxu0
    %v1848 = vadd.f32 %v298, %v1847
    %v1849 = vpop.f32.mrf.mxu0
    %1850 = vdwg.mxu0
    %1851 = vmatpush.bf16.msra.mxu0 0
    %1852 = vmatpush.bf16.msra.mxu0 0
    %1853 = vmatpush.bf16.msra.mxu0 0
    %1854 = vmatpush.bf16.msra.mxu0 0
    %1855 = vmatpush.bf16.msra.mxu0 0
    %1856 = vmatpush.bf16.msra.mxu0 0
    %1857 = vmatpush.bf16.msra.mxu0 %v1181
    %1858 = vmatpush.bf16.msra.mxu0 %v1083
    %1859 = vmatmul.bf16.gmra.mxu0 %v1446
    %v1860 = vpop.f32.mrf.mxu0
    %v1861 = vadd.f32 %v299, %v1860
    %v1862 = vpop.f32.mrf.mxu0
    %1863 = vdwg.mxu0
    %1864 = vmatpush.bf16.msra.mxu0 0
    %1865 = vmatpush.bf16.msra.mxu0 0
    %1866 = vmatpush.bf16.msra.mxu0 0
    %1867 = vmatpush.bf16.msra.mxu0 0
    %1868 = vmatpush.bf16.msra.mxu0 0
    %1869 = vmatpush.bf16.msra.mxu0 0
    %1870 = vmatpush.bf16.msra.mxu0 %v1182
    %1871 = vmatpush.bf16.msra.mxu0 %v1084
    %1872 = vmatmul.bf16.gmra.mxu0 %v1446
    %v1873 = vpop.f32.mrf.mxu0
    %v1874 = vadd.f32 %v300, %v1873
    %v1875 = vpop.f32.mrf.mxu0
    %1876 = vdwg.mxu0
    %1877 = vmatpush.bf16.msra.mxu0 0
    %1878 = vmatpush.bf16.msra.mxu0 0
    %1879 = vmatpush.bf16.msra.mxu0 0
    %1880 = vmatpush.bf16.msra.mxu0 0
    %1881 = vmatpush.bf16.msra.mxu0 0
    %1882 = vmatpush.bf16.msra.mxu0 0
    %1883 = vmatpush.bf16.msra.mxu0 %v1183
    %1884 = vmatpush.bf16.msra.mxu0 %v1085
    %1885 = vmatmul.bf16.gmra.mxu0 %v1446
    %v1886 = vpop.f32.mrf.mxu0
    %v1887 = vadd.f32 %v301, %v1886
    %v1888 = vpop.f32.mrf.mxu0
    %1889 = vdwg.mxu0
    %1890 = vmatpush.bf16.msra.mxu0 0
    %1891 = vmatpush.bf16.msra.mxu0 0
    %1892 = vmatpush.bf16.msra.mxu0 0
    %1893 = vmatpush.bf16.msra.mxu0 0
    %1894 = vmatpush.bf16.msra.mxu0 0
    %1895 = vmatpush.bf16.msra.mxu0 0
    %1896 = vmatpush.bf16.msra.mxu0 %v1184
    %1897 = vmatpush.bf16.msra.mxu0 %v1086
    %1898 = vmatmul.bf16.gmra.mxu0 %v1446
    %v1899 = vpop.f32.mrf.mxu0
    %v1900 = vadd.f32 %v302, %v1899
    %v1901 = vpop.f32.mrf.mxu0
    %1902 = vdwg.mxu0
    %1903 = vmatpush.bf16.msra.mxu0 0
    %1904 = vmatpush.bf16.msra.mxu0 0
    %1905 = vmatpush.bf16.msra.mxu0 0
    %1906 = vmatpush.bf16.msra.mxu0 0
    %1907 = vmatpush.bf16.msra.mxu0 0
    %1908 = vmatpush.bf16.msra.mxu0 0
    %1909 = vmatpush.bf16.msra.mxu0 %v1185
    %1910 = vmatpush.bf16.msra.mxu0 %v1087
    %1911 = vmatmul.bf16.gmra.mxu0 %v1446
    %v1912 = vpop.f32.mrf.mxu0
    %v1913 = vadd.f32 %v303, %v1912
    %v1914 = vpop.f32.mrf.mxu0
    %1915 = vdwg.mxu0
    %1916 = vmatpush.bf16.msra.mxu0 0
    %1917 = vmatpush.bf16.msra.mxu0 0
    %1918 = vmatpush.bf16.msra.mxu0 0
    %1919 = vmatpush.bf16.msra.mxu0 0
    %1920 = vmatpush.bf16.msra.mxu0 0
    %1921 = vmatpush.bf16.msra.mxu0 0
    %1922 = vmatpush.bf16.msra.mxu0 %v1186
    %1923 = vmatpush.bf16.msra.mxu0 %v1088
    %1924 = vmatmul.bf16.gmra.mxu0 %v1446
    %v1925 = vpop.f32.mrf.mxu0
    %v1926 = vadd.f32 %v304, %v1925
    %v1927 = vpop.f32.mrf.mxu0
    %1928 = vdwg.mxu0
    %1929 = vmatpush.bf16.msra.mxu0 0
    %1930 = vmatpush.bf16.msra.mxu0 0
    %1931 = vmatpush.bf16.msra.mxu0 0
    %1932 = vmatpush.bf16.msra.mxu0 0
    %1933 = vmatpush.bf16.msra.mxu0 0
    %1934 = vmatpush.bf16.msra.mxu0 0
    %1935 = vmatpush.bf16.msra.mxu0 %v1187
    %1936 = vmatpush.bf16.msra.mxu0 %v1089
    %1937 = vmatmul.bf16.gmra.mxu0 %v1446
    %v1938 = vpop.f32.mrf.mxu0
    %v1939 = vadd.f32 %v305, %v1938
    %v1940 = vpop.f32.mrf.mxu0
    %1941 = vdwg.mxu0
    %1942 = vmatpush.bf16.msra.mxu0 0
    %1943 = vmatpush.bf16.msra.mxu0 0
    %1944 = vmatpush.bf16.msra.mxu0 0
    %1945 = vmatpush.bf16.msra.mxu0 0
    %1946 = vmatpush.bf16.msra.mxu0 0
    %1947 = vmatpush.bf16.msra.mxu0 0
    %1948 = vmatpush.bf16.msra.mxu0 %v1188
    %1949 = vmatpush.bf16.msra.mxu0 %v1090
    %1950 = vmatmul.bf16.gmra.mxu0 %v1446
    %v1951 = vpop.f32.mrf.mxu0
    %v1952 = vadd.f32 %v306, %v1951
    %v1953 = vpop.f32.mrf.mxu0
    %1954 = vdwg.mxu0
    %1955 = vmatpush.bf16.msra.mxu0 0
    %1956 = vmatpush.bf16.msra.mxu0 0
    %1957 = vmatpush.bf16.msra.mxu0 0
    %1958 = vmatpush.bf16.msra.mxu0 0
    %1959 = vmatpush.bf16.msra.mxu0 0
    %1960 = vmatpush.bf16.msra.mxu0 0
    %1961 = vmatpush.bf16.msra.mxu0 %v1189
    %1962 = vmatpush.bf16.msra.mxu0 %v1091
    %1963 = vmatmul.bf16.gmra.mxu0 %v1446
    %v1964 = vpop.f32.mrf.mxu0
    %v1965 = vadd.f32 %v307, %v1964
    %v1966 = vpop.f32.mrf.mxu0
    %1967 = vdwg.mxu0
    %1968 = vmatpush.bf16.msra.mxu0 0
    %1969 = vmatpush.bf16.msra.mxu0 0
    %1970 = vmatpush.bf16.msra.mxu0 0
    %1971 = vmatpush.bf16.msra.mxu0 0
    %1972 = vmatpush.bf16.msra.mxu0 0
    %1973 = vmatpush.bf16.msra.mxu0 0
    %1974 = vmatpush.bf16.msra.mxu0 %v1190
    %1975 = vmatpush.bf16.msra.mxu0 %v1092
    %1976 = vmatmul.bf16.gmra.mxu0 %v1446
    %v1977 = vpop.f32.mrf.mxu0
    %v1978 = vadd.f32 %v308, %v1977
    %v1979 = vpop.f32.mrf.mxu0
    %1980 = vdwg.mxu0
    %1981 = vmatpush.bf16.msra.mxu0 0
    %1982 = vmatpush.bf16.msra.mxu0 0
    %1983 = vmatpush.bf16.msra.mxu0 0
    %1984 = vmatpush.bf16.msra.mxu0 0
    %1985 = vmatpush.bf16.msra.mxu0 0
    %1986 = vmatpush.bf16.msra.mxu0 0
    %1987 = vmatpush.bf16.msra.mxu0 %v1191
    %1988 = vmatpush.bf16.msra.mxu0 %v1093
    %1989 = vmatmul.bf16.gmra.mxu0 %v1446
    %v1990 = vpop.f32.mrf.mxu0
    %v1991 = vadd.f32 %v309, %v1990
    %v1992 = vpop.f32.mrf.mxu0
    %1993 = vdwg.mxu0
    %1994 = vmatpush.bf16.msra.mxu0 0
    %1995 = vmatpush.bf16.msra.mxu0 0
    %1996 = vmatpush.bf16.msra.mxu0 0
    %1997 = vmatpush.bf16.msra.mxu0 0
    %1998 = vmatpush.bf16.msra.mxu0 0
    %1999 = vmatpush.bf16.msra.mxu0 0
    %2000 = vmatpush.bf16.msra.mxu0 %v1192
    %2001 = vmatpush.bf16.msra.mxu0 %v1094
    %2002 = vmatmul.bf16.gmra.mxu0 %v1446
    %v2003 = vpop.f32.mrf.mxu0
    %v2004 = vadd.f32 %v310, %v2003
    %v2005 = vpop.f32.mrf.mxu0
    %2006 = vdwg.mxu0
    %2007 = vmatpush.bf16.msra.mxu0 0
    %2008 = vmatpush.bf16.msra.mxu0 0
    %2009 = vmatpush.bf16.msra.mxu0 0
    %2010 = vmatpush.bf16.msra.mxu0 0
    %2011 = vmatpush.bf16.msra.mxu0 0
    %2012 = vmatpush.bf16.msra.mxu0 0
    %2013 = vmatpush.bf16.msra.mxu0 %v1193
    %2014 = vmatpush.bf16.msra.mxu0 %v1095
    %2015 = vmatmul.bf16.gmra.mxu0 %v1446
    %v2016 = vpop.f32.mrf.mxu0
    %v2017 = vadd.f32 %v311, %v2016
    %v2018 = vpop.f32.mrf.mxu0
    %2019 = vdwg.mxu0
    %2020 = vmatpush.bf16.msra.mxu0 0
    %2021 = vmatpush.bf16.msra.mxu0 0
    %2022 = vmatpush.bf16.msra.mxu0 0
    %2023 = vmatpush.bf16.msra.mxu0 0
    %2024 = vmatpush.bf16.msra.mxu0 0
    %2025 = vmatpush.bf16.msra.mxu0 0
    %2026 = vmatpush.bf16.msra.mxu0 %v1194
    %2027 = vmatpush.bf16.msra.mxu0 %v1096
    %2028 = vmatmul.bf16.gmra.mxu0 %v1446
    %v2029 = vpop.f32.mrf.mxu0
    %v2030 = vadd.f32 %v312, %v2029
    %v2031 = vpop.f32.mrf.mxu0
    %2032 = vdwg.mxu0
    %2033 = vmatpush.bf16.msra.mxu0 0
    %2034 = vmatpush.bf16.msra.mxu0 0
    %2035 = vmatpush.bf16.msra.mxu0 0
    %2036 = vmatpush.bf16.msra.mxu0 0
    %2037 = vmatpush.bf16.msra.mxu0 0
    %2038 = vmatpush.bf16.msra.mxu0 0
    %2039 = vmatpush.bf16.msra.mxu0 %v1195
    %2040 = vmatpush.bf16.msra.mxu0 %v1097
    %2041 = vmatmul.bf16.gmra.mxu0 %v1446
    %v2042 = vpop.f32.mrf.mxu0
    %v2043 = vadd.f32 %v313, %v2042
    %v2044 = vpop.f32.mrf.mxu0
    %2045 = vdwg.mxu0
    %2046 = vmatpush.bf16.msra.mxu0 0
    %2047 = vmatpush.bf16.msra.mxu0 0
    %2048 = vmatpush.bf16.msra.mxu0 0
    %2049 = vmatpush.bf16.msra.mxu0 0
    %2050 = vmatpush.bf16.msra.mxu0 0
    %2051 = vmatpush.bf16.msra.mxu0 0
    %2052 = vmatpush.bf16.msra.mxu0 %v1196
    %2053 = vmatpush.bf16.msra.mxu0 %v1098
    %2054 = vmatmul.bf16.gmra.mxu0 %v1446
    %v2055 = vpop.f32.mrf.mxu0
    %v2056 = vadd.f32 %v314, %v2055
    %v2057 = vpop.f32.mrf.mxu0
    %2058 = vdwg.mxu0
    %2059 = vmatpush.bf16.msra.mxu0 0
    %2060 = vmatpush.bf16.msra.mxu0 0
    %2061 = vmatpush.bf16.msra.mxu0 0
    %2062 = vmatpush.bf16.msra.mxu0 0
    %2063 = vmatpush.bf16.msra.mxu0 0
    %2064 = vmatpush.bf16.msra.mxu0 0
    %2065 = vmatpush.bf16.msra.mxu0 %v1197
    %2066 = vmatpush.bf16.msra.mxu0 %v1099
    %2067 = vmatmul.bf16.gmra.mxu0 %v1446
    %v2068 = vpop.f32.mrf.mxu0
    %v2069 = vadd.f32 %v315, %v2068
    %v2070 = vpop.f32.mrf.mxu0
    %2071 = vdwg.mxu0
    %2072 = vmatpush.bf16.msra.mxu0 0
    %2073 = vmatpush.bf16.msra.mxu0 0
    %2074 = vmatpush.bf16.msra.mxu0 0
    %2075 = vmatpush.bf16.msra.mxu0 0
    %2076 = vmatpush.bf16.msra.mxu0 0
    %2077 = vmatpush.bf16.msra.mxu0 0
    %2078 = vmatpush.bf16.msra.mxu0 %v1198
    %2079 = vmatpush.bf16.msra.mxu0 %v1100
    %2080 = vmatmul.bf16.gmra.mxu0 %v1446
    %v2081 = vpop.f32.mrf.mxu0
    %v2082 = vadd.f32 %v316, %v2081
    %v2083 = vpop.f32.mrf.mxu0
    %2084 = vdwg.mxu0
    %2085 = vmatpush.bf16.msra.mxu0 0
    %2086 = vmatpush.bf16.msra.mxu0 0
    %2087 = vmatpush.bf16.msra.mxu0 0
    %2088 = vmatpush.bf16.msra.mxu0 0
    %2089 = vmatpush.bf16.msra.mxu0 0
    %2090 = vmatpush.bf16.msra.mxu0 0
    %2091 = vmatpush.bf16.msra.mxu0 %v1199
    %2092 = vmatpush.bf16.msra.mxu0 %v1101
    %2093 = vmatmul.bf16.gmra.mxu0 %v1446
    %v2094 = vpop.f32.mrf.mxu0
    %v2095 = vadd.f32 %v317, %v2094
    %v2096 = vpop.f32.mrf.mxu0
    %2097 = vdwg.mxu0
    %2098 = vmatpush.bf16.msra.mxu0 0
    %2099 = vmatpush.bf16.msra.mxu0 0
    %2100 = vmatpush.bf16.msra.mxu0 0
    %2101 = vmatpush.bf16.msra.mxu0 0
    %2102 = vmatpush.bf16.msra.mxu0 0
    %2103 = vmatpush.bf16.msra.mxu0 0
    %2104 = vmatpush.bf16.msra.mxu0 %v1200
    %2105 = vmatpush.bf16.msra.mxu0 %v1102
    %2106 = vmatmul.bf16.gmra.mxu0 %v1446
    %v2107 = vpop.f32.mrf.mxu0
    %v2108 = vadd.f32 %v318, %v2107
    %v2109 = vpop.f32.mrf.mxu0
    %2110 = vdwg.mxu0
    %2111 = vmatpush.bf16.msra.mxu0 0
    %2112 = vmatpush.bf16.msra.mxu0 0
    %2113 = vmatpush.bf16.msra.mxu0 0
    %2114 = vmatpush.bf16.msra.mxu0 0
    %2115 = vmatpush.bf16.msra.mxu0 0
    %2116 = vmatpush.bf16.msra.mxu0 0
    %2117 = vmatpush.bf16.msra.mxu0 %v1201
    %2118 = vmatpush.bf16.msra.mxu0 %v1103
    %2119 = vmatmul.bf16.gmra.mxu0 %v1446
    %v2120 = vpop.f32.mrf.mxu0
    %v2121 = vadd.f32 %v319, %v2120
    %v2122 = vpop.f32.mrf.mxu0
    %2123 = vdwg.mxu0
    %2124 = vmatpush.bf16.msra.mxu0 0
    %2125 = vmatpush.bf16.msra.mxu0 0
    %2126 = vmatpush.bf16.msra.mxu0 0
    %2127 = vmatpush.bf16.msra.mxu0 0
    %2128 = vmatpush.bf16.msra.mxu0 0
    %2129 = vmatpush.bf16.msra.mxu0 0
    %2130 = vmatpush.bf16.msra.mxu0 %v1202
    %2131 = vmatpush.bf16.msra.mxu0 %v1104
    %2132 = vmatmul.bf16.gmra.mxu0 %v1446
    %v2133 = vpop.f32.mrf.mxu0
    %v2134 = vadd.f32 %v320, %v2133
    %v2135 = vpop.f32.mrf.mxu0
    %2136 = vdwg.mxu0
    %2137 = vmatpush.bf16.msra.mxu0 0
    %2138 = vmatpush.bf16.msra.mxu0 0
    %2139 = vmatpush.bf16.msra.mxu0 0
    %2140 = vmatpush.bf16.msra.mxu0 0
    %2141 = vmatpush.bf16.msra.mxu0 0
    %2142 = vmatpush.bf16.msra.mxu0 0
    %2143 = vmatpush.bf16.msra.mxu0 %v1203
    %2144 = vmatpush.bf16.msra.mxu0 %v1105
    %2145 = vmatmul.bf16.gmra.mxu0 %v1446
    %v2146 = vpop.f32.mrf.mxu0
    %v2147 = vadd.f32 %v321, %v2146
    %v2148 = vpop.f32.mrf.mxu0
    %2149 = vdwg.mxu0
    %2150 = vmatpush.bf16.msra.mxu0 0
    %2151 = vmatpush.bf16.msra.mxu0 0
    %2152 = vmatpush.bf16.msra.mxu0 0
    %2153 = vmatpush.bf16.msra.mxu0 0
    %2154 = vmatpush.bf16.msra.mxu0 0
    %2155 = vmatpush.bf16.msra.mxu0 0
    %2156 = vmatpush.bf16.msra.mxu0 %v1204
    %2157 = vmatpush.bf16.msra.mxu0 %v1106
    %2158 = vmatmul.bf16.gmra.mxu0 %v1446
    %v2159 = vpop.f32.mrf.mxu0
    %v2160 = vadd.f32 %v322, %v2159
    %v2161 = vpop.f32.mrf.mxu0
    %2162 = vdwg.mxu0
    %2163 = vmatpush.bf16.msra.mxu0 0
    %2164 = vmatpush.bf16.msra.mxu0 0
    %2165 = vmatpush.bf16.msra.mxu0 0
    %2166 = vmatpush.bf16.msra.mxu0 0
    %2167 = vmatpush.bf16.msra.mxu0 0
    %2168 = vmatpush.bf16.msra.mxu0 0
    %2169 = vmatpush.bf16.msra.mxu0 %v1205
    %2170 = vmatpush.bf16.msra.mxu0 %v1107
    %2171 = vmatmul.bf16.gmra.mxu0 %v1446
    %v2172 = vpop.f32.mrf.mxu0
    %v2173 = vadd.f32 %v323, %v2172
    %v2174 = vpop.f32.mrf.mxu0
    %2175 = vdwg.mxu0
    %2176 = vmatpush.bf16.msra.mxu0 0
    %2177 = vmatpush.bf16.msra.mxu0 0
    %2178 = vmatpush.bf16.msra.mxu0 0
    %2179 = vmatpush.bf16.msra.mxu0 0
    %2180 = vmatpush.bf16.msra.mxu0 0
    %2181 = vmatpush.bf16.msra.mxu0 0
    %2182 = vmatpush.bf16.msra.mxu0 %v1206
    %2183 = vmatpush.bf16.msra.mxu0 %v1108
    %2184 = vmatmul.bf16.gmra.mxu0 %v1446
    %v2185 = vpop.f32.mrf.mxu0
    %v2186 = vadd.f32 %v324, %v2185
    %v2187 = vpop.f32.mrf.mxu0
    %2188 = vdwg.mxu0
    %2189 = vmatpush.bf16.msra.mxu0 0
    %2190 = vmatpush.bf16.msra.mxu0 0
    %2191 = vmatpush.bf16.msra.mxu0 0
    %2192 = vmatpush.bf16.msra.mxu0 0
    %2193 = vmatpush.bf16.msra.mxu0 0
    %2194 = vmatpush.bf16.msra.mxu0 0
    %2195 = vmatpush.bf16.msra.mxu0 %v1207
    %2196 = vmatpush.bf16.msra.mxu0 %v1109
    %2197 = vmatmul.bf16.gmra.mxu0 %v1446
    %v2198 = vpop.f32.mrf.mxu0
    %v2199 = vadd.f32 %v325, %v2198
    %v2200 = vpop.f32.mrf.mxu0
    %2201 = vdwg.mxu0
    %2202 = vmatpush.bf16.msra.mxu0 0
    %2203 = vmatpush.bf16.msra.mxu0 0
    %2204 = vmatpush.bf16.msra.mxu0 0
    %2205 = vmatpush.bf16.msra.mxu0 0
    %2206 = vmatpush.bf16.msra.mxu0 0
    %2207 = vmatpush.bf16.msra.mxu0 0
    %2208 = vmatpush.bf16.msra.mxu0 %v1208
    %2209 = vmatpush.bf16.msra.mxu0 %v1110
    %2210 = vmatmul.bf16.gmra.mxu0 %v1446
    %v2211 = vpop.f32.mrf.mxu0
    %v2212 = vadd.f32 %v326, %v2211
    %v2213 = vpop.f32.mrf.mxu0
    %2214 = vdwg.mxu0
    %2215 = vmatpush.bf16.msra.mxu0 0
    %2216 = vmatpush.bf16.msra.mxu0 0
    %2217 = vmatpush.bf16.msra.mxu0 0
    %2218 = vmatpush.bf16.msra.mxu0 0
    %2219 = vmatpush.bf16.msra.mxu0 0
    %2220 = vmatpush.bf16.msra.mxu0 0
    %2221 = vmatpush.bf16.msra.mxu0 %v1209
    %2222 = vmatpush.bf16.msra.mxu0 %v1111
    %2223 = vmatmul.bf16.gmra.mxu0 %v1446
    %v2224 = vpop.f32.mrf.mxu0
    %v2225 = vadd.f32 %v327, %v2224
    %v2226 = vpop.f32.mrf.mxu0
    %2227 = vdwg.mxu0
    %2228 = vmatpush.bf16.msra.mxu0 0
    %2229 = vmatpush.bf16.msra.mxu0 0
    %2230 = vmatpush.bf16.msra.mxu0 0
    %2231 = vmatpush.bf16.msra.mxu0 0
    %2232 = vmatpush.bf16.msra.mxu0 0
    %2233 = vmatpush.bf16.msra.mxu0 0
    %2234 = vmatpush.bf16.msra.mxu0 %v1210
    %2235 = vmatpush.bf16.msra.mxu0 %v1112
    %2236 = vmatmul.bf16.gmra.mxu0 %v1446
    %v2237 = vpop.f32.mrf.mxu0
    %v2238 = vadd.f32 %v328, %v2237
    %v2239 = vpop.f32.mrf.mxu0
    %2240 = vdwg.mxu0
    %2241 = vmatpush.bf16.msra.mxu0 0
    %2242 = vmatpush.bf16.msra.mxu0 0
    %2243 = vmatpush.bf16.msra.mxu0 0
    %2244 = vmatpush.bf16.msra.mxu0 0
    %2245 = vmatpush.bf16.msra.mxu0 0
    %2246 = vmatpush.bf16.msra.mxu0 0
    %2247 = vmatpush.bf16.msra.mxu0 %v1211
    %2248 = vmatpush.bf16.msra.mxu0 %v1113
    %2249 = vmatmul.bf16.gmra.mxu0 %v1446
    %v2250 = vpop.f32.mrf.mxu0
    %v2251 = vadd.f32 %v329, %v2250
    %v2252 = vpop.f32.mrf.mxu0
    %2253 = vdwg.mxu0
    %2254 = vmatpush.bf16.msra.mxu0 0
    %2255 = vmatpush.bf16.msra.mxu0 0
    %2256 = vmatpush.bf16.msra.mxu0 0
    %2257 = vmatpush.bf16.msra.mxu0 0
    %2258 = vmatpush.bf16.msra.mxu0 0
    %2259 = vmatpush.bf16.msra.mxu0 0
    %2260 = vmatpush.bf16.msra.mxu0 %v1212
    %2261 = vmatpush.bf16.msra.mxu0 %v1114
    %2262 = vmatmul.bf16.gmra.mxu0 %v1446
    %v2263 = vpop.f32.mrf.mxu0
    %v2264 = vadd.f32 %v330, %v2263
    %v2265 = vpop.f32.mrf.mxu0
    %2266 = vdwg.mxu0
    %2267 = vmatpush.bf16.msra.mxu0 0
    %2268 = vmatpush.bf16.msra.mxu0 0
    %2269 = vmatpush.bf16.msra.mxu0 0
    %2270 = vmatpush.bf16.msra.mxu0 0
    %2271 = vmatpush.bf16.msra.mxu0 0
    %2272 = vmatpush.bf16.msra.mxu0 0
    %2273 = vmatpush.bf16.msra.mxu0 %v1213
    %2274 = vmatpush.bf16.msra.mxu0 %v1115
    %2275 = vmatmul.bf16.gmra.mxu0 %v1446
    %v2276 = vpop.f32.mrf.mxu0
    %v2277 = vadd.f32 %v331, %v2276
    %v2278 = vpop.f32.mrf.mxu0
    %2279 = vdwg.mxu0
    %2280 = vmatpush.bf16.msra.mxu0 0
    %2281 = vmatpush.bf16.msra.mxu0 0
    %2282 = vmatpush.bf16.msra.mxu0 0
    %2283 = vmatpush.bf16.msra.mxu0 0
    %2284 = vmatpush.bf16.msra.mxu0 0
    %2285 = vmatpush.bf16.msra.mxu0 0
    %2286 = vmatpush.bf16.msra.mxu0 %v1214
    %2287 = vmatpush.bf16.msra.mxu0 %v1116
    %2288 = vmatmul.bf16.gmra.mxu0 %v1446
    %v2289 = vpop.f32.mrf.mxu0
    %v2290 = vadd.f32 %v332, %v2289
    %v2291 = vpop.f32.mrf.mxu0
    %2292 = vdwg.mxu0
    %2293 = vmatpush.bf16.msra.mxu0 0
    %2294 = vmatpush.bf16.msra.mxu0 0
    %2295 = vmatpush.bf16.msra.mxu0 0
    %2296 = vmatpush.bf16.msra.mxu0 0
    %2297 = vmatpush.bf16.msra.mxu0 0
    %2298 = vmatpush.bf16.msra.mxu0 0
    %2299 = vmatpush.bf16.msra.mxu0 %v1215
    %2300 = vmatpush.bf16.msra.mxu0 %v1117
    %2301 = vmatmul.bf16.gmra.mxu0 %v1446
    %v2302 = vpop.f32.mrf.mxu0
    %v2303 = vadd.f32 %v333, %v2302
    %v2304 = vpop.f32.mrf.mxu0
    %2305 = vdwg.mxu0
    %2306 = vmatpush.bf16.msra.mxu0 0
    %2307 = vmatpush.bf16.msra.mxu0 0
    %2308 = vmatpush.bf16.msra.mxu0 0
    %2309 = vmatpush.bf16.msra.mxu0 0
    %2310 = vmatpush.bf16.msra.mxu0 0
    %2311 = vmatpush.bf16.msra.mxu0 0
    %2312 = vmatpush.bf16.msra.mxu0 %v1216
    %2313 = vmatpush.bf16.msra.mxu0 %v1118
    %2314 = vmatmul.bf16.gmra.mxu0 %v1446
    %v2315 = vpop.f32.mrf.mxu0
    %v2316 = vadd.f32 %v334, %v2315
    %v2317 = vpop.f32.mrf.mxu0
    %2318 = vdwg.mxu0
    %2319 = vmatpush.bf16.msra.mxu0 0
    %2320 = vmatpush.bf16.msra.mxu0 0
    %2321 = vmatpush.bf16.msra.mxu0 0
    %2322 = vmatpush.bf16.msra.mxu0 0
    %2323 = vmatpush.bf16.msra.mxu0 0
    %2324 = vmatpush.bf16.msra.mxu0 0
    %2325 = vmatpush.bf16.msra.mxu0 %v1217
    %2326 = vmatpush.bf16.msra.mxu0 %v1119
    %2327 = vmatmul.bf16.gmra.mxu0 %v1446
    %v2328 = vpop.f32.mrf.mxu0
    %v2329 = vadd.f32 %v335, %v2328
    %v2330 = vpop.f32.mrf.mxu0
    %2331 = vdwg.mxu0
    %2332 = vmatpush.bf16.msra.mxu0 0
    %2333 = vmatpush.bf16.msra.mxu0 0
    %2334 = vmatpush.bf16.msra.mxu0 0
    %2335 = vmatpush.bf16.msra.mxu0 0
    %2336 = vmatpush.bf16.msra.mxu0 0
    %2337 = vmatpush.bf16.msra.mxu0 0
    %2338 = vmatpush.bf16.msra.mxu0 %v1218
    %2339 = vmatpush.bf16.msra.mxu0 %v1120
    %2340 = vmatmul.bf16.gmra.mxu0 %v1446
    %v2341 = vpop.f32.mrf.mxu0
    %v2342 = vadd.f32 %v336, %v2341
    %v2343 = vpop.f32.mrf.mxu0
    %2344 = vdwg.mxu0
    %2345 = vmatpush.bf16.msra.mxu0 0
    %2346 = vmatpush.bf16.msra.mxu0 0
    %2347 = vmatpush.bf16.msra.mxu0 0
    %2348 = vmatpush.bf16.msra.mxu0 0
    %2349 = vmatpush.bf16.msra.mxu0 0
    %2350 = vmatpush.bf16.msra.mxu0 0
    %2351 = vmatpush.bf16.msra.mxu0 %v1219
    %2352 = vmatpush.bf16.msra.mxu0 %v1121
    %2353 = vmatmul.bf16.gmra.mxu0 %v1446
    %v2354 = vpop.f32.mrf.mxu0
    %v2355 = vadd.f32 %v337, %v2354
    %v2356 = vpop.f32.mrf.mxu0
    %2357 = vdwg.mxu0
    %2358 = vmatpush.bf16.msra.mxu0 0
    %2359 = vmatpush.bf16.msra.mxu0 0
    %2360 = vmatpush.bf16.msra.mxu0 0
    %2361 = vmatpush.bf16.msra.mxu0 0
    %2362 = vmatpush.bf16.msra.mxu0 0
    %2363 = vmatpush.bf16.msra.mxu0 0
    %2364 = vmatpush.bf16.msra.mxu0 %v1220
    %2365 = vmatpush.bf16.msra.mxu0 %v1122
    %2366 = vmatmul.bf16.gmra.mxu0 %v1446
    %v2367 = vpop.f32.mrf.mxu0
    %v2368 = vadd.f32 %v338, %v2367
    %v2369 = vpop.f32.mrf.mxu0
    %2370 = vdwg.mxu0
    %2371 = vmatpush.bf16.msra.mxu0 0
    %2372 = vmatpush.bf16.msra.mxu0 0
    %2373 = vmatpush.bf16.msra.mxu0 0
    %2374 = vmatpush.bf16.msra.mxu0 0
    %2375 = vmatpush.bf16.msra.mxu0 0
    %2376 = vmatpush.bf16.msra.mxu0 0
    %2377 = vmatpush.bf16.msra.mxu0 %v1221
    %2378 = vmatpush.bf16.msra.mxu0 %v1123
    %2379 = vmatmul.bf16.gmra.mxu0 %v1446
    %v2380 = vpop.f32.mrf.mxu0
    %v2381 = vadd.f32 %v339, %v2380
    %v2382 = vpop.f32.mrf.mxu0
    %2383 = vdwg.mxu0
    %2384 = vmatpush.bf16.msra.mxu0 0
    %2385 = vmatpush.bf16.msra.mxu0 0
    %2386 = vmatpush.bf16.msra.mxu0 0
    %2387 = vmatpush.bf16.msra.mxu0 0
    %2388 = vmatpush.bf16.msra.mxu0 0
    %2389 = vmatpush.bf16.msra.mxu0 0
    %2390 = vmatpush.bf16.msra.mxu0 %v1222
    %2391 = vmatpush.bf16.msra.mxu0 %v1124
    %2392 = vmatmul.bf16.gmra.mxu0 %v1446
    %v2393 = vpop.f32.mrf.mxu0
    %v2394 = vadd.f32 %v340, %v2393
    %v2395 = vpop.f32.mrf.mxu0
    %2396 = vdwg.mxu0
    %2397 = vmatpush.bf16.msra.mxu0 0
    %2398 = vmatpush.bf16.msra.mxu0 0
    %2399 = vmatpush.bf16.msra.mxu0 0
    %2400 = vmatpush.bf16.msra.mxu0 0
    %2401 = vmatpush.bf16.msra.mxu0 0
    %2402 = vmatpush.bf16.msra.mxu0 0
    %2403 = vmatpush.bf16.msra.mxu0 %v1223
    %2404 = vmatpush.bf16.msra.mxu0 %v1125
    %2405 = vmatmul.bf16.gmra.mxu0 %v1446
    %v2406 = vpop.f32.mrf.mxu0
    %v2407 = vadd.f32 %v341, %v2406
    %v2408 = vpop.f32.mrf.mxu0
    %2409 = vdwg.mxu0
    %2410 = vmatpush.bf16.msra.mxu0 0
    %2411 = vmatpush.bf16.msra.mxu0 0
    %2412 = vmatpush.bf16.msra.mxu0 0
    %2413 = vmatpush.bf16.msra.mxu0 0
    %2414 = vmatpush.bf16.msra.mxu0 0
    %2415 = vmatpush.bf16.msra.mxu0 0
    %2416 = vmatpush.bf16.msra.mxu0 %v1224
    %2417 = vmatpush.bf16.msra.mxu0 %v1126
    %2418 = vmatmul.bf16.gmra.mxu0 %v1446
    %v2419 = vpop.f32.mrf.mxu0
    %v2420 = vadd.f32 %v342, %v2419
    %v2421 = vpop.f32.mrf.mxu0
    %2422 = vdwg.mxu0
    %2423 = vmatpush.bf16.msra.mxu0 0
    %2424 = vmatpush.bf16.msra.mxu0 0
    %2425 = vmatpush.bf16.msra.mxu0 0
    %2426 = vmatpush.bf16.msra.mxu0 0
    %2427 = vmatpush.bf16.msra.mxu0 0
    %2428 = vmatpush.bf16.msra.mxu0 0
    %2429 = vmatpush.bf16.msra.mxu0 %v1225
    %2430 = vmatpush.bf16.msra.mxu0 %v1127
    %2431 = vmatmul.bf16.gmra.mxu0 %v1446
    %v2432 = vpop.f32.mrf.mxu0
    %v2433 = vadd.f32 %v343, %v2432
    %v2434 = vpop.f32.mrf.mxu0
    %2435 = vdwg.mxu0
    %2436 = vmatpush.bf16.msra.mxu0 0
    %2437 = vmatpush.bf16.msra.mxu0 0
    %2438 = vmatpush.bf16.msra.mxu0 0
    %2439 = vmatpush.bf16.msra.mxu0 0
    %2440 = vmatpush.bf16.msra.mxu0 0
    %2441 = vmatpush.bf16.msra.mxu0 0
    %2442 = vmatpush.bf16.msra.mxu0 %v1226
    %2443 = vmatpush.bf16.msra.mxu0 %v1128
    %2444 = vmatmul.bf16.gmra.mxu0 %v1446
    %v2445 = vpop.f32.mrf.mxu0
    %v2446 = vadd.f32 %v344, %v2445
    %v2447 = vpop.f32.mrf.mxu0
    %2448 = vdwg.mxu0
    %2449 = vmatpush.bf16.msra.mxu0 0
    %2450 = vmatpush.bf16.msra.mxu0 0
    %2451 = vmatpush.bf16.msra.mxu0 0
    %2452 = vmatpush.bf16.msra.mxu0 0
    %2453 = vmatpush.bf16.msra.mxu0 0
    %2454 = vmatpush.bf16.msra.mxu0 0
    %2455 = vmatpush.bf16.msra.mxu0 %v1227
    %2456 = vmatpush.bf16.msra.mxu0 %v1129
    %2457 = vmatmul.bf16.gmra.mxu0 %v1446
    %v2458 = vpop.f32.mrf.mxu0
    %v2459 = vadd.f32 %v345, %v2458
    %v2460 = vpop.f32.mrf.mxu0
    %2461 = vdwg.mxu0
    %2462 = vmatpush.bf16.msra.mxu0 0
    %2463 = vmatpush.bf16.msra.mxu0 0
    %2464 = vmatpush.bf16.msra.mxu0 0
    %2465 = vmatpush.bf16.msra.mxu0 0
    %2466 = vmatpush.bf16.msra.mxu0 0
    %2467 = vmatpush.bf16.msra.mxu0 0
    %2468 = vmatpush.bf16.msra.mxu0 %v1228
    %2469 = vmatpush.bf16.msra.mxu0 %v1130
    %2470 = vmatmul.bf16.gmra.mxu0 %v1446
    %v2471 = vpop.f32.mrf.mxu0
    %v2472 = vadd.f32 %v346, %v2471
    %v2473 = vpop.f32.mrf.mxu0
    %2474 = vdwg.mxu0
    %2475 = vmatpush.bf16.msra.mxu0 0
    %2476 = vmatpush.bf16.msra.mxu0 0
    %2477 = vmatpush.bf16.msra.mxu0 0
    %2478 = vmatpush.bf16.msra.mxu0 0
    %2479 = vmatpush.bf16.msra.mxu0 0
    %2480 = vmatpush.bf16.msra.mxu0 0
    %2481 = vmatpush.bf16.msra.mxu0 %v1229
    %2482 = vmatpush.bf16.msra.mxu0 %v1131
    %2483 = vmatmul.bf16.gmra.mxu0 %v1446
    %v2484 = vpop.f32.mrf.mxu0
    %v2485 = vadd.f32 %v347, %v2484
    %v2486 = vpop.f32.mrf.mxu0
    %2487 = vdwg.mxu0
    %2488 = vmatpush.bf16.msra.mxu0 0
    %2489 = vmatpush.bf16.msra.mxu0 0
    %2490 = vmatpush.bf16.msra.mxu0 0
    %2491 = vmatpush.bf16.msra.mxu0 0
    %2492 = vmatpush.bf16.msra.mxu0 0
    %2493 = vmatpush.bf16.msra.mxu0 0
    %2494 = vmatpush.bf16.msra.mxu0 %v1230
    %2495 = vmatpush.bf16.msra.mxu0 %v1132
    %2496 = vmatmul.bf16.gmra.mxu0 %v1446
    %v2497 = vpop.f32.mrf.mxu0
    %v2498 = vadd.f32 %v348, %v2497
    %v2499 = vpop.f32.mrf.mxu0
    %2500 = vdwg.mxu0
    %2501 = vmatpush.bf16.msra.mxu0 0
    %2502 = vmatpush.bf16.msra.mxu0 0
    %2503 = vmatpush.bf16.msra.mxu0 0
    %2504 = vmatpush.bf16.msra.mxu0 0
    %2505 = vmatpush.bf16.msra.mxu0 0
    %2506 = vmatpush.bf16.msra.mxu0 0
    %2507 = vmatpush.bf16.msra.mxu0 %v1231
    %2508 = vmatpush.bf16.msra.mxu0 %v1133
    %2509 = vmatmul.bf16.gmra.mxu0 %v1446
    %v2510 = vpop.f32.mrf.mxu0
    %v2511 = vadd.f32 %v349, %v2510
    %v2512 = vpop.f32.mrf.mxu0
    %2513 = vdwg.mxu0
    %2514 = vmatpush.bf16.msra.mxu0 0
    %2515 = vmatpush.bf16.msra.mxu0 0
    %2516 = vmatpush.bf16.msra.mxu0 0
    %2517 = vmatpush.bf16.msra.mxu0 0
    %2518 = vmatpush.bf16.msra.mxu0 0
    %2519 = vmatpush.bf16.msra.mxu0 0
    %2520 = vmatpush.bf16.msra.mxu0 %v1232
    %2521 = vmatpush.bf16.msra.mxu0 %v1134
    %2522 = vmatmul.bf16.gmra.mxu0 %v1446
    %v2523 = vpop.f32.mrf.mxu0
    %v2524 = vadd.f32 %v350, %v2523
    %v2525 = vpop.f32.mrf.mxu0
    %2526 = vdwg.mxu0
    %2527 = vmatpush.bf16.msra.mxu0 0
    %2528 = vmatpush.bf16.msra.mxu0 0
    %2529 = vmatpush.bf16.msra.mxu0 0
    %2530 = vmatpush.bf16.msra.mxu0 0
    %2531 = vmatpush.bf16.msra.mxu0 0
    %2532 = vmatpush.bf16.msra.mxu0 0
    %2533 = vmatpush.bf16.msra.mxu0 %v1233
    %2534 = vmatpush.bf16.msra.mxu0 %v1135
    %2535 = vmatmul.bf16.gmra.mxu0 %v1446
    %v2536 = vpop.f32.mrf.mxu0
    %v2537 = vadd.f32 %v351, %v2536
    %v2538 = vpop.f32.mrf.mxu0
    %2539 = vdwg.mxu0
    %2540 = vmatpush.bf16.msra.mxu0 0
    %2541 = vmatpush.bf16.msra.mxu0 0
    %2542 = vmatpush.bf16.msra.mxu0 0
    %2543 = vmatpush.bf16.msra.mxu0 0
    %2544 = vmatpush.bf16.msra.mxu0 0
    %2545 = vmatpush.bf16.msra.mxu0 0
    %2546 = vmatpush.bf16.msra.mxu0 %v1234
    %2547 = vmatpush.bf16.msra.mxu0 %v1136
    %2548 = vmatmul.bf16.gmra.mxu0 %v1446
    %v2549 = vpop.f32.mrf.mxu0
    %v2550 = vadd.f32 %v352, %v2549
    %v2551 = vpop.f32.mrf.mxu0
    %2552 = vdwg.mxu0
    %2553 = vmatpush.bf16.msra.mxu0 0
    %2554 = vmatpush.bf16.msra.mxu0 0
    %2555 = vmatpush.bf16.msra.mxu0 0
    %2556 = vmatpush.bf16.msra.mxu0 0
    %2557 = vmatpush.bf16.msra.mxu0 0
    %2558 = vmatpush.bf16.msra.mxu0 0
    %2559 = vmatpush.bf16.msra.mxu0 %v1235
    %2560 = vmatpush.bf16.msra.mxu0 %v1137
    %2561 = vmatmul.bf16.gmra.mxu0 %v1446
    %v2562 = vpop.f32.mrf.mxu0
    %v2563 = vadd.f32 %v353, %v2562
    %v2564 = vpop.f32.mrf.mxu0
    %2565 = vdwg.mxu0
    %2566 = vmatpush.bf16.msra.mxu0 0
    %2567 = vmatpush.bf16.msra.mxu0 0
    %2568 = vmatpush.bf16.msra.mxu0 0
    %2569 = vmatpush.bf16.msra.mxu0 0
    %2570 = vmatpush.bf16.msra.mxu0 0
    %2571 = vmatpush.bf16.msra.mxu0 0
    %2572 = vmatpush.bf16.msra.mxu0 %v1236
    %2573 = vmatpush.bf16.msra.mxu0 %v1138
    %2574 = vmatmul.bf16.gmra.mxu0 %v1446
    %v2575 = vpop.f32.mrf.mxu0
    %v2576 = vadd.f32 %v354, %v2575
    %v2577 = vpop.f32.mrf.mxu0
    %2578 = vdwg.mxu0
    %2579 = vmatpush.bf16.msra.mxu0 0
    %2580 = vmatpush.bf16.msra.mxu0 0
    %2581 = vmatpush.bf16.msra.mxu0 0
    %2582 = vmatpush.bf16.msra.mxu0 0
    %2583 = vmatpush.bf16.msra.mxu0 0
    %2584 = vmatpush.bf16.msra.mxu0 0
    %2585 = vmatpush.bf16.msra.mxu0 %v1237
    %2586 = vmatpush.bf16.msra.mxu0 %v1139
    %2587 = vmatmul.bf16.gmra.mxu0 %v1446
    %v2588 = vpop.f32.mrf.mxu0
    %v2589 = vadd.f32 %v355, %v2588
    %v2590 = vpop.f32.mrf.mxu0
    %2591 = vdwg.mxu0
    %2592 = vmatpush.bf16.msra.mxu0 0
    %2593 = vmatpush.bf16.msra.mxu0 0
    %2594 = vmatpush.bf16.msra.mxu0 0
    %2595 = vmatpush.bf16.msra.mxu0 0
    %2596 = vmatpush.bf16.msra.mxu0 0
    %2597 = vmatpush.bf16.msra.mxu0 0
    %2598 = vmatpush.bf16.msra.mxu0 %v1238
    %2599 = vmatpush.bf16.msra.mxu0 %v1140
    %2600 = vmatmul.bf16.gmra.mxu0 %v1446
    %v2601 = vpop.f32.mrf.mxu0
    %v2602 = vadd.f32 %v356, %v2601
    %v2603 = vpop.f32.mrf.mxu0
    %2604 = vdwg.mxu0
    %2605 = vmatpush.bf16.msra.mxu0 0
    %2606 = vmatpush.bf16.msra.mxu0 0
    %2607 = vmatpush.bf16.msra.mxu0 0
    %2608 = vmatpush.bf16.msra.mxu0 0
    %2609 = vmatpush.bf16.msra.mxu0 0
    %2610 = vmatpush.bf16.msra.mxu0 0
    %2611 = vmatpush.bf16.msra.mxu0 %v1239
    %2612 = vmatpush.bf16.msra.mxu0 %v1141
    %2613 = vmatmul.bf16.gmra.mxu0 %v1446
    %v2614 = vpop.f32.mrf.mxu0
    %v2615 = vadd.f32 %v357, %v2614
    %v2616 = vpop.f32.mrf.mxu0
    %2617 = vdwg.mxu0
    %2618 = vmatpush.bf16.msra.mxu0 0
    %2619 = vmatpush.bf16.msra.mxu0 0
    %2620 = vmatpush.bf16.msra.mxu0 0
    %2621 = vmatpush.bf16.msra.mxu0 0
    %2622 = vmatpush.bf16.msra.mxu0 0
    %2623 = vmatpush.bf16.msra.mxu0 0
    %2624 = vmatpush.bf16.msra.mxu0 %v1240
    %2625 = vmatpush.bf16.msra.mxu0 %v1142
    %2626 = vmatmul.bf16.gmra.mxu0 %v1446
    %v2627 = vpop.f32.mrf.mxu0
    %v2628 = vadd.f32 %v358, %v2627
    %v2629 = vpop.f32.mrf.mxu0
    %2630 = vdwg.mxu0
    %2631 = vmatpush.bf16.msra.mxu0 0
    %2632 = vmatpush.bf16.msra.mxu0 0
    %2633 = vmatpush.bf16.msra.mxu0 0
    %2634 = vmatpush.bf16.msra.mxu0 0
    %2635 = vmatpush.bf16.msra.mxu0 0
    %2636 = vmatpush.bf16.msra.mxu0 0
    %2637 = vmatpush.bf16.msra.mxu0 %v1241
    %2638 = vmatpush.bf16.msra.mxu0 %v1143
    %2639 = vmatmul.bf16.gmra.mxu0 %v1446
    %v2640 = vpop.f32.mrf.mxu0
    %v2641 = vadd.f32 %v359, %v2640
    %v2642 = vpop.f32.mrf.mxu0
    %2643 = vdwg.mxu0
    %2644 = vmatpush.bf16.msra.mxu0 0
    %2645 = vmatpush.bf16.msra.mxu0 0
    %2646 = vmatpush.bf16.msra.mxu0 0
    %2647 = vmatpush.bf16.msra.mxu0 0
    %2648 = vmatpush.bf16.msra.mxu0 0
    %2649 = vmatpush.bf16.msra.mxu0 0
    %2650 = vmatpush.bf16.msra.mxu0 %v1242
    %2651 = vmatpush.bf16.msra.mxu0 %v1144
    %2652 = vmatmul.bf16.gmra.mxu0 %v1446
    %v2653 = vpop.f32.mrf.mxu0
    %v2654 = vadd.f32 %v360, %v2653
    %v2655 = vpop.f32.mrf.mxu0
    %2656 = vdwg.mxu0
    %2657 = vmatpush.bf16.msra.mxu0 0
    %2658 = vmatpush.bf16.msra.mxu0 0
    %2659 = vmatpush.bf16.msra.mxu0 0
    %2660 = vmatpush.bf16.msra.mxu0 0
    %2661 = vmatpush.bf16.msra.mxu0 0
    %2662 = vmatpush.bf16.msra.mxu0 0
    %2663 = vmatpush.bf16.msra.mxu0 %v1243
    %2664 = vmatpush.bf16.msra.mxu0 %v1145
    %2665 = vmatmul.bf16.gmra.mxu0 %v1446
    %v2666 = vpop.f32.mrf.mxu0
    %v2667 = vadd.f32 %v361, %v2666
    %v2668 = vpop.f32.mrf.mxu0
    %2669 = vdwg.mxu0
    %2670 = vmatpush.bf16.msra.mxu0 0
    %2671 = vmatpush.bf16.msra.mxu0 0
    %2672 = vmatpush.bf16.msra.mxu0 0
    %2673 = vmatpush.bf16.msra.mxu0 0
    %2674 = vmatpush.bf16.msra.mxu0 0
    %2675 = vmatpush.bf16.msra.mxu0 0
    %2676 = vmatpush.bf16.msra.mxu0 %v1244
    %2677 = vmatpush.bf16.msra.mxu0 %v1146
    %2678 = vmatmul.bf16.gmra.mxu0 %v1446
    %v2679 = vpop.f32.mrf.mxu0
    %v2680 = vadd.f32 %v362, %v2679
    %v2681 = vpop.f32.mrf.mxu0
    %2682 = vdwg.mxu0
    %2683 = vmatpush.bf16.msra.mxu0 0
    %2684 = vmatpush.bf16.msra.mxu0 0
    %2685 = vmatpush.bf16.msra.mxu0 0
    %2686 = vmatpush.bf16.msra.mxu0 0
    %2687 = vmatpush.bf16.msra.mxu0 0
    %2688 = vmatpush.bf16.msra.mxu0 0
    %2689 = vmatpush.bf16.msra.mxu0 %v1245
    %2690 = vmatpush.bf16.msra.mxu0 %v1147
    %2691 = vmatmul.bf16.gmra.mxu0 %v1446
    %v2692 = vpop.f32.mrf.mxu0
    %v2693 = vadd.f32 %v363, %v2692
    %v2694 = vpop.f32.mrf.mxu0
    %2695 = vdwg.mxu0
    %2696 = vmatpush.bf16.msra.mxu0 0
    %2697 = vmatpush.bf16.msra.mxu0 0
    %2698 = vmatpush.bf16.msra.mxu0 0
    %2699 = vmatpush.bf16.msra.mxu0 0
    %2700 = vmatpush.bf16.msra.mxu0 0
    %2701 = vmatpush.bf16.msra.mxu0 0
    %2702 = vmatpush.bf16.msra.mxu0 %v1246
    %2703 = vmatpush.bf16.msra.mxu0 %v1148
    %2704 = vmatmul.bf16.gmra.mxu0 %v1446
    %v2705 = vpop.f32.mrf.mxu0
    %v2706 = vadd.f32 %v364, %v2705
    %v2707 = vpop.f32.mrf.mxu0
    %2708 = vdwg.mxu0
    %2709 = vmatpush.bf16.msra.mxu0 0
    %2710 = vmatpush.bf16.msra.mxu0 0
    %2711 = vmatpush.bf16.msra.mxu0 0
    %2712 = vmatpush.bf16.msra.mxu0 0
    %2713 = vmatpush.bf16.msra.mxu0 0
    %2714 = vmatpush.bf16.msra.mxu0 0
    %2715 = vmatpush.bf16.msra.mxu0 %v1247
    %2716 = vmatpush.bf16.msra.mxu0 %v1149
    %2717 = vmatmul.bf16.gmra.mxu0 %v1446
    %v2718 = vpop.f32.mrf.mxu0
    %v2719 = vadd.f32 %v365, %v2718
    %v2720 = vpop.f32.mrf.mxu0
    %2721 = vdwg.mxu0
    %v2722 = vmax.f32 %v1458, 0.0
    %v2723 = vmax.f32 %v1471, 0.0
    %v2724 = vmax.f32 %v1484, 0.0
    %v2725 = vmax.f32 %v1497, 0.0
    %v2726 = vmax.f32 %v1510, 0.0
    %v2727 = vmax.f32 %v1523, 0.0
    %v2728 = vmax.f32 %v1536, 0.0
    %v2729 = vmax.f32 %v1549, 0.0
    %v2730 = vmax.f32 %v1562, 0.0
    %v2731 = vmax.f32 %v1575, 0.0
    %v2732 = vmax.f32 %v1588, 0.0
    %v2733 = vmax.f32 %v1601, 0.0
    %v2734 = vmax.f32 %v1614, 0.0
    %v2735 = vmax.f32 %v1627, 0.0
    %v2736 = vmax.f32 %v1640, 0.0
    %v2737 = vmax.f32 %v1653, 0.0
    %v2738 = vmax.f32 %v1666, 0.0
    %v2739 = vmax.f32 %v1679, 0.0
    %v2740 = vmax.f32 %v1692, 0.0
    %v2741 = vmax.f32 %v1705, 0.0
    %v2742 = vmax.f32 %v1718, 0.0
    %v2743 = vmax.f32 %v1731, 0.0
    %v2744 = vmax.f32 %v1744, 0.0
    %v2745 = vmax.f32 %v1757, 0.0
    %v2746 = vmax.f32 %v1770, 0.0
    %v2747 = vmax.f32 %v1783, 0.0
    %v2748 = vmax.f32 %v1796, 0.0
    %v2749 = vmax.f32 %v1809, 0.0
    %v2750 = vmax.f32 %v1822, 0.0
    %v2751 = vmax.f32 %v1835, 0.0
    %v2752 = vmax.f32 %v1848, 0.0
    %v2753 = vmax.f32 %v1861, 0.0
    %v2754 = vmax.f32 %v1874, 0.0
    %v2755 = vmax.f32 %v1887, 0.0
    %v2756 = vmax.f32 %v1900, 0.0
    %v2757 = vmax.f32 %v1913, 0.0
    %v2758 = vmax.f32 %v1926, 0.0
    %v2759 = vmax.f32 %v1939, 0.0
    %v2760 = vmax.f32 %v1952, 0.0
    %v2761 = vmax.f32 %v1965, 0.0
    %v2762 = vmax.f32 %v1978, 0.0
    %v2763 = vmax.f32 %v1991, 0.0
    %v2764 = vmax.f32 %v2004, 0.0
    %v2765 = vmax.f32 %v2017, 0.0
    %v2766 = vmax.f32 %v2030, 0.0
    %v2767 = vmax.f32 %v2043, 0.0
    %v2768 = vmax.f32 %v2056, 0.0
    %v2769 = vmax.f32 %v2069, 0.0
    %v2770 = vmax.f32 %v2082, 0.0
    %v2771 = vmax.f32 %v2095, 0.0
    %v2772 = vmax.f32 %v2108, 0.0
    %v2773 = vmax.f32 %v2121, 0.0
    %v2774 = vmax.f32 %v2134, 0.0
    %v2775 = vmax.f32 %v2147, 0.0
    %v2776 = vmax.f32 %v2160, 0.0
    %v2777 = vmax.f32 %v2173, 0.0
    %v2778 = vmax.f32 %v2186, 0.0
    %v2779 = vmax.f32 %v2199, 0.0
    %v2780 = vmax.f32 %v2212, 0.0
    %v2781 = vmax.f32 %v2225, 0.0
    %v2782 = vmax.f32 %v2238, 0.0
    %v2783 = vmax.f32 %v2251, 0.0
    %v2784 = vmax.f32 %v2264, 0.0
    %v2785 = vmax.f32 %v2277, 0.0
    %v2786 = vmax.f32 %v2290, 0.0
    %v2787 = vmax.f32 %v2303, 0.0
    %v2788 = vmax.f32 %v2316, 0.0
    %v2789 = vmax.f32 %v2329, 0.0
    %v2790 = vmax.f32 %v2342, 0.0
    %v2791 = vmax.f32 %v2355, 0.0
    %v2792 = vmax.f32 %v2368, 0.0
    %v2793 = vmax.f32 %v2381, 0.0
    %v2794 = vmax.f32 %v2394, 0.0
    %v2795 = vmax.f32 %v2407, 0.0
    %v2796 = vmax.f32 %v2420, 0.0
    %v2797 = vmax.f32 %v2433, 0.0
    %v2798 = vmax.f32 %v2446, 0.0
    %v2799 = vmax.f32 %v2459, 0.0
    %v2800 = vmax.f32 %v2472, 0.0
    %v2801 = vmax.f32 %v2485, 0.0
    %v2802 = vmax.f32 %v2498, 0.0
    %v2803 = vmax.f32 %v2511, 0.0
    %v2804 = vmax.f32 %v2524, 0.0
    %v2805 = vmax.f32 %v2537, 0.0
    %v2806 = vmax.f32 %v2550, 0.0
    %v2807 = vmax.f32 %v2563, 0.0
    %v2808 = vmax.f32 %v2576, 0.0
    %v2809 = vmax.f32 %v2589, 0.0
    %v2810 = vmax.f32 %v2602, 0.0
    %v2811 = vmax.f32 %v2615, 0.0
    %v2812 = vmax.f32 %v2628, 0.0
    %v2813 = vmax.f32 %v2641, 0.0
    %v2814 = vmax.f32 %v2654, 0.0
    %v2815 = vmax.f32 %v2667, 0.0
    %v2816 = vmax.f32 %v2680, 0.0
    %v2817 = vmax.f32 %v2693, 0.0
    %v2818 = vmax.f32 %v2706, 0.0
    %v2819 = vmax.f32 %v2719, 0.0
    %v2820 = vpack.c.bf16 %v2723, %v2722
    %v2821 = vpack.c.bf16 %v2725, %v2724
    %v2822 = vpack.c.bf16 %v2727, %v2726
    %v2823 = vpack.c.bf16 %v2729, %v2728
    %v2824 = vpack.c.bf16 %v2731, %v2730
    %v2825 = vpack.c.bf16 %v2733, %v2732
    %v2826 = vpack.c.bf16 %v2735, %v2734
    %v2827 = vpack.c.bf16 %v2737, %v2736
    %v2828 = vpack.c.bf16 %v2739, %v2738
    %v2829 = vpack.c.bf16 %v2741, %v2740
    %v2830 = vpack.c.bf16 %v2743, %v2742
    %v2831 = vpack.c.bf16 %v2745, %v2744
    %v2832 = vpack.c.bf16 %v2747, %v2746
    %v2833 = vpack.c.bf16 %v2749, %v2748
    %v2834 = vpack.c.bf16 %v2751, %v2750
    %v2835 = vpack.c.bf16 %v2753, %v2752
    %v2836 = vpack.c.bf16 %v2755, %v2754
    %v2837 = vpack.c.bf16 %v2757, %v2756
    %v2838 = vpack.c.bf16 %v2759, %v2758
    %v2839 = vpack.c.bf16 %v2761, %v2760
    %v2840 = vpack.c.bf16 %v2763, %v2762
    %v2841 = vpack.c.bf16 %v2765, %v2764
    %v2842 = vpack.c.bf16 %v2767, %v2766
    %v2843 = vpack.c.bf16 %v2769, %v2768
    %v2844 = vpack.c.bf16 %v2771, %v2770
    %v2845 = vpack.c.bf16 %v2773, %v2772
    %v2846 = vpack.c.bf16 %v2775, %v2774
    %v2847 = vpack.c.bf16 %v2777, %v2776
    %v2848 = vpack.c.bf16 %v2779, %v2778
    %v2849 = vpack.c.bf16 %v2781, %v2780
    %v2850 = vpack.c.bf16 %v2783, %v2782
    %v2851 = vpack.c.bf16 %v2785, %v2784
    %v2852 = vpack.c.bf16 %v2787, %v2786
    %v2853 = vpack.c.bf16 %v2789, %v2788
    %v2854 = vpack.c.bf16 %v2791, %v2790
    %v2855 = vpack.c.bf16 %v2793, %v2792
    %v2856 = vpack.c.bf16 %v2795, %v2794
    %v2857 = vpack.c.bf16 %v2797, %v2796
    %v2858 = vpack.c.bf16 %v2799, %v2798
    %v2859 = vpack.c.bf16 %v2801, %v2800
    %v2860 = vpack.c.bf16 %v2803, %v2802
    %v2861 = vpack.c.bf16 %v2805, %v2804
    %v2862 = vpack.c.bf16 %v2807, %v2806
    %v2863 = vpack.c.bf16 %v2809, %v2808
    %v2864 = vpack.c.bf16 %v2811, %v2810
    %v2865 = vpack.c.bf16 %v2813, %v2812
    %v2866 = vpack.c.bf16 %v2815, %v2814
    %v2867 = vpack.c.bf16 %v2817, %v2816
    %v2868 = vpack.c.bf16 %v2819, %v2818
    %v2918 = vrot.slane %v2820, 3
    %v2919 = vrot.slane %v2821, 6
    %v2920 = vrot.slane %v2821, 1
    %v2921 = vrot.slane %v2822, 4
    %v2922 = vrot.slane %v2822, 7
    %v2923 = vrot.slane %v2823, 2
    %v2924 = vrot.slane %v2823, 5
    %v2925 = vrot.slane %v2824, 3
    %v2926 = vrot.slane %v2825, 6
    %v2927 = vrot.slane %v2825, 1
    %v2928 = vrot.slane %v2826, 4
    %v2929 = vrot.slane %v2826, 7
    %v2930 = vrot.slane %v2827, 2
    %v2931 = vrot.slane %v2827, 5
    %v2932 = vrot.slane %v2828, 3
    %v2933 = vrot.slane %v2829, 6
    %v2934 = vrot.slane %v2829, 1
    %v2935 = vrot.slane %v2830, 4
    %v2936 = vrot.slane %v2830, 7
    %v2937 = vrot.slane %v2831, 2
    %v2938 = vrot.slane %v2831, 5
    %v2939 = vrot.slane %v2832, 3
    %v2940 = vrot.slane %v2833, 6
    %v2941 = vrot.slane %v2833, 1
    %v2942 = vrot.slane %v2834, 4
    %v2943 = vrot.slane %v2834, 7
    %v2944 = vrot.slane %v2835, 2
    %v2945 = vrot.slane %v2835, 5
    %v2946 = vrot.slane %v2836, 3
    %v2947 = vrot.slane %v2837, 6
    %v2948 = vrot.slane %v2837, 1
    %v2949 = vrot.slane %v2838, 4
    %v2950 = vrot.slane %v2838, 7
    %v2951 = vrot.slane %v2839, 2
    %v2952 = vrot.slane %v2839, 5
    %v2953 = vrot.slane %v2840, 3
    %v2954 = vrot.slane %v2841, 6
    %v2955 = vrot.slane %v2841, 1
    %v2956 = vrot.slane %v2842, 4
    %v2957 = vrot.slane %v2842, 7
    %v2958 = vrot.slane %v2843, 2
    %v2959 = vrot.slane %v2843, 5
    %v2960 = vrot.slane %v2844, 3
    %v2961 = vrot.slane %v2845, 6
    %v2962 = vrot.slane %v2845, 1
    %v2963 = vrot.slane %v2846, 4
    %v2964 = vrot.slane %v2846, 7
    %v2965 = vrot.slane %v2847, 2
    %v2966 = vrot.slane %v2847, 5
    %v2967 = vrot.slane %v2848, 3
    %v2968 = vrot.slane %v2849, 6
    %v2969 = vrot.slane %v2849, 1
    %v2970 = vrot.slane %v2850, 4
    %v2971 = vrot.slane %v2850, 7
    %v2972 = vrot.slane %v2851, 2
    %v2973 = vrot.slane %v2851, 5
    %v2974 = vrot.slane %v2852, 3
    %v2975 = vrot.slane %v2853, 6
    %v2976 = vrot.slane %v2853, 1
    %v2977 = vrot.slane %v2854, 4
    %v2978 = vrot.slane %v2854, 7
    %v2979 = vrot.slane %v2855, 2
    %v2980 = vrot.slane %v2855, 5
    %v2981 = vrot.slane %v2856, 3
    %v2982 = vrot.slane %v2857, 6
    %v2983 = vrot.slane %v2857, 1
    %v2984 = vrot.slane %v2858, 4
    %v2985 = vrot.slane %v2858, 7
    %v2986 = vrot.slane %v2859, 2
    %v2987 = vrot.slane %v2859, 5
    %v2988 = vrot.slane %v2860, 3
    %v2989 = vrot.slane %v2861, 6
    %v2990 = vrot.slane %v2861, 1
    %v2991 = vrot.slane %v2862, 4
    %v2992 = vrot.slane %v2862, 7
    %v2993 = vrot.slane %v2863, 2
    %v2994 = vrot.slane %v2863, 5
    %v2995 = vrot.slane %v2864, 3
    %v2996 = vrot.slane %v2865, 6
    %v2997 = vrot.slane %v2865, 1
    %v2998 = vrot.slane %v2866, 4
    %v2999 = vrot.slane %v2866, 7
    %v3000 = vrot.slane %v2867, 2
    %v3001 = vrot.slane %v2867, 5
    %v3002 = vrot.slane %v2868, 3
    %vm3003 = vcmask 1040384
    %v3006 = vsel %vm3003, %v2820, %v2918
    %vm3007 = vcmask 1042434
    %v3010 = vsel %vm3007, %v2919, %v2920
    %vm3011 = vcmask 1041408
    %v3012 = vsel %vm3011, %v3006, %v3010
    %vm3013 = vcmask 1044484
    %v3016 = vsel %vm3013, %v2921, %v2922
    %vm3017 = vcmask 1046534
    %v3020 = vsel %vm3017, %v2923, %v2924
    %vm3021 = vcmask 1045508
    %v3022 = vsel %vm3021, %v3016, %v3020
    %vm3023 = vcmask 1043456
    %v3024 = vsel %vm3023, %v3012, %v3022
    %v3027 = vsel %vm3003, %v2824, %v2925
    %v3030 = vsel %vm3007, %v2926, %v2927
    %v3031 = vsel %vm3011, %v3027, %v3030
    %v3034 = vsel %vm3013, %v2928, %v2929
    %v3037 = vsel %vm3017, %v2930, %v2931
    %v3038 = vsel %vm3021, %v3034, %v3037
    %v3039 = vsel %vm3023, %v3031, %v3038
    %v3042 = vsel %vm3003, %v2828, %v2932
    %v3045 = vsel %vm3007, %v2933, %v2934
    %v3046 = vsel %vm3011, %v3042, %v3045
    %v3049 = vsel %vm3013, %v2935, %v2936
    %v3052 = vsel %vm3017, %v2937, %v2938
    %v3053 = vsel %vm3021, %v3049, %v3052
    %v3054 = vsel %vm3023, %v3046, %v3053
    %v3057 = vsel %vm3003, %v2832, %v2939
    %v3060 = vsel %vm3007, %v2940, %v2941
    %v3061 = vsel %vm3011, %v3057, %v3060
    %v3064 = vsel %vm3013, %v2942, %v2943
    %v3067 = vsel %vm3017, %v2944, %v2945
    %v3068 = vsel %vm3021, %v3064, %v3067
    %v3069 = vsel %vm3023, %v3061, %v3068
    %v3072 = vsel %vm3003, %v2836, %v2946
    %v3075 = vsel %vm3007, %v2947, %v2948
    %v3076 = vsel %vm3011, %v3072, %v3075
    %v3079 = vsel %vm3013, %v2949, %v2950
    %v3082 = vsel %vm3017, %v2951, %v2952
    %v3083 = vsel %vm3021, %v3079, %v3082
    %v3084 = vsel %vm3023, %v3076, %v3083
    %v3087 = vsel %vm3003, %v2840, %v2953
    %v3090 = vsel %vm3007, %v2954, %v2955
    %v3091 = vsel %vm3011, %v3087, %v3090
    %v3094 = vsel %vm3013, %v2956, %v2957
    %v3097 = vsel %vm3017, %v2958, %v2959
    %v3098 = vsel %vm3021, %v3094, %v3097
    %v3099 = vsel %vm3023, %v3091, %v3098
    %v3102 = vsel %vm3003, %v2844, %v2960
    %v3105 = vsel %vm3007, %v2961, %v2962
    %v3106 = vsel %vm3011, %v3102, %v3105
    %v3109 = vsel %vm3013, %v2963, %v2964
    %v3112 = vsel %vm3017, %v2965, %v2966
    %v3113 = vsel %vm3021, %v3109, %v3112
    %v3114 = vsel %vm3023, %v3106, %v3113
    %v3117 = vsel %vm3003, %v2848, %v2967
    %v3120 = vsel %vm3007, %v2968, %v2969
    %v3121 = vsel %vm3011, %v3117, %v3120
    %v3124 = vsel %vm3013, %v2970, %v2971
    %v3127 = vsel %vm3017, %v2972, %v2973
    %v3128 = vsel %vm3021, %v3124, %v3127
    %v3129 = vsel %vm3023, %v3121, %v3128
    %v3132 = vsel %vm3003, %v2852, %v2974
    %v3135 = vsel %vm3007, %v2975, %v2976
    %v3136 = vsel %vm3011, %v3132, %v3135
    %v3139 = vsel %vm3013, %v2977, %v2978
    %v3142 = vsel %vm3017, %v2979, %v2980
    %v3143 = vsel %vm3021, %v3139, %v3142
    %v3144 = vsel %vm3023, %v3136, %v3143
    %v3147 = vsel %vm3003, %v2856, %v2981
    %v3150 = vsel %vm3007, %v2982, %v2983
    %v3151 = vsel %vm3011, %v3147, %v3150
    %v3154 = vsel %vm3013, %v2984, %v2985
    %v3157 = vsel %vm3017, %v2986, %v2987
    %v3158 = vsel %vm3021, %v3154, %v3157
    %v3159 = vsel %vm3023, %v3151, %v3158
    %v3162 = vsel %vm3003, %v2860, %v2988
    %v3165 = vsel %vm3007, %v2989, %v2990
    %v3166 = vsel %vm3011, %v3162, %v3165
    %v3169 = vsel %vm3013, %v2991, %v2992
    %v3172 = vsel %vm3017, %v2993, %v2994
    %v3173 = vsel %vm3021, %v3169, %v3172
    %v3174 = vsel %vm3023, %v3166, %v3173
    %v3177 = vsel %vm3003, %v2864, %v2995
    %v3180 = vsel %vm3007, %v2996, %v2997
    %v3181 = vsel %vm3011, %v3177, %v3180
    %v3184 = vsel %vm3013, %v2998, %v2999
    %v3187 = vsel %vm3017, %v3000, %v3001
    %v3188 = vsel %vm3021, %v3184, %v3187
    %v3189 = vsel %vm3023, %v3181, %v3188
    %v3192 = vsel %vm3003, %v2868, %v3002
    %3206 = vst [vmem:[%s3] sm:$0xff] %v3024
    %3207 = vst [vmem:[%s3 + $0x8] sm:$0xff] %v3039
    %3208 = vst [vmem:[%s3 + $0x10] sm:$0xff] %v3054
    %3209 = vst [vmem:[%s3 + $0x18] sm:$0xff] %v3069
    %3210 = vst [vmem:[%s3 + $0x20] sm:$0xff] %v3084
    %3211 = vst [vmem:[%s3 + $0x28] sm:$0xff] %v3099
    %3212 = vst [vmem:[%s3 + $0x30] sm:$0xff] %v3114
    %3213 = vst [vmem:[%s3 + $0x38] sm:$0xff] %v3129
    %3214 = vst [vmem:[%s3 + $0x40] sm:$0xff] %v3144
    %3215 = vst [vmem:[%s3 + $0x48] sm:$0xff] %v3159
    %3216 = vst [vmem:[%s3 + $0x50] sm:$0xff] %v3174
    %3217 = vst [vmem:[%s3 + $0x58] sm:$0xff] %v3189
    %3218 = vst [vmem:[%s3 + $0x60] sm:$0x3] %v3192
    // Predicated region
    $region22: #{decoder_forward.2} parent=1 // pred_check
      _
    $region23: #{decoder_forward.2} parent=1 // pred_check_branch
      %3220 = sbr.rel (0) target = $region25
    $region24: #{decoder_forward.2} parent=1 // pred_region
      _
    $region25: #{decoder_forward.2} parent=1 // pred_fallthru
      _
    // Predicated region
    $region26: #{decoder_forward.2} parent=1 // pred_check
      _
    $region27: #{decoder_forward.2} parent=1 // pred_check_branch
      %3222 = sbr.rel (0) target = $region29
    $region28: #{decoder_forward.2} parent=1 // pred_region
      _
    $region29: #{decoder_forward.2} parent=1 // pred_fallthru
      _
    %3223 = vsyncpa [#allocation3], 1
    %3224 = vsyncpa [#allocation5], 1

// kernel: decoder_forward.3
$region0: #{decoder_forward.3}
  #allocation0 [shape = 'u32[]', space=smem, size = 0x4, offset = 0x4, fixed_abs, tag = 'smem constant byte address 0x4 - core index']
  #allocation1 [shape = 'u32[72,128]{1,0:T(1,128)}', space=vmem, size = 0x9000, scoped, tag = 'internal scratch']
  #allocation2 [shape = 'bf16[216,64]{1,0:T(8,128)(2,1)}', space=vmem, size = 0xd800, scoped, tag = 'scratch operand']
  #allocation3 [shape = 'bf16[232,64]{1,0:T(8,128)(2,1)}', space=vmem, size = 0xe800, scoped, tag = 'scratch operand']
  #allocation4 [shape = 'bf16[232,64]{1,0:T(8,128)(2,1)}', space=vmem, size = 0xe800, scoped, tag = 'scratch operand']
  %s0 = inlined_call_operand.vmem [shape: bf16[2,196,64], index: 0, kind: input, shape index: {}]
  %s1 = inlined_call_operand.vmem [shape: bf16[6,64,64], index: 1, kind: input, shape index: {}]
  %s2 = inlined_call_operand.vmem [shape: f32[1,64], index: 2, kind: input, shape index: {}]
  %s3 = inlined_call_operand.vmem [shape: bf16[12,64,4], index: 3, kind: input, shape index: {}]
  %s4 = inlined_call_operand.vmem [shape: f32[1,4], index: 4, kind: input, shape index: {}]
  %s5 = inlined_call_operand.vmem [shape: f32[2,196,4], index: 5, kind: output, shape index: {}]
  %s6 = sld [smem:[#allocation0]]
  $region53: #{decoder_forward.3} parent=0
    _
  %s8 = ssub.s32 1, %s6
  %s9 = scalar_select 0, %s8, %s6
  loop: start=0, step=1, limit=4
  $region2: #{decoder_forward.3} parent=0 // loop_pre_header
    _
  $region3: #{decoder_forward.3} parent=0 // loop_header
    %s11 = sphi 0, %s15
    %p12 = scmp.ge.s32.totalorder %s11, 4
    %s21 = sphi 0, %s23
    %s24 = sphi 0, %s21
    %s25 = sphi 0, %s24
    %s41 = sphi 0, %s25
    %s45 = sphi 0, %s45
    %s47 = sphi 0, %s45
    %s48 = sphi 0, %s47
    %s62 = sphi 0, %s48
    %s66 = sphi 0, %s66
    %s68 = sphi 0, %s66
    %s69 = sphi 0, %s68
    %s83 = sphi 0, %s69
    %s87 = sphi 0, %s87
    %s89 = sphi 0, %s87
    %s90 = sphi 0, %s89
    %s104 = sphi 0, %s90
    %s108 = sphi 0, %s108
    %s110 = sphi 0, %s108
    %s111 = sphi 0, %s110
    %s125 = sphi 0, %s111
    %s131 = sphi 0, %s133
    %s134 = sphi 0, %s131
    %s135 = sphi 0, %s134
    %s151 = sphi 0, %s135
  $region4: #{decoder_forward.3} parent=0 // loop_header_branch
    %14 = sbr.rel (%p12) target = $region8
  $region5: #{decoder_forward.3} parent=0 // loop_body
    %s16 = ssub.s32 %s11, 1
    %s17 = ssub.s32 %s11, 2
    %s18 = sadd.s32 %s11, 1
    %s19 = ssub.s32 %s11, %s18
    %p20 = scmp.eq.s32.totalorder %s19, 0
    %s22 = sadd.s32 %s21, 1
    %s23 = scalar_select %p20, %s21, %s22
    %p26 = pneg %p20
    %p27 = scmp.eq.s32.totalorder %s11, 1
    %p28 = por %p26, %p27
    %p29 = scmp.ne.s32.totalorder %s21, %s24
    %p30 = scmp.eq.s32.totalorder %s11, 0
    %p31 = por %p29, %p30
    %p32 = scmp.ne.s32.totalorder %s21, %s24
    %p33 = scmp.eq.s32.totalorder %s16, 1
    %p34 = por %p32, %p33
    %p35 = scmp.ne.s32.totalorder %s24, %s25
    %p36 = scmp.eq.s32.totalorder %s16, 0
    %p37 = por %p35, %p36
    %p38 = scmp.ne.s32.totalorder %s24, %s25
    %p39 = scmp.eq.s32.totalorder %s17, 1
    %p40 = por %p38, %p39
    %p42 = scmp.ne.s32.totalorder %s25, %s41
    %p43 = scmp.eq.s32.totalorder %s17, 0
    %p44 = por %p42, %p43
    %s46 = sadd.s32 %s45, 1
    %p49 = scmp.eq.s32.totalorder %s11, 1
    %p50 = scmp.ne.s32.totalorder %s45, %s47
    %p51 = scmp.eq.s32.totalorder %s11, 0
    %p52 = por %p50, %p51
    %p53 = scmp.ne.s32.totalorder %s45, %s47
    %p54 = scmp.eq.s32.totalorder %s16, 1
    %p55 = por %p53, %p54
    %p56 = scmp.ne.s32.totalorder %s47, %s48
    %p57 = scmp.eq.s32.totalorder %s16, 0
    %p58 = por %p56, %p57
    %p59 = scmp.ne.s32.totalorder %s47, %s48
    %p60 = scmp.eq.s32.totalorder %s17, 1
    %p61 = por %p59, %p60
    %p63 = scmp.ne.s32.totalorder %s48, %s62
    %p64 = scmp.eq.s32.totalorder %s17, 0
    %p65 = por %p63, %p64
    %s67 = sadd.s32 %s66, 1
    %p70 = scmp.eq.s32.totalorder %s11, 1
    %p71 = scmp.ne.s32.totalorder %s66, %s68
    %p72 = scmp.eq.s32.totalorder %s11, 0
    %p73 = por %p71, %p72
    %p74 = scmp.ne.s32.totalorder %s66, %s68
    %p75 = scmp.eq.s32.totalorder %s16, 1
    %p76 = por %p74, %p75
    %p77 = scmp.ne.s32.totalorder %s68, %s69
    %p78 = scmp.eq.s32.totalorder %s16, 0
    %p79 = por %p77, %p78
    %p80 = scmp.ne.s32.totalorder %s68, %s69
    %p81 = scmp.eq.s32.totalorder %s17, 1
    %p82 = por %p80, %p81
    %p84 = scmp.ne.s32.totalorder %s69, %s83
    %p85 = scmp.eq.s32.totalorder %s17, 0
    %p86 = por %p84, %p85
    %s88 = sadd.s32 %s87, 1
    %p91 = scmp.eq.s32.totalorder %s11, 1
    %p92 = scmp.ne.s32.totalorder %s87, %s89
    %p93 = scmp.eq.s32.totalorder %s11, 0
    %p94 = por %p92, %p93
    %p95 = scmp.ne.s32.totalorder %s87, %s89
    %p96 = scmp.eq.s32.totalorder %s16, 1
    %p97 = por %p95, %p96
    %p98 = scmp.ne.s32.totalorder %s89, %s90
    %p99 = scmp.eq.s32.totalorder %s16, 0
    %p100 = por %p98, %p99
    %p101 = scmp.ne.s32.totalorder %s89, %s90
    %p102 = scmp.eq.s32.totalorder %s17, 1
    %p103 = por %p101, %p102
    %p105 = scmp.ne.s32.totalorder %s90, %s104
    %p106 = scmp.eq.s32.totalorder %s17, 0
    %p107 = por %p105, %p106
    %s109 = sadd.s32 %s108, 1
    %p112 = scmp.eq.s32.totalorder %s11, 1
    %p113 = scmp.ne.s32.totalorder %s108, %s110
    %p114 = scmp.eq.s32.totalorder %s11, 0
    %p115 = por %p113, %p114
    %p116 = scmp.ne.s32.totalorder %s108, %s110
    %p117 = scmp.eq.s32.totalorder %s16, 1
    %p118 = por %p116, %p117
    %p119 = scmp.ne.s32.totalorder %s110, %s111
    %p120 = scmp.eq.s32.totalorder %s16, 0
    %p121 = por %p119, %p120
    %p122 = scmp.ne.s32.totalorder %s110, %s111
    %p123 = scmp.eq.s32.totalorder %s17, 1
    %p124 = por %p122, %p123
    %p126 = scmp.ne.s32.totalorder %s111, %s125
    %p127 = scmp.eq.s32.totalorder %s17, 0
    %p128 = por %p126, %p127
    %s129 = ssub.s32 %s11, %s18
    %p130 = scmp.eq.s32.totalorder %s129, 0
    %s132 = sadd.s32 %s131, 1
    %s133 = scalar_select %p130, %s131, %s132
    %p136 = pneg %p130
    %p137 = scmp.eq.s32.totalorder %s11, 1
    %p138 = por %p136, %p137
    %p139 = scmp.ne.s32.totalorder %s131, %s134
    %p140 = scmp.eq.s32.totalorder %s11, 0
    %p141 = por %p139, %p140
    %p142 = scmp.ne.s32.totalorder %s131, %s134
    %p143 = scmp.eq.s32.totalorder %s16, 1
    %p144 = por %p142, %p143
    %p145 = scmp.ne.s32.totalorder %s134, %s135
    %p146 = scmp.eq.s32.totalorder %s16, 0
    %p147 = por %p145, %p146
    %p148 = scmp.ne.s32.totalorder %s134, %s135
    %p149 = scmp.eq.s32.totalorder %s17, 1
    %p150 = por %p148, %p149
    %p152 = scmp.ne.s32.totalorder %s135, %s151
    %p153 = scmp.eq.s32.totalorder %s17, 0
    %p154 = por %p152, %p153
    %p155 = scmp.le.s32.totalorder 1, %s11
    %p156 = scmp.lt.s32.totalorder %s11, 3
    %p157 = pnand %p155, %p156
    %p158 = pneg %p157
    // Predicated region
    $region9: #{decoder_forward.3} parent=5 // pred_check
      _
    $region10: #{decoder_forward.3} parent=5 // pred_check_branch
      %160 = sbr.rel (%p157) target = $region12
    $region11: #{decoder_forward.3} parent=5 // pred_region
      %s161 = ssub.s32 %s11, 1
      // Predicated region
      $region13: #{decoder_forward.3} parent=11 // pred_check
        %p162 = pneg %p58
      $region14: #{decoder_forward.3} parent=11 // pred_check_branch
        %164 = sbr.rel (%p162) target = $region16
      $region15: #{decoder_forward.3} parent=11 // pred_region
        _
      $region16: #{decoder_forward.3} parent=11 // pred_fallthru
        _
      // Predicated region
      $region17: #{decoder_forward.3} parent=11 // pred_check
        %p165 = pneg %p79
      $region18: #{decoder_forward.3} parent=11 // pred_check_branch
        %167 = sbr.rel (%p165) target = $region20
      $region19: #{decoder_forward.3} parent=11 // pred_region
        _
      $region20: #{decoder_forward.3} parent=11 // pred_fallthru
        _
      // Predicated region
      $region21: #{decoder_forward.3} parent=11 // pred_check
        %p168 = pneg %p100
      $region22: #{decoder_forward.3} parent=11 // pred_check_branch
        %170 = sbr.rel (%p168) target = $region24
      $region23: #{decoder_forward.3} parent=11 // pred_region
        _
      $region24: #{decoder_forward.3} parent=11 // pred_fallthru
        _
      // Predicated region
      $region25: #{decoder_forward.3} parent=11 // pred_check
        %p171 = pneg %p121
      $region26: #{decoder_forward.3} parent=11 // pred_check_branch
        %173 = sbr.rel (%p171) target = $region28
      $region27: #{decoder_forward.3} parent=11 // pred_region
        _
      $region28: #{decoder_forward.3} parent=11 // pred_fallthru
        _
    $region12: #{decoder_forward.3} parent=5 // pred_fallthru
      _
    %p174 = scmp.lt.s32.totalorder %s11, 2
    // Predicated region
    $region29: #{decoder_forward.3} parent=5 // pred_check
      %p175 = pneg %p174
    $region30: #{decoder_forward.3} parent=5 // pred_check_branch
      %177 = sbr.rel (%p175) target = $region32
    $region31: #{decoder_forward.3} parent=5 // pred_region
      // Predicated region
      $region33: #{decoder_forward.3} parent=31 // pred_check
        %p178 = pneg %p31
      $region34: #{decoder_forward.3} parent=31 // pred_check_branch
        %180 = sbr.rel (%p178) target = $region36
      $region35: #{decoder_forward.3} parent=31 // pred_region
        %p181 = scmp.lt.s32.totalorder %s11, 1
        %s182 = scalar_select %p181, %s11, 1
        %s183 = smul.addr %s182, 25
        %s184 = smul.addr %s183, 4
        %s185 = scalar_lea.vmem %s0, %s184
      $region36: #{decoder_forward.3} parent=31 // pred_fallthru
        _
    $region32: #{decoder_forward.3} parent=5 // pred_fallthru
      _
    %p186 = scmp.le.s32.totalorder 1, %s11
    %p187 = scmp.lt.s32.totalorder %s11, 3
    %p188 = pnand %p186, %p187
    %p189 = pneg %p188
    // Predicated region
    $region37: #{decoder_forward.3} parent=5 // pred_check
      _
    $region38: #{decoder_forward.3} parent=5 // pred_check_branch
      %191 = sbr.rel (%p188) target = $region40
    $region39: #{decoder_forward.3} parent=5 // pred_region
      %s192 = ssub.s32 %s11, 1
      %p193 = scmp.lt.s32.totalorder %s16, 1
      %s194 = scalar_select %p193, %s16, 1
      %s195 = smul.addr %s194, 25
      %s196 = smul.addr %s195, 4
      %s197 = scalar_lea.vmem %s0, %s196
      %p198 = pneg %p37
      %p199 = pneg %p34
      %p200 = pneg %p58
      %p201 = pneg %p55
      %p202 = pneg %p79
      %p203 = pneg %p76
      %p204 = pneg %p100
      %p205 = pneg %p97
      %p206 = pneg %p121
      %p207 = pneg %p118
      %p208 = pneg %p147
      %p209 = pneg %p144
      %p210 = scmp.lt.s32.totalorder %s16, 1
      %s211 = scalar_select %p210, %s16, 1
      %s212 = smul.addr %s211, 25
      %s213 = smul.addr %s212, 8
      %s214 = scalar_lea.vmem %s5, %s213
      %p215 = scmp.lt.s32.totalorder %s16, 1
      %s216 = scalar_select %p215, %s16, 1
      %s217 = smul.addr %s216, 25
      %s218 = smul.addr %s217, 4
      %s219 = scalar_lea.vmem %s0, %s218
      %p220 = scmp.lt.s32.totalorder %s16, 1
      %s221 = scalar_select %p220, %s16, 1
      %s222 = smul.addr %s221, 25
      %s223 = smul.addr %s222, 8
      %s224 = scalar_lea.vmem %s5, %s223
      %vm226 = vcmask 519168
      %227 = vst.msk [vmem:[#allocation2 + $0x60] sm:$0xf] %vm226, 0
      %228 = vst.msk [vmem:[#allocation2 + $0x64] sm:$0xf] %vm226, 0
      %229 = vst.msk [vmem:[#allocation2 + $0x68] sm:$0xf] %vm226, 0
      %230 = vst.msk [vmem:[#allocation3] sm:$0xf] %vm226, 0
      %231 = vst.msk [vmem:[#allocation3 + $0x4] sm:$0xf] %vm226, 0
      %232 = vst.msk [vmem:[#allocation3 + $0x68] sm:$0xf] %vm226, 0
      %233 = vst.msk [vmem:[#allocation3 + $0x6c] sm:$0xf] %vm226, 0
      %234 = vst.msk [vmem:[#allocation3 + $0x70] sm:$0xf] %vm226, 0
      %235 = vst.msk [vmem:[#allocation4] sm:$0xf] %vm226, 0
      %236 = vst.msk [vmem:[#allocation4 + $0x4] sm:$0xf] %vm226, 0
      %237 = vst.msk [vmem:[#allocation4 + $0x68] sm:$0xf] %vm226, 0
      %238 = vst.msk [vmem:[#allocation4 + $0x6c] sm:$0xf] %vm226, 0
      %239 = vst.msk [vmem:[#allocation4 + $0x70] sm:$0xf] %vm226, 0
      %v240 = vld [vmem:[%s219] sm:$0xf]
      %v241 = vld [vmem:[%s219 + $0x4] sm:$0xf]
      %v242 = vld [vmem:[%s219 + $0x8] sm:$0xf]
      %v243 = vld [vmem:[%s219 + $0xc] sm:$0xf]
      %v244 = vld [vmem:[%s219 + $0x10] sm:$0xf]
      %v245 = vld [vmem:[%s219 + $0x14] sm:$0xf]
      %v246 = vld [vmem:[%s219 + $0x18] sm:$0xf]
      %v247 = vld [vmem:[%s219 + $0x1c] sm:$0xf]
      %v248 = vld [vmem:[%s219 + $0x20] sm:$0xf]
      %v249 = vld [vmem:[%s219 + $0x24] sm:$0xf]
      %v250 = vld [vmem:[%s219 + $0x28] sm:$0xf]
      %v251 = vld [vmem:[%s219 + $0x2c] sm:$0xf]
      %v252 = vld [vmem:[%s219 + $0x30] sm:$0xf]
      %v253 = vld [vmem:[%s219 + $0x34] sm:$0xf]
      %v254 = vld [vmem:[%s219 + $0x38] sm:$0xf]
      %v255 = vld [vmem:[%s219 + $0x3c] sm:$0xf]
      %v256 = vld [vmem:[%s219 + $0x40] sm:$0xf]
      %v257 = vld [vmem:[%s219 + $0x44] sm:$0xf]
      %v258 = vld [vmem:[%s219 + $0x48] sm:$0xf]
      %v259 = vld [vmem:[%s219 + $0x4c] sm:$0xf]
      %v260 = vld [vmem:[%s219 + $0x50] sm:$0xf]
      %v261 = vld [vmem:[%s219 + $0x54] sm:$0xf]
      %v262 = vld [vmem:[%s219 + $0x58] sm:$0xf]
      %v263 = vld [vmem:[%s219 + $0x5c] sm:$0xf]
      %v264 = vld [vmem:[%s219 + $0x60] sm:$0x3]
      %265 = vst.msk [vmem:[#allocation2] sm:$0xf] %vm226, %v240
      %266 = vst.msk [vmem:[#allocation2 + $0x4] sm:$0xf] %vm226, %v241
      %267 = vst.msk [vmem:[#allocation2 + $0x8] sm:$0xf] %vm226, %v242
      %268 = vst.msk [vmem:[#allocation2 + $0xc] sm:$0xf] %vm226, %v243
      %269 = vst.msk [vmem:[#allocation2 + $0x10] sm:$0xf] %vm226, %v244
      %270 = vst.msk [vmem:[#allocation2 + $0x14] sm:$0xf] %vm226, %v245
      %271 = vst.msk [vmem:[#allocation2 + $0x18] sm:$0xf] %vm226, %v246
      %272 = vst.msk [vmem:[#allocation2 + $0x1c] sm:$0xf] %vm226, %v247
      %273 = vst.msk [vmem:[#allocation2 + $0x20] sm:$0xf] %vm226, %v248
      %274 = vst.msk [vmem:[#allocation2 + $0x24] sm:$0xf] %vm226, %v249
      %275 = vst.msk [vmem:[#allocation2 + $0x28] sm:$0xf] %vm226, %v250
      %276 = vst.msk [vmem:[#allocation2 + $0x2c] sm:$0xf] %vm226, %v251
      %277 = vst.msk [vmem:[#allocation2 + $0x30] sm:$0xf] %vm226, %v252
      %278 = vst.msk [vmem:[#allocation2 + $0x34] sm:$0xf] %vm226, %v253
      %279 = vst.msk [vmem:[#allocation2 + $0x38] sm:$0xf] %vm226, %v254
      %280 = vst.msk [vmem:[#allocation2 + $0x3c] sm:$0xf] %vm226, %v255
      %281 = vst.msk [vmem:[#allocation2 + $0x40] sm:$0xf] %vm226, %v256
      %282 = vst.msk [vmem:[#allocation2 + $0x44] sm:$0xf] %vm226, %v257
      %283 = vst.msk [vmem:[#allocation2 + $0x48] sm:$0xf] %vm226, %v258
      %284 = vst.msk [vmem:[#allocation2 + $0x4c] sm:$0xf] %vm226, %v259
      %285 = vst.msk [vmem:[#allocation2 + $0x50] sm:$0xf] %vm226, %v260
      %286 = vst.msk [vmem:[#allocation2 + $0x54] sm:$0xf] %vm226, %v261
      %287 = vst.msk [vmem:[#allocation2 + $0x58] sm:$0xf] %vm226, %v262
      %288 = vst.msk [vmem:[#allocation2 + $0x5c] sm:$0xf] %vm226, %v263
      %vm289 = vcmask 517120
      %290 = vst.msk [vmem:[#allocation2 + $0x60] sm:$0x3] %vm289, %v264
      %v291 = vlaneseq
      %v292 = vshrl.u32 %v291, 7
      %v293 = vadd.s32 %v292, 8
      %v294 = vadd.s32 %v292, 16
      %v295 = vadd.s32 %v292, 24
      %v296 = vadd.s32 %v292, 32
      %v297 = vadd.s32 %v292, 40
      %v298 = vadd.s32 %v292, 48
      %v299 = vadd.s32 %v292, 56
      %v300 = vadd.s32 %v292, 64
      %v301 = vadd.s32 %v292, 72
      %v302 = vadd.s32 %v292, 80
      %v303 = vadd.s32 %v292, 88
      %v304 = vadd.s32 %v292, 96
      %v305 = vadd.s32 %v292, 104
      %v306 = vadd.s32 %v292, 112
      %v307 = vadd.s32 %v292, 120
      %v308 = vadd.s32 %v292, 128
      %v309 = vadd.s32 %v292, 136
      %v310 = vadd.s32 %v292, 144
      %v311 = vadd.s32 %v292, 152
      %v312 = vadd.s32 %v292, 160
      %v313 = vadd.s32 %v292, 168
      %v314 = vadd.s32 %v292, 176
      %v315 = vadd.s32 %v292, 184
      %v316 = vadd.s32 %v292, 192
      %vm317 = vcmp.lt.s32.totalorder %v292, 0
      %v318 = vsub.s32 0, %v292
      %v319 = vsel %vm317, %v318, %v292
      %v320 = vand.u32 %v319, 65535
      %v321 = vshrl.u32 %v319, 16
      %v323 = vmul.u32 %v320, 9362
      %v324 = vmul.u32 %v320, 37449
      %v325 = vmul.u32 %v321, 9362
      %v326 = vmul.u32 %v321, 37449
      %v327 = vshll.u32 %v324, 16
      %v328 = vshrl.u32 %v324, 16
      %v329 = vshll.u32 %v325, 16
      %v330 = vshrl.u32 %v325, 16
      %vm331 = vc.u32 %v323, %v327
      %v332 = vsel %vm331, 1, 0
      %v333 = vadd.s32 %v323, %v327
      %v334 = vadd.s32 %v326, %v332
      %vm335 = vc.u32 %v333, %v329
      %v336 = vsel %vm335, 1, 0
      %v337 = vadd.s32 %v333, %v329
      %v338 = vadd.s32 %v334, %v336
      %v339 = vadd.s32 %v338, %v328
      %v340 = vadd.s32 %v339, %v330
      %vm341 = vc.u32 %v337, 2454267026
      %v342 = vsel %vm341, 1, 0
      %v343 = vadd.s32 %v340, %v342
      %v344 = vshrl.u32 %v343, 3
      %v345 = vmul.u32 %v344, 14
      %v346 = vsub.s32 %v319, %v345
      %v347 = vsub.s32 0, %v346
      %v348 = vsel %vm317, %v347, %v346
      %vm349 = vcmp.lt.s32.totalorder %v293, 0
      %v350 = vsub.s32 0, %v293
      %v351 = vsel %vm349, %v350, %v293
      %v352 = vand.u32 %v351, 65535
      %v353 = vshrl.u32 %v351, 16
      %v355 = vmul.u32 %v352, 9362
      %v356 = vmul.u32 %v352, 37449
      %v357 = vmul.u32 %v353, 9362
      %v358 = vmul.u32 %v353, 37449
      %v359 = vshll.u32 %v356, 16
      %v360 = vshrl.u32 %v356, 16
      %v361 = vshll.u32 %v357, 16
      %v362 = vshrl.u32 %v357, 16
      %vm363 = vc.u32 %v355, %v359
      %v364 = vsel %vm363, 1, 0
      %v365 = vadd.s32 %v355, %v359
      %v366 = vadd.s32 %v358, %v364
      %vm367 = vc.u32 %v365, %v361
      %v368 = vsel %vm367, 1, 0
      %v369 = vadd.s32 %v365, %v361
      %v370 = vadd.s32 %v366, %v368
      %v371 = vadd.s32 %v370, %v360
      %v372 = vadd.s32 %v371, %v362
      %vm373 = vc.u32 %v369, 2454267026
      %v374 = vsel %vm373, 1, 0
      %v375 = vadd.s32 %v372, %v374
      %v376 = vshrl.u32 %v375, 3
      %v377 = vmul.u32 %v376, 14
      %v378 = vsub.s32 %v351, %v377
      %v379 = vsub.s32 0, %v378
      %v380 = vsel %vm349, %v379, %v378
      %vm381 = vcmp.lt.s32.totalorder %v294, 0
      %v382 = vsub.s32 0, %v294
      %v383 = vsel %vm381, %v382, %v294
      %v384 = vand.u32 %v383, 65535
      %v385 = vshrl.u32 %v383, 16
      %v387 = vmul.u32 %v384, 9362
      %v388 = vmul.u32 %v384, 37449
      %v389 = vmul.u32 %v385, 9362
      %v390 = vmul.u32 %v385, 37449
      %v391 = vshll.u32 %v388, 16
      %v392 = vshrl.u32 %v388, 16
      %v393 = vshll.u32 %v389, 16
      %v394 = vshrl.u32 %v389, 16
      %vm395 = vc.u32 %v387, %v391
      %v396 = vsel %vm395, 1, 0
      %v397 = vadd.s32 %v387, %v391
      %v398 = vadd.s32 %v390, %v396
      %vm399 = vc.u32 %v397, %v393
      %v400 = vsel %vm399, 1, 0
      %v401 = vadd.s32 %v397, %v393
      %v402 = vadd.s32 %v398, %v400
      %v403 = vadd.s32 %v402, %v392
      %v404 = vadd.s32 %v403, %v394
      %vm405 = vc.u32 %v401, 2454267026
      %v406 = vsel %vm405, 1, 0
      %v407 = vadd.s32 %v404, %v406
      %v408 = vshrl.u32 %v407, 3
      %v409 = vmul.u32 %v408, 14
      %v410 = vsub.s32 %v383, %v409
      %v411 = vsub.s32 0, %v410
      %v412 = vsel %vm381, %v411, %v410
      %vm413 = vcmp.lt.s32.totalorder %v295, 0
      %v414 = vsub.s32 0, %v295
      %v415 = vsel %vm413, %v414, %v295
      %v416 = vand.u32 %v415, 65535
      %v417 = vshrl.u32 %v415, 16
      %v419 = vmul.u32 %v416, 9362
      %v420 = vmul.u32 %v416, 37449
      %v421 = vmul.u32 %v417, 9362
      %v422 = vmul.u32 %v417, 37449
      %v423 = vshll.u32 %v420, 16
      %v424 = vshrl.u32 %v420, 16
      %v425 = vshll.u32 %v421, 16
      %v426 = vshrl.u32 %v421, 16
      %vm427 = vc.u32 %v419, %v423
      %v428 = vsel %vm427, 1, 0
      %v429 = vadd.s32 %v419, %v423
      %v430 = vadd.s32 %v422, %v428
      %vm431 = vc.u32 %v429, %v425
      %v432 = vsel %vm431, 1, 0
      %v433 = vadd.s32 %v429, %v425
      %v434 = vadd.s32 %v430, %v432
      %v435 = vadd.s32 %v434, %v424
      %v436 = vadd.s32 %v435, %v426
      %vm437 = vc.u32 %v433, 2454267026
      %v438 = vsel %vm437, 1, 0
      %v439 = vadd.s32 %v436, %v438
      %v440 = vshrl.u32 %v439, 3
      %v441 = vmul.u32 %v440, 14
      %v442 = vsub.s32 %v415, %v441
      %v443 = vsub.s32 0, %v442
      %v444 = vsel %vm413, %v443, %v442
      %vm445 = vcmp.lt.s32.totalorder %v296, 0
      %v446 = vsub.s32 0, %v296
      %v447 = vsel %vm445, %v446, %v296
      %v448 = vand.u32 %v447, 65535
      %v449 = vshrl.u32 %v447, 16
      %v451 = vmul.u32 %v448, 9362
      %v452 = vmul.u32 %v448, 37449
      %v453 = vmul.u32 %v449, 9362
      %v454 = vmul.u32 %v449, 37449
      %v455 = vshll.u32 %v452, 16
      %v456 = vshrl.u32 %v452, 16
      %v457 = vshll.u32 %v453, 16
      %v458 = vshrl.u32 %v453, 16
      %vm459 = vc.u32 %v451, %v455
      %v460 = vsel %vm459, 1, 0
      %v461 = vadd.s32 %v451, %v455
      %v462 = vadd.s32 %v454, %v460
      %vm463 = vc.u32 %v461, %v457
      %v464 = vsel %vm463, 1, 0
      %v465 = vadd.s32 %v461, %v457
      %v466 = vadd.s32 %v462, %v464
      %v467 = vadd.s32 %v466, %v456
      %v468 = vadd.s32 %v467, %v458
      %vm469 = vc.u32 %v465, 2454267026
      %v470 = vsel %vm469, 1, 0
      %v471 = vadd.s32 %v468, %v470
      %v472 = vshrl.u32 %v471, 3
      %v473 = vmul.u32 %v472, 14
      %v474 = vsub.s32 %v447, %v473
      %v475 = vsub.s32 0, %v474
      %v476 = vsel %vm445, %v475, %v474
      %vm477 = vcmp.lt.s32.totalorder %v297, 0
      %v478 = vsub.s32 0, %v297
      %v479 = vsel %vm477, %v478, %v297
      %v480 = vand.u32 %v479, 65535
      %v481 = vshrl.u32 %v479, 16
      %v483 = vmul.u32 %v480, 9362
      %v484 = vmul.u32 %v480, 37449
      %v485 = vmul.u32 %v481, 9362
      %v486 = vmul.u32 %v481, 37449
      %v487 = vshll.u32 %v484, 16
      %v488 = vshrl.u32 %v484, 16
      %v489 = vshll.u32 %v485, 16
      %v490 = vshrl.u32 %v485, 16
      %vm491 = vc.u32 %v483, %v487
      %v492 = vsel %vm491, 1, 0
      %v493 = vadd.s32 %v483, %v487
      %v494 = vadd.s32 %v486, %v492
      %vm495 = vc.u32 %v493, %v489
      %v496 = vsel %vm495, 1, 0
      %v497 = vadd.s32 %v493, %v489
      %v498 = vadd.s32 %v494, %v496
      %v499 = vadd.s32 %v498, %v488
      %v500 = vadd.s32 %v499, %v490
      %vm501 = vc.u32 %v497, 2454267026
      %v502 = vsel %vm501, 1, 0
      %v503 = vadd.s32 %v500, %v502
      %v504 = vshrl.u32 %v503, 3
      %v505 = vmul.u32 %v504, 14
      %v506 = vsub.s32 %v479, %v505
      %v507 = vsub.s32 0, %v506
      %v508 = vsel %vm477, %v507, %v506
      %vm509 = vcmp.lt.s32.totalorder %v298, 0
      %v510 = vsub.s32 0, %v298
      %v511 = vsel %vm509, %v510, %v298
      %v512 = vand.u32 %v511, 65535
      %v513 = vshrl.u32 %v511, 16
      %v515 = vmul.u32 %v512, 9362
      %v516 = vmul.u32 %v512, 37449
      %v517 = vmul.u32 %v513, 9362
      %v518 = vmul.u32 %v513, 37449
      %v519 = vshll.u32 %v516, 16
      %v520 = vshrl.u32 %v516, 16
      %v521 = vshll.u32 %v517, 16
      %v522 = vshrl.u32 %v517, 16
      %vm523 = vc.u32 %v515, %v519
      %v524 = vsel %vm523, 1, 0
      %v525 = vadd.s32 %v515, %v519
      %v526 = vadd.s32 %v518, %v524
      %vm527 = vc.u32 %v525, %v521
      %v528 = vsel %vm527, 1, 0
      %v529 = vadd.s32 %v525, %v521
      %v530 = vadd.s32 %v526, %v528
      %v531 = vadd.s32 %v530, %v520
      %v532 = vadd.s32 %v531, %v522
      %vm533 = vc.u32 %v529, 2454267026
      %v534 = vsel %vm533, 1, 0
      %v535 = vadd.s32 %v532, %v534
      %v536 = vshrl.u32 %v535, 3
      %v537 = vmul.u32 %v536, 14
      %v538 = vsub.s32 %v511, %v537
      %v539 = vsub.s32 0, %v538
      %v540 = vsel %vm509, %v539, %v538
      %vm541 = vcmp.lt.s32.totalorder %v299, 0
      %v542 = vsub.s32 0, %v299
      %v543 = vsel %vm541, %v542, %v299
      %v544 = vand.u32 %v543, 65535
      %v545 = vshrl.u32 %v543, 16
      %v547 = vmul.u32 %v544, 9362
      %v548 = vmul.u32 %v544, 37449
      %v549 = vmul.u32 %v545, 9362
      %v550 = vmul.u32 %v545, 37449
      %v551 = vshll.u32 %v548, 16
      %v552 = vshrl.u32 %v548, 16
      %v553 = vshll.u32 %v549, 16
      %v554 = vshrl.u32 %v549, 16
      %vm555 = vc.u32 %v547, %v551
      %v556 = vsel %vm555, 1, 0
      %v557 = vadd.s32 %v547, %v551
      %v558 = vadd.s32 %v550, %v556
      %vm559 = vc.u32 %v557, %v553
      %v560 = vsel %vm559, 1, 0
      %v561 = vadd.s32 %v557, %v553
      %v562 = vadd.s32 %v558, %v560
      %v563 = vadd.s32 %v562, %v552
      %v564 = vadd.s32 %v563, %v554
      %vm565 = vc.u32 %v561, 2454267026
      %v566 = vsel %vm565, 1, 0
      %v567 = vadd.s32 %v564, %v566
      %v568 = vshrl.u32 %v567, 3
      %v569 = vmul.u32 %v568, 14
      %v570 = vsub.s32 %v543, %v569
      %v571 = vsub.s32 0, %v570
      %v572 = vsel %vm541, %v571, %v570
      %vm573 = vcmp.lt.s32.totalorder %v300, 0
      %v574 = vsub.s32 0, %v300
      %v575 = vsel %vm573, %v574, %v300
      %v576 = vand.u32 %v575, 65535
      %v577 = vshrl.u32 %v575, 16
      %v579 = vmul.u32 %v576, 9362
      %v580 = vmul.u32 %v576, 37449
      %v581 = vmul.u32 %v577, 9362
      %v582 = vmul.u32 %v577, 37449
      %v583 = vshll.u32 %v580, 16
      %v584 = vshrl.u32 %v580, 16
      %v585 = vshll.u32 %v581, 16
      %v586 = vshrl.u32 %v581, 16
      %vm587 = vc.u32 %v579, %v583
      %v588 = vsel %vm587, 1, 0
      %v589 = vadd.s32 %v579, %v583
      %v590 = vadd.s32 %v582, %v588
      %vm591 = vc.u32 %v589, %v585
      %v592 = vsel %vm591, 1, 0
      %v593 = vadd.s32 %v589, %v585
      %v594 = vadd.s32 %v590, %v592
      %v595 = vadd.s32 %v594, %v584
      %v596 = vadd.s32 %v595, %v586
      %vm597 = vc.u32 %v593, 2454267026
      %v598 = vsel %vm597, 1, 0
      %v599 = vadd.s32 %v596, %v598
      %v600 = vshrl.u32 %v599, 3
      %v601 = vmul.u32 %v600, 14
      %v602 = vsub.s32 %v575, %v601
      %v603 = vsub.s32 0, %v602
      %v604 = vsel %vm573, %v603, %v602
      %vm605 = vcmp.lt.s32.totalorder %v301, 0
      %v606 = vsub.s32 0, %v301
      %v607 = vsel %vm605, %v606, %v301
      %v608 = vand.u32 %v607, 65535
      %v609 = vshrl.u32 %v607, 16
      %v611 = vmul.u32 %v608, 9362
      %v612 = vmul.u32 %v608, 37449
      %v613 = vmul.u32 %v609, 9362
      %v614 = vmul.u32 %v609, 37449
      %v615 = vshll.u32 %v612, 16
      %v616 = vshrl.u32 %v612, 16
      %v617 = vshll.u32 %v613, 16
      %v618 = vshrl.u32 %v613, 16
      %vm619 = vc.u32 %v611, %v615
      %v620 = vsel %vm619, 1, 0
      %v621 = vadd.s32 %v611, %v615
      %v622 = vadd.s32 %v614, %v620
      %vm623 = vc.u32 %v621, %v617
      %v624 = vsel %vm623, 1, 0
      %v625 = vadd.s32 %v621, %v617
      %v626 = vadd.s32 %v622, %v624
      %v627 = vadd.s32 %v626, %v616
      %v628 = vadd.s32 %v627, %v618
      %vm629 = vc.u32 %v625, 2454267026
      %v630 = vsel %vm629, 1, 0
      %v631 = vadd.s32 %v628, %v630
      %v632 = vshrl.u32 %v631, 3
      %v633 = vmul.u32 %v632, 14
      %v634 = vsub.s32 %v607, %v633
      %v635 = vsub.s32 0, %v634
      %v636 = vsel %vm605, %v635, %v634
      %vm637 = vcmp.lt.s32.totalorder %v302, 0
      %v638 = vsub.s32 0, %v302
      %v639 = vsel %vm637, %v638, %v302
      %v640 = vand.u32 %v639, 65535
      %v641 = vshrl.u32 %v639, 16
      %v643 = vmul.u32 %v640, 9362
      %v644 = vmul.u32 %v640, 37449
      %v645 = vmul.u32 %v641, 9362
      %v646 = vmul.u32 %v641, 37449
      %v647 = vshll.u32 %v644, 16
      %v648 = vshrl.u32 %v644, 16
      %v649 = vshll.u32 %v645, 16
      %v650 = vshrl.u32 %v645, 16
      %vm651 = vc.u32 %v643, %v647
      %v652 = vsel %vm651, 1, 0
      %v653 = vadd.s32 %v643, %v647
      %v654 = vadd.s32 %v646, %v652
      %vm655 = vc.u32 %v653, %v649
      %v656 = vsel %vm655, 1, 0
      %v657 = vadd.s32 %v653, %v649
      %v658 = vadd.s32 %v654, %v656
      %v659 = vadd.s32 %v658, %v648
      %v660 = vadd.s32 %v659, %v650
      %vm661 = vc.u32 %v657, 2454267026
      %v662 = vsel %vm661, 1, 0
      %v663 = vadd.s32 %v660, %v662
      %v664 = vshrl.u32 %v663, 3
      %v665 = vmul.u32 %v664, 14
      %v666 = vsub.s32 %v639, %v665
      %v667 = vsub.s32 0, %v666
      %v668 = vsel %vm637, %v667, %v666
      %vm669 = vcmp.lt.s32.totalorder %v303, 0
      %v670 = vsub.s32 0, %v303
      %v671 = vsel %vm669, %v670, %v303
      %v672 = vand.u32 %v671, 65535
      %v673 = vshrl.u32 %v671, 16
      %v675 = vmul.u32 %v672, 9362
      %v676 = vmul.u32 %v672, 37449
      %v677 = vmul.u32 %v673, 9362
      %v678 = vmul.u32 %v673, 37449
      %v679 = vshll.u32 %v676, 16
      %v680 = vshrl.u32 %v676, 16
      %v681 = vshll.u32 %v677, 16
      %v682 = vshrl.u32 %v677, 16
      %vm683 = vc.u32 %v675, %v679
      %v684 = vsel %vm683, 1, 0
      %v685 = vadd.s32 %v675, %v679
      %v686 = vadd.s32 %v678, %v684
      %vm687 = vc.u32 %v685, %v681
      %v688 = vsel %vm687, 1, 0
      %v689 = vadd.s32 %v685, %v681
      %v690 = vadd.s32 %v686, %v688
      %v691 = vadd.s32 %v690, %v680
      %v692 = vadd.s32 %v691, %v682
      %vm693 = vc.u32 %v689, 2454267026
      %v694 = vsel %vm693, 1, 0
      %v695 = vadd.s32 %v692, %v694
      %v696 = vshrl.u32 %v695, 3
      %v697 = vmul.u32 %v696, 14
      %v698 = vsub.s32 %v671, %v697
      %v699 = vsub.s32 0, %v698
      %v700 = vsel %vm669, %v699, %v698
      %vm701 = vcmp.lt.s32.totalorder %v304, 0
      %v702 = vsub.s32 0, %v304
      %v703 = vsel %vm701, %v702, %v304
      %v704 = vand.u32 %v703, 65535
      %v705 = vshrl.u32 %v703, 16
      %v707 = vmul.u32 %v704, 9362
      %v708 = vmul.u32 %v704, 37449
      %v709 = vmul.u32 %v705, 9362
      %v710 = vmul.u32 %v705, 37449
      %v711 = vshll.u32 %v708, 16
      %v712 = vshrl.u32 %v708, 16
      %v713 = vshll.u32 %v709, 16
      %v714 = vshrl.u32 %v709, 16
      %vm715 = vc.u32 %v707, %v711
      %v716 = vsel %vm715, 1, 0
      %v717 = vadd.s32 %v707, %v711
      %v718 = vadd.s32 %v710, %v716
      %vm719 = vc.u32 %v717, %v713
      %v720 = vsel %vm719, 1, 0
      %v721 = vadd.s32 %v717, %v713
      %v722 = vadd.s32 %v718, %v720
      %v723 = vadd.s32 %v722, %v712
      %v724 = vadd.s32 %v723, %v714
      %vm725 = vc.u32 %v721, 2454267026
      %v726 = vsel %vm725, 1, 0
      %v727 = vadd.s32 %v724, %v726
      %v728 = vshrl.u32 %v727, 3
      %v729 = vmul.u32 %v728, 14
      %v730 = vsub.s32 %v703, %v729
      %v731 = vsub.s32 0, %v730
      %v732 = vsel %vm701, %v731, %v730
      %vm733 = vcmp.lt.s32.totalorder %v305, 0
      %v734 = vsub.s32 0, %v305
      %v735 = vsel %vm733, %v734, %v305
      %v736 = vand.u32 %v735, 65535
      %v737 = vshrl.u32 %v735, 16
      %v739 = vmul.u32 %v736, 9362
      %v740 = vmul.u32 %v736, 37449
      %v741 = vmul.u32 %v737, 9362
      %v742 = vmul.u32 %v737, 37449
      %v743 = vshll.u32 %v740, 16
      %v744 = vshrl.u32 %v740, 16
      %v745 = vshll.u32 %v741, 16
      %v746 = vshrl.u32 %v741, 16
      %vm747 = vc.u32 %v739, %v743
      %v748 = vsel %vm747, 1, 0
      %v749 = vadd.s32 %v739, %v743
      %v750 = vadd.s32 %v742, %v748
      %vm751 = vc.u32 %v749, %v745
      %v752 = vsel %vm751, 1, 0
      %v753 = vadd.s32 %v749, %v745
      %v754 = vadd.s32 %v750, %v752
      %v755 = vadd.s32 %v754, %v744
      %v756 = vadd.s32 %v755, %v746
      %vm757 = vc.u32 %v753, 2454267026
      %v758 = vsel %vm757, 1, 0
      %v759 = vadd.s32 %v756, %v758
      %v760 = vshrl.u32 %v759, 3
      %v761 = vmul.u32 %v760, 14
      %v762 = vsub.s32 %v735, %v761
      %v763 = vsub.s32 0, %v762
      %v764 = vsel %vm733, %v763, %v762
      %vm765 = vcmp.lt.s32.totalorder %v306, 0
      %v766 = vsub.s32 0, %v306
      %v767 = vsel %vm765, %v766, %v306
      %v768 = vand.u32 %v767, 65535
      %v769 = vshrl.u32 %v767, 16
      %v771 = vmul.u32 %v768, 9362
      %v772 = vmul.u32 %v768, 37449
      %v773 = vmul.u32 %v769, 9362
      %v774 = vmul.u32 %v769, 37449
      %v775 = vshll.u32 %v772, 16
      %v776 = vshrl.u32 %v772, 16
      %v777 = vshll.u32 %v773, 16
      %v778 = vshrl.u32 %v773, 16
      %vm779 = vc.u32 %v771, %v775
      %v780 = vsel %vm779, 1, 0
      %v781 = vadd.s32 %v771, %v775
      %v782 = vadd.s32 %v774, %v780
      %vm783 = vc.u32 %v781, %v777
      %v784 = vsel %vm783, 1, 0
      %v785 = vadd.s32 %v781, %v777
      %v786 = vadd.s32 %v782, %v784
      %v787 = vadd.s32 %v786, %v776
      %v788 = vadd.s32 %v787, %v778
      %vm789 = vc.u32 %v785, 2454267026
      %v790 = vsel %vm789, 1, 0
      %v791 = vadd.s32 %v788, %v790
      %v792 = vshrl.u32 %v791, 3
      %v793 = vmul.u32 %v792, 14
      %v794 = vsub.s32 %v767, %v793
      %v795 = vsub.s32 0, %v794
      %v796 = vsel %vm765, %v795, %v794
      %vm797 = vcmp.lt.s32.totalorder %v307, 0
      %v798 = vsub.s32 0, %v307
      %v799 = vsel %vm797, %v798, %v307
      %v800 = vand.u32 %v799, 65535
      %v801 = vshrl.u32 %v799, 16
      %v803 = vmul.u32 %v800, 9362
      %v804 = vmul.u32 %v800, 37449
      %v805 = vmul.u32 %v801, 9362
      %v806 = vmul.u32 %v801, 37449
      %v807 = vshll.u32 %v804, 16
      %v808 = vshrl.u32 %v804, 16
      %v809 = vshll.u32 %v805, 16
      %v810 = vshrl.u32 %v805, 16
      %vm811 = vc.u32 %v803, %v807
      %v812 = vsel %vm811, 1, 0
      %v813 = vadd.s32 %v803, %v807
      %v814 = vadd.s32 %v806, %v812
      %vm815 = vc.u32 %v813, %v809
      %v816 = vsel %vm815, 1, 0
      %v817 = vadd.s32 %v813, %v809
      %v818 = vadd.s32 %v814, %v816
      %v819 = vadd.s32 %v818, %v808
      %v820 = vadd.s32 %v819, %v810
      %vm821 = vc.u32 %v817, 2454267026
      %v822 = vsel %vm821, 1, 0
      %v823 = vadd.s32 %v820, %v822
      %v824 = vshrl.u32 %v823, 3
      %v825 = vmul.u32 %v824, 14
      %v826 = vsub.s32 %v799, %v825
      %v827 = vsub.s32 0, %v826
      %v828 = vsel %vm797, %v827, %v826
      %vm829 = vcmp.lt.s32.totalorder %v308, 0
      %v830 = vsub.s32 0, %v308
      %v831 = vsel %vm829, %v830, %v308
      %v832 = vand.u32 %v831, 65535
      %v833 = vshrl.u32 %v831, 16
      %v835 = vmul.u32 %v832, 9362
      %v836 = vmul.u32 %v832, 37449
      %v837 = vmul.u32 %v833, 9362
      %v838 = vmul.u32 %v833, 37449
      %v839 = vshll.u32 %v836, 16
      %v840 = vshrl.u32 %v836, 16
      %v841 = vshll.u32 %v837, 16
      %v842 = vshrl.u32 %v837, 16
      %vm843 = vc.u32 %v835, %v839
      %v844 = vsel %vm843, 1, 0
      %v845 = vadd.s32 %v835, %v839
      %v846 = vadd.s32 %v838, %v844
      %vm847 = vc.u32 %v845, %v841
      %v848 = vsel %vm847, 1, 0
      %v849 = vadd.s32 %v845, %v841
      %v850 = vadd.s32 %v846, %v848
      %v851 = vadd.s32 %v850, %v840
      %v852 = vadd.s32 %v851, %v842
      %vm853 = vc.u32 %v849, 2454267026
      %v854 = vsel %vm853, 1, 0
      %v855 = vadd.s32 %v852, %v854
      %v856 = vshrl.u32 %v855, 3
      %v857 = vmul.u32 %v856, 14
      %v858 = vsub.s32 %v831, %v857
      %v859 = vsub.s32 0, %v858
      %v860 = vsel %vm829, %v859, %v858
      %vm861 = vcmp.lt.s32.totalorder %v309, 0
      %v862 = vsub.s32 0, %v309
      %v863 = vsel %vm861, %v862, %v309
      %v864 = vand.u32 %v863, 65535
      %v865 = vshrl.u32 %v863, 16
      %v867 = vmul.u32 %v864, 9362
      %v868 = vmul.u32 %v864, 37449
      %v869 = vmul.u32 %v865, 9362
      %v870 = vmul.u32 %v865, 37449
      %v871 = vshll.u32 %v868, 16
      %v872 = vshrl.u32 %v868, 16
      %v873 = vshll.u32 %v869, 16
      %v874 = vshrl.u32 %v869, 16
      %vm875 = vc.u32 %v867, %v871
      %v876 = vsel %vm875, 1, 0
      %v877 = vadd.s32 %v867, %v871
      %v878 = vadd.s32 %v870, %v876
      %vm879 = vc.u32 %v877, %v873
      %v880 = vsel %vm879, 1, 0
      %v881 = vadd.s32 %v877, %v873
      %v882 = vadd.s32 %v878, %v880
      %v883 = vadd.s32 %v882, %v872
      %v884 = vadd.s32 %v883, %v874
      %vm885 = vc.u32 %v881, 2454267026
      %v886 = vsel %vm885, 1, 0
      %v887 = vadd.s32 %v884, %v886
      %v888 = vshrl.u32 %v887, 3
      %v889 = vmul.u32 %v888, 14
      %v890 = vsub.s32 %v863, %v889
      %v891 = vsub.s32 0, %v890
      %v892 = vsel %vm861, %v891, %v890
      %vm893 = vcmp.lt.s32.totalorder %v310, 0
      %v894 = vsub.s32 0, %v310
      %v895 = vsel %vm893, %v894, %v310
      %v896 = vand.u32 %v895, 65535
      %v897 = vshrl.u32 %v895, 16
      %v899 = vmul.u32 %v896, 9362
      %v900 = vmul.u32 %v896, 37449
      %v901 = vmul.u32 %v897, 9362
      %v902 = vmul.u32 %v897, 37449
      %v903 = vshll.u32 %v900, 16
      %v904 = vshrl.u32 %v900, 16
      %v905 = vshll.u32 %v901, 16
      %v906 = vshrl.u32 %v901, 16
      %vm907 = vc.u32 %v899, %v903
      %v908 = vsel %vm907, 1, 0
      %v909 = vadd.s32 %v899, %v903
      %v910 = vadd.s32 %v902, %v908
      %vm911 = vc.u32 %v909, %v905
      %v912 = vsel %vm911, 1, 0
      %v913 = vadd.s32 %v909, %v905
      %v914 = vadd.s32 %v910, %v912
      %v915 = vadd.s32 %v914, %v904
      %v916 = vadd.s32 %v915, %v906
      %vm917 = vc.u32 %v913, 2454267026
      %v918 = vsel %vm917, 1, 0
      %v919 = vadd.s32 %v916, %v918
      %v920 = vshrl.u32 %v919, 3
      %v921 = vmul.u32 %v920, 14
      %v922 = vsub.s32 %v895, %v921
      %v923 = vsub.s32 0, %v922
      %v924 = vsel %vm893, %v923, %v922
      %vm925 = vcmp.lt.s32.totalorder %v311, 0
      %v926 = vsub.s32 0, %v311
      %v927 = vsel %vm925, %v926, %v311
      %v928 = vand.u32 %v927, 65535
      %v929 = vshrl.u32 %v927, 16
      %v931 = vmul.u32 %v928, 9362
      %v932 = vmul.u32 %v928, 37449
      %v933 = vmul.u32 %v929, 9362
      %v934 = vmul.u32 %v929, 37449
      %v935 = vshll.u32 %v932, 16
      %v936 = vshrl.u32 %v932, 16
      %v937 = vshll.u32 %v933, 16
      %v938 = vshrl.u32 %v933, 16
      %vm939 = vc.u32 %v931, %v935
      %v940 = vsel %vm939, 1, 0
      %v941 = vadd.s32 %v931, %v935
      %v942 = vadd.s32 %v934, %v940
      %vm943 = vc.u32 %v941, %v937
      %v944 = vsel %vm943, 1, 0
      %v945 = vadd.s32 %v941, %v937
      %v946 = vadd.s32 %v942, %v944
      %v947 = vadd.s32 %v946, %v936
      %v948 = vadd.s32 %v947, %v938
      %vm949 = vc.u32 %v945, 2454267026
      %v950 = vsel %vm949, 1, 0
      %v951 = vadd.s32 %v948, %v950
      %v952 = vshrl.u32 %v951, 3
      %v953 = vmul.u32 %v952, 14
      %v954 = vsub.s32 %v927, %v953
      %v955 = vsub.s32 0, %v954
      %v956 = vsel %vm925, %v955, %v954
      %vm957 = vcmp.lt.s32.totalorder %v312, 0
      %v958 = vsub.s32 0, %v312
      %v959 = vsel %vm957, %v958, %v312
      %v960 = vand.u32 %v959, 65535
      %v961 = vshrl.u32 %v959, 16
      %v963 = vmul.u32 %v960, 9362
      %v964 = vmul.u32 %v960, 37449
      %v965 = vmul.u32 %v961, 9362
      %v966 = vmul.u32 %v961, 37449
      %v967 = vshll.u32 %v964, 16
      %v968 = vshrl.u32 %v964, 16
      %v969 = vshll.u32 %v965, 16
      %v970 = vshrl.u32 %v965, 16
      %vm971 = vc.u32 %v963, %v967
      %v972 = vsel %vm971, 1, 0
      %v973 = vadd.s32 %v963, %v967
      %v974 = vadd.s32 %v966, %v972
      %vm975 = vc.u32 %v973, %v969
      %v976 = vsel %vm975, 1, 0
      %v977 = vadd.s32 %v973, %v969
      %v978 = vadd.s32 %v974, %v976
      %v979 = vadd.s32 %v978, %v968
      %v980 = vadd.s32 %v979, %v970
      %vm981 = vc.u32 %v977, 2454267026
      %v982 = vsel %vm981, 1, 0
      %v983 = vadd.s32 %v980, %v982
      %v984 = vshrl.u32 %v983, 3
      %v985 = vmul.u32 %v984, 14
      %v986 = vsub.s32 %v959, %v985
      %v987 = vsub.s32 0, %v986
      %v988 = vsel %vm957, %v987, %v986
      %vm989 = vcmp.lt.s32.totalorder %v313, 0
      %v990 = vsub.s32 0, %v313
      %v991 = vsel %vm989, %v990, %v313
      %v992 = vand.u32 %v991, 65535
      %v993 = vshrl.u32 %v991, 16
      %v995 = vmul.u32 %v992, 9362
      %v996 = vmul.u32 %v992, 37449
      %v997 = vmul.u32 %v993, 9362
      %v998 = vmul.u32 %v993, 37449
      %v999 = vshll.u32 %v996, 16
      %v1000 = vshrl.u32 %v996, 16
      %v1001 = vshll.u32 %v997, 16
      %v1002 = vshrl.u32 %v997, 16
      %vm1003 = vc.u32 %v995, %v999
      %v1004 = vsel %vm1003, 1, 0
      %v1005 = vadd.s32 %v995, %v999
      %v1006 = vadd.s32 %v998, %v1004
      %vm1007 = vc.u32 %v1005, %v1001
      %v1008 = vsel %vm1007, 1, 0
      %v1009 = vadd.s32 %v1005, %v1001
      %v1010 = vadd.s32 %v1006, %v1008
      %v1011 = vadd.s32 %v1010, %v1000
      %v1012 = vadd.s32 %v1011, %v1002
      %vm1013 = vc.u32 %v1009, 2454267026
      %v1014 = vsel %vm1013, 1, 0
      %v1015 = vadd.s32 %v1012, %v1014
      %v1016 = vshrl.u32 %v1015, 3
      %v1017 = vmul.u32 %v1016, 14
      %v1018 = vsub.s32 %v991, %v1017
      %v1019 = vsub.s32 0, %v1018
      %v1020 = vsel %vm989, %v1019, %v1018
      %vm1021 = vcmp.lt.s32.totalorder %v314, 0
      %v1022 = vsub.s32 0, %v314
      %v1023 = vsel %vm1021, %v1022, %v314
      %v1024 = vand.u32 %v1023, 65535
      %v1025 = vshrl.u32 %v1023, 16
      %v1027 = vmul.u32 %v1024, 9362
      %v1028 = vmul.u32 %v1024, 37449
      %v1029 = vmul.u32 %v1025, 9362
      %v1030 = vmul.u32 %v1025, 37449
      %v1031 = vshll.u32 %v1028, 16
      %v1032 = vshrl.u32 %v1028, 16
      %v1033 = vshll.u32 %v1029, 16
      %v1034 = vshrl.u32 %v1029, 16
      %vm1035 = vc.u32 %v1027, %v1031
      %v1036 = vsel %vm1035, 1, 0
      %v1037 = vadd.s32 %v1027, %v1031
      %v1038 = vadd.s32 %v1030, %v1036
      %vm1039 = vc.u32 %v1037, %v1033
      %v1040 = vsel %vm1039, 1, 0
      %v1041 = vadd.s32 %v1037, %v1033
      %v1042 = vadd.s32 %v1038, %v1040
      %v1043 = vadd.s32 %v1042, %v1032
      %v1044 = vadd.s32 %v1043, %v1034
      %vm1045 = vc.u32 %v1041, 2454267026
      %v1046 = vsel %vm1045, 1, 0
      %v1047 = vadd.s32 %v1044, %v1046
      %v1048 = vshrl.u32 %v1047, 3
      %v1049 = vmul.u32 %v1048, 14
      %v1050 = vsub.s32 %v1023, %v1049
      %v1051 = vsub.s32 0, %v1050
      %v1052 = vsel %vm1021, %v1051, %v1050
      %vm1053 = vcmp.lt.s32.totalorder %v315, 0
      %v1054 = vsub.s32 0, %v315
      %v1055 = vsel %vm1053, %v1054, %v315
      %v1056 = vand.u32 %v1055, 65535
      %v1057 = vshrl.u32 %v1055, 16
      %v1059 = vmul.u32 %v1056, 9362
      %v1060 = vmul.u32 %v1056, 37449
      %v1061 = vmul.u32 %v1057, 9362
      %v1062 = vmul.u32 %v1057, 37449
      %v1063 = vshll.u32 %v1060, 16
      %v1064 = vshrl.u32 %v1060, 16
      %v1065 = vshll.u32 %v1061, 16
      %v1066 = vshrl.u32 %v1061, 16
      %vm1067 = vc.u32 %v1059, %v1063
      %v1068 = vsel %vm1067, 1, 0
      %v1069 = vadd.s32 %v1059, %v1063
      %v1070 = vadd.s32 %v1062, %v1068
      %vm1071 = vc.u32 %v1069, %v1065
      %v1072 = vsel %vm1071, 1, 0
      %v1073 = vadd.s32 %v1069, %v1065
      %v1074 = vadd.s32 %v1070, %v1072
      %v1075 = vadd.s32 %v1074, %v1064
      %v1076 = vadd.s32 %v1075, %v1066
      %vm1077 = vc.u32 %v1073, 2454267026
      %v1078 = vsel %vm1077, 1, 0
      %v1079 = vadd.s32 %v1076, %v1078
      %v1080 = vshrl.u32 %v1079, 3
      %v1081 = vmul.u32 %v1080, 14
      %v1082 = vsub.s32 %v1055, %v1081
      %v1083 = vsub.s32 0, %v1082
      %v1084 = vsel %vm1053, %v1083, %v1082
      %vm1085 = vcmp.lt.s32.totalorder %v316, 0
      %v1086 = vsub.s32 0, %v316
      %v1087 = vsel %vm1085, %v1086, %v316
      %v1088 = vand.u32 %v1087, 65535
      %v1089 = vshrl.u32 %v1087, 16
      %v1091 = vmul.u32 %v1088, 9362
      %v1092 = vmul.u32 %v1088, 37449
      %v1093 = vmul.u32 %v1089, 9362
      %v1094 = vmul.u32 %v1089, 37449
      %v1095 = vshll.u32 %v1092, 16
      %v1096 = vshrl.u32 %v1092, 16
      %v1097 = vshll.u32 %v1093, 16
      %v1098 = vshrl.u32 %v1093, 16
      %vm1099 = vc.u32 %v1091, %v1095
      %v1100 = vsel %vm1099, 1, 0
      %v1101 = vadd.s32 %v1091, %v1095
      %v1102 = vadd.s32 %v1094, %v1100
      %vm1103 = vc.u32 %v1101, %v1097
      %v1104 = vsel %vm1103, 1, 0
      %v1105 = vadd.s32 %v1101, %v1097
      %v1106 = vadd.s32 %v1102, %v1104
      %v1107 = vadd.s32 %v1106, %v1096
      %v1108 = vadd.s32 %v1107, %v1098
      %vm1109 = vc.u32 %v1105, 2454267026
      %v1110 = vsel %vm1109, 1, 0
      %v1111 = vadd.s32 %v1108, %v1110
      %v1112 = vshrl.u32 %v1111, 3
      %v1113 = vmul.u32 %v1112, 14
      %v1114 = vsub.s32 %v1087, %v1113
      %v1115 = vsub.s32 0, %v1114
      %v1116 = vsel %vm1085, %v1115, %v1114
      %vm1117 = vcmp.ne.s32.totalorder %v348, 0
      %vm1118 = vcmp.ne.s32.totalorder %v380, 0
      %vm1119 = vcmp.ne.s32.totalorder %v412, 0
      %vm1120 = vcmp.ne.s32.totalorder %v444, 0
      %vm1121 = vcmp.ne.s32.totalorder %v476, 0
      %vm1122 = vcmp.ne.s32.totalorder %v508, 0
      %vm1123 = vcmp.ne.s32.totalorder %v540, 0
      %vm1124 = vcmp.ne.s32.totalorder %v572, 0
      %vm1125 = vcmp.ne.s32.totalorder %v604, 0
      %vm1126 = vcmp.ne.s32.totalorder %v636, 0
      %vm1127 = vcmp.ne.s32.totalorder %v668, 0
      %vm1128 = vcmp.ne.s32.totalorder %v700, 0
      %vm1129 = vcmp.ne.s32.totalorder %v732, 0
      %vm1130 = vcmp.ne.s32.totalorder %v764, 0
      %vm1131 = vcmp.ne.s32.totalorder %v796, 0
      %vm1132 = vcmp.ne.s32.totalorder %v828, 0
      %vm1133 = vcmp.ne.s32.totalorder %v860, 0
      %vm1134 = vcmp.ne.s32.totalorder %v892, 0
      %vm1135 = vcmp.ne.s32.totalorder %v924, 0
      %vm1136 = vcmp.ne.s32.totalorder %v956, 0
      %vm1137 = vcmp.ne.s32.totalorder %v988, 0
      %vm1138 = vcmp.ne.s32.totalorder %v1020, 0
      %vm1139 = vcmp.ne.s32.totalorder %v1052, 0
      %vm1140 = vcmp.ne.s32.totalorder %v1084, 0
      %vm1141 = vcmp.ne.s32.totalorder %v1116, 0
      %vm1142 = vcmp.lt.s32.totalorder %v348, 0
      %vm1143 = vcmp.lt.s32.totalorder %v380, 0
      %vm1144 = vcmp.lt.s32.totalorder %v412, 0
      %vm1145 = vcmp.lt.s32.totalorder %v444, 0
      %vm1146 = vcmp.lt.s32.totalorder %v476, 0
      %vm1147 = vcmp.lt.s32.totalorder %v508, 0
      %vm1148 = vcmp.lt.s32.totalorder %v540, 0
      %vm1149 = vcmp.lt.s32.totalorder %v572, 0
      %vm1150 = vcmp.lt.s32.totalorder %v604, 0
      %vm1151 = vcmp.lt.s32.totalorder %v636, 0
      %vm1152 = vcmp.lt.s32.totalorder %v668, 0
      %vm1153 = vcmp.lt.s32.totalorder %v700, 0
      %vm1154 = vcmp.lt.s32.totalorder %v732, 0
      %vm1155 = vcmp.lt.s32.totalorder %v764, 0
      %vm1156 = vcmp.lt.s32.totalorder %v796, 0
      %vm1157 = vcmp.lt.s32.totalorder %v828, 0
      %vm1158 = vcmp.lt.s32.totalorder %v860, 0
      %vm1159 = vcmp.lt.s32.totalorder %v892, 0
      %vm1160 = vcmp.lt.s32.totalorder %v924, 0
      %vm1161 = vcmp.lt.s32.totalorder %v956, 0
      %vm1162 = vcmp.lt.s32.totalorder %v988, 0
      %vm1163 = vcmp.lt.s32.totalorder %v1020, 0
      %vm1164 = vcmp.lt.s32.totalorder %v1052, 0
      %vm1165 = vcmp.lt.s32.totalorder %v1084, 0
      %vm1166 = vcmp.lt.s32.totalorder %v1116, 0
      %vm1167 = vmand %vm1142, %vm1117
      %vm1168 = vmand %vm1143, %vm1118
      %vm1169 = vmand %vm1144, %vm1119
      %vm1170 = vmand %vm1145, %vm1120
      %vm1171 = vmand %vm1146, %vm1121
      %vm1172 = vmand %vm1147, %vm1122
      %vm1173 = vmand %vm1148, %vm1123
      %vm1174 = vmand %vm1149, %vm1124
      %vm1175 = vmand %vm1150, %vm1125
      %vm1176 = vmand %vm1151, %vm1126
      %vm1177 = vmand %vm1152, %vm1127
      %vm1178 = vmand %vm1153, %vm1128
      %vm1179 = vmand %vm1154, %vm1129
      %vm1180 = vmand %vm1155, %vm1130
      %vm1181 = vmand %vm1156, %vm1131
      %vm1182 = vmand %vm1157, %vm1132
      %vm1183 = vmand %vm1158, %vm1133
      %vm1184 = vmand %vm1159, %vm1134
      %vm1185 = vmand %vm1160, %vm1135
      %vm1186 = vmand %vm1161, %vm1136
      %vm1187 = vmand %vm1162, %vm1137
      %vm1188 = vmand %vm1163, %vm1138
      %vm1189 = vmand %vm1164, %vm1139
      %vm1190 = vmand %vm1165, %vm1140
      %vm1191 = vmand %vm1166, %vm1141
      %v1192 = vadd.s32 %v348, 14
      %v1193 = vadd.s32 %v380, 14
      %v1194 = vadd.s32 %v412, 14
      %v1195 = vadd.s32 %v444, 14
      %v1196 = vadd.s32 %v476, 14
      %v1197 = vadd.s32 %v508, 14
      %v1198 = vadd.s32 %v540, 14
      %v1199 = vadd.s32 %v572, 14
      %v1200 = vadd.s32 %v604, 14
      %v1201 = vadd.s32 %v636, 14
      %v1202 = vadd.s32 %v668, 14
      %v1203 = vadd.s32 %v700, 14
      %v1204 = vadd.s32 %v732, 14
      %v1205 = vadd.s32 %v764, 14
      %v1206 = vadd.s32 %v796, 14
      %v1207 = vadd.s32 %v828, 14
      %v1208 = vadd.s32 %v860, 14
      %v1209 = vadd.s32 %v892, 14
      %v1210 = vadd.s32 %v924, 14
      %v1211 = vadd.s32 %v956, 14
      %v1212 = vadd.s32 %v988, 14
      %v1213 = vadd.s32 %v1020, 14
      %v1214 = vadd.s32 %v1052, 14
      %v1215 = vadd.s32 %v1084, 14
      %v1216 = vadd.s32 %v1116, 14
      %v1217 = vsel %vm1167, %v1192, %v348
      %v1218 = vsel %vm1168, %v1193, %v380
      %v1219 = vsel %vm1169, %v1194, %v412
      %v1220 = vsel %vm1170, %v1195, %v444
      %v1221 = vsel %vm1171, %v1196, %v476
      %v1222 = vsel %vm1172, %v1197, %v508
      %v1223 = vsel %vm1173, %v1198, %v540
      %v1224 = vsel %vm1174, %v1199, %v572
      %v1225 = vsel %vm1175, %v1200, %v604
      %v1226 = vsel %vm1176, %v1201, %v636
      %v1227 = vsel %vm1177, %v1202, %v668
      %v1228 = vsel %vm1178, %v1203, %v700
      %v1229 = vsel %vm1179, %v1204, %v732
      %v1230 = vsel %vm1180, %v1205, %v764
      %v1231 = vsel %vm1181, %v1206, %v796
      %v1232 = vsel %vm1182, %v1207, %v828
      %v1233 = vsel %vm1183, %v1208, %v860
      %v1234 = vsel %vm1184, %v1209, %v892
      %v1235 = vsel %vm1185, %v1210, %v924
      %v1236 = vsel %vm1186, %v1211, %v956
      %v1237 = vsel %vm1187, %v1212, %v988
      %v1238 = vsel %vm1188, %v1213, %v1020
      %v1239 = vsel %vm1189, %v1214, %v1052
      %v1240 = vsel %vm1190, %v1215, %v1084
      %v1241 = vsel %vm1191, %v1216, %v1116
      %vm1242 = vcmp.eq.s32.totalorder %v1217, 0
      %vm1243 = vcmp.eq.s32.totalorder %v1218, 0
      %vm1244 = vcmp.eq.s32.totalorder %v1219, 0
      %vm1245 = vcmp.eq.s32.totalorder %v1220, 0
      %vm1246 = vcmp.eq.s32.totalorder %v1221, 0
      %vm1247 = vcmp.eq.s32.totalorder %v1222, 0
      %vm1248 = vcmp.eq.s32.totalorder %v1223, 0
      %vm1249 = vcmp.eq.s32.totalorder %v1224, 0
      %vm1250 = vcmp.eq.s32.totalorder %v1225, 0
      %vm1251 = vcmp.eq.s32.totalorder %v1226, 0
      %vm1252 = vcmp.eq.s32.totalorder %v1227, 0
      %vm1253 = vcmp.eq.s32.totalorder %v1228, 0
      %vm1254 = vcmp.eq.s32.totalorder %v1229, 0
      %vm1255 = vcmp.eq.s32.totalorder %v1230, 0
      %vm1256 = vcmp.eq.s32.totalorder %v1231, 0
      %vm1257 = vcmp.eq.s32.totalorder %v1232, 0
      %vm1258 = vcmp.eq.s32.totalorder %v1233, 0
      %vm1259 = vcmp.eq.s32.totalorder %v1234, 0
      %vm1260 = vcmp.eq.s32.totalorder %v1235, 0
      %vm1261 = vcmp.eq.s32.totalorder %v1236, 0
      %vm1262 = vcmp.eq.s32.totalorder %v1237, 0
      %vm1263 = vcmp.eq.s32.totalorder %v1238, 0
      %vm1264 = vcmp.eq.s32.totalorder %v1239, 0
      %vm1265 = vcmp.eq.s32.totalorder %v1240, 0
      %vm1266 = vcmp.eq.s32.totalorder %v1241, 0
      %v1267 = vsel %vm1242, 0.0, 1.0
      %v1268 = vsel %vm1243, 0.0, 1.0
      %v1269 = vsel %vm1244, 0.0, 1.0
      %v1270 = vsel %vm1245, 0.0, 1.0
      %v1271 = vsel %vm1246, 0.0, 1.0
      %v1272 = vsel %vm1247, 0.0, 1.0
      %v1273 = vsel %vm1248, 0.0, 1.0
      %v1274 = vsel %vm1249, 0.0, 1.0
      %v1275 = vsel %vm1250, 0.0, 1.0
      %v1276 = vsel %vm1251, 0.0, 1.0
      %v1277 = vsel %vm1252, 0.0, 1.0
      %v1278 = vsel %vm1253, 0.0, 1.0
      %v1279 = vsel %vm1254, 0.0, 1.0
      %v1280 = vsel %vm1255, 0.0, 1.0
      %v1281 = vsel %vm1256, 0.0, 1.0
      %v1282 = vsel %vm1257, 0.0, 1.0
      %v1283 = vsel %vm1258, 0.0, 1.0
      %v1284 = vsel %vm1259, 0.0, 1.0
      %v1285 = vsel %vm1260, 0.0, 1.0
      %v1286 = vsel %vm1261, 0.0, 1.0
      %v1287 = vsel %vm1262, 0.0, 1.0
      %v1288 = vsel %vm1263, 0.0, 1.0
      %v1289 = vsel %vm1264, 0.0, 1.0
      %v1290 = vsel %vm1265, 0.0, 1.0
      %v1291 = vsel %vm1266, 0.0, 1.0
      %v1292 = vpack.c.bf16 %v1267, %v1267
      %v1293 = vpack.c.bf16 %v1268, %v1268
      %v1294 = vpack.c.bf16 %v1269, %v1269
      %v1295 = vpack.c.bf16 %v1270, %v1270
      %v1296 = vpack.c.bf16 %v1271, %v1271
      %v1297 = vpack.c.bf16 %v1272, %v1272
      %v1298 = vpack.c.bf16 %v1273, %v1273
      %v1299 = vpack.c.bf16 %v1274, %v1274
      %v1300 = vpack.c.bf16 %v1275, %v1275
      %v1301 = vpack.c.bf16 %v1276, %v1276
      %v1302 = vpack.c.bf16 %v1277, %v1277
      %v1303 = vpack.c.bf16 %v1278, %v1278
      %v1304 = vpack.c.bf16 %v1279, %v1279
      %v1305 = vpack.c.bf16 %v1280, %v1280
      %v1306 = vpack.c.bf16 %v1281, %v1281
      %v1307 = vpack.c.bf16 %v1282, %v1282
      %v1308 = vpack.c.bf16 %v1283, %v1283
      %v1309 = vpack.c.bf16 %v1284, %v1284
      %v1310 = vpack.c.bf16 %v1285, %v1285
      %v1311 = vpack.c.bf16 %v1286, %v1286
      %v1312 = vpack.c.bf16 %v1287, %v1287
      %v1313 = vpack.c.bf16 %v1288, %v1288
      %v1314 = vpack.c.bf16 %v1289, %v1289
      %v1315 = vpack.c.bf16 %v1290, %v1290
      %v1316 = vpack.c.bf16 %v1291, %v1291
      %vm1317 = vcmp.eq.s32.totalorder %v1217, 13
      %vm1318 = vcmp.eq.s32.totalorder %v1218, 13
      %vm1319 = vcmp.eq.s32.totalorder %v1219, 13
      %vm1320 = vcmp.eq.s32.totalorder %v1220, 13
      %vm1321 = vcmp.eq.s32.totalorder %v1221, 13
      %vm1322 = vcmp.eq.s32.totalorder %v1222, 13
      %vm1323 = vcmp.eq.s32.totalorder %v1223, 13
      %vm1324 = vcmp.eq.s32.totalorder %v1224, 13
      %vm1325 = vcmp.eq.s32.totalorder %v1225, 13
      %vm1326 = vcmp.eq.s32.totalorder %v1226, 13
      %vm1327 = vcmp.eq.s32.totalorder %v1227, 13
      %vm1328 = vcmp.eq.s32.totalorder %v1228, 13
      %vm1329 = vcmp.eq.s32.totalorder %v1229, 13
      %vm1330 = vcmp.eq.s32.totalorder %v1230, 13
      %vm1331 = vcmp.eq.s32.totalorder %v1231, 13
      %vm1332 = vcmp.eq.s32.totalorder %v1232, 13
      %vm1333 = vcmp.eq.s32.totalorder %v1233, 13
      %vm1334 = vcmp.eq.s32.totalorder %v1234, 13
      %vm1335 = vcmp.eq.s32.totalorder %v1235, 13
      %vm1336 = vcmp.eq.s32.totalorder %v1236, 13
      %vm1337 = vcmp.eq.s32.totalorder %v1237, 13
      %vm1338 = vcmp.eq.s32.totalorder %v1238, 13
      %vm1339 = vcmp.eq.s32.totalorder %v1239, 13
      %vm1340 = vcmp.eq.s32.totalorder %v1240, 13
      %vm1341 = vcmp.eq.s32.totalorder %v1241, 13
      %v1342 = vsel %vm1317, 0.0, 1.0
      %v1343 = vsel %vm1318, 0.0, 1.0
      %v1344 = vsel %vm1319, 0.0, 1.0
      %v1345 = vsel %vm1320, 0.0, 1.0
      %v1346 = vsel %vm1321, 0.0, 1.0
      %v1347 = vsel %vm1322, 0.0, 1.0
      %v1348 = vsel %vm1323, 0.0, 1.0
      %v1349 = vsel %vm1324, 0.0, 1.0
      %v1350 = vsel %vm1325, 0.0, 1.0
      %v1351 = vsel %vm1326, 0.0, 1.0
      %v1352 = vsel %vm1327, 0.0, 1.0
      %v1353 = vsel %vm1328, 0.0, 1.0
      %v1354 = vsel %vm1329, 0.0, 1.0
      %v1355 = vsel %vm1330, 0.0, 1.0
      %v1356 = vsel %vm1331, 0.0, 1.0
      %v1357 = vsel %vm1332, 0.0, 1.0
      %v1358 = vsel %vm1333, 0.0, 1.0
      %v1359 = vsel %vm1334, 0.0, 1.0
      %v1360 = vsel %vm1335, 0.0, 1.0
      %v1361 = vsel %vm1336, 0.0, 1.0
      %v1362 = vsel %vm1337, 0.0, 1.0
      %v1363 = vsel %vm1338, 0.0, 1.0
      %v1364 = vsel %vm1339, 0.0, 1.0
      %v1365 = vsel %vm1340, 0.0, 1.0
      %v1366 = vsel %vm1341, 0.0, 1.0
      %v1367 = vpack.c.bf16 %v1342, %v1342
      %v1368 = vpack.c.bf16 %v1343, %v1343
      %v1369 = vpack.c.bf16 %v1344, %v1344
      %v1370 = vpack.c.bf16 %v1345, %v1345
      %v1371 = vpack.c.bf16 %v1346, %v1346
      %v1372 = vpack.c.bf16 %v1347, %v1347
      %v1373 = vpack.c.bf16 %v1348, %v1348
      %v1374 = vpack.c.bf16 %v1349, %v1349
      %v1375 = vpack.c.bf16 %v1350, %v1350
      %v1376 = vpack.c.bf16 %v1351, %v1351
      %v1377 = vpack.c.bf16 %v1352, %v1352
      %v1378 = vpack.c.bf16 %v1353, %v1353
      %v1379 = vpack.c.bf16 %v1354, %v1354
      %v1380 = vpack.c.bf16 %v1355, %v1355
      %v1381 = vpack.c.bf16 %v1356, %v1356
      %v1382 = vpack.c.bf16 %v1357, %v1357
      %v1383 = vpack.c.bf16 %v1358, %v1358
      %v1384 = vpack.c.bf16 %v1359, %v1359
      %v1385 = vpack.c.bf16 %v1360, %v1360
      %v1386 = vpack.c.bf16 %v1361, %v1361
      %v1387 = vpack.c.bf16 %v1362, %v1362
      %v1388 = vpack.c.bf16 %v1363, %v1363
      %v1389 = vpack.c.bf16 %v1364, %v1364
      %v1390 = vpack.c.bf16 %v1365, %v1365
      %v1391 = vpack.c.bf16 %v1366, %v1366
      %v1392 = vld [vmem:[#allocation2] sm:$0xf]
      %v1393 = vld [vmem:[#allocation2 + $0x4] sm:$0xf]
      %v1394 = vld [vmem:[#allocation2 + $0x8] sm:$0xf]
      %v1395 = vld [vmem:[#allocation2 + $0xc] sm:$0xf]
      %v1396 = vld [vmem:[#allocation2 + $0x10] sm:$0xf]
      %v1397 = vld [vmem:[#allocation2 + $0x14] sm:$0xf]
      %v1398 = vld [vmem:[#allocation2 + $0x18] sm:$0xf]
      %v1399 = vld [vmem:[#allocation2 + $0x1c] sm:$0xf]
      %v1400 = vld [vmem:[#allocation2 + $0x20] sm:$0xf]
      %v1401 = vld [vmem:[#allocation2 + $0x24] sm:$0xf]
      %v1402 = vld [vmem:[#allocation2 + $0x28] sm:$0xf]
      %v1403 = vld [vmem:[#allocation2 + $0x2c] sm:$0xf]
      %v1404 = vld [vmem:[#allocation2 + $0x30] sm:$0xf]
      %v1405 = vld [vmem:[#allocation2 + $0x34] sm:$0xf]
      %v1406 = vld [vmem:[#allocation2 + $0x38] sm:$0xf]
      %v1407 = vld [vmem:[#allocation2 + $0x3c] sm:$0xf]
      %v1408 = vld [vmem:[#allocation2 + $0x40] sm:$0xf]
      %v1409 = vld [vmem:[#allocation2 + $0x44] sm:$0xf]
      %v1410 = vld [vmem:[#allocation2 + $0x48] sm:$0xf]
      %v1411 = vld [vmem:[#allocation2 + $0x4c] sm:$0xf]
      %v1412 = vld [vmem:[#allocation2 + $0x50] sm:$0xf]
      %v1413 = vld [vmem:[#allocation2 + $0x54] sm:$0xf]
      %v1414 = vld [vmem:[#allocation2 + $0x58] sm:$0xf]
      %v1415 = vld [vmem:[#allocation2 + $0x5c] sm:$0xf]
      %v1416 = vld [vmem:[#allocation2 + $0x60] sm:$0x3]
      %v1417 = vld [vmem:[#allocation2 + $0x60] sm:$0x7]
      %v1418 = vunpack.c.l.bf16 %v1392
      %v1419 = vunpack.c.l.bf16 %v1393
      %v1420 = vunpack.c.l.bf16 %v1394
      %v1421 = vunpack.c.l.bf16 %v1395
      %v1422 = vunpack.c.l.bf16 %v1396
      %v1423 = vunpack.c.l.bf16 %v1397
      %v1424 = vunpack.c.l.bf16 %v1398
      %v1425 = vunpack.c.l.bf16 %v1399
      %v1426 = vunpack.c.l.bf16 %v1400
      %v1427 = vunpack.c.l.bf16 %v1401
      %v1428 = vunpack.c.l.bf16 %v1402
      %v1429 = vunpack.c.l.bf16 %v1403
      %v1430 = vunpack.c.l.bf16 %v1404
      %v1431 = vunpack.c.l.bf16 %v1405
      %v1432 = vunpack.c.l.bf16 %v1406
      %v1433 = vunpack.c.l.bf16 %v1407
      %v1434 = vunpack.c.l.bf16 %v1408
      %v1435 = vunpack.c.l.bf16 %v1409
      %v1436 = vunpack.c.l.bf16 %v1410
      %v1437 = vunpack.c.l.bf16 %v1411
      %v1438 = vunpack.c.l.bf16 %v1412
      %v1439 = vunpack.c.l.bf16 %v1413
      %v1440 = vunpack.c.l.bf16 %v1414
      %v1441 = vunpack.c.l.bf16 %v1415
      %v1442 = vunpack.c.l.bf16 %v1417
      %v1443 = vunpack.c.l.bf16 %v1367
      %v1444 = vunpack.c.l.bf16 %v1368
      %v1445 = vunpack.c.l.bf16 %v1369
      %v1446 = vunpack.c.l.bf16 %v1370
      %v1447 = vunpack.c.l.bf16 %v1371
      %v1448 = vunpack.c.l.bf16 %v1372
      %v1449 = vunpack.c.l.bf16 %v1373
      %v1450 = vunpack.c.l.bf16 %v1374
      %v1451 = vunpack.c.l.bf16 %v1375
      %v1452 = vunpack.c.l.bf16 %v1376
      %v1453 = vunpack.c.l.bf16 %v1377
      %v1454 = vunpack.c.l.bf16 %v1378
      %v1455 = vunpack.c.l.bf16 %v1379
      %v1456 = vunpack.c.l.bf16 %v1380
      %v1457 = vunpack.c.l.bf16 %v1381
      %v1458 = vunpack.c.l.bf16 %v1382
      %v1459 = vunpack.c.l.bf16 %v1383
      %v1460 = vunpack.c.l.bf16 %v1384
      %v1461 = vunpack.c.l.bf16 %v1385
      %v1462 = vunpack.c.l.bf16 %v1386
      %v1463 = vunpack.c.l.bf16 %v1387
      %v1464 = vunpack.c.l.bf16 %v1388
      %v1465 = vunpack.c.l.bf16 %v1389
      %v1466 = vunpack.c.l.bf16 %v1390
      %v1467 = vunpack.c.l.bf16 %v1391
      %vm1493 = vcmask 1040384
      %v1494 = vrot.slane %v1443, 7
      %v1495 = vrot.slane %v1444, 7
      %v1496 = vsel %vm1493, %v1494, %v1495
      %v1497 = vrot.slane %v1445, 7
      %v1498 = vsel %vm1493, %v1495, %v1497
      %v1499 = vrot.slane %v1446, 7
      %v1500 = vsel %vm1493, %v1497, %v1499
      %v1501 = vrot.slane %v1447, 7
      %v1502 = vsel %vm1493, %v1499, %v1501
      %v1503 = vrot.slane %v1448, 7
      %v1504 = vsel %vm1493, %v1501, %v1503
      %v1505 = vrot.slane %v1449, 7
      %v1506 = vsel %vm1493, %v1503, %v1505
      %v1507 = vrot.slane %v1450, 7
      %v1508 = vsel %vm1493, %v1505, %v1507
      %v1509 = vrot.slane %v1451, 7
      %v1510 = vsel %vm1493, %v1507, %v1509
      %v1511 = vrot.slane %v1452, 7
      %v1512 = vsel %vm1493, %v1509, %v1511
      %v1513 = vrot.slane %v1453, 7
      %v1514 = vsel %vm1493, %v1511, %v1513
      %v1515 = vrot.slane %v1454, 7
      %v1516 = vsel %vm1493, %v1513, %v1515
      %v1517 = vrot.slane %v1455, 7
      %v1518 = vsel %vm1493, %v1515, %v1517
      %v1519 = vrot.slane %v1456, 7
      %v1520 = vsel %vm1493, %v1517, %v1519
      %v1521 = vrot.slane %v1457, 7
      %v1522 = vsel %vm1493, %v1519, %v1521
      %v1523 = vrot.slane %v1458, 7
      %v1524 = vsel %vm1493, %v1521, %v1523
      %v1525 = vrot.slane %v1459, 7
      %v1526 = vsel %vm1493, %v1523, %v1525
      %v1527 = vrot.slane %v1460, 7
      %v1528 = vsel %vm1493, %v1525, %v1527
      %v1529 = vrot.slane %v1461, 7
      %v1530 = vsel %vm1493, %v1527, %v1529
      %v1531 = vrot.slane %v1462, 7
      %v1532 = vsel %vm1493, %v1529, %v1531
      %v1533 = vrot.slane %v1463, 7
      %v1534 = vsel %vm1493, %v1531, %v1533
      %v1535 = vrot.slane %v1464, 7
      %v1536 = vsel %vm1493, %v1533, %v1535
      %v1537 = vrot.slane %v1465, 7
      %v1538 = vsel %vm1493, %v1535, %v1537
      %v1539 = vrot.slane %v1466, 7
      %v1540 = vsel %vm1493, %v1537, %v1539
      %v1541 = vrot.slane %v1467, 7
      %v1542 = vsel %vm1493, %v1539, %v1541
      %v1568 = vmul.f32 %v1418, %v1494
      %v1569 = vmul.f32 %v1419, %v1496
      %v1570 = vmul.f32 %v1420, %v1498
      %v1571 = vmul.f32 %v1421, %v1500
      %v1572 = vmul.f32 %v1422, %v1502
      %v1573 = vmul.f32 %v1423, %v1504
      %v1574 = vmul.f32 %v1424, %v1506
      %v1575 = vmul.f32 %v1425, %v1508
      %v1576 = vmul.f32 %v1426, %v1510
      %v1577 = vmul.f32 %v1427, %v1512
      %v1578 = vmul.f32 %v1428, %v1514
      %v1579 = vmul.f32 %v1429, %v1516
      %v1580 = vmul.f32 %v1430, %v1518
      %v1581 = vmul.f32 %v1431, %v1520
      %v1582 = vmul.f32 %v1432, %v1522
      %v1583 = vmul.f32 %v1433, %v1524
      %v1584 = vmul.f32 %v1434, %v1526
      %v1585 = vmul.f32 %v1435, %v1528
      %v1586 = vmul.f32 %v1436, %v1530
      %v1587 = vmul.f32 %v1437, %v1532
      %v1588 = vmul.f32 %v1438, %v1534
      %v1589 = vmul.f32 %v1439, %v1536
      %v1590 = vmul.f32 %v1440, %v1538
      %v1591 = vmul.f32 %v1441, %v1540
      %v1592 = vmul.f32 %v1442, %v1542
      %v1593 = vpack.c.bf16 %v1569, %v1568
      %v1594 = vpack.c.bf16 %v1571, %v1570
      %v1595 = vpack.c.bf16 %v1573, %v1572
      %v1596 = vpack.c.bf16 %v1575, %v1574
      %v1597 = vpack.c.bf16 %v1577, %v1576
      %v1598 = vpack.c.bf16 %v1579, %v1578
      %v1599 = vpack.c.bf16 %v1581, %v1580
      %v1600 = vpack.c.bf16 %v1583, %v1582
      %v1601 = vpack.c.bf16 %v1585, %v1584
      %v1602 = vpack.c.bf16 %v1587, %v1586
      %v1603 = vpack.c.bf16 %v1589, %v1588
      %v1604 = vpack.c.bf16 %v1591, %v1590
      %v1605 = vpack.c.bf16 %v1592, %v1592
      %v1606 = vld [vmem:[#allocation2 + $0x4] sm:$0x8]
      %v1607 = vld [vmem:[#allocation2 + $0x60] sm:$0xf]
      %v1608 = vld [vmem:[#allocation2 + $0x64] sm:$0xf]
      %v1609 = vld [vmem:[#allocation2 + $0x68] sm:$0x1]
      %v1610 = vld [vmem:[#allocation2 + $0x68] sm:$0x3]
      %v1611 = vunpack.c.l.bf16 %v1606
      %v1612 = vunpack.c.l.bf16 %v1607
      %v1613 = vunpack.c.l.bf16 %v1608
      %v1614 = vunpack.c.l.bf16 %v1610
      %vm1615 = vcmask 1046528
      %v1616 = vrot.slane %v1443, 1
      %v1617 = vrot.slane %v1444, 1
      %v1618 = vsel %vm1615, %v1616, %v1617
      %v1619 = vrot.slane %v1445, 1
      %v1620 = vsel %vm1615, %v1617, %v1619
      %v1621 = vrot.slane %v1446, 1
      %v1622 = vsel %vm1615, %v1619, %v1621
      %v1623 = vrot.slane %v1447, 1
      %v1624 = vsel %vm1615, %v1621, %v1623
      %v1625 = vrot.slane %v1448, 1
      %v1626 = vsel %vm1615, %v1623, %v1625
      %v1627 = vrot.slane %v1449, 1
      %v1628 = vsel %vm1615, %v1625, %v1627
      %v1629 = vrot.slane %v1450, 1
      %v1630 = vsel %vm1615, %v1627, %v1629
      %v1631 = vrot.slane %v1451, 1
      %v1632 = vsel %vm1615, %v1629, %v1631
      %v1633 = vrot.slane %v1452, 1
      %v1634 = vsel %vm1615, %v1631, %v1633
      %v1635 = vrot.slane %v1453, 1
      %v1636 = vsel %vm1615, %v1633, %v1635
      %v1637 = vrot.slane %v1454, 1
      %v1638 = vsel %vm1615, %v1635, %v1637
      %v1639 = vrot.slane %v1455, 1
      %v1640 = vsel %vm1615, %v1637, %v1639
      %v1641 = vrot.slane %v1456, 1
      %v1642 = vsel %vm1615, %v1639, %v1641
      %v1643 = vrot.slane %v1457, 1
      %v1644 = vsel %vm1615, %v1641, %v1643
      %v1645 = vrot.slane %v1458, 1
      %v1646 = vsel %vm1615, %v1643, %v1645
      %v1647 = vrot.slane %v1459, 1
      %v1648 = vsel %vm1615, %v1645, %v1647
      %v1649 = vrot.slane %v1460, 1
      %v1650 = vsel %vm1615, %v1647, %v1649
      %v1651 = vrot.slane %v1461, 1
      %v1652 = vsel %vm1615, %v1649, %v1651
      %v1653 = vrot.slane %v1462, 1
      %v1654 = vsel %vm1615, %v1651, %v1653
      %v1655 = vrot.slane %v1463, 1
      %v1656 = vsel %vm1615, %v1653, %v1655
      %v1657 = vrot.slane %v1464, 1
      %v1658 = vsel %vm1615, %v1655, %v1657
      %v1659 = vrot.slane %v1465, 1
      %v1660 = vsel %vm1615, %v1657, %v1659
      %v1661 = vrot.slane %v1466, 1
      %v1662 = vsel %vm1615, %v1659, %v1661
      %v1663 = vrot.slane %v1467, 1
      %v1664 = vsel %vm1615, %v1661, %v1663
      %v1691 = vmul.f32 %v1611, %v1616
      %v1692 = vmul.f32 %v1420, %v1618
      %v1693 = vmul.f32 %v1421, %v1620
      %v1694 = vmul.f32 %v1422, %v1622
      %v1695 = vmul.f32 %v1423, %v1624
      %v1696 = vmul.f32 %v1424, %v1626
      %v1697 = vmul.f32 %v1425, %v1628
      %v1698 = vmul.f32 %v1426, %v1630
      %v1699 = vmul.f32 %v1427, %v1632
      %v1700 = vmul.f32 %v1428, %v1634
      %v1701 = vmul.f32 %v1429, %v1636
      %v1702 = vmul.f32 %v1430, %v1638
      %v1703 = vmul.f32 %v1431, %v1640
      %v1704 = vmul.f32 %v1432, %v1642
      %v1705 = vmul.f32 %v1433, %v1644
      %v1706 = vmul.f32 %v1434, %v1646
      %v1707 = vmul.f32 %v1435, %v1648
      %v1708 = vmul.f32 %v1436, %v1650
      %v1709 = vmul.f32 %v1437, %v1652
      %v1710 = vmul.f32 %v1438, %v1654
      %v1711 = vmul.f32 %v1439, %v1656
      %v1712 = vmul.f32 %v1440, %v1658
      %v1713 = vmul.f32 %v1441, %v1660
      %v1714 = vmul.f32 %v1612, %v1662
      %v1715 = vmul.f32 %v1613, %v1664
      %v1716 = vmul.f32 %v1614, %v1663
      %v1717 = vpack.c.bf16 %v1692, %v1691
      %v1718 = vpack.c.bf16 %v1694, %v1693
      %v1719 = vpack.c.bf16 %v1696, %v1695
      %v1720 = vpack.c.bf16 %v1698, %v1697
      %v1721 = vpack.c.bf16 %v1700, %v1699
      %v1722 = vpack.c.bf16 %v1702, %v1701
      %v1723 = vpack.c.bf16 %v1704, %v1703
      %v1724 = vpack.c.bf16 %v1706, %v1705
      %v1725 = vpack.c.bf16 %v1708, %v1707
      %v1726 = vpack.c.bf16 %v1710, %v1709
      %v1727 = vpack.c.bf16 %v1712, %v1711
      %v1728 = vpack.c.bf16 %v1714, %v1713
      %v1729 = vpack.c.bf16 %v1716, %v1715
      %v1730 = vld [vmem:[%s2] sm:$0x1]
      %v1731 = vld [vmem:[%s1] sm:$0xf]
      %v1732 = vld [vmem:[%s1 + $0x4] sm:$0xf]
      %v1733 = vld [vmem:[%s1 + $0x8] sm:$0xf]
      %v1734 = vld [vmem:[%s1 + $0xc] sm:$0xf]
      %v1735 = vld [vmem:[%s1 + $0x10] sm:$0xf]
      %v1736 = vld [vmem:[%s1 + $0x14] sm:$0xf]
      %v1737 = vld [vmem:[%s1 + $0x18] sm:$0xf]
      %v1738 = vld [vmem:[%s1 + $0x1c] sm:$0xf]
      %s1739 = scalar_lea.vmem %s1, 32
      %v1740 = vld [vmem:[%s1739] sm:$0xf]
      %v1741 = vld [vmem:[%s1739 + $0x4] sm:$0xf]
      %v1742 = vld [vmem:[%s1739 + $0x8] sm:$0xf]
      %v1743 = vld [vmem:[%s1739 + $0xc] sm:$0xf]
      %v1744 = vld [vmem:[%s1739 + $0x10] sm:$0xf]
      %v1745 = vld [vmem:[%s1739 + $0x14] sm:$0xf]
      %v1746 = vld [vmem:[%s1739 + $0x18] sm:$0xf]
      %v1747 = vld [vmem:[%s1739 + $0x1c] sm:$0xf]
      %vm1748 = vsmask.f32 7424
      %v1750 = vshrl.u32 %v1593, 16
      %v1752 = vshll.u32 %v1593, 16
      %v1754 = vrot.slane %v1752, 1
      %v1755 = vor.u32 %v1750, %v1754
      %v1757 = vshll.u32 %v1594, 16
      %v1759 = vrot.slane %v1757, 1
      %v1760 = vsel %vm1748, %v1755, %v1759
      %v1761 = vshrl.u32 %v1594, 16
      %v1763 = vor.u32 %v1761, %v1759
      %v1765 = vshll.u32 %v1595, 16
      %v1767 = vrot.slane %v1765, 1
      %v1768 = vsel %vm1748, %v1763, %v1767
      %v1769 = vshrl.u32 %v1595, 16
      %v1771 = vor.u32 %v1769, %v1767
      %v1773 = vshll.u32 %v1596, 16
      %v1775 = vrot.slane %v1773, 1
      %v1776 = vsel %vm1748, %v1771, %v1775
      %v1777 = vshrl.u32 %v1596, 16
      %v1779 = vor.u32 %v1777, %v1775
      %v1781 = vshll.u32 %v1597, 16
      %v1783 = vrot.slane %v1781, 1
      %v1784 = vsel %vm1748, %v1779, %v1783
      %v1785 = vshrl.u32 %v1597, 16
      %v1787 = vor.u32 %v1785, %v1783
      %v1789 = vshll.u32 %v1598, 16
      %v1791 = vrot.slane %v1789, 1
      %v1792 = vsel %vm1748, %v1787, %v1791
      %v1793 = vshrl.u32 %v1598, 16
      %v1795 = vor.u32 %v1793, %v1791
      %v1797 = vshll.u32 %v1599, 16
      %v1799 = vrot.slane %v1797, 1
      %v1800 = vsel %vm1748, %v1795, %v1799
      %v1801 = vshrl.u32 %v1599, 16
      %v1803 = vor.u32 %v1801, %v1799
      %v1805 = vshll.u32 %v1600, 16
      %v1807 = vrot.slane %v1805, 1
      %v1808 = vsel %vm1748, %v1803, %v1807
      %v1809 = vshrl.u32 %v1600, 16
      %v1811 = vor.u32 %v1809, %v1807
      %v1813 = vshll.u32 %v1601, 16
      %v1815 = vrot.slane %v1813, 1
      %v1816 = vsel %vm1748, %v1811, %v1815
      %v1817 = vshrl.u32 %v1601, 16
      %v1819 = vor.u32 %v1817, %v1815
      %v1821 = vshll.u32 %v1602, 16
      %v1823 = vrot.slane %v1821, 1
      %v1824 = vsel %vm1748, %v1819, %v1823
      %v1825 = vshrl.u32 %v1602, 16
      %v1827 = vor.u32 %v1825, %v1823
      %v1829 = vshll.u32 %v1603, 16
      %v1831 = vrot.slane %v1829, 1
      %v1832 = vsel %vm1748, %v1827, %v1831
      %v1833 = vshrl.u32 %v1603, 16
      %v1835 = vor.u32 %v1833, %v1831
      %v1837 = vshll.u32 %v1604, 16
      %v1839 = vrot.slane %v1837, 1
      %v1840 = vsel %vm1748, %v1835, %v1839
      %v1841 = vshrl.u32 %v1604, 16
      %v1843 = vor.u32 %v1841, %v1839
      %v1845 = vshll.u32 %v1605, 16
      %v1847 = vrot.slane %v1845, 1
      %v1848 = vsel %vm1748, %v1843, %v1847
      %v1849 = vshrl.u32 %v1605, 16
      %v1851 = vor.u32 %v1849, %v1847
      %v1860 = vunpack.c.l.b16 %v1740
      %v1861 = vunpack.c.l.b16 %v1741
      %v1862 = vunpack.c.l.b16 %v1742
      %v1863 = vunpack.c.l.b16 %v1743
      %v1864 = vunpack.c.l.b16 %v1744
      %v1865 = vunpack.c.l.b16 %v1745
      %v1866 = vunpack.c.l.b16 %v1746
      %v1867 = vunpack.c.l.b16 %v1747
      %v1868 = vpack.c.b16 %v1861, %v1860
      %v1869 = vpack.c.b16 %v1863, %v1862
      %v1870 = vpack.c.b16 %v1865, %v1864
      %v1871 = vpack.c.b16 %v1867, %v1866
      %vm1876 = vcmask 523264
      %v1878 = vsel %vm1876, %v1760, 0
      %v1881 = vsel %vm1876, %v1768, 0
      %v1884 = vsel %vm1876, %v1776, 0
      %v1887 = vsel %vm1876, %v1784, 0
      %v1890 = vsel %vm1876, %v1792, 0
      %v1893 = vsel %vm1876, %v1800, 0
      %v1896 = vsel %vm1876, %v1808, 0
      %v1899 = vsel %vm1876, %v1816, 0
      %v1902 = vsel %vm1876, %v1824, 0
      %v1905 = vsel %vm1876, %v1832, 0
      %v1908 = vsel %vm1876, %v1840, 0
      %v1911 = vsel %vm1876, %v1848, 0
      %v1914 = vsel %vm1876, %v1851, 0
      %1916 = vmatpush.bf16.msra.mxu0 0
      %1917 = vmatpush.bf16.msra.mxu0 0
      %1918 = vmatpush.bf16.msra.mxu0 0
      %1919 = vmatpush.bf16.msra.mxu0 0
      %1920 = vmatpush.bf16.msra.mxu0 %v1871
      %1921 = vmatpush.bf16.msra.mxu0 %v1870
      %1922 = vmatpush.bf16.msra.mxu0 %v1869
      %1923 = vmatpush.bf16.msra.mxu0 %v1868
      %1924 = vmatmul.bf16.gmra.mxu0 %v1878
      %v1925 = vpop.f32.mrf.mxu0
      %v1926 = vadd.f32 0.0, %v1925
      %v1927 = vpop.f32.mrf.mxu0
      %v1928 = vadd.f32 0.0, %v1927
      %1929 = vmatmul.bf16.gmra.mxu0 %v1881
      %v1930 = vpop.f32.mrf.mxu0
      %v1931 = vadd.f32 0.0, %v1930
      %v1932 = vpop.f32.mrf.mxu0
      %v1933 = vadd.f32 0.0, %v1932
      %1934 = vmatmul.bf16.gmra.mxu0 %v1884
      %v1935 = vpop.f32.mrf.mxu0
      %v1936 = vadd.f32 0.0, %v1935
      %v1937 = vpop.f32.mrf.mxu0
      %v1938 = vadd.f32 0.0, %v1937
      %1939 = vmatmul.bf16.gmra.mxu0 %v1887
      %v1940 = vpop.f32.mrf.mxu0
      %v1941 = vadd.f32 0.0, %v1940
      %v1942 = vpop.f32.mrf.mxu0
      %v1943 = vadd.f32 0.0, %v1942
      %1944 = vmatmul.bf16.gmra.mxu0 %v1890
      %v1945 = vpop.f32.mrf.mxu0
      %v1946 = vadd.f32 0.0, %v1945
      %v1947 = vpop.f32.mrf.mxu0
      %v1948 = vadd.f32 0.0, %v1947
      %1949 = vmatmul.bf16.gmra.mxu0 %v1893
      %v1950 = vpop.f32.mrf.mxu0
      %v1951 = vadd.f32 0.0, %v1950
      %v1952 = vpop.f32.mrf.mxu0
      %v1953 = vadd.f32 0.0, %v1952
      %1954 = vmatmul.bf16.gmra.mxu0 %v1896
      %v1955 = vpop.f32.mrf.mxu0
      %v1956 = vadd.f32 0.0, %v1955
      %v1957 = vpop.f32.mrf.mxu0
      %v1958 = vadd.f32 0.0, %v1957
      %1959 = vmatmul.bf16.gmra.mxu0 %v1899
      %v1960 = vpop.f32.mrf.mxu0
      %v1961 = vadd.f32 0.0, %v1960
      %v1962 = vpop.f32.mrf.mxu0
      %v1963 = vadd.f32 0.0, %v1962
      %1964 = vmatmul.bf16.gmra.mxu0 %v1902
      %v1965 = vpop.f32.mrf.mxu0
      %v1966 = vadd.f32 0.0, %v1965
      %v1967 = vpop.f32.mrf.mxu0
      %v1968 = vadd.f32 0.0, %v1967
      %1969 = vmatmul.bf16.gmra.mxu0 %v1905
      %v1970 = vpop.f32.mrf.mxu0
      %v1971 = vadd.f32 0.0, %v1970
      %v1972 = vpop.f32.mrf.mxu0
      %v1973 = vadd.f32 0.0, %v1972
      %1974 = vmatmul.bf16.gmra.mxu0 %v1908
      %v1975 = vpop.f32.mrf.mxu0
      %v1976 = vadd.f32 0.0, %v1975
      %v1977 = vpop.f32.mrf.mxu0
      %v1978 = vadd.f32 0.0, %v1977
      %1979 = vmatmul.bf16.gmra.mxu0 %v1911
      %v1980 = vpop.f32.mrf.mxu0
      %v1981 = vadd.f32 0.0, %v1980
      %v1982 = vpop.f32.mrf.mxu0
      %v1983 = vadd.f32 0.0, %v1982
      %1984 = vmatmul.bf16.gmra.mxu0 %v1914
      %v1985 = vpop.f32.mrf.mxu0
      %v1986 = vadd.f32 0.0, %v1985
      %v1987 = vpop.f32.mrf.mxu0
      %1988 = vdwg.mxu0
      %v2014 = vunpack.c.l.b16 %v1392
      %v2015 = vunpack.c.l.b16 %v1393
      %v2016 = vunpack.c.l.b16 %v1394
      %v2017 = vunpack.c.l.b16 %v1395
      %v2018 = vunpack.c.l.b16 %v1396
      %v2019 = vunpack.c.l.b16 %v1397
      %v2020 = vunpack.c.l.b16 %v1398
      %v2021 = vunpack.c.l.b16 %v1399
      %v2022 = vunpack.c.l.b16 %v1400
      %v2023 = vunpack.c.l.b16 %v1401
      %v2024 = vunpack.c.l.b16 %v1402
      %v2025 = vunpack.c.l.b16 %v1403
      %v2026 = vunpack.c.l.b16 %v1404
      %v2027 = vunpack.c.l.b16 %v1405
      %v2028 = vunpack.c.l.b16 %v1406
      %v2029 = vunpack.c.l.b16 %v1407
      %v2030 = vunpack.c.l.b16 %v1408
      %v2031 = vunpack.c.l.b16 %v1409
      %v2032 = vunpack.c.l.b16 %v1410
      %v2033 = vunpack.c.l.b16 %v1411
      %v2034 = vunpack.c.l.b16 %v1412
      %v2035 = vunpack.c.l.b16 %v1413
      %v2036 = vunpack.c.l.b16 %v1414
      %v2037 = vunpack.c.l.b16 %v1415
      %v2038 = vunpack.c.l.b16 %v1416
      %v2039 = vpack.c.b16 %v2015, %v2014
      %v2040 = vpack.c.b16 %v2017, %v2016
      %v2041 = vpack.c.b16 %v2019, %v2018
      %v2042 = vpack.c.b16 %v2021, %v2020
      %v2043 = vpack.c.b16 %v2023, %v2022
      %v2044 = vpack.c.b16 %v2025, %v2024
      %v2045 = vpack.c.b16 %v2027, %v2026
      %v2046 = vpack.c.b16 %v2029, %v2028
      %v2047 = vpack.c.b16 %v2031, %v2030
      %v2048 = vpack.c.b16 %v2033, %v2032
      %v2049 = vpack.c.b16 %v2035, %v2034
      %v2050 = vpack.c.b16 %v2037, %v2036
      %v2051 = vpack.c.b16 %v2038, %v2038
      %v2060 = vunpack.c.l.b16 %v1731
      %v2061 = vunpack.c.l.b16 %v1732
      %v2062 = vunpack.c.l.b16 %v1733
      %v2063 = vunpack.c.l.b16 %v1734
      %v2064 = vunpack.c.l.b16 %v1735
      %v2065 = vunpack.c.l.b16 %v1736
      %v2066 = vunpack.c.l.b16 %v1737
      %v2067 = vunpack.c.l.b16 %v1738
      %v2068 = vpack.c.b16 %v2061, %v2060
      %v2069 = vpack.c.b16 %v2063, %v2062
      %v2070 = vpack.c.b16 %v2065, %v2064
      %v2071 = vpack.c.b16 %v2067, %v2066
      %v2077 = vsel %vm1876, %v2039, 0
      %v2080 = vsel %vm1876, %v2040, 0
      %v2083 = vsel %vm1876, %v2041, 0
      %v2086 = vsel %vm1876, %v2042, 0
      %v2089 = vsel %vm1876, %v2043, 0
      %v2092 = vsel %vm1876, %v2044, 0
      %v2095 = vsel %vm1876, %v2045, 0
      %v2098 = vsel %vm1876, %v2046, 0
      %v2101 = vsel %vm1876, %v2047, 0
      %v2104 = vsel %vm1876, %v2048, 0
      %v2107 = vsel %vm1876, %v2049, 0
      %v2110 = vsel %vm1876, %v2050, 0
      %v2113 = vsel %vm1876, %v2051, 0
      %2115 = vmatpush.bf16.msra.mxu0 0
      %2116 = vmatpush.bf16.msra.mxu0 0
      %2117 = vmatpush.bf16.msra.mxu0 0
      %2118 = vmatpush.bf16.msra.mxu0 0
      %2119 = vmatpush.bf16.msra.mxu0 %v2071
      %2120 = vmatpush.bf16.msra.mxu0 %v2070
      %2121 = vmatpush.bf16.msra.mxu0 %v2069
      %2122 = vmatpush.bf16.msra.mxu0 %v2068
      %2123 = vmatmul.bf16.gmra.mxu0 %v2077
      %v2124 = vpop.f32.mrf.mxu0
      %v2125 = vadd.f32 %v1926, %v2124
      %v2126 = vpop.f32.mrf.mxu0
      %v2127 = vadd.f32 %v1928, %v2126
      %2128 = vmatmul.bf16.gmra.mxu0 %v2080
      %v2129 = vpop.f32.mrf.mxu0
      %v2130 = vadd.f32 %v1931, %v2129
      %v2131 = vpop.f32.mrf.mxu0
      %v2132 = vadd.f32 %v1933, %v2131
      %2133 = vmatmul.bf16.gmra.mxu0 %v2083
      %v2134 = vpop.f32.mrf.mxu0
      %v2135 = vadd.f32 %v1936, %v2134
      %v2136 = vpop.f32.mrf.mxu0
      %v2137 = vadd.f32 %v1938, %v2136
      %2138 = vmatmul.bf16.gmra.mxu0 %v2086
      %v2139 = vpop.f32.mrf.mxu0
      %v2140 = vadd.f32 %v1941, %v2139
      %v2141 = vpop.f32.mrf.mxu0
      %v2142 = vadd.f32 %v1943, %v2141
      %2143 = vmatmul.bf16.gmra.mxu0 %v2089
      %v2144 = vpop.f32.mrf.mxu0
      %v2145 = vadd.f32 %v1946, %v2144
      %v2146 = vpop.f32.mrf.mxu0
      %v2147 = vadd.f32 %v1948, %v2146
      %2148 = vmatmul.bf16.gmra.mxu0 %v2092
      %v2149 = vpop.f32.mrf.mxu0
      %v2150 = vadd.f32 %v1951, %v2149
      %v2151 = vpop.f32.mrf.mxu0
      %v2152 = vadd.f32 %v1953, %v2151
      %2153 = vmatmul.bf16.gmra.mxu0 %v2095
      %v2154 = vpop.f32.mrf.mxu0
      %v2155 = vadd.f32 %v1956, %v2154
      %v2156 = vpop.f32.mrf.mxu0
      %v2157 = vadd.f32 %v1958, %v2156
      %2158 = vmatmul.bf16.gmra.mxu0 %v2098
      %v2159 = vpop.f32.mrf.mxu0
      %v2160 = vadd.f32 %v1961, %v2159
      %v2161 = vpop.f32.mrf.mxu0
      %v2162 = vadd.f32 %v1963, %v2161
      %2163 = vmatmul.bf16.gmra.mxu0 %v2101
      %v2164 = vpop.f32.mrf.mxu0
      %v2165 = vadd.f32 %v1966, %v2164
      %v2166 = vpop.f32.mrf.mxu0
      %v2167 = vadd.f32 %v1968, %v2166
      %2168 = vmatmul.bf16.gmra.mxu0 %v2104
      %v2169 = vpop.f32.mrf.mxu0
      %v2170 = vadd.f32 %v1971, %v2169
      %v2171 = vpop.f32.mrf.mxu0
      %v2172 = vadd.f32 %v1973, %v2171
      %2173 = vmatmul.bf16.gmra.mxu0 %v2107
      %v2174 = vpop.f32.mrf.mxu0
      %v2175 = vadd.f32 %v1976, %v2174
      %v2176 = vpop.f32.mrf.mxu0
      %v2177 = vadd.f32 %v1978, %v2176
      %2178 = vmatmul.bf16.gmra.mxu0 %v2110
      %v2179 = vpop.f32.mrf.mxu0
      %v2180 = vadd.f32 %v1981, %v2179
      %v2181 = vpop.f32.mrf.mxu0
      %v2182 = vadd.f32 %v1983, %v2181
      %2183 = vmatmul.bf16.gmra.mxu0 %v2113
      %v2184 = vpop.f32.mrf.mxu0
      %v2185 = vadd.f32 %v1986, %v2184
      %v2186 = vpop.f32.mrf.mxu0
      %2187 = vdwg.mxu0
      %v2189 = vperm.slane %v1730, 0
      %v2191 = vadd.f32 %v2125, %v2189
      %v2192 = vadd.f32 %v2127, %v2189
      %v2193 = vadd.f32 %v2130, %v2189
      %v2194 = vadd.f32 %v2132, %v2189
      %v2195 = vadd.f32 %v2135, %v2189
      %v2196 = vadd.f32 %v2137, %v2189
      %v2197 = vadd.f32 %v2140, %v2189
      %v2198 = vadd.f32 %v2142, %v2189
      %v2199 = vadd.f32 %v2145, %v2189
      %v2200 = vadd.f32 %v2147, %v2189
      %v2201 = vadd.f32 %v2150, %v2189
      %v2202 = vadd.f32 %v2152, %v2189
      %v2203 = vadd.f32 %v2155, %v2189
      %v2204 = vadd.f32 %v2157, %v2189
      %v2205 = vadd.f32 %v2160, %v2189
      %v2206 = vadd.f32 %v2162, %v2189
      %v2207 = vadd.f32 %v2165, %v2189
      %v2208 = vadd.f32 %v2167, %v2189
      %v2209 = vadd.f32 %v2170, %v2189
      %v2210 = vadd.f32 %v2172, %v2189
      %v2211 = vadd.f32 %v2175, %v2189
      %v2212 = vadd.f32 %v2177, %v2189
      %v2213 = vadd.f32 %v2180, %v2189
      %v2214 = vadd.f32 %v2182, %v2189
      %v2215 = vadd.f32 %v2185, %v2189
      %v2216 = vmax.f32 %v2191, 0.0
      %v2217 = vmax.f32 %v2192, 0.0
      %v2218 = vmax.f32 %v2193, 0.0
      %v2219 = vmax.f32 %v2194, 0.0
      %v2220 = vmax.f32 %v2195, 0.0
      %v2221 = vmax.f32 %v2196, 0.0
      %v2222 = vmax.f32 %v2197, 0.0
      %v2223 = vmax.f32 %v2198, 0.0
      %v2224 = vmax.f32 %v2199, 0.0
      %v2225 = vmax.f32 %v2200, 0.0
      %v2226 = vmax.f32 %v2201, 0.0
      %v2227 = vmax.f32 %v2202, 0.0
      %v2228 = vmax.f32 %v2203, 0.0
      %v2229 = vmax.f32 %v2204, 0.0
      %v2230 = vmax.f32 %v2205, 0.0
      %v2231 = vmax.f32 %v2206, 0.0
      %v2232 = vmax.f32 %v2207, 0.0
      %v2233 = vmax.f32 %v2208, 0.0
      %v2234 = vmax.f32 %v2209, 0.0
      %v2235 = vmax.f32 %v2210, 0.0
      %v2236 = vmax.f32 %v2211, 0.0
      %v2237 = vmax.f32 %v2212, 0.0
      %v2238 = vmax.f32 %v2213, 0.0
      %v2239 = vmax.f32 %v2214, 0.0
      %v2240 = vmax.f32 %v2215, 0.0
      %v2241 = vpack.c.bf16 %v2216, %v2216
      %v2242 = vpack.c.bf16 %v2217, %v2217
      %v2243 = vpack.c.bf16 %v2218, %v2218
      %v2244 = vpack.c.bf16 %v2219, %v2219
      %v2245 = vpack.c.bf16 %v2220, %v2220
      %v2246 = vpack.c.bf16 %v2221, %v2221
      %v2247 = vpack.c.bf16 %v2222, %v2222
      %v2248 = vpack.c.bf16 %v2223, %v2223
      %v2249 = vpack.c.bf16 %v2224, %v2224
      %v2250 = vpack.c.bf16 %v2225, %v2225
      %v2251 = vpack.c.bf16 %v2226, %v2226
      %v2252 = vpack.c.bf16 %v2227, %v2227
      %v2253 = vpack.c.bf16 %v2228, %v2228
      %v2254 = vpack.c.bf16 %v2229, %v2229
      %v2255 = vpack.c.bf16 %v2230, %v2230
      %v2256 = vpack.c.bf16 %v2231, %v2231
      %v2257 = vpack.c.bf16 %v2232, %v2232
      %v2258 = vpack.c.bf16 %v2233, %v2233
      %v2259 = vpack.c.bf16 %v2234, %v2234
      %v2260 = vpack.c.bf16 %v2235, %v2235
      %v2261 = vpack.c.bf16 %v2236, %v2236
      %v2262 = vpack.c.bf16 %v2237, %v2237
      %v2263 = vpack.c.bf16 %v2238, %v2238
      %v2264 = vpack.c.bf16 %v2239, %v2239
      %v2265 = vpack.c.bf16 %v2240, %v2240
      %2266 = vst.msk [vmem:[#allocation3 + $0x8] sm:$0xf] %vm226, %v2241
      %2267 = vst.msk [vmem:[#allocation3 + $0xc] sm:$0xf] %vm226, %v2242
      %2268 = vst.msk [vmem:[#allocation3 + $0x10] sm:$0xf] %vm226, %v2243
      %2269 = vst.msk [vmem:[#allocation3 + $0x14] sm:$0xf] %vm226, %v2244
      %2270 = vst.msk [vmem:[#allocation3 + $0x18] sm:$0xf] %vm226, %v2245
      %2271 = vst.msk [vmem:[#allocation3 + $0x1c] sm:$0xf] %vm226, %v2246
      %2272 = vst.msk [vmem:[#allocation3 + $0x20] sm:$0xf] %vm226, %v2247
      %2273 = vst.msk [vmem:[#allocation3 + $0x24] sm:$0xf] %vm226, %v2248
      %2274 = vst.msk [vmem:[#allocation3 + $0x28] sm:$0xf] %vm226, %v2249
      %2275 = vst.msk [vmem:[#allocation3 + $0x2c] sm:$0xf] %vm226, %v2250
      %2276 = vst.msk [vmem:[#allocation3 + $0x30] sm:$0xf] %vm226, %v2251
      %2277 = vst.msk [vmem:[#allocation3 + $0x34] sm:$0xf] %vm226, %v2252
      %2278 = vst.msk [vmem:[#allocation3 + $0x38] sm:$0xf] %vm226, %v2253
      %2279 = vst.msk [vmem:[#allocation3 + $0x3c] sm:$0xf] %vm226, %v2254
      %2280 = vst.msk [vmem:[#allocation3 + $0x40] sm:$0xf] %vm226, %v2255
      %2281 = vst.msk [vmem:[#allocation3 + $0x44] sm:$0xf] %vm226, %v2256
      %2282 = vst.msk [vmem:[#allocation3 + $0x48] sm:$0xf] %vm226, %v2257
      %2283 = vst.msk [vmem:[#allocation3 + $0x4c] sm:$0xf] %vm226, %v2258
      %2284 = vst.msk [vmem:[#allocation3 + $0x50] sm:$0xf] %vm226, %v2259
      %2285 = vst.msk [vmem:[#allocation3 + $0x54] sm:$0xf] %vm226, %v2260
      %2286 = vst.msk [vmem:[#allocation3 + $0x58] sm:$0xf] %vm226, %v2261
      %2287 = vst.msk [vmem:[#allocation3 + $0x5c] sm:$0xf] %vm226, %v2262
      %2288 = vst.msk [vmem:[#allocation3 + $0x60] sm:$0xf] %vm226, %v2263
      %2289 = vst.msk [vmem:[#allocation3 + $0x64] sm:$0xf] %vm226, %v2264
      %2290 = vst.msk [vmem:[#allocation3 + $0x68] sm:$0x3] %vm289, %v2265
      %s2291 = scalar_lea.vmem %s1, 64
      %v2292 = vld [vmem:[%s2291] sm:$0xf]
      %v2293 = vld [vmem:[%s2291 + $0x4] sm:$0xf]
      %v2294 = vld [vmem:[%s2291 + $0x8] sm:$0xf]
      %v2295 = vld [vmem:[%s2291 + $0xc] sm:$0xf]
      %v2296 = vld [vmem:[%s2291 + $0x10] sm:$0xf]
      %v2297 = vld [vmem:[%s2291 + $0x14] sm:$0xf]
      %v2298 = vld [vmem:[%s2291 + $0x18] sm:$0xf]
      %v2299 = vld [vmem:[%s2291 + $0x1c] sm:$0xf]
      %s2300 = scalar_lea.vmem %s1, 96
      %v2301 = vld [vmem:[%s2300] sm:$0xf]
      %v2302 = vld [vmem:[%s2300 + $0x4] sm:$0xf]
      %v2303 = vld [vmem:[%s2300 + $0x8] sm:$0xf]
      %v2304 = vld [vmem:[%s2300 + $0xc] sm:$0xf]
      %v2305 = vld [vmem:[%s2300 + $0x10] sm:$0xf]
      %v2306 = vld [vmem:[%s2300 + $0x14] sm:$0xf]
      %v2307 = vld [vmem:[%s2300 + $0x18] sm:$0xf]
      %v2308 = vld [vmem:[%s2300 + $0x1c] sm:$0xf]
      %v2317 = vunpack.c.l.b16 %v2301
      %v2318 = vunpack.c.l.b16 %v2302
      %v2319 = vunpack.c.l.b16 %v2303
      %v2320 = vunpack.c.l.b16 %v2304
      %v2321 = vunpack.c.l.b16 %v2305
      %v2322 = vunpack.c.l.b16 %v2306
      %v2323 = vunpack.c.l.b16 %v2307
      %v2324 = vunpack.c.l.b16 %v2308
      %v2325 = vpack.c.b16 %v2318, %v2317
      %v2326 = vpack.c.b16 %v2320, %v2319
      %v2327 = vpack.c.b16 %v2322, %v2321
      %v2328 = vpack.c.b16 %v2324, %v2323
      %2333 = vmatpush.bf16.msra.mxu0 0
      %2334 = vmatpush.bf16.msra.mxu0 0
      %2335 = vmatpush.bf16.msra.mxu0 0
      %2336 = vmatpush.bf16.msra.mxu0 0
      %2337 = vmatpush.bf16.msra.mxu0 %v2328
      %2338 = vmatpush.bf16.msra.mxu0 %v2327
      %2339 = vmatpush.bf16.msra.mxu0 %v2326
      %2340 = vmatpush.bf16.msra.mxu0 %v2325
      %2341 = vmatmul.bf16.gmra.mxu0 %v1878
      %v2342 = vpop.f32.mrf.mxu0
      %v2343 = vadd.f32 0.0, %v2342
      %v2344 = vpop.f32.mrf.mxu0
      %v2345 = vadd.f32 0.0, %v2344
      %2346 = vmatmul.bf16.gmra.mxu0 %v1881
      %v2347 = vpop.f32.mrf.mxu0
      %v2348 = vadd.f32 0.0, %v2347
      %v2349 = vpop.f32.mrf.mxu0
      %v2350 = vadd.f32 0.0, %v2349
      %2351 = vmatmul.bf16.gmra.mxu0 %v1884
      %v2352 = vpop.f32.mrf.mxu0
      %v2353 = vadd.f32 0.0, %v2352
      %v2354 = vpop.f32.mrf.mxu0
      %v2355 = vadd.f32 0.0, %v2354
      %2356 = vmatmul.bf16.gmra.mxu0 %v1887
      %v2357 = vpop.f32.mrf.mxu0
      %v2358 = vadd.f32 0.0, %v2357
      %v2359 = vpop.f32.mrf.mxu0
      %v2360 = vadd.f32 0.0, %v2359
      %2361 = vmatmul.bf16.gmra.mxu0 %v1890
      %v2362 = vpop.f32.mrf.mxu0
      %v2363 = vadd.f32 0.0, %v2362
      %v2364 = vpop.f32.mrf.mxu0
      %v2365 = vadd.f32 0.0, %v2364
      %2366 = vmatmul.bf16.gmra.mxu0 %v1893
      %v2367 = vpop.f32.mrf.mxu0
      %v2368 = vadd.f32 0.0, %v2367
      %v2369 = vpop.f32.mrf.mxu0
      %v2370 = vadd.f32 0.0, %v2369
      %2371 = vmatmul.bf16.gmra.mxu0 %v1896
      %v2372 = vpop.f32.mrf.mxu0
      %v2373 = vadd.f32 0.0, %v2372
      %v2374 = vpop.f32.mrf.mxu0
      %v2375 = vadd.f32 0.0, %v2374
      %2376 = vmatmul.bf16.gmra.mxu0 %v1899
      %v2377 = vpop.f32.mrf.mxu0
      %v2378 = vadd.f32 0.0, %v2377
      %v2379 = vpop.f32.mrf.mxu0
      %v2380 = vadd.f32 0.0, %v2379
      %2381 = vmatmul.bf16.gmra.mxu0 %v1902
      %v2382 = vpop.f32.mrf.mxu0
      %v2383 = vadd.f32 0.0, %v2382
      %v2384 = vpop.f32.mrf.mxu0
      %v2385 = vadd.f32 0.0, %v2384
      %2386 = vmatmul.bf16.gmra.mxu0 %v1905
      %v2387 = vpop.f32.mrf.mxu0
      %v2388 = vadd.f32 0.0, %v2387
      %v2389 = vpop.f32.mrf.mxu0
      %v2390 = vadd.f32 0.0, %v2389
      %2391 = vmatmul.bf16.gmra.mxu0 %v1908
      %v2392 = vpop.f32.mrf.mxu0
      %v2393 = vadd.f32 0.0, %v2392
      %v2394 = vpop.f32.mrf.mxu0
      %v2395 = vadd.f32 0.0, %v2394
      %2396 = vmatmul.bf16.gmra.mxu0 %v1911
      %v2397 = vpop.f32.mrf.mxu0
      %v2398 = vadd.f32 0.0, %v2397
      %v2399 = vpop.f32.mrf.mxu0
      %v2400 = vadd.f32 0.0, %v2399
      %2401 = vmatmul.bf16.gmra.mxu0 %v1914
      %v2402 = vpop.f32.mrf.mxu0
      %v2403 = vadd.f32 0.0, %v2402
      %v2404 = vpop.f32.mrf.mxu0
      %2405 = vdwg.mxu0
      %v2414 = vunpack.c.l.b16 %v2292
      %v2415 = vunpack.c.l.b16 %v2293
      %v2416 = vunpack.c.l.b16 %v2294
      %v2417 = vunpack.c.l.b16 %v2295
      %v2418 = vunpack.c.l.b16 %v2296
      %v2419 = vunpack.c.l.b16 %v2297
      %v2420 = vunpack.c.l.b16 %v2298
      %v2421 = vunpack.c.l.b16 %v2299
      %v2422 = vpack.c.b16 %v2415, %v2414
      %v2423 = vpack.c.b16 %v2417, %v2416
      %v2424 = vpack.c.b16 %v2419, %v2418
      %v2425 = vpack.c.b16 %v2421, %v2420
      %2430 = vmatpush.bf16.msra.mxu0 0
      %2431 = vmatpush.bf16.msra.mxu0 0
      %2432 = vmatpush.bf16.msra.mxu0 0
      %2433 = vmatpush.bf16.msra.mxu0 0
      %2434 = vmatpush.bf16.msra.mxu0 %v2425
      %2435 = vmatpush.bf16.msra.mxu0 %v2424
      %2436 = vmatpush.bf16.msra.mxu0 %v2423
      %2437 = vmatpush.bf16.msra.mxu0 %v2422
      %2438 = vmatmul.bf16.gmra.mxu0 %v2077
      %v2439 = vpop.f32.mrf.mxu0
      %v2440 = vadd.f32 %v2343, %v2439
      %v2441 = vpop.f32.mrf.mxu0
      %v2442 = vadd.f32 %v2345, %v2441
      %2443 = vmatmul.bf16.gmra.mxu0 %v2080
      %v2444 = vpop.f32.mrf.mxu0
      %v2445 = vadd.f32 %v2348, %v2444
      %v2446 = vpop.f32.mrf.mxu0
      %v2447 = vadd.f32 %v2350, %v2446
      %2448 = vmatmul.bf16.gmra.mxu0 %v2083
      %v2449 = vpop.f32.mrf.mxu0
      %v2450 = vadd.f32 %v2353, %v2449
      %v2451 = vpop.f32.mrf.mxu0
      %v2452 = vadd.f32 %v2355, %v2451
      %2453 = vmatmul.bf16.gmra.mxu0 %v2086
      %v2454 = vpop.f32.mrf.mxu0
      %v2455 = vadd.f32 %v2358, %v2454
      %v2456 = vpop.f32.mrf.mxu0
      %v2457 = vadd.f32 %v2360, %v2456
      %2458 = vmatmul.bf16.gmra.mxu0 %v2089
      %v2459 = vpop.f32.mrf.mxu0
      %v2460 = vadd.f32 %v2363, %v2459
      %v2461 = vpop.f32.mrf.mxu0
      %v2462 = vadd.f32 %v2365, %v2461
      %2463 = vmatmul.bf16.gmra.mxu0 %v2092
      %v2464 = vpop.f32.mrf.mxu0
      %v2465 = vadd.f32 %v2368, %v2464
      %v2466 = vpop.f32.mrf.mxu0
      %v2467 = vadd.f32 %v2370, %v2466
      %2468 = vmatmul.bf16.gmra.mxu0 %v2095
      %v2469 = vpop.f32.mrf.mxu0
      %v2470 = vadd.f32 %v2373, %v2469
      %v2471 = vpop.f32.mrf.mxu0
      %v2472 = vadd.f32 %v2375, %v2471
      %2473 = vmatmul.bf16.gmra.mxu0 %v2098
      %v2474 = vpop.f32.mrf.mxu0
      %v2475 = vadd.f32 %v2378, %v2474
      %v2476 = vpop.f32.mrf.mxu0
      %v2477 = vadd.f32 %v2380, %v2476
      %2478 = vmatmul.bf16.gmra.mxu0 %v2101
      %v2479 = vpop.f32.mrf.mxu0
      %v2480 = vadd.f32 %v2383, %v2479
      %v2481 = vpop.f32.mrf.mxu0
      %v2482 = vadd.f32 %v2385, %v2481
      %2483 = vmatmul.bf16.gmra.mxu0 %v2104
      %v2484 = vpop.f32.mrf.mxu0
      %v2485 = vadd.f32 %v2388, %v2484
      %v2486 = vpop.f32.mrf.mxu0
      %v2487 = vadd.f32 %v2390, %v2486
      %2488 = vmatmul.bf16.gmra.mxu0 %v2107
      %v2489 = vpop.f32.mrf.mxu0
      %v2490 = vadd.f32 %v2393, %v2489
      %v2491 = vpop.f32.mrf.mxu0
      %v2492 = vadd.f32 %v2395, %v2491
      %2493 = vmatmul.bf16.gmra.mxu0 %v2110
      %v2494 = vpop.f32.mrf.mxu0
      %v2495 = vadd.f32 %v2398, %v2494
      %v2496 = vpop.f32.mrf.mxu0
      %v2497 = vadd.f32 %v2400, %v2496
      %2498 = vmatmul.bf16.gmra.mxu0 %v2113
      %v2499 = vpop.f32.mrf.mxu0
      %v2500 = vadd.f32 %v2403, %v2499
      %v2501 = vpop.f32.mrf.mxu0
      %2502 = vdwg.mxu0
      %s2503 = scalar_lea.vmem %s1, 128
      %v2504 = vld [vmem:[%s2503] sm:$0xf]
      %v2505 = vld [vmem:[%s2503 + $0x4] sm:$0xf]
      %v2506 = vld [vmem:[%s2503 + $0x8] sm:$0xf]
      %v2507 = vld [vmem:[%s2503 + $0xc] sm:$0xf]
      %v2508 = vld [vmem:[%s2503 + $0x10] sm:$0xf]
      %v2509 = vld [vmem:[%s2503 + $0x14] sm:$0xf]
      %v2510 = vld [vmem:[%s2503 + $0x18] sm:$0xf]
      %v2511 = vld [vmem:[%s2503 + $0x1c] sm:$0xf]
      %v2516 = vunpack.c.l.b16 %v1606
      %v2517 = vunpack.c.l.b16 %v1607
      %v2518 = vunpack.c.l.b16 %v1608
      %v2519 = vunpack.c.l.b16 %v1609
      %v2520 = vpack.c.b16 %v2016, %v2516
      %v2521 = vpack.c.b16 %v2018, %v2017
      %v2522 = vpack.c.b16 %v2020, %v2019
      %v2523 = vpack.c.b16 %v2022, %v2021
      %v2524 = vpack.c.b16 %v2024, %v2023
      %v2525 = vpack.c.b16 %v2026, %v2025
      %v2526 = vpack.c.b16 %v2028, %v2027
      %v2527 = vpack.c.b16 %v2030, %v2029
      %v2528 = vpack.c.b16 %v2032, %v2031
      %v2529 = vpack.c.b16 %v2034, %v2033
      %v2530 = vpack.c.b16 %v2036, %v2035
      %v2531 = vpack.c.b16 %v2517, %v2037
      %v2532 = vpack.c.b16 %v2519, %v2518
      %vm2533 = vcmask 1044480
      %v2534 = vrot.slane %v2520, 3
      %v2535 = vrot.slane %v2521, 3
      %v2536 = vsel %vm2533, %v2534, %v2535
      %v2537 = vrot.slane %v2522, 3
      %v2538 = vsel %vm2533, %v2535, %v2537
      %v2539 = vrot.slane %v2523, 3
      %v2540 = vsel %vm2533, %v2537, %v2539
      %v2541 = vrot.slane %v2524, 3
      %v2542 = vsel %vm2533, %v2539, %v2541
      %v2543 = vrot.slane %v2525, 3
      %v2544 = vsel %vm2533, %v2541, %v2543
      %v2545 = vrot.slane %v2526, 3
      %v2546 = vsel %vm2533, %v2543, %v2545
      %v2547 = vrot.slane %v2527, 3
      %v2548 = vsel %vm2533, %v2545, %v2547
      %v2549 = vrot.slane %v2528, 3
      %v2550 = vsel %vm2533, %v2547, %v2549
      %v2551 = vrot.slane %v2529, 3
      %v2552 = vsel %vm2533, %v2549, %v2551
      %v2553 = vrot.slane %v2530, 3
      %v2554 = vsel %vm2533, %v2551, %v2553
      %v2555 = vrot.slane %v2531, 3
      %v2556 = vsel %vm2533, %v2553, %v2555
      %v2557 = vrot.slane %v2532, 3
      %v2558 = vsel %vm2533, %v2555, %v2557
      %v2567 = vunpack.c.l.b16 %v2504
      %v2568 = vunpack.c.l.b16 %v2505
      %v2569 = vunpack.c.l.b16 %v2506
      %v2570 = vunpack.c.l.b16 %v2507
      %v2571 = vunpack.c.l.b16 %v2508
      %v2572 = vunpack.c.l.b16 %v2509
      %v2573 = vunpack.c.l.b16 %v2510
      %v2574 = vunpack.c.l.b16 %v2511
      %v2575 = vpack.c.b16 %v2568, %v2567
      %v2576 = vpack.c.b16 %v2570, %v2569
      %v2577 = vpack.c.b16 %v2572, %v2571
      %v2578 = vpack.c.b16 %v2574, %v2573
      %v2584 = vsel %vm1876, %v2536, 0
      %v2587 = vsel %vm1876, %v2538, 0
      %v2590 = vsel %vm1876, %v2540, 0
      %v2593 = vsel %vm1876, %v2542, 0
      %v2596 = vsel %vm1876, %v2544, 0
      %v2599 = vsel %vm1876, %v2546, 0
      %v2602 = vsel %vm1876, %v2548, 0
      %v2605 = vsel %vm1876, %v2550, 0
      %v2608 = vsel %vm1876, %v2552, 0
      %v2611 = vsel %vm1876, %v2554, 0
      %v2614 = vsel %vm1876, %v2556, 0
      %v2617 = vsel %vm1876, %v2558, 0
      %v2620 = vsel %vm1876, %v2557, 0
      %2622 = vmatpush.bf16.msra.mxu0 0
      %2623 = vmatpush.bf16.msra.mxu0 0
      %2624 = vmatpush.bf16.msra.mxu0 0
      %2625 = vmatpush.bf16.msra.mxu0 0
      %2626 = vmatpush.bf16.msra.mxu0 %v2578
      %2627 = vmatpush.bf16.msra.mxu0 %v2577
      %2628 = vmatpush.bf16.msra.mxu0 %v2576
      %2629 = vmatpush.bf16.msra.mxu0 %v2575
      %2630 = vmatmul.bf16.gmra.mxu0 %v2584
      %v2631 = vpop.f32.mrf.mxu0
      %v2632 = vadd.f32 0.0, %v2631
      %v2633 = vpop.f32.mrf.mxu0
      %v2634 = vadd.f32 0.0, %v2633
      %2635 = vmatmul.bf16.gmra.mxu0 %v2587
      %v2636 = vpop.f32.mrf.mxu0
      %v2637 = vadd.f32 0.0, %v2636
      %v2638 = vpop.f32.mrf.mxu0
      %v2639 = vadd.f32 0.0, %v2638
      %2640 = vmatmul.bf16.gmra.mxu0 %v2590
      %v2641 = vpop.f32.mrf.mxu0
      %v2642 = vadd.f32 0.0, %v2641
      %v2643 = vpop.f32.mrf.mxu0
      %v2644 = vadd.f32 0.0, %v2643
      %2645 = vmatmul.bf16.gmra.mxu0 %v2593
      %v2646 = vpop.f32.mrf.mxu0
      %v2647 = vadd.f32 0.0, %v2646
      %v2648 = vpop.f32.mrf.mxu0
      %v2649 = vadd.f32 0.0, %v2648
      %2650 = vmatmul.bf16.gmra.mxu0 %v2596
      %v2651 = vpop.f32.mrf.mxu0
      %v2652 = vadd.f32 0.0, %v2651
      %v2653 = vpop.f32.mrf.mxu0
      %v2654 = vadd.f32 0.0, %v2653
      %2655 = vmatmul.bf16.gmra.mxu0 %v2599
      %v2656 = vpop.f32.mrf.mxu0
      %v2657 = vadd.f32 0.0, %v2656
      %v2658 = vpop.f32.mrf.mxu0
      %v2659 = vadd.f32 0.0, %v2658
      %2660 = vmatmul.bf16.gmra.mxu0 %v2602
      %v2661 = vpop.f32.mrf.mxu0
      %v2662 = vadd.f32 0.0, %v2661
      %v2663 = vpop.f32.mrf.mxu0
      %v2664 = vadd.f32 0.0, %v2663
      %2665 = vmatmul.bf16.gmra.mxu0 %v2605
      %v2666 = vpop.f32.mrf.mxu0
      %v2667 = vadd.f32 0.0, %v2666
      %v2668 = vpop.f32.mrf.mxu0
      %v2669 = vadd.f32 0.0, %v2668
      %2670 = vmatmul.bf16.gmra.mxu0 %v2608
      %v2671 = vpop.f32.mrf.mxu0
      %v2672 = vadd.f32 0.0, %v2671
      %v2673 = vpop.f32.mrf.mxu0
      %v2674 = vadd.f32 0.0, %v2673
      %2675 = vmatmul.bf16.gmra.mxu0 %v2611
      %v2676 = vpop.f32.mrf.mxu0
      %v2677 = vadd.f32 0.0, %v2676
      %v2678 = vpop.f32.mrf.mxu0
      %v2679 = vadd.f32 0.0, %v2678
      %2680 = vmatmul.bf16.gmra.mxu0 %v2614
      %v2681 = vpop.f32.mrf.mxu0
      %v2682 = vadd.f32 0.0, %v2681
      %v2683 = vpop.f32.mrf.mxu0
      %v2684 = vadd.f32 0.0, %v2683
      %2685 = vmatmul.bf16.gmra.mxu0 %v2617
      %v2686 = vpop.f32.mrf.mxu0
      %v2687 = vadd.f32 0.0, %v2686
      %v2688 = vpop.f32.mrf.mxu0
      %v2689 = vadd.f32 0.0, %v2688
      %2690 = vmatmul.bf16.gmra.mxu0 %v2620
      %v2691 = vpop.f32.mrf.mxu0
      %v2692 = vadd.f32 0.0, %v2691
      %v2693 = vpop.f32.mrf.mxu0
      %2694 = vdwg.mxu0
      %v2695 = vadd.f32 %v2440, %v2632
      %v2696 = vadd.f32 %v2442, %v2634
      %v2697 = vadd.f32 %v2445, %v2637
      %v2698 = vadd.f32 %v2447, %v2639
      %v2699 = vadd.f32 %v2450, %v2642
      %v2700 = vadd.f32 %v2452, %v2644
      %v2701 = vadd.f32 %v2455, %v2647
      %v2702 = vadd.f32 %v2457, %v2649
      %v2703 = vadd.f32 %v2460, %v2652
      %v2704 = vadd.f32 %v2462, %v2654
      %v2705 = vadd.f32 %v2465, %v2657
      %v2706 = vadd.f32 %v2467, %v2659
      %v2707 = vadd.f32 %v2470, %v2662
      %v2708 = vadd.f32 %v2472, %v2664
      %v2709 = vadd.f32 %v2475, %v2667
      %v2710 = vadd.f32 %v2477, %v2669
      %v2711 = vadd.f32 %v2480, %v2672
      %v2712 = vadd.f32 %v2482, %v2674
      %v2713 = vadd.f32 %v2485, %v2677
      %v2714 = vadd.f32 %v2487, %v2679
      %v2715 = vadd.f32 %v2490, %v2682
      %v2716 = vadd.f32 %v2492, %v2684
      %v2717 = vadd.f32 %v2495, %v2687
      %v2718 = vadd.f32 %v2497, %v2689
      %v2719 = vadd.f32 %v2500, %v2692
      %s2720 = scalar_lea.vmem %s1, 160
      %v2721 = vld [vmem:[%s2720] sm:$0xf]
      %v2722 = vld [vmem:[%s2720 + $0x4] sm:$0xf]
      %v2723 = vld [vmem:[%s2720 + $0x8] sm:$0xf]
      %v2724 = vld [vmem:[%s2720 + $0xc] sm:$0xf]
      %v2725 = vld [vmem:[%s2720 + $0x10] sm:$0xf]
      %v2726 = vld [vmem:[%s2720 + $0x14] sm:$0xf]
      %v2727 = vld [vmem:[%s2720 + $0x18] sm:$0xf]
      %v2728 = vld [vmem:[%s2720 + $0x1c] sm:$0xf]
      %vm2729 = vsmask.f32 4352
      %v2731 = vshrl.u32 %v1717, 16
      %v2733 = vrot.slane %v2731, 3
      %v2734 = vshll.u32 %v1717, 16
      %v2736 = vrot.slane %v2734, 4
      %v2737 = vor.u32 %v2733, %v2736
      %v2739 = vshrl.u32 %v1718, 16
      %v2741 = vrot.slane %v2739, 3
      %v2742 = vshll.u32 %v1718, 16
      %v2744 = vrot.slane %v2742, 4
      %v2745 = vor.u32 %v2741, %v2744
      %v2746 = vsel %vm2729, %v2737, %v2745
      %v2748 = vshrl.u32 %v1719, 16
      %v2750 = vrot.slane %v2748, 3
      %v2751 = vshll.u32 %v1719, 16
      %v2753 = vrot.slane %v2751, 4
      %v2754 = vor.u32 %v2750, %v2753
      %v2755 = vsel %vm2729, %v2745, %v2754
      %v2757 = vshrl.u32 %v1720, 16
      %v2759 = vrot.slane %v2757, 3
      %v2760 = vshll.u32 %v1720, 16
      %v2762 = vrot.slane %v2760, 4
      %v2763 = vor.u32 %v2759, %v2762
      %v2764 = vsel %vm2729, %v2754, %v2763
      %v2766 = vshrl.u32 %v1721, 16
      %v2768 = vrot.slane %v2766, 3
      %v2769 = vshll.u32 %v1721, 16
      %v2771 = vrot.slane %v2769, 4
      %v2772 = vor.u32 %v2768, %v2771
      %v2773 = vsel %vm2729, %v2763, %v2772
      %v2775 = vshrl.u32 %v1722, 16
      %v2777 = vrot.slane %v2775, 3
      %v2778 = vshll.u32 %v1722, 16
      %v2780 = vrot.slane %v2778, 4
      %v2781 = vor.u32 %v2777, %v2780
      %v2782 = vsel %vm2729, %v2772, %v2781
      %v2784 = vshrl.u32 %v1723, 16
      %v2786 = vrot.slane %v2784, 3
      %v2787 = vshll.u32 %v1723, 16
      %v2789 = vrot.slane %v2787, 4
      %v2790 = vor.u32 %v2786, %v2789
      %v2791 = vsel %vm2729, %v2781, %v2790
      %v2793 = vshrl.u32 %v1724, 16
      %v2795 = vrot.slane %v2793, 3
      %v2796 = vshll.u32 %v1724, 16
      %v2798 = vrot.slane %v2796, 4
      %v2799 = vor.u32 %v2795, %v2798
      %v2800 = vsel %vm2729, %v2790, %v2799
      %v2802 = vshrl.u32 %v1725, 16
      %v2804 = vrot.slane %v2802, 3
      %v2805 = vshll.u32 %v1725, 16
      %v2807 = vrot.slane %v2805, 4
      %v2808 = vor.u32 %v2804, %v2807
      %v2809 = vsel %vm2729, %v2799, %v2808
      %v2811 = vshrl.u32 %v1726, 16
      %v2813 = vrot.slane %v2811, 3
      %v2814 = vshll.u32 %v1726, 16
      %v2816 = vrot.slane %v2814, 4
      %v2817 = vor.u32 %v2813, %v2816
      %v2818 = vsel %vm2729, %v2808, %v2817
      %v2820 = vshrl.u32 %v1727, 16
      %v2822 = vrot.slane %v2820, 3
      %v2823 = vshll.u32 %v1727, 16
      %v2825 = vrot.slane %v2823, 4
      %v2826 = vor.u32 %v2822, %v2825
      %v2827 = vsel %vm2729, %v2817, %v2826
      %v2829 = vshrl.u32 %v1728, 16
      %v2831 = vrot.slane %v2829, 3
      %v2832 = vshll.u32 %v1728, 16
      %v2834 = vrot.slane %v2832, 4
      %v2835 = vor.u32 %v2831, %v2834
      %v2836 = vsel %vm2729, %v2826, %v2835
      %v2838 = vshrl.u32 %v1729, 16
      %v2840 = vrot.slane %v2838, 3
      %v2841 = vshll.u32 %v1729, 16
      %v2843 = vrot.slane %v2841, 4
      %v2844 = vor.u32 %v2840, %v2843
      %v2845 = vsel %vm2729, %v2835, %v2844
      %v2854 = vunpack.c.l.b16 %v2721
      %v2855 = vunpack.c.l.b16 %v2722
      %v2856 = vunpack.c.l.b16 %v2723
      %v2857 = vunpack.c.l.b16 %v2724
      %v2858 = vunpack.c.l.b16 %v2725
      %v2859 = vunpack.c.l.b16 %v2726
      %v2860 = vunpack.c.l.b16 %v2727
      %v2861 = vunpack.c.l.b16 %v2728
      %v2862 = vpack.c.b16 %v2855, %v2854
      %v2863 = vpack.c.b16 %v2857, %v2856
      %v2864 = vpack.c.b16 %v2859, %v2858
      %v2865 = vpack.c.b16 %v2861, %v2860
      %v2871 = vsel %vm1876, %v2746, 0
      %v2874 = vsel %vm1876, %v2755, 0
      %v2877 = vsel %vm1876, %v2764, 0
      %v2880 = vsel %vm1876, %v2773, 0
      %v2883 = vsel %vm1876, %v2782, 0
      %v2886 = vsel %vm1876, %v2791, 0
      %v2889 = vsel %vm1876, %v2800, 0
      %v2892 = vsel %vm1876, %v2809, 0
      %v2895 = vsel %vm1876, %v2818, 0
      %v2898 = vsel %vm1876, %v2827, 0
      %v2901 = vsel %vm1876, %v2836, 0
      %v2904 = vsel %vm1876, %v2845, 0
      %v2907 = vsel %vm1876, %v2844, 0
      %2909 = vmatpush.bf16.msra.mxu0 0
      %2910 = vmatpush.bf16.msra.mxu0 0
      %2911 = vmatpush.bf16.msra.mxu0 0
      %2912 = vmatpush.bf16.msra.mxu0 0
      %2913 = vmatpush.bf16.msra.mxu0 %v2865
      %2914 = vmatpush.bf16.msra.mxu0 %v2864
      %2915 = vmatpush.bf16.msra.mxu0 %v2863
      %2916 = vmatpush.bf16.msra.mxu0 %v2862
      %2917 = vmatmul.bf16.gmra.mxu0 %v2871
      %v2918 = vpop.f32.mrf.mxu0
      %v2919 = vadd.f32 0.0, %v2918
      %v2920 = vpop.f32.mrf.mxu0
      %v2921 = vadd.f32 0.0, %v2920
      %2922 = vmatmul.bf16.gmra.mxu0 %v2874
      %v2923 = vpop.f32.mrf.mxu0
      %v2924 = vadd.f32 0.0, %v2923
      %v2925 = vpop.f32.mrf.mxu0
      %v2926 = vadd.f32 0.0, %v2925
      %2927 = vmatmul.bf16.gmra.mxu0 %v2877
      %v2928 = vpop.f32.mrf.mxu0
      %v2929 = vadd.f32 0.0, %v2928
      %v2930 = vpop.f32.mrf.mxu0
      %v2931 = vadd.f32 0.0, %v2930
      %2932 = vmatmul.bf16.gmra.mxu0 %v2880
      %v2933 = vpop.f32.mrf.mxu0
      %v2934 = vadd.f32 0.0, %v2933
      %v2935 = vpop.f32.mrf.mxu0
      %v2936 = vadd.f32 0.0, %v2935
      %2937 = vmatmul.bf16.gmra.mxu0 %v2883
      %v2938 = vpop.f32.mrf.mxu0
      %v2939 = vadd.f32 0.0, %v2938
      %v2940 = vpop.f32.mrf.mxu0
      %v2941 = vadd.f32 0.0, %v2940
      %2942 = vmatmul.bf16.gmra.mxu0 %v2886
      %v2943 = vpop.f32.mrf.mxu0
      %v2944 = vadd.f32 0.0, %v2943
      %v2945 = vpop.f32.mrf.mxu0
      %v2946 = vadd.f32 0.0, %v2945
      %2947 = vmatmul.bf16.gmra.mxu0 %v2889
      %v2948 = vpop.f32.mrf.mxu0
      %v2949 = vadd.f32 0.0, %v2948
      %v2950 = vpop.f32.mrf.mxu0
      %v2951 = vadd.f32 0.0, %v2950
      %2952 = vmatmul.bf16.gmra.mxu0 %v2892
      %v2953 = vpop.f32.mrf.mxu0
      %v2954 = vadd.f32 0.0, %v2953
      %v2955 = vpop.f32.mrf.mxu0
      %v2956 = vadd.f32 0.0, %v2955
      %2957 = vmatmul.bf16.gmra.mxu0 %v2895
      %v2958 = vpop.f32.mrf.mxu0
      %v2959 = vadd.f32 0.0, %v2958
      %v2960 = vpop.f32.mrf.mxu0
      %v2961 = vadd.f32 0.0, %v2960
      %2962 = vmatmul.bf16.gmra.mxu0 %v2898
      %v2963 = vpop.f32.mrf.mxu0
      %v2964 = vadd.f32 0.0, %v2963
      %v2965 = vpop.f32.mrf.mxu0
      %v2966 = vadd.f32 0.0, %v2965
      %2967 = vmatmul.bf16.gmra.mxu0 %v2901
      %v2968 = vpop.f32.mrf.mxu0
      %v2969 = vadd.f32 0.0, %v2968
      %v2970 = vpop.f32.mrf.mxu0
      %v2971 = vadd.f32 0.0, %v2970
      %2972 = vmatmul.bf16.gmra.mxu0 %v2904
      %v2973 = vpop.f32.mrf.mxu0
      %v2974 = vadd.f32 0.0, %v2973
      %v2975 = vpop.f32.mrf.mxu0
      %v2976 = vadd.f32 0.0, %v2975
      %2977 = vmatmul.bf16.gmra.mxu0 %v2907
      %v2978 = vpop.f32.mrf.mxu0
      %v2979 = vadd.f32 0.0, %v2978
      %v2980 = vpop.f32.mrf.mxu0
      %2981 = vdwg.mxu0
      %v2982 = vadd.f32 %v2695, %v2919
      %v2983 = vadd.f32 %v2696, %v2921
      %v2984 = vadd.f32 %v2697, %v2924
      %v2985 = vadd.f32 %v2698, %v2926
      %v2986 = vadd.f32 %v2699, %v2929
      %v2987 = vadd.f32 %v2700, %v2931
      %v2988 = vadd.f32 %v2701, %v2934
      %v2989 = vadd.f32 %v2702, %v2936
      %v2990 = vadd.f32 %v2703, %v2939
      %v2991 = vadd.f32 %v2704, %v2941
      %v2992 = vadd.f32 %v2705, %v2944
      %v2993 = vadd.f32 %v2706, %v2946
      %v2994 = vadd.f32 %v2707, %v2949
      %v2995 = vadd.f32 %v2708, %v2951
      %v2996 = vadd.f32 %v2709, %v2954
      %v2997 = vadd.f32 %v2710, %v2956
      %v2998 = vadd.f32 %v2711, %v2959
      %v2999 = vadd.f32 %v2712, %v2961
      %v3000 = vadd.f32 %v2713, %v2964
      %v3001 = vadd.f32 %v2714, %v2966
      %v3002 = vadd.f32 %v2715, %v2969
      %v3003 = vadd.f32 %v2716, %v2971
      %v3004 = vadd.f32 %v2717, %v2974
      %v3005 = vadd.f32 %v2718, %v2976
      %v3006 = vadd.f32 %v2719, %v2979
      %v3007 = vadd.f32 %v2982, %v2189
      %v3008 = vadd.f32 %v2983, %v2189
      %v3009 = vadd.f32 %v2984, %v2189
      %v3010 = vadd.f32 %v2985, %v2189
      %v3011 = vadd.f32 %v2986, %v2189
      %v3012 = vadd.f32 %v2987, %v2189
      %v3013 = vadd.f32 %v2988, %v2189
      %v3014 = vadd.f32 %v2989, %v2189
      %v3015 = vadd.f32 %v2990, %v2189
      %v3016 = vadd.f32 %v2991, %v2189
      %v3017 = vadd.f32 %v2992, %v2189
      %v3018 = vadd.f32 %v2993, %v2189
      %v3019 = vadd.f32 %v2994, %v2189
      %v3020 = vadd.f32 %v2995, %v2189
      %v3021 = vadd.f32 %v2996, %v2189
      %v3022 = vadd.f32 %v2997, %v2189
      %v3023 = vadd.f32 %v2998, %v2189
      %v3024 = vadd.f32 %v2999, %v2189
      %v3025 = vadd.f32 %v3000, %v2189
      %v3026 = vadd.f32 %v3001, %v2189
      %v3027 = vadd.f32 %v3002, %v2189
      %v3028 = vadd.f32 %v3003, %v2189
      %v3029 = vadd.f32 %v3004, %v2189
      %v3030 = vadd.f32 %v3005, %v2189
      %v3031 = vadd.f32 %v3006, %v2189
      %v3032 = vmax.f32 %v3007, 0.0
      %v3033 = vmax.f32 %v3008, 0.0
      %v3034 = vmax.f32 %v3009, 0.0
      %v3035 = vmax.f32 %v3010, 0.0
      %v3036 = vmax.f32 %v3011, 0.0
      %v3037 = vmax.f32 %v3012, 0.0
      %v3038 = vmax.f32 %v3013, 0.0
      %v3039 = vmax.f32 %v3014, 0.0
      %v3040 = vmax.f32 %v3015, 0.0
      %v3041 = vmax.f32 %v3016, 0.0
      %v3042 = vmax.f32 %v3017, 0.0
      %v3043 = vmax.f32 %v3018, 0.0
      %v3044 = vmax.f32 %v3019, 0.0
      %v3045 = vmax.f32 %v3020, 0.0
      %v3046 = vmax.f32 %v3021, 0.0
      %v3047 = vmax.f32 %v3022, 0.0
      %v3048 = vmax.f32 %v3023, 0.0
      %v3049 = vmax.f32 %v3024, 0.0
      %v3050 = vmax.f32 %v3025, 0.0
      %v3051 = vmax.f32 %v3026, 0.0
      %v3052 = vmax.f32 %v3027, 0.0
      %v3053 = vmax.f32 %v3028, 0.0
      %v3054 = vmax.f32 %v3029, 0.0
      %v3055 = vmax.f32 %v3030, 0.0
      %v3056 = vmax.f32 %v3031, 0.0
      %v3057 = vpack.c.bf16 %v3032, %v3032
      %v3058 = vpack.c.bf16 %v3033, %v3033
      %v3059 = vpack.c.bf16 %v3034, %v3034
      %v3060 = vpack.c.bf16 %v3035, %v3035
      %v3061 = vpack.c.bf16 %v3036, %v3036
      %v3062 = vpack.c.bf16 %v3037, %v3037
      %v3063 = vpack.c.bf16 %v3038, %v3038
      %v3064 = vpack.c.bf16 %v3039, %v3039
      %v3065 = vpack.c.bf16 %v3040, %v3040
      %v3066 = vpack.c.bf16 %v3041, %v3041
      %v3067 = vpack.c.bf16 %v3042, %v3042
      %v3068 = vpack.c.bf16 %v3043, %v3043
      %v3069 = vpack.c.bf16 %v3044, %v3044
      %v3070 = vpack.c.bf16 %v3045, %v3045
      %v3071 = vpack.c.bf16 %v3046, %v3046
      %v3072 = vpack.c.bf16 %v3047, %v3047
      %v3073 = vpack.c.bf16 %v3048, %v3048
      %v3074 = vpack.c.bf16 %v3049, %v3049
      %v3075 = vpack.c.bf16 %v3050, %v3050
      %v3076 = vpack.c.bf16 %v3051, %v3051
      %v3077 = vpack.c.bf16 %v3052, %v3052
      %v3078 = vpack.c.bf16 %v3053, %v3053
      %v3079 = vpack.c.bf16 %v3054, %v3054
      %v3080 = vpack.c.bf16 %v3055, %v3055
      %v3081 = vpack.c.bf16 %v3056, %v3056
      %3082 = vst.msk [vmem:[#allocation4 + $0x8] sm:$0xf] %vm226, %v3057
      %3083 = vst.msk [vmem:[#allocation4 + $0xc] sm:$0xf] %vm226, %v3058
      %3084 = vst.msk [vmem:[#allocation4 + $0x10] sm:$0xf] %vm226, %v3059
      %3085 = vst.msk [vmem:[#allocation4 + $0x14] sm:$0xf] %vm226, %v3060
      %3086 = vst.msk [vmem:[#allocation4 + $0x18] sm:$0xf] %vm226, %v3061
      %3087 = vst.msk [vmem:[#allocation4 + $0x1c] sm:$0xf] %vm226, %v3062
      %3088 = vst.msk [vmem:[#allocation4 + $0x20] sm:$0xf] %vm226, %v3063
      %3089 = vst.msk [vmem:[#allocation4 + $0x24] sm:$0xf] %vm226, %v3064
      %3090 = vst.msk [vmem:[#allocation4 + $0x28] sm:$0xf] %vm226, %v3065
      %3091 = vst.msk [vmem:[#allocation4 + $0x2c] sm:$0xf] %vm226, %v3066
      %3092 = vst.msk [vmem:[#allocation4 + $0x30] sm:$0xf] %vm226, %v3067
      %3093 = vst.msk [vmem:[#allocation4 + $0x34] sm:$0xf] %vm226, %v3068
      %3094 = vst.msk [vmem:[#allocation4 + $0x38] sm:$0xf] %vm226, %v3069
      %3095 = vst.msk [vmem:[#allocation4 + $0x3c] sm:$0xf] %vm226, %v3070
      %3096 = vst.msk [vmem:[#allocation4 + $0x40] sm:$0xf] %vm226, %v3071
      %3097 = vst.msk [vmem:[#allocation4 + $0x44] sm:$0xf] %vm226, %v3072
      %3098 = vst.msk [vmem:[#allocation4 + $0x48] sm:$0xf] %vm226, %v3073
      %3099 = vst.msk [vmem:[#allocation4 + $0x4c] sm:$0xf] %vm226, %v3074
      %3100 = vst.msk [vmem:[#allocation4 + $0x50] sm:$0xf] %vm226, %v3075
      %3101 = vst.msk [vmem:[#allocation4 + $0x54] sm:$0xf] %vm226, %v3076
      %3102 = vst.msk [vmem:[#allocation4 + $0x58] sm:$0xf] %vm226, %v3077
      %3103 = vst.msk [vmem:[#allocation4 + $0x5c] sm:$0xf] %vm226, %v3078
      %3104 = vst.msk [vmem:[#allocation4 + $0x60] sm:$0xf] %vm226, %v3079
      %3105 = vst.msk [vmem:[#allocation4 + $0x64] sm:$0xf] %vm226, %v3080
      %3106 = vst.msk [vmem:[#allocation4 + $0x68] sm:$0x3] %vm289, %v3081
      %v3107 = vld [vmem:[#allocation4] sm:$0xf]
      %v3108 = vld [vmem:[#allocation4 + $0x4] sm:$0xf]
      %v3109 = vld [vmem:[#allocation4 + $0x8] sm:$0xf]
      %v3110 = vld [vmem:[#allocation4 + $0xc] sm:$0xf]
      %v3111 = vld [vmem:[#allocation4 + $0x10] sm:$0xf]
      %v3112 = vld [vmem:[#allocation4 + $0x14] sm:$0xf]
      %v3113 = vld [vmem:[#allocation4 + $0x18] sm:$0xf]
      %v3114 = vld [vmem:[#allocation4 + $0x1c] sm:$0xf]
      %v3115 = vld [vmem:[#allocation4 + $0x20] sm:$0xf]
      %v3116 = vld [vmem:[#allocation4 + $0x24] sm:$0xf]
      %v3117 = vld [vmem:[#allocation4 + $0x28] sm:$0xf]
      %v3118 = vld [vmem:[#allocation4 + $0x2c] sm:$0xf]
      %v3119 = vld [vmem:[#allocation4 + $0x30] sm:$0xf]
      %v3120 = vld [vmem:[#allocation4 + $0x34] sm:$0xf]
      %v3121 = vld [vmem:[#allocation4 + $0x38] sm:$0xf]
      %v3122 = vld [vmem:[#allocation4 + $0x3c] sm:$0xf]
      %v3123 = vld [vmem:[#allocation4 + $0x40] sm:$0xf]
      %v3124 = vld [vmem:[#allocation4 + $0x44] sm:$0xf]
      %v3125 = vld [vmem:[#allocation4 + $0x48] sm:$0xf]
      %v3126 = vld [vmem:[#allocation4 + $0x4c] sm:$0xf]
      %v3127 = vld [vmem:[#allocation4 + $0x50] sm:$0xf]
      %v3128 = vld [vmem:[#allocation4 + $0x54] sm:$0xf]
      %v3129 = vld [vmem:[#allocation4 + $0x58] sm:$0xf]
      %v3130 = vld [vmem:[#allocation4 + $0x5c] sm:$0xf]
      %v3131 = vld [vmem:[#allocation4 + $0x60] sm:$0x7]
      %v3132 = vunpack.c.l.bf16 %v3107
      %v3133 = vunpack.c.l.bf16 %v3108
      %v3134 = vunpack.c.l.bf16 %v3109
      %v3135 = vunpack.c.l.bf16 %v3110
      %v3136 = vunpack.c.l.bf16 %v3111
      %v3137 = vunpack.c.l.bf16 %v3112
      %v3138 = vunpack.c.l.bf16 %v3113
      %v3139 = vunpack.c.l.bf16 %v3114
      %v3140 = vunpack.c.l.bf16 %v3115
      %v3141 = vunpack.c.l.bf16 %v3116
      %v3142 = vunpack.c.l.bf16 %v3117
      %v3143 = vunpack.c.l.bf16 %v3118
      %v3144 = vunpack.c.l.bf16 %v3119
      %v3145 = vunpack.c.l.bf16 %v3120
      %v3146 = vunpack.c.l.bf16 %v3121
      %v3147 = vunpack.c.l.bf16 %v3122
      %v3148 = vunpack.c.l.bf16 %v3123
      %v3149 = vunpack.c.l.bf16 %v3124
      %v3150 = vunpack.c.l.bf16 %v3125
      %v3151 = vunpack.c.l.bf16 %v3126
      %v3152 = vunpack.c.l.bf16 %v3127
      %v3153 = vunpack.c.l.bf16 %v3128
      %v3154 = vunpack.c.l.bf16 %v3129
      %v3155 = vunpack.c.l.bf16 %v3130
      %v3156 = vunpack.c.l.bf16 %v3131
      %v3157 = vunpack.c.l.bf16 %v1292
      %v3158 = vunpack.c.l.bf16 %v1293
      %v3159 = vunpack.c.l.bf16 %v1294
      %v3160 = vunpack.c.l.bf16 %v1295
      %v3161 = vunpack.c.l.bf16 %v1296
      %v3162 = vunpack.c.l.bf16 %v1297
      %v3163 = vunpack.c.l.bf16 %v1298
      %v3164 = vunpack.c.l.bf16 %v1299
      %v3165 = vunpack.c.l.bf16 %v1300
      %v3166 = vunpack.c.l.bf16 %v1301
      %v3167 = vunpack.c.l.bf16 %v1302
      %v3168 = vunpack.c.l.bf16 %v1303
      %v3169 = vunpack.c.l.bf16 %v1304
      %v3170 = vunpack.c.l.bf16 %v1305
      %v3171 = vunpack.c.l.bf16 %v1306
      %v3172 = vunpack.c.l.bf16 %v1307
      %v3173 = vunpack.c.l.bf16 %v1308
      %v3174 = vunpack.c.l.bf16 %v1309
      %v3175 = vunpack.c.l.bf16 %v1310
      %v3176 = vunpack.c.l.bf16 %v1311
      %v3177 = vunpack.c.l.bf16 %v1312
      %v3178 = vunpack.c.l.bf16 %v1313
      %v3179 = vunpack.c.l.bf16 %v1314
      %v3180 = vunpack.c.l.bf16 %v1315
      %v3181 = vunpack.c.l.bf16 %v1316
      %v3207 = vrot.slane %v3157, 7
      %v3208 = vrot.slane %v3158, 7
      %v3209 = vsel %vm1493, %v3207, %v3208
      %v3210 = vrot.slane %v3159, 7
      %v3211 = vsel %vm1493, %v3208, %v3210
      %v3212 = vrot.slane %v3160, 7
      %v3213 = vsel %vm1493, %v3210, %v3212
      %v3214 = vrot.slane %v3161, 7
      %v3215 = vsel %vm1493, %v3212, %v3214
      %v3216 = vrot.slane %v3162, 7
      %v3217 = vsel %vm1493, %v3214, %v3216
      %v3218 = vrot.slane %v3163, 7
      %v3219 = vsel %vm1493, %v3216, %v3218
      %v3220 = vrot.slane %v3164, 7
      %v3221 = vsel %vm1493, %v3218, %v3220
      %v3222 = vrot.slane %v3165, 7
      %v3223 = vsel %vm1493, %v3220, %v3222
      %v3224 = vrot.slane %v3166, 7
      %v3225 = vsel %vm1493, %v3222, %v3224
      %v3226 = vrot.slane %v3167, 7
      %v3227 = vsel %vm1493, %v3224, %v3226
      %v3228 = vrot.slane %v3168, 7
      %v3229 = vsel %vm1493, %v3226, %v3228
      %v3230 = vrot.slane %v3169, 7
      %v3231 = vsel %vm1493, %v3228, %v3230
      %v3232 = vrot.slane %v3170, 7
      %v3233 = vsel %vm1493, %v3230, %v3232
      %v3234 = vrot.slane %v3171, 7
      %v3235 = vsel %vm1493, %v3232, %v3234
      %v3236 = vrot.slane %v3172, 7
      %v3237 = vsel %vm1493, %v3234, %v3236
      %v3238 = vrot.slane %v3173, 7
      %v3239 = vsel %vm1493, %v3236, %v3238
      %v3240 = vrot.slane %v3174, 7
      %v3241 = vsel %vm1493, %v3238, %v3240
      %v3242 = vrot.slane %v3175, 7
      %v3243 = vsel %vm1493, %v3240, %v3242
      %v3244 = vrot.slane %v3176, 7
      %v3245 = vsel %vm1493, %v3242, %v3244
      %v3246 = vrot.slane %v3177, 7
      %v3247 = vsel %vm1493, %v3244, %v3246
      %v3248 = vrot.slane %v3178, 7
      %v3249 = vsel %vm1493, %v3246, %v3248
      %v3250 = vrot.slane %v3179, 7
      %v3251 = vsel %vm1493, %v3248, %v3250
      %v3252 = vrot.slane %v3180, 7
      %v3253 = vsel %vm1493, %v3250, %v3252
      %v3254 = vrot.slane %v3181, 7
      %v3255 = vsel %vm1493, %v3252, %v3254
      %v3281 = vmul.f32 %v3132, %v3207
      %v3282 = vmul.f32 %v3133, %v3209
      %v3283 = vmul.f32 %v3134, %v3211
      %v3284 = vmul.f32 %v3135, %v3213
      %v3285 = vmul.f32 %v3136, %v3215
      %v3286 = vmul.f32 %v3137, %v3217
      %v3287 = vmul.f32 %v3138, %v3219
      %v3288 = vmul.f32 %v3139, %v3221
      %v3289 = vmul.f32 %v3140, %v3223
      %v3290 = vmul.f32 %v3141, %v3225
      %v3291 = vmul.f32 %v3142, %v3227
      %v3292 = vmul.f32 %v3143, %v3229
      %v3293 = vmul.f32 %v3144, %v3231
      %v3294 = vmul.f32 %v3145, %v3233
      %v3295 = vmul.f32 %v3146, %v3235
      %v3296 = vmul.f32 %v3147, %v3237
      %v3297 = vmul.f32 %v3148, %v3239
      %v3298 = vmul.f32 %v3149, %v3241
      %v3299 = vmul.f32 %v3150, %v3243
      %v3300 = vmul.f32 %v3151, %v3245
      %v3301 = vmul.f32 %v3152, %v3247
      %v3302 = vmul.f32 %v3153, %v3249
      %v3303 = vmul.f32 %v3154, %v3251
      %v3304 = vmul.f32 %v3155, %v3253
      %v3305 = vmul.f32 %v3156, %v3255
      %v3306 = vpack.c.bf16 %v3282, %v3281
      %v3307 = vpack.c.bf16 %v3284, %v3283
      %v3308 = vpack.c.bf16 %v3286, %v3285
      %v3309 = vpack.c.bf16 %v3288, %v3287
      %v3310 = vpack.c.bf16 %v3290, %v3289
      %v3311 = vpack.c.bf16 %v3292, %v3291
      %v3312 = vpack.c.bf16 %v3294, %v3293
      %v3313 = vpack.c.bf16 %v3296, %v3295
      %v3314 = vpack.c.bf16 %v3298, %v3297
      %v3315 = vpack.c.bf16 %v3300, %v3299
      %v3316 = vpack.c.bf16 %v3302, %v3301
      %v3317 = vpack.c.bf16 %v3304, %v3303
      %v3318 = vpack.c.bf16 %v3305, %v3305
      %v3319 = vld [vmem:[%s3] sm:$0xf]
      %v3320 = vld [vmem:[%s3 + $0x4] sm:$0xf]
      %v3321 = vld [vmem:[%s3 + $0x8] sm:$0xf]
      %v3322 = vld [vmem:[%s3 + $0xc] sm:$0xf]
      %v3323 = vld [vmem:[%s3 + $0x10] sm:$0xf]
      %v3324 = vld [vmem:[%s3 + $0x14] sm:$0xf]
      %v3325 = vld [vmem:[%s3 + $0x18] sm:$0xf]
      %v3326 = vld [vmem:[%s3 + $0x1c] sm:$0xf]
      %v3327 = vld [vmem:[#allocation4] sm:$0xe]
      %s3328 = scalar_lea.vmem %s3, 32
      %v3329 = vld [vmem:[%s3328] sm:$0xf]
      %v3330 = vld [vmem:[%s3328 + $0x4] sm:$0xf]
      %v3331 = vld [vmem:[%s3328 + $0x8] sm:$0xf]
      %v3332 = vld [vmem:[%s3328 + $0xc] sm:$0xf]
      %v3333 = vld [vmem:[%s3328 + $0x10] sm:$0xf]
      %v3334 = vld [vmem:[%s3328 + $0x14] sm:$0xf]
      %v3335 = vld [vmem:[%s3328 + $0x18] sm:$0xf]
      %v3336 = vld [vmem:[%s3328 + $0x1c] sm:$0xf]
      %v3362 = vunpack.c.l.b16 %v3327
      %v3363 = vunpack.c.l.b16 %v3108
      %v3364 = vunpack.c.l.b16 %v3109
      %v3365 = vunpack.c.l.b16 %v3110
      %v3366 = vunpack.c.l.b16 %v3111
      %v3367 = vunpack.c.l.b16 %v3112
      %v3368 = vunpack.c.l.b16 %v3113
      %v3369 = vunpack.c.l.b16 %v3114
      %v3370 = vunpack.c.l.b16 %v3115
      %v3371 = vunpack.c.l.b16 %v3116
      %v3372 = vunpack.c.l.b16 %v3117
      %v3373 = vunpack.c.l.b16 %v3118
      %v3374 = vunpack.c.l.b16 %v3119
      %v3375 = vunpack.c.l.b16 %v3120
      %v3376 = vunpack.c.l.b16 %v3121
      %v3377 = vunpack.c.l.b16 %v3122
      %v3378 = vunpack.c.l.b16 %v3123
      %v3379 = vunpack.c.l.b16 %v3124
      %v3380 = vunpack.c.l.b16 %v3125
      %v3381 = vunpack.c.l.b16 %v3126
      %v3382 = vunpack.c.l.b16 %v3127
      %v3383 = vunpack.c.l.b16 %v3128
      %v3384 = vunpack.c.l.b16 %v3129
      %v3385 = vunpack.c.l.b16 %v3130
      %v3386 = vunpack.c.l.b16 %v3131
      %v3387 = vpack.c.b16 %v3363, %v3362
      %v3388 = vpack.c.b16 %v3365, %v3364
      %v3389 = vpack.c.b16 %v3367, %v3366
      %v3390 = vpack.c.b16 %v3369, %v3368
      %v3391 = vpack.c.b16 %v3371, %v3370
      %v3392 = vpack.c.b16 %v3373, %v3372
      %v3393 = vpack.c.b16 %v3375, %v3374
      %v3394 = vpack.c.b16 %v3377, %v3376
      %v3395 = vpack.c.b16 %v3379, %v3378
      %v3396 = vpack.c.b16 %v3381, %v3380
      %v3397 = vpack.c.b16 %v3383, %v3382
      %v3398 = vpack.c.b16 %v3385, %v3384
      %v3399 = vpack.c.b16 %v3386, %v3386
      %vm3400 = vcmask 1046528
      %v3401 = vrot.slane %v3387, 1
      %v3402 = vrot.slane %v3388, 1
      %v3403 = vsel %vm3400, %v3401, %v3402
      %v3404 = vrot.slane %v3389, 1
      %v3405 = vsel %vm3400, %v3402, %v3404
      %v3406 = vrot.slane %v3390, 1
      %v3407 = vsel %vm3400, %v3404, %v3406
      %v3408 = vrot.slane %v3391, 1
      %v3409 = vsel %vm3400, %v3406, %v3408
      %v3410 = vrot.slane %v3392, 1
      %v3411 = vsel %vm3400, %v3408, %v3410
      %v3412 = vrot.slane %v3393, 1
      %v3413 = vsel %vm3400, %v3410, %v3412
      %v3414 = vrot.slane %v3394, 1
      %v3415 = vsel %vm3400, %v3412, %v3414
      %v3416 = vrot.slane %v3395, 1
      %v3417 = vsel %vm3400, %v3414, %v3416
      %v3418 = vrot.slane %v3396, 1
      %v3419 = vsel %vm3400, %v3416, %v3418
      %v3420 = vrot.slane %v3397, 1
      %v3421 = vsel %vm3400, %v3418, %v3420
      %v3422 = vrot.slane %v3398, 1
      %v3423 = vsel %vm3400, %v3420, %v3422
      %v3424 = vrot.slane %v3399, 1
      %v3425 = vsel %vm3400, %v3422, %v3424
      %v3434 = vunpack.c.l.b16 %v3329
      %v3435 = vunpack.c.l.b16 %v3330
      %v3436 = vunpack.c.l.b16 %v3331
      %v3437 = vunpack.c.l.b16 %v3332
      %v3438 = vunpack.c.l.b16 %v3333
      %v3439 = vunpack.c.l.b16 %v3334
      %v3440 = vunpack.c.l.b16 %v3335
      %v3441 = vunpack.c.l.b16 %v3336
      %v3442 = vpack.c.b16 %v3435, %v3434
      %v3443 = vpack.c.b16 %v3437, %v3436
      %v3444 = vpack.c.b16 %v3439, %v3438
      %v3445 = vpack.c.b16 %v3441, %v3440
      %v3451 = vsel %vm1876, %v3403, 0
      %v3454 = vsel %vm1876, %v3405, 0
      %v3457 = vsel %vm1876, %v3407, 0
      %v3460 = vsel %vm1876, %v3409, 0
      %v3463 = vsel %vm1876, %v3411, 0
      %v3466 = vsel %vm1876, %v3413, 0
      %v3469 = vsel %vm1876, %v3415, 0
      %v3472 = vsel %vm1876, %v3417, 0
      %v3475 = vsel %vm1876, %v3419, 0
      %v3478 = vsel %vm1876, %v3421, 0
      %v3481 = vsel %vm1876, %v3423, 0
      %v3484 = vsel %vm1876, %v3425, 0
      %v3487 = vsel %vm1876, %v3424, 0
      %3489 = vmatpush.bf16.msra.mxu0 0
      %3490 = vmatpush.bf16.msra.mxu0 0
      %3491 = vmatpush.bf16.msra.mxu0 0
      %3492 = vmatpush.bf16.msra.mxu0 0
      %3493 = vmatpush.bf16.msra.mxu0 %v3445
      %3494 = vmatpush.bf16.msra.mxu0 %v3444
      %3495 = vmatpush.bf16.msra.mxu0 %v3443
      %3496 = vmatpush.bf16.msra.mxu0 %v3442
      %3497 = vmatmul.bf16.gmra.mxu0 %v3451
      %v3498 = vpop.f32.mrf.mxu0
      %v3499 = vadd.f32 0.0, %v3498
      %v3500 = vpop.f32.mrf.mxu0
      %v3501 = vadd.f32 0.0, %v3500
      %3502 = vmatmul.bf16.gmra.mxu0 %v3454
      %v3503 = vpop.f32.mrf.mxu0
      %v3504 = vadd.f32 0.0, %v3503
      %v3505 = vpop.f32.mrf.mxu0
      %v3506 = vadd.f32 0.0, %v3505
      %3507 = vmatmul.bf16.gmra.mxu0 %v3457
      %v3508 = vpop.f32.mrf.mxu0
      %v3509 = vadd.f32 0.0, %v3508
      %v3510 = vpop.f32.mrf.mxu0
      %v3511 = vadd.f32 0.0, %v3510
      %3512 = vmatmul.bf16.gmra.mxu0 %v3460
      %v3513 = vpop.f32.mrf.mxu0
      %v3514 = vadd.f32 0.0, %v3513
      %v3515 = vpop.f32.mrf.mxu0
      %v3516 = vadd.f32 0.0, %v3515
      %3517 = vmatmul.bf16.gmra.mxu0 %v3463
      %v3518 = vpop.f32.mrf.mxu0
      %v3519 = vadd.f32 0.0, %v3518
      %v3520 = vpop.f32.mrf.mxu0
      %v3521 = vadd.f32 0.0, %v3520
      %3522 = vmatmul.bf16.gmra.mxu0 %v3466
      %v3523 = vpop.f32.mrf.mxu0
      %v3524 = vadd.f32 0.0, %v3523
      %v3525 = vpop.f32.mrf.mxu0
      %v3526 = vadd.f32 0.0, %v3525
      %3527 = vmatmul.bf16.gmra.mxu0 %v3469
      %v3528 = vpop.f32.mrf.mxu0
      %v3529 = vadd.f32 0.0, %v3528
      %v3530 = vpop.f32.mrf.mxu0
      %v3531 = vadd.f32 0.0, %v3530
      %3532 = vmatmul.bf16.gmra.mxu0 %v3472
      %v3533 = vpop.f32.mrf.mxu0
      %v3534 = vadd.f32 0.0, %v3533
      %v3535 = vpop.f32.mrf.mxu0
      %v3536 = vadd.f32 0.0, %v3535
      %3537 = vmatmul.bf16.gmra.mxu0 %v3475
      %v3538 = vpop.f32.mrf.mxu0
      %v3539 = vadd.f32 0.0, %v3538
      %v3540 = vpop.f32.mrf.mxu0
      %v3541 = vadd.f32 0.0, %v3540
      %3542 = vmatmul.bf16.gmra.mxu0 %v3478
      %v3543 = vpop.f32.mrf.mxu0
      %v3544 = vadd.f32 0.0, %v3543
      %v3545 = vpop.f32.mrf.mxu0
      %v3546 = vadd.f32 0.0, %v3545
      %3547 = vmatmul.bf16.gmra.mxu0 %v3481
      %v3548 = vpop.f32.mrf.mxu0
      %v3549 = vadd.f32 0.0, %v3548
      %v3550 = vpop.f32.mrf.mxu0
      %v3551 = vadd.f32 0.0, %v3550
      %3552 = vmatmul.bf16.gmra.mxu0 %v3484
      %v3553 = vpop.f32.mrf.mxu0
      %v3554 = vadd.f32 0.0, %v3553
      %v3555 = vpop.f32.mrf.mxu0
      %v3556 = vadd.f32 0.0, %v3555
      %3557 = vmatmul.bf16.gmra.mxu0 %v3487
      %v3558 = vpop.f32.mrf.mxu0
      %v3559 = vadd.f32 0.0, %v3558
      %v3560 = vpop.f32.mrf.mxu0
      %3561 = vdwg.mxu0
      %v3563 = vshrl.u32 %v3306, 16
      %v3565 = vshll.u32 %v3306, 16
      %v3567 = vrot.slane %v3565, 1
      %v3568 = vor.u32 %v3563, %v3567
      %v3570 = vshll.u32 %v3307, 16
      %v3572 = vrot.slane %v3570, 1
      %v3573 = vsel %vm1748, %v3568, %v3572
      %v3574 = vshrl.u32 %v3307, 16
      %v3576 = vor.u32 %v3574, %v3572
      %v3578 = vshll.u32 %v3308, 16
      %v3580 = vrot.slane %v3578, 1
      %v3581 = vsel %vm1748, %v3576, %v3580
      %v3582 = vshrl.u32 %v3308, 16
      %v3584 = vor.u32 %v3582, %v3580
      %v3586 = vshll.u32 %v3309, 16
      %v3588 = vrot.slane %v3586, 1
      %v3589 = vsel %vm1748, %v3584, %v3588
      %v3590 = vshrl.u32 %v3309, 16
      %v3592 = vor.u32 %v3590, %v3588
      %v3594 = vshll.u32 %v3310, 16
      %v3596 = vrot.slane %v3594, 1
      %v3597 = vsel %vm1748, %v3592, %v3596
      %v3598 = vshrl.u32 %v3310, 16
      %v3600 = vor.u32 %v3598, %v3596
      %v3602 = vshll.u32 %v3311, 16
      %v3604 = vrot.slane %v3602, 1
      %v3605 = vsel %vm1748, %v3600, %v3604
      %v3606 = vshrl.u32 %v3311, 16
      %v3608 = vor.u32 %v3606, %v3604
      %v3610 = vshll.u32 %v3312, 16
      %v3612 = vrot.slane %v3610, 1
      %v3613 = vsel %vm1748, %v3608, %v3612
      %v3614 = vshrl.u32 %v3312, 16
      %v3616 = vor.u32 %v3614, %v3612
      %v3618 = vshll.u32 %v3313, 16
      %v3620 = vrot.slane %v3618, 1
      %v3621 = vsel %vm1748, %v3616, %v3620
      %v3622 = vshrl.u32 %v3313, 16
      %v3624 = vor.u32 %v3622, %v3620
      %v3626 = vshll.u32 %v3314, 16
      %v3628 = vrot.slane %v3626, 1
      %v3629 = vsel %vm1748, %v3624, %v3628
      %v3630 = vshrl.u32 %v3314, 16
      %v3632 = vor.u32 %v3630, %v3628
      %v3634 = vshll.u32 %v3315, 16
      %v3636 = vrot.slane %v3634, 1
      %v3637 = vsel %vm1748, %v3632, %v3636
      %v3638 = vshrl.u32 %v3315, 16
      %v3640 = vor.u32 %v3638, %v3636
      %v3642 = vshll.u32 %v3316, 16
      %v3644 = vrot.slane %v3642, 1
      %v3645 = vsel %vm1748, %v3640, %v3644
      %v3646 = vshrl.u32 %v3316, 16
      %v3648 = vor.u32 %v3646, %v3644
      %v3650 = vshll.u32 %v3317, 16
      %v3652 = vrot.slane %v3650, 1
      %v3653 = vsel %vm1748, %v3648, %v3652
      %v3654 = vshrl.u32 %v3317, 16
      %v3656 = vor.u32 %v3654, %v3652
      %v3658 = vshll.u32 %v3318, 16
      %v3660 = vrot.slane %v3658, 1
      %v3661 = vsel %vm1748, %v3656, %v3660
      %v3662 = vshrl.u32 %v3318, 16
      %v3664 = vor.u32 %v3662, %v3660
      %v3673 = vunpack.c.l.b16 %v3319
      %v3674 = vunpack.c.l.b16 %v3320
      %v3675 = vunpack.c.l.b16 %v3321
      %v3676 = vunpack.c.l.b16 %v3322
      %v3677 = vunpack.c.l.b16 %v3323
      %v3678 = vunpack.c.l.b16 %v3324
      %v3679 = vunpack.c.l.b16 %v3325
      %v3680 = vunpack.c.l.b16 %v3326
      %v3681 = vpack.c.b16 %v3674, %v3673
      %v3682 = vpack.c.b16 %v3676, %v3675
      %v3683 = vpack.c.b16 %v3678, %v3677
      %v3684 = vpack.c.b16 %v3680, %v3679
      %v3690 = vsel %vm1876, %v3573, 0
      %v3693 = vsel %vm1876, %v3581, 0
      %v3696 = vsel %vm1876, %v3589, 0
      %v3699 = vsel %vm1876, %v3597, 0
      %v3702 = vsel %vm1876, %v3605, 0
      %v3705 = vsel %vm1876, %v3613, 0
      %v3708 = vsel %vm1876, %v3621, 0
      %v3711 = vsel %vm1876, %v3629, 0
      %v3714 = vsel %vm1876, %v3637, 0
      %v3717 = vsel %vm1876, %v3645, 0
      %v3720 = vsel %vm1876, %v3653, 0
      %v3723 = vsel %vm1876, %v3661, 0
      %v3726 = vsel %vm1876, %v3664, 0
      %3728 = vmatpush.bf16.msra.mxu0 0
      %3729 = vmatpush.bf16.msra.mxu0 0
      %3730 = vmatpush.bf16.msra.mxu0 0
      %3731 = vmatpush.bf16.msra.mxu0 0
      %3732 = vmatpush.bf16.msra.mxu0 %v3684
      %3733 = vmatpush.bf16.msra.mxu0 %v3683
      %3734 = vmatpush.bf16.msra.mxu0 %v3682
      %3735 = vmatpush.bf16.msra.mxu0 %v3681
      %3736 = vmatmul.bf16.gmra.mxu0 %v3690
      %v3737 = vpop.f32.mrf.mxu0
      %v3738 = vadd.f32 %v3499, %v3737
      %v3739 = vpop.f32.mrf.mxu0
      %v3740 = vadd.f32 %v3501, %v3739
      %3741 = vmatmul.bf16.gmra.mxu0 %v3693
      %v3742 = vpop.f32.mrf.mxu0
      %v3743 = vadd.f32 %v3504, %v3742
      %v3744 = vpop.f32.mrf.mxu0
      %v3745 = vadd.f32 %v3506, %v3744
      %3746 = vmatmul.bf16.gmra.mxu0 %v3696
      %v3747 = vpop.f32.mrf.mxu0
      %v3748 = vadd.f32 %v3509, %v3747
      %v3749 = vpop.f32.mrf.mxu0
      %v3750 = vadd.f32 %v3511, %v3749
      %3751 = vmatmul.bf16.gmra.mxu0 %v3699
      %v3752 = vpop.f32.mrf.mxu0
      %v3753 = vadd.f32 %v3514, %v3752
      %v3754 = vpop.f32.mrf.mxu0
      %v3755 = vadd.f32 %v3516, %v3754
      %3756 = vmatmul.bf16.gmra.mxu0 %v3702
      %v3757 = vpop.f32.mrf.mxu0
      %v3758 = vadd.f32 %v3519, %v3757
      %v3759 = vpop.f32.mrf.mxu0
      %v3760 = vadd.f32 %v3521, %v3759
      %3761 = vmatmul.bf16.gmra.mxu0 %v3705
      %v3762 = vpop.f32.mrf.mxu0
      %v3763 = vadd.f32 %v3524, %v3762
      %v3764 = vpop.f32.mrf.mxu0
      %v3765 = vadd.f32 %v3526, %v3764
      %3766 = vmatmul.bf16.gmra.mxu0 %v3708
      %v3767 = vpop.f32.mrf.mxu0
      %v3768 = vadd.f32 %v3529, %v3767
      %v3769 = vpop.f32.mrf.mxu0
      %v3770 = vadd.f32 %v3531, %v3769
      %3771 = vmatmul.bf16.gmra.mxu0 %v3711
      %v3772 = vpop.f32.mrf.mxu0
      %v3773 = vadd.f32 %v3534, %v3772
      %v3774 = vpop.f32.mrf.mxu0
      %v3775 = vadd.f32 %v3536, %v3774
      %3776 = vmatmul.bf16.gmra.mxu0 %v3714
      %v3777 = vpop.f32.mrf.mxu0
      %v3778 = vadd.f32 %v3539, %v3777
      %v3779 = vpop.f32.mrf.mxu0
      %v3780 = vadd.f32 %v3541, %v3779
      %3781 = vmatmul.bf16.gmra.mxu0 %v3717
      %v3782 = vpop.f32.mrf.mxu0
      %v3783 = vadd.f32 %v3544, %v3782
      %v3784 = vpop.f32.mrf.mxu0
      %v3785 = vadd.f32 %v3546, %v3784
      %3786 = vmatmul.bf16.gmra.mxu0 %v3720
      %v3787 = vpop.f32.mrf.mxu0
      %v3788 = vadd.f32 %v3549, %v3787
      %v3789 = vpop.f32.mrf.mxu0
      %v3790 = vadd.f32 %v3551, %v3789
      %3791 = vmatmul.bf16.gmra.mxu0 %v3723
      %v3792 = vpop.f32.mrf.mxu0
      %v3793 = vadd.f32 %v3554, %v3792
      %v3794 = vpop.f32.mrf.mxu0
      %v3795 = vadd.f32 %v3556, %v3794
      %3796 = vmatmul.bf16.gmra.mxu0 %v3726
      %v3797 = vpop.f32.mrf.mxu0
      %v3798 = vadd.f32 %v3559, %v3797
      %v3799 = vpop.f32.mrf.mxu0
      %3800 = vdwg.mxu0
      %v3801 = vld [vmem:[#allocation4 + $0x60] sm:$0xf]
      %v3802 = vunpack.c.l.bf16 %v3327
      %v3803 = vunpack.c.l.bf16 %v3801
      %vm3804 = vcmask 1042432
      %v3805 = vrot.slane %v1443, 5
      %v3806 = vrot.slane %v1444, 5
      %v3807 = vsel %vm3804, %v3805, %v3806
      %v3808 = vrot.slane %v1445, 5
      %v3809 = vsel %vm3804, %v3806, %v3808
      %v3810 = vrot.slane %v1446, 5
      %v3811 = vsel %vm3804, %v3808, %v3810
      %v3812 = vrot.slane %v1447, 5
      %v3813 = vsel %vm3804, %v3810, %v3812
      %v3814 = vrot.slane %v1448, 5
      %v3815 = vsel %vm3804, %v3812, %v3814
      %v3816 = vrot.slane %v1449, 5
      %v3817 = vsel %vm3804, %v3814, %v3816
      %v3818 = vrot.slane %v1450, 5
      %v3819 = vsel %vm3804, %v3816, %v3818
      %v3820 = vrot.slane %v1451, 5
      %v3821 = vsel %vm3804, %v3818, %v3820
      %v3822 = vrot.slane %v1452, 5
      %v3823 = vsel %vm3804, %v3820, %v3822
      %v3824 = vrot.slane %v1453, 5
      %v3825 = vsel %vm3804, %v3822, %v3824
      %v3826 = vrot.slane %v1454, 5
      %v3827 = vsel %vm3804, %v3824, %v3826
      %v3828 = vrot.slane %v1455, 5
      %v3829 = vsel %vm3804, %v3826, %v3828
      %v3830 = vrot.slane %v1456, 5
      %v3831 = vsel %vm3804, %v3828, %v3830
      %v3832 = vrot.slane %v1457, 5
      %v3833 = vsel %vm3804, %v3830, %v3832
      %v3834 = vrot.slane %v1458, 5
      %v3835 = vsel %vm3804, %v3832, %v3834
      %v3836 = vrot.slane %v1459, 5
      %v3837 = vsel %vm3804, %v3834, %v3836
      %v3838 = vrot.slane %v1460, 5
      %v3839 = vsel %vm3804, %v3836, %v3838
      %v3840 = vrot.slane %v1461, 5
      %v3841 = vsel %vm3804, %v3838, %v3840
      %v3842 = vrot.slane %v1462, 5
      %v3843 = vsel %vm3804, %v3840, %v3842
      %v3844 = vrot.slane %v1463, 5
      %v3845 = vsel %vm3804, %v3842, %v3844
      %v3846 = vrot.slane %v1464, 5
      %v3847 = vsel %vm3804, %v3844, %v3846
      %v3848 = vrot.slane %v1465, 5
      %v3849 = vsel %vm3804, %v3846, %v3848
      %v3850 = vrot.slane %v1466, 5
      %v3851 = vsel %vm3804, %v3848, %v3850
      %v3852 = vrot.slane %v1467, 5
      %v3853 = vsel %vm3804, %v3850, %v3852
      %v3879 = vmul.f32 %v3802, %v3805
      %v3880 = vmul.f32 %v3133, %v3807
      %v3881 = vmul.f32 %v3134, %v3809
      %v3882 = vmul.f32 %v3135, %v3811
      %v3883 = vmul.f32 %v3136, %v3813
      %v3884 = vmul.f32 %v3137, %v3815
      %v3885 = vmul.f32 %v3138, %v3817
      %v3886 = vmul.f32 %v3139, %v3819
      %v3887 = vmul.f32 %v3140, %v3821
      %v3888 = vmul.f32 %v3141, %v3823
      %v3889 = vmul.f32 %v3142, %v3825
      %v3890 = vmul.f32 %v3143, %v3827
      %v3891 = vmul.f32 %v3144, %v3829
      %v3892 = vmul.f32 %v3145, %v3831
      %v3893 = vmul.f32 %v3146, %v3833
      %v3894 = vmul.f32 %v3147, %v3835
      %v3895 = vmul.f32 %v3148, %v3837
      %v3896 = vmul.f32 %v3149, %v3839
      %v3897 = vmul.f32 %v3150, %v3841
      %v3898 = vmul.f32 %v3151, %v3843
      %v3899 = vmul.f32 %v3152, %v3845
      %v3900 = vmul.f32 %v3153, %v3847
      %v3901 = vmul.f32 %v3154, %v3849
      %v3902 = vmul.f32 %v3155, %v3851
      %v3903 = vmul.f32 %v3803, %v3853
      %v3904 = vpack.c.bf16 %v3880, %v3879
      %v3905 = vpack.c.bf16 %v3882, %v3881
      %v3906 = vpack.c.bf16 %v3884, %v3883
      %v3907 = vpack.c.bf16 %v3886, %v3885
      %v3908 = vpack.c.bf16 %v3888, %v3887
      %v3909 = vpack.c.bf16 %v3890, %v3889
      %v3910 = vpack.c.bf16 %v3892, %v3891
      %v3911 = vpack.c.bf16 %v3894, %v3893
      %v3912 = vpack.c.bf16 %v3896, %v3895
      %v3913 = vpack.c.bf16 %v3898, %v3897
      %v3914 = vpack.c.bf16 %v3900, %v3899
      %v3915 = vpack.c.bf16 %v3902, %v3901
      %v3916 = vpack.c.bf16 %v3903, %v3903
      %s3917 = scalar_lea.vmem %s3, 64
      %v3918 = vld [vmem:[%s3917] sm:$0xf]
      %v3919 = vld [vmem:[%s3917 + $0x4] sm:$0xf]
      %v3920 = vld [vmem:[%s3917 + $0x8] sm:$0xf]
      %v3921 = vld [vmem:[%s3917 + $0xc] sm:$0xf]
      %v3922 = vld [vmem:[%s3917 + $0x10] sm:$0xf]
      %v3923 = vld [vmem:[%s3917 + $0x14] sm:$0xf]
      %v3924 = vld [vmem:[%s3917 + $0x18] sm:$0xf]
      %v3925 = vld [vmem:[%s3917 + $0x1c] sm:$0xf]
      %vm3926 = vsmask.f32 6400
      %v3928 = vshrl.u32 %v3904, 16
      %v3930 = vrot.slane %v3928, 1
      %v3931 = vshll.u32 %v3904, 16
      %v3933 = vrot.slane %v3931, 2
      %v3934 = vor.u32 %v3930, %v3933
      %v3936 = vshrl.u32 %v3905, 16
      %v3938 = vrot.slane %v3936, 1
      %v3939 = vshll.u32 %v3905, 16
      %v3941 = vrot.slane %v3939, 2
      %v3942 = vor.u32 %v3938, %v3941
      %v3943 = vsel %vm3926, %v3934, %v3942
      %v3945 = vshrl.u32 %v3906, 16
      %v3947 = vrot.slane %v3945, 1
      %v3948 = vshll.u32 %v3906, 16
      %v3950 = vrot.slane %v3948, 2
      %v3951 = vor.u32 %v3947, %v3950
      %v3952 = vsel %vm3926, %v3942, %v3951
      %v3954 = vshrl.u32 %v3907, 16
      %v3956 = vrot.slane %v3954, 1
      %v3957 = vshll.u32 %v3907, 16
      %v3959 = vrot.slane %v3957, 2
      %v3960 = vor.u32 %v3956, %v3959
      %v3961 = vsel %vm3926, %v3951, %v3960
      %v3963 = vshrl.u32 %v3908, 16
      %v3965 = vrot.slane %v3963, 1
      %v3966 = vshll.u32 %v3908, 16
      %v3968 = vrot.slane %v3966, 2
      %v3969 = vor.u32 %v3965, %v3968
      %v3970 = vsel %vm3926, %v3960, %v3969
      %v3972 = vshrl.u32 %v3909, 16
      %v3974 = vrot.slane %v3972, 1
      %v3975 = vshll.u32 %v3909, 16
      %v3977 = vrot.slane %v3975, 2
      %v3978 = vor.u32 %v3974, %v3977
      %v3979 = vsel %vm3926, %v3969, %v3978
      %v3981 = vshrl.u32 %v3910, 16
      %v3983 = vrot.slane %v3981, 1
      %v3984 = vshll.u32 %v3910, 16
      %v3986 = vrot.slane %v3984, 2
      %v3987 = vor.u32 %v3983, %v3986
      %v3988 = vsel %vm3926, %v3978, %v3987
      %v3990 = vshrl.u32 %v3911, 16
      %v3992 = vrot.slane %v3990, 1
      %v3993 = vshll.u32 %v3911, 16
      %v3995 = vrot.slane %v3993, 2
      %v3996 = vor.u32 %v3992, %v3995
      %v3997 = vsel %vm3926, %v3987, %v3996
      %v3999 = vshrl.u32 %v3912, 16
      %v4001 = vrot.slane %v3999, 1
      %v4002 = vshll.u32 %v3912, 16
      %v4004 = vrot.slane %v4002, 2
      %v4005 = vor.u32 %v4001, %v4004
      %v4006 = vsel %vm3926, %v3996, %v4005
      %v4008 = vshrl.u32 %v3913, 16
      %v4010 = vrot.slane %v4008, 1
      %v4011 = vshll.u32 %v3913, 16
      %v4013 = vrot.slane %v4011, 2
      %v4014 = vor.u32 %v4010, %v4013
      %v4015 = vsel %vm3926, %v4005, %v4014
      %v4017 = vshrl.u32 %v3914, 16
      %v4019 = vrot.slane %v4017, 1
      %v4020 = vshll.u32 %v3914, 16
      %v4022 = vrot.slane %v4020, 2
      %v4023 = vor.u32 %v4019, %v4022
      %v4024 = vsel %vm3926, %v4014, %v4023
      %v4026 = vshrl.u32 %v3915, 16
      %v4028 = vrot.slane %v4026, 1
      %v4029 = vshll.u32 %v3915, 16
      %v4031 = vrot.slane %v4029, 2
      %v4032 = vor.u32 %v4028, %v4031
      %v4033 = vsel %vm3926, %v4023, %v4032
      %v4035 = vshrl.u32 %v3916, 16
      %v4037 = vrot.slane %v4035, 1
      %v4038 = vshll.u32 %v3916, 16
      %v4040 = vrot.slane %v4038, 2
      %v4041 = vor.u32 %v4037, %v4040
      %v4042 = vsel %vm3926, %v4032, %v4041
      %v4051 = vunpack.c.l.b16 %v3918
      %v4052 = vunpack.c.l.b16 %v3919
      %v4053 = vunpack.c.l.b16 %v3920
      %v4054 = vunpack.c.l.b16 %v3921
      %v4055 = vunpack.c.l.b16 %v3922
      %v4056 = vunpack.c.l.b16 %v3923
      %v4057 = vunpack.c.l.b16 %v3924
      %v4058 = vunpack.c.l.b16 %v3925
      %v4059 = vpack.c.b16 %v4052, %v4051
      %v4060 = vpack.c.b16 %v4054, %v4053
      %v4061 = vpack.c.b16 %v4056, %v4055
      %v4062 = vpack.c.b16 %v4058, %v4057
      %v4068 = vsel %vm1876, %v3943, 0
      %v4071 = vsel %vm1876, %v3952, 0
      %v4074 = vsel %vm1876, %v3961, 0
      %v4077 = vsel %vm1876, %v3970, 0
      %v4080 = vsel %vm1876, %v3979, 0
      %v4083 = vsel %vm1876, %v3988, 0
      %v4086 = vsel %vm1876, %v3997, 0
      %v4089 = vsel %vm1876, %v4006, 0
      %v4092 = vsel %vm1876, %v4015, 0
      %v4095 = vsel %vm1876, %v4024, 0
      %v4098 = vsel %vm1876, %v4033, 0
      %v4101 = vsel %vm1876, %v4042, 0
      %v4104 = vsel %vm1876, %v4041, 0
      %4106 = vmatpush.bf16.msra.mxu0 0
      %4107 = vmatpush.bf16.msra.mxu0 0
      %4108 = vmatpush.bf16.msra.mxu0 0
      %4109 = vmatpush.bf16.msra.mxu0 0
      %4110 = vmatpush.bf16.msra.mxu0 %v4062
      %4111 = vmatpush.bf16.msra.mxu0 %v4061
      %4112 = vmatpush.bf16.msra.mxu0 %v4060
      %4113 = vmatpush.bf16.msra.mxu0 %v4059
      %4114 = vmatmul.bf16.gmra.mxu0 %v4068
      %v4115 = vpop.f32.mrf.mxu0
      %v4116 = vadd.f32 0.0, %v4115
      %v4117 = vpop.f32.mrf.mxu0
      %v4118 = vadd.f32 0.0, %v4117
      %4119 = vmatmul.bf16.gmra.mxu0 %v4071
      %v4120 = vpop.f32.mrf.mxu0
      %v4121 = vadd.f32 0.0, %v4120
      %v4122 = vpop.f32.mrf.mxu0
      %v4123 = vadd.f32 0.0, %v4122
      %4124 = vmatmul.bf16.gmra.mxu0 %v4074
      %v4125 = vpop.f32.mrf.mxu0
      %v4126 = vadd.f32 0.0, %v4125
      %v4127 = vpop.f32.mrf.mxu0
      %v4128 = vadd.f32 0.0, %v4127
      %4129 = vmatmul.bf16.gmra.mxu0 %v4077
      %v4130 = vpop.f32.mrf.mxu0
      %v4131 = vadd.f32 0.0, %v4130
      %v4132 = vpop.f32.mrf.mxu0
      %v4133 = vadd.f32 0.0, %v4132
      %4134 = vmatmul.bf16.gmra.mxu0 %v4080
      %v4135 = vpop.f32.mrf.mxu0
      %v4136 = vadd.f32 0.0, %v4135
      %v4137 = vpop.f32.mrf.mxu0
      %v4138 = vadd.f32 0.0, %v4137
      %4139 = vmatmul.bf16.gmra.mxu0 %v4083
      %v4140 = vpop.f32.mrf.mxu0
      %v4141 = vadd.f32 0.0, %v4140
      %v4142 = vpop.f32.mrf.mxu0
      %v4143 = vadd.f32 0.0, %v4142
      %4144 = vmatmul.bf16.gmra.mxu0 %v4086
      %v4145 = vpop.f32.mrf.mxu0
      %v4146 = vadd.f32 0.0, %v4145
      %v4147 = vpop.f32.mrf.mxu0
      %v4148 = vadd.f32 0.0, %v4147
      %4149 = vmatmul.bf16.gmra.mxu0 %v4089
      %v4150 = vpop.f32.mrf.mxu0
      %v4151 = vadd.f32 0.0, %v4150
      %v4152 = vpop.f32.mrf.mxu0
      %v4153 = vadd.f32 0.0, %v4152
      %4154 = vmatmul.bf16.gmra.mxu0 %v4092
      %v4155 = vpop.f32.mrf.mxu0
      %v4156 = vadd.f32 0.0, %v4155
      %v4157 = vpop.f32.mrf.mxu0
      %v4158 = vadd.f32 0.0, %v4157
      %4159 = vmatmul.bf16.gmra.mxu0 %v4095
      %v4160 = vpop.f32.mrf.mxu0
      %v4161 = vadd.f32 0.0, %v4160
      %v4162 = vpop.f32.mrf.mxu0
      %v4163 = vadd.f32 0.0, %v4162
      %4164 = vmatmul.bf16.gmra.mxu0 %v4098
      %v4165 = vpop.f32.mrf.mxu0
      %v4166 = vadd.f32 0.0, %v4165
      %v4167 = vpop.f32.mrf.mxu0
      %v4168 = vadd.f32 0.0, %v4167
      %4169 = vmatmul.bf16.gmra.mxu0 %v4101
      %v4170 = vpop.f32.mrf.mxu0
      %v4171 = vadd.f32 0.0, %v4170
      %v4172 = vpop.f32.mrf.mxu0
      %v4173 = vadd.f32 0.0, %v4172
      %4174 = vmatmul.bf16.gmra.mxu0 %v4104
      %v4175 = vpop.f32.mrf.mxu0
      %v4176 = vadd.f32 0.0, %v4175
      %v4177 = vpop.f32.mrf.mxu0
      %4178 = vdwg.mxu0
      %v4179 = vadd.f32 %v3738, %v4116
      %v4180 = vadd.f32 %v3740, %v4118
      %v4181 = vadd.f32 %v3743, %v4121
      %v4182 = vadd.f32 %v3745, %v4123
      %v4183 = vadd.f32 %v3748, %v4126
      %v4184 = vadd.f32 %v3750, %v4128
      %v4185 = vadd.f32 %v3753, %v4131
      %v4186 = vadd.f32 %v3755, %v4133
      %v4187 = vadd.f32 %v3758, %v4136
      %v4188 = vadd.f32 %v3760, %v4138
      %v4189 = vadd.f32 %v3763, %v4141
      %v4190 = vadd.f32 %v3765, %v4143
      %v4191 = vadd.f32 %v3768, %v4146
      %v4192 = vadd.f32 %v3770, %v4148
      %v4193 = vadd.f32 %v3773, %v4151
      %v4194 = vadd.f32 %v3775, %v4153
      %v4195 = vadd.f32 %v3778, %v4156
      %v4196 = vadd.f32 %v3780, %v4158
      %v4197 = vadd.f32 %v3783, %v4161
      %v4198 = vadd.f32 %v3785, %v4163
      %v4199 = vadd.f32 %v3788, %v4166
      %v4200 = vadd.f32 %v3790, %v4168
      %v4201 = vadd.f32 %v3793, %v4171
      %v4202 = vadd.f32 %v3795, %v4173
      %v4203 = vadd.f32 %v3798, %v4176
      %v4204 = vld [vmem:[#allocation3 + $0x4] sm:$0x8]
      %v4205 = vld [vmem:[#allocation3 + $0x8] sm:$0xf]
      %v4206 = vld [vmem:[#allocation3 + $0xc] sm:$0xf]
      %v4207 = vld [vmem:[#allocation3 + $0x10] sm:$0xf]
      %v4208 = vld [vmem:[#allocation3 + $0x14] sm:$0xf]
      %v4209 = vld [vmem:[#allocation3 + $0x18] sm:$0xf]
      %v4210 = vld [vmem:[#allocation3 + $0x1c] sm:$0xf]
      %v4211 = vld [vmem:[#allocation3 + $0x20] sm:$0xf]
      %v4212 = vld [vmem:[#allocation3 + $0x24] sm:$0xf]
      %v4213 = vld [vmem:[#allocation3 + $0x28] sm:$0xf]
      %v4214 = vld [vmem:[#allocation3 + $0x2c] sm:$0xf]
      %v4215 = vld [vmem:[#allocation3 + $0x30] sm:$0xf]
      %v4216 = vld [vmem:[#allocation3 + $0x34] sm:$0xf]
      %v4217 = vld [vmem:[#allocation3 + $0x38] sm:$0xf]
      %v4218 = vld [vmem:[#allocation3 + $0x3c] sm:$0xf]
      %v4219 = vld [vmem:[#allocation3 + $0x40] sm:$0xf]
      %v4220 = vld [vmem:[#allocation3 + $0x44] sm:$0xf]
      %v4221 = vld [vmem:[#allocation3 + $0x48] sm:$0xf]
      %v4222 = vld [vmem:[#allocation3 + $0x4c] sm:$0xf]
      %v4223 = vld [vmem:[#allocation3 + $0x50] sm:$0xf]
      %v4224 = vld [vmem:[#allocation3 + $0x54] sm:$0xf]
      %v4225 = vld [vmem:[#allocation3 + $0x58] sm:$0xf]
      %v4226 = vld [vmem:[#allocation3 + $0x5c] sm:$0xf]
      %v4227 = vld [vmem:[#allocation3 + $0x60] sm:$0xf]
      %v4228 = vld [vmem:[#allocation3 + $0x64] sm:$0xf]
      %v4229 = vld [vmem:[#allocation3 + $0x68] sm:$0x3]
      %v4230 = vunpack.c.l.bf16 %v4204
      %v4231 = vunpack.c.l.bf16 %v4205
      %v4232 = vunpack.c.l.bf16 %v4206
      %v4233 = vunpack.c.l.bf16 %v4207
      %v4234 = vunpack.c.l.bf16 %v4208
      %v4235 = vunpack.c.l.bf16 %v4209
      %v4236 = vunpack.c.l.bf16 %v4210
      %v4237 = vunpack.c.l.bf16 %v4211
      %v4238 = vunpack.c.l.bf16 %v4212
      %v4239 = vunpack.c.l.bf16 %v4213
      %v4240 = vunpack.c.l.bf16 %v4214
      %v4241 = vunpack.c.l.bf16 %v4215
      %v4242 = vunpack.c.l.bf16 %v4216
      %v4243 = vunpack.c.l.bf16 %v4217
      %v4244 = vunpack.c.l.bf16 %v4218
      %v4245 = vunpack.c.l.bf16 %v4219
      %v4246 = vunpack.c.l.bf16 %v4220
      %v4247 = vunpack.c.l.bf16 %v4221
      %v4248 = vunpack.c.l.bf16 %v4222
      %v4249 = vunpack.c.l.bf16 %v4223
      %v4250 = vunpack.c.l.bf16 %v4224
      %v4251 = vunpack.c.l.bf16 %v4225
      %v4252 = vunpack.c.l.bf16 %v4226
      %v4253 = vunpack.c.l.bf16 %v4227
      %v4254 = vunpack.c.l.bf16 %v4228
      %v4255 = vunpack.c.l.bf16 %v4229
      %v4256 = vrot.slane %v3157, 1
      %v4257 = vrot.slane %v3158, 1
      %v4258 = vsel %vm1615, %v4256, %v4257
      %v4259 = vrot.slane %v3159, 1
      %v4260 = vsel %vm1615, %v4257, %v4259
      %v4261 = vrot.slane %v3160, 1
      %v4262 = vsel %vm1615, %v4259, %v4261
      %v4263 = vrot.slane %v3161, 1
      %v4264 = vsel %vm1615, %v4261, %v4263
      %v4265 = vrot.slane %v3162, 1
      %v4266 = vsel %vm1615, %v4263, %v4265
      %v4267 = vrot.slane %v3163, 1
      %v4268 = vsel %vm1615, %v4265, %v4267
      %v4269 = vrot.slane %v3164, 1
      %v4270 = vsel %vm1615, %v4267, %v4269
      %v4271 = vrot.slane %v3165, 1
      %v4272 = vsel %vm1615, %v4269, %v4271
      %v4273 = vrot.slane %v3166, 1
      %v4274 = vsel %vm1615, %v4271, %v4273
      %v4275 = vrot.slane %v3167, 1
      %v4276 = vsel %vm1615, %v4273, %v4275
      %v4277 = vrot.slane %v3168, 1
      %v4278 = vsel %vm1615, %v4275, %v4277
      %v4279 = vrot.slane %v3169, 1
      %v4280 = vsel %vm1615, %v4277, %v4279
      %v4281 = vrot.slane %v3170, 1
      %v4282 = vsel %vm1615, %v4279, %v4281
      %v4283 = vrot.slane %v3171, 1
      %v4284 = vsel %vm1615, %v4281, %v4283
      %v4285 = vrot.slane %v3172, 1
      %v4286 = vsel %vm1615, %v4283, %v4285
      %v4287 = vrot.slane %v3173, 1
      %v4288 = vsel %vm1615, %v4285, %v4287
      %v4289 = vrot.slane %v3174, 1
      %v4290 = vsel %vm1615, %v4287, %v4289
      %v4291 = vrot.slane %v3175, 1
      %v4292 = vsel %vm1615, %v4289, %v4291
      %v4293 = vrot.slane %v3176, 1
      %v4294 = vsel %vm1615, %v4291, %v4293
      %v4295 = vrot.slane %v3177, 1
      %v4296 = vsel %vm1615, %v4293, %v4295
      %v4297 = vrot.slane %v3178, 1
      %v4298 = vsel %vm1615, %v4295, %v4297
      %v4299 = vrot.slane %v3179, 1
      %v4300 = vsel %vm1615, %v4297, %v4299
      %v4301 = vrot.slane %v3180, 1
      %v4302 = vsel %vm1615, %v4299, %v4301
      %v4303 = vrot.slane %v3181, 1
      %v4304 = vsel %vm1615, %v4301, %v4303
      %v4331 = vmul.f32 %v4230, %v4256
      %v4332 = vmul.f32 %v4231, %v4258
      %v4333 = vmul.f32 %v4232, %v4260
      %v4334 = vmul.f32 %v4233, %v4262
      %v4335 = vmul.f32 %v4234, %v4264
      %v4336 = vmul.f32 %v4235, %v4266
      %v4337 = vmul.f32 %v4236, %v4268
      %v4338 = vmul.f32 %v4237, %v4270
      %v4339 = vmul.f32 %v4238, %v4272
      %v4340 = vmul.f32 %v4239, %v4274
      %v4341 = vmul.f32 %v4240, %v4276
      %v4342 = vmul.f32 %v4241, %v4278
      %v4343 = vmul.f32 %v4242, %v4280
      %v4344 = vmul.f32 %v4243, %v4282
      %v4345 = vmul.f32 %v4244, %v4284
      %v4346 = vmul.f32 %v4245, %v4286
      %v4347 = vmul.f32 %v4246, %v4288
      %v4348 = vmul.f32 %v4247, %v4290
      %v4349 = vmul.f32 %v4248, %v4292
      %v4350 = vmul.f32 %v4249, %v4294
      %v4351 = vmul.f32 %v4250, %v4296
      %v4352 = vmul.f32 %v4251, %v4298
      %v4353 = vmul.f32 %v4252, %v4300
      %v4354 = vmul.f32 %v4253, %v4302
      %v4355 = vmul.f32 %v4254, %v4304
      %v4356 = vmul.f32 %v4255, %v4303
      %v4357 = vpack.c.bf16 %v4332, %v4331
      %v4358 = vpack.c.bf16 %v4334, %v4333
      %v4359 = vpack.c.bf16 %v4336, %v4335
      %v4360 = vpack.c.bf16 %v4338, %v4337
      %v4361 = vpack.c.bf16 %v4340, %v4339
      %v4362 = vpack.c.bf16 %v4342, %v4341
      %v4363 = vpack.c.bf16 %v4344, %v4343
      %v4364 = vpack.c.bf16 %v4346, %v4345
      %v4365 = vpack.c.bf16 %v4348, %v4347
      %v4366 = vpack.c.bf16 %v4350, %v4349
      %v4367 = vpack.c.bf16 %v4352, %v4351
      %v4368 = vpack.c.bf16 %v4354, %v4353
      %v4369 = vpack.c.bf16 %v4356, %v4355
      %s4370 = scalar_lea.vmem %s3, 96
      %v4371 = vld [vmem:[%s4370] sm:$0xf]
      %v4372 = vld [vmem:[%s4370 + $0x4] sm:$0xf]
      %v4373 = vld [vmem:[%s4370 + $0x8] sm:$0xf]
      %v4374 = vld [vmem:[%s4370 + $0xc] sm:$0xf]
      %v4375 = vld [vmem:[%s4370 + $0x10] sm:$0xf]
      %v4376 = vld [vmem:[%s4370 + $0x14] sm:$0xf]
      %v4377 = vld [vmem:[%s4370 + $0x18] sm:$0xf]
      %v4378 = vld [vmem:[%s4370 + $0x1c] sm:$0xf]
      %v4380 = vshrl.u32 %v4357, 16
      %v4382 = vrot.slane %v4380, 3
      %v4383 = vshll.u32 %v4357, 16
      %v4385 = vrot.slane %v4383, 4
      %v4386 = vor.u32 %v4382, %v4385
      %v4388 = vshrl.u32 %v4358, 16
      %v4390 = vrot.slane %v4388, 3
      %v4391 = vshll.u32 %v4358, 16
      %v4393 = vrot.slane %v4391, 4
      %v4394 = vor.u32 %v4390, %v4393
      %v4395 = vsel %vm2729, %v4386, %v4394
      %v4397 = vshrl.u32 %v4359, 16
      %v4399 = vrot.slane %v4397, 3
      %v4400 = vshll.u32 %v4359, 16
      %v4402 = vrot.slane %v4400, 4
      %v4403 = vor.u32 %v4399, %v4402
      %v4404 = vsel %vm2729, %v4394, %v4403
      %v4406 = vshrl.u32 %v4360, 16
      %v4408 = vrot.slane %v4406, 3
      %v4409 = vshll.u32 %v4360, 16
      %v4411 = vrot.slane %v4409, 4
      %v4412 = vor.u32 %v4408, %v4411
      %v4413 = vsel %vm2729, %v4403, %v4412
      %v4415 = vshrl.u32 %v4361, 16
      %v4417 = vrot.slane %v4415, 3
      %v4418 = vshll.u32 %v4361, 16
      %v4420 = vrot.slane %v4418, 4
      %v4421 = vor.u32 %v4417, %v4420
      %v4422 = vsel %vm2729, %v4412, %v4421
      %v4424 = vshrl.u32 %v4362, 16
      %v4426 = vrot.slane %v4424, 3
      %v4427 = vshll.u32 %v4362, 16
      %v4429 = vrot.slane %v4427, 4
      %v4430 = vor.u32 %v4426, %v4429
      %v4431 = vsel %vm2729, %v4421, %v4430
      %v4433 = vshrl.u32 %v4363, 16
      %v4435 = vrot.slane %v4433, 3
      %v4436 = vshll.u32 %v4363, 16
      %v4438 = vrot.slane %v4436, 4
      %v4439 = vor.u32 %v4435, %v4438
      %v4440 = vsel %vm2729, %v4430, %v4439
      %v4442 = vshrl.u32 %v4364, 16
      %v4444 = vrot.slane %v4442, 3
      %v4445 = vshll.u32 %v4364, 16
      %v4447 = vrot.slane %v4445, 4
      %v4448 = vor.u32 %v4444, %v4447
      %v4449 = vsel %vm2729, %v4439, %v4448
      %v4451 = vshrl.u32 %v4365, 16
      %v4453 = vrot.slane %v4451, 3
      %v4454 = vshll.u32 %v4365, 16
      %v4456 = vrot.slane %v4454, 4
      %v4457 = vor.u32 %v4453, %v4456
      %v4458 = vsel %vm2729, %v4448, %v4457
      %v4460 = vshrl.u32 %v4366, 16
      %v4462 = vrot.slane %v4460, 3
      %v4463 = vshll.u32 %v4366, 16
      %v4465 = vrot.slane %v4463, 4
      %v4466 = vor.u32 %v4462, %v4465
      %v4467 = vsel %vm2729, %v4457, %v4466
      %v4469 = vshrl.u32 %v4367, 16
      %v4471 = vrot.slane %v4469, 3
      %v4472 = vshll.u32 %v4367, 16
      %v4474 = vrot.slane %v4472, 4
      %v4475 = vor.u32 %v4471, %v4474
      %v4476 = vsel %vm2729, %v4466, %v4475
      %v4478 = vshrl.u32 %v4368, 16
      %v4480 = vrot.slane %v4478, 3
      %v4481 = vshll.u32 %v4368, 16
      %v4483 = vrot.slane %v4481, 4
      %v4484 = vor.u32 %v4480, %v4483
      %v4485 = vsel %vm2729, %v4475, %v4484
      %v4487 = vshrl.u32 %v4369, 16
      %v4489 = vrot.slane %v4487, 3
      %v4490 = vshll.u32 %v4369, 16
      %v4492 = vrot.slane %v4490, 4
      %v4493 = vor.u32 %v4489, %v4492
      %v4494 = vsel %vm2729, %v4484, %v4493
      %v4503 = vunpack.c.l.b16 %v4371
      %v4504 = vunpack.c.l.b16 %v4372
      %v4505 = vunpack.c.l.b16 %v4373
      %v4506 = vunpack.c.l.b16 %v4374
      %v4507 = vunpack.c.l.b16 %v4375
      %v4508 = vunpack.c.l.b16 %v4376
      %v4509 = vunpack.c.l.b16 %v4377
      %v4510 = vunpack.c.l.b16 %v4378
      %v4511 = vpack.c.b16 %v4504, %v4503
      %v4512 = vpack.c.b16 %v4506, %v4505
      %v4513 = vpack.c.b16 %v4508, %v4507
      %v4514 = vpack.c.b16 %v4510, %v4509
      %v4520 = vsel %vm1876, %v4395, 0
      %v4523 = vsel %vm1876, %v4404, 0
      %v4526 = vsel %vm1876, %v4413, 0
      %v4529 = vsel %vm1876, %v4422, 0
      %v4532 = vsel %vm1876, %v4431, 0
      %v4535 = vsel %vm1876, %v4440, 0
      %v4538 = vsel %vm1876, %v4449, 0
      %v4541 = vsel %vm1876, %v4458, 0
      %v4544 = vsel %vm1876, %v4467, 0
      %v4547 = vsel %vm1876, %v4476, 0
      %v4550 = vsel %vm1876, %v4485, 0
      %v4553 = vsel %vm1876, %v4494, 0
      %v4556 = vsel %vm1876, %v4493, 0
      %4558 = vmatpush.bf16.msra.mxu0 0
      %4559 = vmatpush.bf16.msra.mxu0 0
      %4560 = vmatpush.bf16.msra.mxu0 0
      %4561 = vmatpush.bf16.msra.mxu0 0
      %4562 = vmatpush.bf16.msra.mxu0 %v4514
      %4563 = vmatpush.bf16.msra.mxu0 %v4513
      %4564 = vmatpush.bf16.msra.mxu0 %v4512
      %4565 = vmatpush.bf16.msra.mxu0 %v4511
      %4566 = vmatmul.bf16.gmra.mxu0 %v4520
      %v4567 = vpop.f32.mrf.mxu0
      %v4568 = vadd.f32 0.0, %v4567
      %v4569 = vpop.f32.mrf.mxu0
      %v4570 = vadd.f32 0.0, %v4569
      %4571 = vmatmul.bf16.gmra.mxu0 %v4523
      %v4572 = vpop.f32.mrf.mxu0
      %v4573 = vadd.f32 0.0, %v4572
      %v4574 = vpop.f32.mrf.mxu0
      %v4575 = vadd.f32 0.0, %v4574
      %4576 = vmatmul.bf16.gmra.mxu0 %v4526
      %v4577 = vpop.f32.mrf.mxu0
      %v4578 = vadd.f32 0.0, %v4577
      %v4579 = vpop.f32.mrf.mxu0
      %v4580 = vadd.f32 0.0, %v4579
      %4581 = vmatmul.bf16.gmra.mxu0 %v4529
      %v4582 = vpop.f32.mrf.mxu0
      %v4583 = vadd.f32 0.0, %v4582
      %v4584 = vpop.f32.mrf.mxu0
      %v4585 = vadd.f32 0.0, %v4584
      %4586 = vmatmul.bf16.gmra.mxu0 %v4532
      %v4587 = vpop.f32.mrf.mxu0
      %v4588 = vadd.f32 0.0, %v4587
      %v4589 = vpop.f32.mrf.mxu0
      %v4590 = vadd.f32 0.0, %v4589
      %4591 = vmatmul.bf16.gmra.mxu0 %v4535
      %v4592 = vpop.f32.mrf.mxu0
      %v4593 = vadd.f32 0.0, %v4592
      %v4594 = vpop.f32.mrf.mxu0
      %v4595 = vadd.f32 0.0, %v4594
      %4596 = vmatmul.bf16.gmra.mxu0 %v4538
      %v4597 = vpop.f32.mrf.mxu0
      %v4598 = vadd.f32 0.0, %v4597
      %v4599 = vpop.f32.mrf.mxu0
      %v4600 = vadd.f32 0.0, %v4599
      %4601 = vmatmul.bf16.gmra.mxu0 %v4541
      %v4602 = vpop.f32.mrf.mxu0
      %v4603 = vadd.f32 0.0, %v4602
      %v4604 = vpop.f32.mrf.mxu0
      %v4605 = vadd.f32 0.0, %v4604
      %4606 = vmatmul.bf16.gmra.mxu0 %v4544
      %v4607 = vpop.f32.mrf.mxu0
      %v4608 = vadd.f32 0.0, %v4607
      %v4609 = vpop.f32.mrf.mxu0
      %v4610 = vadd.f32 0.0, %v4609
      %4611 = vmatmul.bf16.gmra.mxu0 %v4547
      %v4612 = vpop.f32.mrf.mxu0
      %v4613 = vadd.f32 0.0, %v4612
      %v4614 = vpop.f32.mrf.mxu0
      %v4615 = vadd.f32 0.0, %v4614
      %4616 = vmatmul.bf16.gmra.mxu0 %v4550
      %v4617 = vpop.f32.mrf.mxu0
      %v4618 = vadd.f32 0.0, %v4617
      %v4619 = vpop.f32.mrf.mxu0
      %v4620 = vadd.f32 0.0, %v4619
      %4621 = vmatmul.bf16.gmra.mxu0 %v4553
      %v4622 = vpop.f32.mrf.mxu0
      %v4623 = vadd.f32 0.0, %v4622
      %v4624 = vpop.f32.mrf.mxu0
      %v4625 = vadd.f32 0.0, %v4624
      %4626 = vmatmul.bf16.gmra.mxu0 %v4556
      %v4627 = vpop.f32.mrf.mxu0
      %v4628 = vadd.f32 0.0, %v4627
      %v4629 = vpop.f32.mrf.mxu0
      %4630 = vdwg.mxu0
      %v4631 = vadd.f32 %v4179, %v4568
      %v4632 = vadd.f32 %v4180, %v4570
      %v4633 = vadd.f32 %v4181, %v4573
      %v4634 = vadd.f32 %v4182, %v4575
      %v4635 = vadd.f32 %v4183, %v4578
      %v4636 = vadd.f32 %v4184, %v4580
      %v4637 = vadd.f32 %v4185, %v4583
      %v4638 = vadd.f32 %v4186, %v4585
      %v4639 = vadd.f32 %v4187, %v4588
      %v4640 = vadd.f32 %v4188, %v4590
      %v4641 = vadd.f32 %v4189, %v4593
      %v4642 = vadd.f32 %v4190, %v4595
      %v4643 = vadd.f32 %v4191, %v4598
      %v4644 = vadd.f32 %v4192, %v4600
      %v4645 = vadd.f32 %v4193, %v4603
      %v4646 = vadd.f32 %v4194, %v4605
      %v4647 = vadd.f32 %v4195, %v4608
      %v4648 = vadd.f32 %v4196, %v4610
      %v4649 = vadd.f32 %v4197, %v4613
      %v4650 = vadd.f32 %v4198, %v4615
      %v4651 = vadd.f32 %v4199, %v4618
      %v4652 = vadd.f32 %v4200, %v4620
      %v4653 = vadd.f32 %v4201, %v4623
      %v4654 = vadd.f32 %v4202, %v4625
      %v4655 = vadd.f32 %v4203, %v4628
      %s4656 = scalar_lea.vmem %s3, 128
      %v4657 = vld [vmem:[%s4656] sm:$0xf]
      %v4658 = vld [vmem:[%s4656 + $0x4] sm:$0xf]
      %v4659 = vld [vmem:[%s4656 + $0x8] sm:$0xf]
      %v4660 = vld [vmem:[%s4656 + $0xc] sm:$0xf]
      %v4661 = vld [vmem:[%s4656 + $0x10] sm:$0xf]
      %v4662 = vld [vmem:[%s4656 + $0x14] sm:$0xf]
      %v4663 = vld [vmem:[%s4656 + $0x18] sm:$0xf]
      %v4664 = vld [vmem:[%s4656 + $0x1c] sm:$0xf]
      %v4690 = vunpack.c.l.b16 %v4205
      %v4691 = vunpack.c.l.b16 %v4206
      %v4692 = vunpack.c.l.b16 %v4207
      %v4693 = vunpack.c.l.b16 %v4208
      %v4694 = vunpack.c.l.b16 %v4209
      %v4695 = vunpack.c.l.b16 %v4210
      %v4696 = vunpack.c.l.b16 %v4211
      %v4697 = vunpack.c.l.b16 %v4212
      %v4698 = vunpack.c.l.b16 %v4213
      %v4699 = vunpack.c.l.b16 %v4214
      %v4700 = vunpack.c.l.b16 %v4215
      %v4701 = vunpack.c.l.b16 %v4216
      %v4702 = vunpack.c.l.b16 %v4217
      %v4703 = vunpack.c.l.b16 %v4218
      %v4704 = vunpack.c.l.b16 %v4219
      %v4705 = vunpack.c.l.b16 %v4220
      %v4706 = vunpack.c.l.b16 %v4221
      %v4707 = vunpack.c.l.b16 %v4222
      %v4708 = vunpack.c.l.b16 %v4223
      %v4709 = vunpack.c.l.b16 %v4224
      %v4710 = vunpack.c.l.b16 %v4225
      %v4711 = vunpack.c.l.b16 %v4226
      %v4712 = vunpack.c.l.b16 %v4227
      %v4713 = vunpack.c.l.b16 %v4228
      %v4714 = vunpack.c.l.b16 %v4229
      %v4715 = vpack.c.b16 %v4691, %v4690
      %v4716 = vpack.c.b16 %v4693, %v4692
      %v4717 = vpack.c.b16 %v4695, %v4694
      %v4718 = vpack.c.b16 %v4697, %v4696
      %v4719 = vpack.c.b16 %v4699, %v4698
      %v4720 = vpack.c.b16 %v4701, %v4700
      %v4721 = vpack.c.b16 %v4703, %v4702
      %v4722 = vpack.c.b16 %v4705, %v4704
      %v4723 = vpack.c.b16 %v4707, %v4706
      %v4724 = vpack.c.b16 %v4709, %v4708
      %v4725 = vpack.c.b16 %v4711, %v4710
      %v4726 = vpack.c.b16 %v4713, %v4712
      %v4727 = vpack.c.b16 %v4714, %v4714
      %v4736 = vunpack.c.l.b16 %v4657
      %v4737 = vunpack.c.l.b16 %v4658
      %v4738 = vunpack.c.l.b16 %v4659
      %v4739 = vunpack.c.l.b16 %v4660
      %v4740 = vunpack.c.l.b16 %v4661
      %v4741 = vunpack.c.l.b16 %v4662
      %v4742 = vunpack.c.l.b16 %v4663
      %v4743 = vunpack.c.l.b16 %v4664
      %v4744 = vpack.c.b16 %v4737, %v4736
      %v4745 = vpack.c.b16 %v4739, %v4738
      %v4746 = vpack.c.b16 %v4741, %v4740
      %v4747 = vpack.c.b16 %v4743, %v4742
      %v4753 = vsel %vm1876, %v4715, 0
      %v4756 = vsel %vm1876, %v4716, 0
      %v4759 = vsel %vm1876, %v4717, 0
      %v4762 = vsel %vm1876, %v4718, 0
      %v4765 = vsel %vm1876, %v4719, 0
      %v4768 = vsel %vm1876, %v4720, 0
      %v4771 = vsel %vm1876, %v4721, 0
      %v4774 = vsel %vm1876, %v4722, 0
      %v4777 = vsel %vm1876, %v4723, 0
      %v4780 = vsel %vm1876, %v4724, 0
      %v4783 = vsel %vm1876, %v4725, 0
      %v4786 = vsel %vm1876, %v4726, 0
      %v4789 = vsel %vm1876, %v4727, 0
      %4791 = vmatpush.bf16.msra.mxu0 0
      %4792 = vmatpush.bf16.msra.mxu0 0
      %4793 = vmatpush.bf16.msra.mxu0 0
      %4794 = vmatpush.bf16.msra.mxu0 0
      %4795 = vmatpush.bf16.msra.mxu0 %v4747
      %4796 = vmatpush.bf16.msra.mxu0 %v4746
      %4797 = vmatpush.bf16.msra.mxu0 %v4745
      %4798 = vmatpush.bf16.msra.mxu0 %v4744
      %4799 = vmatmul.bf16.gmra.mxu0 %v4753
      %v4800 = vpop.f32.mrf.mxu0
      %v4801 = vadd.f32 0.0, %v4800
      %v4802 = vpop.f32.mrf.mxu0
      %v4803 = vadd.f32 0.0, %v4802
      %4804 = vmatmul.bf16.gmra.mxu0 %v4756
      %v4805 = vpop.f32.mrf.mxu0
      %v4806 = vadd.f32 0.0, %v4805
      %v4807 = vpop.f32.mrf.mxu0
      %v4808 = vadd.f32 0.0, %v4807
      %4809 = vmatmul.bf16.gmra.mxu0 %v4759
      %v4810 = vpop.f32.mrf.mxu0
      %v4811 = vadd.f32 0.0, %v4810
      %v4812 = vpop.f32.mrf.mxu0
      %v4813 = vadd.f32 0.0, %v4812
      %4814 = vmatmul.bf16.gmra.mxu0 %v4762
      %v4815 = vpop.f32.mrf.mxu0
      %v4816 = vadd.f32 0.0, %v4815
      %v4817 = vpop.f32.mrf.mxu0
      %v4818 = vadd.f32 0.0, %v4817
      %4819 = vmatmul.bf16.gmra.mxu0 %v4765
      %v4820 = vpop.f32.mrf.mxu0
      %v4821 = vadd.f32 0.0, %v4820
      %v4822 = vpop.f32.mrf.mxu0
      %v4823 = vadd.f32 0.0, %v4822
      %4824 = vmatmul.bf16.gmra.mxu0 %v4768
      %v4825 = vpop.f32.mrf.mxu0
      %v4826 = vadd.f32 0.0, %v4825
      %v4827 = vpop.f32.mrf.mxu0
      %v4828 = vadd.f32 0.0, %v4827
      %4829 = vmatmul.bf16.gmra.mxu0 %v4771
      %v4830 = vpop.f32.mrf.mxu0
      %v4831 = vadd.f32 0.0, %v4830
      %v4832 = vpop.f32.mrf.mxu0
      %v4833 = vadd.f32 0.0, %v4832
      %4834 = vmatmul.bf16.gmra.mxu0 %v4774
      %v4835 = vpop.f32.mrf.mxu0
      %v4836 = vadd.f32 0.0, %v4835
      %v4837 = vpop.f32.mrf.mxu0
      %v4838 = vadd.f32 0.0, %v4837
      %4839 = vmatmul.bf16.gmra.mxu0 %v4777
      %v4840 = vpop.f32.mrf.mxu0
      %v4841 = vadd.f32 0.0, %v4840
      %v4842 = vpop.f32.mrf.mxu0
      %v4843 = vadd.f32 0.0, %v4842
      %4844 = vmatmul.bf16.gmra.mxu0 %v4780
      %v4845 = vpop.f32.mrf.mxu0
      %v4846 = vadd.f32 0.0, %v4845
      %v4847 = vpop.f32.mrf.mxu0
      %v4848 = vadd.f32 0.0, %v4847
      %4849 = vmatmul.bf16.gmra.mxu0 %v4783
      %v4850 = vpop.f32.mrf.mxu0
      %v4851 = vadd.f32 0.0, %v4850
      %v4852 = vpop.f32.mrf.mxu0
      %v4853 = vadd.f32 0.0, %v4852
      %4854 = vmatmul.bf16.gmra.mxu0 %v4786
      %v4855 = vpop.f32.mrf.mxu0
      %v4856 = vadd.f32 0.0, %v4855
      %v4857 = vpop.f32.mrf.mxu0
      %v4858 = vadd.f32 0.0, %v4857
      %4859 = vmatmul.bf16.gmra.mxu0 %v4789
      %v4860 = vpop.f32.mrf.mxu0
      %v4861 = vadd.f32 0.0, %v4860
      %v4862 = vpop.f32.mrf.mxu0
      %4863 = vdwg.mxu0
      %v4864 = vadd.f32 %v4631, %v4801
      %v4865 = vadd.f32 %v4632, %v4803
      %v4866 = vadd.f32 %v4633, %v4806
      %v4867 = vadd.f32 %v4634, %v4808
      %v4868 = vadd.f32 %v4635, %v4811
      %v4869 = vadd.f32 %v4636, %v4813
      %v4870 = vadd.f32 %v4637, %v4816
      %v4871 = vadd.f32 %v4638, %v4818
      %v4872 = vadd.f32 %v4639, %v4821
      %v4873 = vadd.f32 %v4640, %v4823
      %v4874 = vadd.f32 %v4641, %v4826
      %v4875 = vadd.f32 %v4642, %v4828
      %v4876 = vadd.f32 %v4643, %v4831
      %v4877 = vadd.f32 %v4644, %v4833
      %v4878 = vadd.f32 %v4645, %v4836
      %v4879 = vadd.f32 %v4646, %v4838
      %v4880 = vadd.f32 %v4647, %v4841
      %v4881 = vadd.f32 %v4648, %v4843
      %v4882 = vadd.f32 %v4649, %v4846
      %v4883 = vadd.f32 %v4650, %v4848
      %v4884 = vadd.f32 %v4651, %v4851
      %v4885 = vadd.f32 %v4652, %v4853
      %v4886 = vadd.f32 %v4653, %v4856
      %v4887 = vadd.f32 %v4654, %v4858
      %v4888 = vadd.f32 %v4655, %v4861
      %v4889 = vld [vmem:[#allocation3 + $0x68] sm:$0x7]
      %v4890 = vunpack.c.l.bf16 %v4889
      %v4891 = vmul.f32 %v4231, %v1494
      %v4892 = vmul.f32 %v4232, %v1496
      %v4893 = vmul.f32 %v4233, %v1498
      %v4894 = vmul.f32 %v4234, %v1500
      %v4895 = vmul.f32 %v4235, %v1502
      %v4896 = vmul.f32 %v4236, %v1504
      %v4897 = vmul.f32 %v4237, %v1506
      %v4898 = vmul.f32 %v4238, %v1508
      %v4899 = vmul.f32 %v4239, %v1510
      %v4900 = vmul.f32 %v4240, %v1512
      %v4901 = vmul.f32 %v4241, %v1514
      %v4902 = vmul.f32 %v4242, %v1516
      %v4903 = vmul.f32 %v4243, %v1518
      %v4904 = vmul.f32 %v4244, %v1520
      %v4905 = vmul.f32 %v4245, %v1522
      %v4906 = vmul.f32 %v4246, %v1524
      %v4907 = vmul.f32 %v4247, %v1526
      %v4908 = vmul.f32 %v4248, %v1528
      %v4909 = vmul.f32 %v4249, %v1530
      %v4910 = vmul.f32 %v4250, %v1532
      %v4911 = vmul.f32 %v4251, %v1534
      %v4912 = vmul.f32 %v4252, %v1536
      %v4913 = vmul.f32 %v4253, %v1538
      %v4914 = vmul.f32 %v4254, %v1540
      %v4915 = vmul.f32 %v4890, %v1542
      %v4916 = vpack.c.bf16 %v4892, %v4891
      %v4917 = vpack.c.bf16 %v4894, %v4893
      %v4918 = vpack.c.bf16 %v4896, %v4895
      %v4919 = vpack.c.bf16 %v4898, %v4897
      %v4920 = vpack.c.bf16 %v4900, %v4899
      %v4921 = vpack.c.bf16 %v4902, %v4901
      %v4922 = vpack.c.bf16 %v4904, %v4903
      %v4923 = vpack.c.bf16 %v4906, %v4905
      %v4924 = vpack.c.bf16 %v4908, %v4907
      %v4925 = vpack.c.bf16 %v4910, %v4909
      %v4926 = vpack.c.bf16 %v4912, %v4911
      %v4927 = vpack.c.bf16 %v4914, %v4913
      %v4928 = vpack.c.bf16 %v4915, %v4915
      %s4929 = scalar_lea.vmem %s3, 160
      %v4930 = vld [vmem:[%s4929] sm:$0xf]
      %v4931 = vld [vmem:[%s4929 + $0x4] sm:$0xf]
      %v4932 = vld [vmem:[%s4929 + $0x8] sm:$0xf]
      %v4933 = vld [vmem:[%s4929 + $0xc] sm:$0xf]
      %v4934 = vld [vmem:[%s4929 + $0x10] sm:$0xf]
      %v4935 = vld [vmem:[%s4929 + $0x14] sm:$0xf]
      %v4936 = vld [vmem:[%s4929 + $0x18] sm:$0xf]
      %v4937 = vld [vmem:[%s4929 + $0x1c] sm:$0xf]
      %v4939 = vshrl.u32 %v4916, 16
      %v4941 = vshll.u32 %v4916, 16
      %v4943 = vrot.slane %v4941, 1
      %v4944 = vor.u32 %v4939, %v4943
      %v4946 = vshll.u32 %v4917, 16
      %v4948 = vrot.slane %v4946, 1
      %v4949 = vsel %vm1748, %v4944, %v4948
      %v4950 = vshrl.u32 %v4917, 16
      %v4952 = vor.u32 %v4950, %v4948
      %v4954 = vshll.u32 %v4918, 16
      %v4956 = vrot.slane %v4954, 1
      %v4957 = vsel %vm1748, %v4952, %v4956
      %v4958 = vshrl.u32 %v4918, 16
      %v4960 = vor.u32 %v4958, %v4956
      %v4962 = vshll.u32 %v4919, 16
      %v4964 = vrot.slane %v4962, 1
      %v4965 = vsel %vm1748, %v4960, %v4964
      %v4966 = vshrl.u32 %v4919, 16
      %v4968 = vor.u32 %v4966, %v4964
      %v4970 = vshll.u32 %v4920, 16
      %v4972 = vrot.slane %v4970, 1
      %v4973 = vsel %vm1748, %v4968, %v4972
      %v4974 = vshrl.u32 %v4920, 16
      %v4976 = vor.u32 %v4974, %v4972
      %v4978 = vshll.u32 %v4921, 16
      %v4980 = vrot.slane %v4978, 1
      %v4981 = vsel %vm1748, %v4976, %v4980
      %v4982 = vshrl.u32 %v4921, 16
      %v4984 = vor.u32 %v4982, %v4980
      %v4986 = vshll.u32 %v4922, 16
      %v4988 = vrot.slane %v4986, 1
      %v4989 = vsel %vm1748, %v4984, %v4988
      %v4990 = vshrl.u32 %v4922, 16
      %v4992 = vor.u32 %v4990, %v4988
      %v4994 = vshll.u32 %v4923, 16
      %v4996 = vrot.slane %v4994, 1
      %v4997 = vsel %vm1748, %v4992, %v4996
      %v4998 = vshrl.u32 %v4923, 16
      %v5000 = vor.u32 %v4998, %v4996
      %v5002 = vshll.u32 %v4924, 16
      %v5004 = vrot.slane %v5002, 1
      %v5005 = vsel %vm1748, %v5000, %v5004
      %v5006 = vshrl.u32 %v4924, 16
      %v5008 = vor.u32 %v5006, %v5004
      %v5010 = vshll.u32 %v4925, 16
      %v5012 = vrot.slane %v5010, 1
      %v5013 = vsel %vm1748, %v5008, %v5012
      %v5014 = vshrl.u32 %v4925, 16
      %v5016 = vor.u32 %v5014, %v5012
      %v5018 = vshll.u32 %v4926, 16
      %v5020 = vrot.slane %v5018, 1
      %v5021 = vsel %vm1748, %v5016, %v5020
      %v5022 = vshrl.u32 %v4926, 16
      %v5024 = vor.u32 %v5022, %v5020
      %v5026 = vshll.u32 %v4927, 16
      %v5028 = vrot.slane %v5026, 1
      %v5029 = vsel %vm1748, %v5024, %v5028
      %v5030 = vshrl.u32 %v4927, 16
      %v5032 = vor.u32 %v5030, %v5028
      %v5034 = vshll.u32 %v4928, 16
      %v5036 = vrot.slane %v5034, 1
      %v5037 = vsel %vm1748, %v5032, %v5036
      %v5038 = vshrl.u32 %v4928, 16
      %v5040 = vor.u32 %v5038, %v5036
      %v5049 = vunpack.c.l.b16 %v4930
      %v5050 = vunpack.c.l.b16 %v4931
      %v5051 = vunpack.c.l.b16 %v4932
      %v5052 = vunpack.c.l.b16 %v4933
      %v5053 = vunpack.c.l.b16 %v4934
      %v5054 = vunpack.c.l.b16 %v4935
      %v5055 = vunpack.c.l.b16 %v4936
      %v5056 = vunpack.c.l.b16 %v4937
      %v5057 = vpack.c.b16 %v5050, %v5049
      %v5058 = vpack.c.b16 %v5052, %v5051
      %v5059 = vpack.c.b16 %v5054, %v5053
      %v5060 = vpack.c.b16 %v5056, %v5055
      %v5066 = vsel %vm1876, %v4949, 0
      %v5069 = vsel %vm1876, %v4957, 0
      %v5072 = vsel %vm1876, %v4965, 0
      %v5075 = vsel %vm1876, %v4973, 0
      %v5078 = vsel %vm1876, %v4981, 0
      %v5081 = vsel %vm1876, %v4989, 0
      %v5084 = vsel %vm1876, %v4997, 0
      %v5087 = vsel %vm1876, %v5005, 0
      %v5090 = vsel %vm1876, %v5013, 0
      %v5093 = vsel %vm1876, %v5021, 0
      %v5096 = vsel %vm1876, %v5029, 0
      %v5099 = vsel %vm1876, %v5037, 0
      %v5102 = vsel %vm1876, %v5040, 0
      %5104 = vmatpush.bf16.msra.mxu0 0
      %5105 = vmatpush.bf16.msra.mxu0 0
      %5106 = vmatpush.bf16.msra.mxu0 0
      %5107 = vmatpush.bf16.msra.mxu0 0
      %5108 = vmatpush.bf16.msra.mxu0 %v5060
      %5109 = vmatpush.bf16.msra.mxu0 %v5059
      %5110 = vmatpush.bf16.msra.mxu0 %v5058
      %5111 = vmatpush.bf16.msra.mxu0 %v5057
      %5112 = vmatmul.bf16.gmra.mxu0 %v5066
      %v5113 = vpop.f32.mrf.mxu0
      %v5114 = vadd.f32 0.0, %v5113
      %v5115 = vpop.f32.mrf.mxu0
      %v5116 = vadd.f32 0.0, %v5115
      %5117 = vmatmul.bf16.gmra.mxu0 %v5069
      %v5118 = vpop.f32.mrf.mxu0
      %v5119 = vadd.f32 0.0, %v5118
      %v5120 = vpop.f32.mrf.mxu0
      %v5121 = vadd.f32 0.0, %v5120
      %5122 = vmatmul.bf16.gmra.mxu0 %v5072
      %v5123 = vpop.f32.mrf.mxu0
      %v5124 = vadd.f32 0.0, %v5123
      %v5125 = vpop.f32.mrf.mxu0
      %v5126 = vadd.f32 0.0, %v5125
      %5127 = vmatmul.bf16.gmra.mxu0 %v5075
      %v5128 = vpop.f32.mrf.mxu0
      %v5129 = vadd.f32 0.0, %v5128
      %v5130 = vpop.f32.mrf.mxu0
      %v5131 = vadd.f32 0.0, %v5130
      %5132 = vmatmul.bf16.gmra.mxu0 %v5078
      %v5133 = vpop.f32.mrf.mxu0
      %v5134 = vadd.f32 0.0, %v5133
      %v5135 = vpop.f32.mrf.mxu0
      %v5136 = vadd.f32 0.0, %v5135
      %5137 = vmatmul.bf16.gmra.mxu0 %v5081
      %v5138 = vpop.f32.mrf.mxu0
      %v5139 = vadd.f32 0.0, %v5138
      %v5140 = vpop.f32.mrf.mxu0
      %v5141 = vadd.f32 0.0, %v5140
      %5142 = vmatmul.bf16.gmra.mxu0 %v5084
      %v5143 = vpop.f32.mrf.mxu0
      %v5144 = vadd.f32 0.0, %v5143
      %v5145 = vpop.f32.mrf.mxu0
      %v5146 = vadd.f32 0.0, %v5145
      %5147 = vmatmul.bf16.gmra.mxu0 %v5087
      %v5148 = vpop.f32.mrf.mxu0
      %v5149 = vadd.f32 0.0, %v5148
      %v5150 = vpop.f32.mrf.mxu0
      %v5151 = vadd.f32 0.0, %v5150
      %5152 = vmatmul.bf16.gmra.mxu0 %v5090
      %v5153 = vpop.f32.mrf.mxu0
      %v5154 = vadd.f32 0.0, %v5153
      %v5155 = vpop.f32.mrf.mxu0
      %v5156 = vadd.f32 0.0, %v5155
      %5157 = vmatmul.bf16.gmra.mxu0 %v5093
      %v5158 = vpop.f32.mrf.mxu0
      %v5159 = vadd.f32 0.0, %v5158
      %v5160 = vpop.f32.mrf.mxu0
      %v5161 = vadd.f32 0.0, %v5160
      %5162 = vmatmul.bf16.gmra.mxu0 %v5096
      %v5163 = vpop.f32.mrf.mxu0
      %v5164 = vadd.f32 0.0, %v5163
      %v5165 = vpop.f32.mrf.mxu0
      %v5166 = vadd.f32 0.0, %v5165
      %5167 = vmatmul.bf16.gmra.mxu0 %v5099
      %v5168 = vpop.f32.mrf.mxu0
      %v5169 = vadd.f32 0.0, %v5168
      %v5170 = vpop.f32.mrf.mxu0
      %v5171 = vadd.f32 0.0, %v5170
      %5172 = vmatmul.bf16.gmra.mxu0 %v5102
      %v5173 = vpop.f32.mrf.mxu0
      %v5174 = vadd.f32 0.0, %v5173
      %v5175 = vpop.f32.mrf.mxu0
      %5176 = vdwg.mxu0
      %v5177 = vadd.f32 %v4864, %v5114
      %v5178 = vadd.f32 %v4865, %v5116
      %v5179 = vadd.f32 %v4866, %v5119
      %v5180 = vadd.f32 %v4867, %v5121
      %v5181 = vadd.f32 %v4868, %v5124
      %v5182 = vadd.f32 %v4869, %v5126
      %v5183 = vadd.f32 %v4870, %v5129
      %v5184 = vadd.f32 %v4871, %v5131
      %v5185 = vadd.f32 %v4872, %v5134
      %v5186 = vadd.f32 %v4873, %v5136
      %v5187 = vadd.f32 %v4874, %v5139
      %v5188 = vadd.f32 %v4875, %v5141
      %v5189 = vadd.f32 %v4876, %v5144
      %v5190 = vadd.f32 %v4877, %v5146
      %v5191 = vadd.f32 %v4878, %v5149
      %v5192 = vadd.f32 %v4879, %v5151
      %v5193 = vadd.f32 %v4880, %v5154
      %v5194 = vadd.f32 %v4881, %v5156
      %v5195 = vadd.f32 %v4882, %v5159
      %v5196 = vadd.f32 %v4883, %v5161
      %v5197 = vadd.f32 %v4884, %v5164
      %v5198 = vadd.f32 %v4885, %v5166
      %v5199 = vadd.f32 %v4886, %v5169
      %v5200 = vadd.f32 %v4887, %v5171
      %v5201 = vadd.f32 %v4888, %v5174
      %v5202 = vld [vmem:[#allocation4 + $0x4] sm:$0x8]
      %v5203 = vld [vmem:[#allocation4 + $0x8] sm:$0xf]
      %v5204 = vld [vmem:[#allocation4 + $0xc] sm:$0xf]
      %v5205 = vld [vmem:[#allocation4 + $0x10] sm:$0xf]
      %v5206 = vld [vmem:[#allocation4 + $0x14] sm:$0xf]
      %v5207 = vld [vmem:[#allocation4 + $0x18] sm:$0xf]
      %v5208 = vld [vmem:[#allocation4 + $0x1c] sm:$0xf]
      %v5209 = vld [vmem:[#allocation4 + $0x20] sm:$0xf]
      %v5210 = vld [vmem:[#allocation4 + $0x24] sm:$0xf]
      %v5211 = vld [vmem:[#allocation4 + $0x28] sm:$0xf]
      %v5212 = vld [vmem:[#allocation4 + $0x2c] sm:$0xf]
      %v5213 = vld [vmem:[#allocation4 + $0x30] sm:$0xf]
      %v5214 = vld [vmem:[#allocation4 + $0x34] sm:$0xf]
      %v5215 = vld [vmem:[#allocation4 + $0x38] sm:$0xf]
      %v5216 = vld [vmem:[#allocation4 + $0x3c] sm:$0xf]
      %v5217 = vld [vmem:[#allocation4 + $0x40] sm:$0xf]
      %v5218 = vld [vmem:[#allocation4 + $0x44] sm:$0xf]
      %v5219 = vld [vmem:[#allocation4 + $0x48] sm:$0xf]
      %v5220 = vld [vmem:[#allocation4 + $0x4c] sm:$0xf]
      %v5221 = vld [vmem:[#allocation4 + $0x50] sm:$0xf]
      %v5222 = vld [vmem:[#allocation4 + $0x54] sm:$0xf]
      %v5223 = vld [vmem:[#allocation4 + $0x58] sm:$0xf]
      %v5224 = vld [vmem:[#allocation4 + $0x5c] sm:$0xf]
      %v5225 = vld [vmem:[#allocation4 + $0x60] sm:$0xf]
      %v5226 = vld [vmem:[#allocation4 + $0x64] sm:$0xf]
      %v5227 = vld [vmem:[#allocation4 + $0x68] sm:$0x3]
      %v5228 = vunpack.c.l.bf16 %v5202
      %v5229 = vunpack.c.l.bf16 %v5203
      %v5230 = vunpack.c.l.bf16 %v5204
      %v5231 = vunpack.c.l.bf16 %v5205
      %v5232 = vunpack.c.l.bf16 %v5206
      %v5233 = vunpack.c.l.bf16 %v5207
      %v5234 = vunpack.c.l.bf16 %v5208
      %v5235 = vunpack.c.l.bf16 %v5209
      %v5236 = vunpack.c.l.bf16 %v5210
      %v5237 = vunpack.c.l.bf16 %v5211
      %v5238 = vunpack.c.l.bf16 %v5212
      %v5239 = vunpack.c.l.bf16 %v5213
      %v5240 = vunpack.c.l.bf16 %v5214
      %v5241 = vunpack.c.l.bf16 %v5215
      %v5242 = vunpack.c.l.bf16 %v5216
      %v5243 = vunpack.c.l.bf16 %v5217
      %v5244 = vunpack.c.l.bf16 %v5218
      %v5245 = vunpack.c.l.bf16 %v5219
      %v5246 = vunpack.c.l.bf16 %v5220
      %v5247 = vunpack.c.l.bf16 %v5221
      %v5248 = vunpack.c.l.bf16 %v5222
      %v5249 = vunpack.c.l.bf16 %v5223
      %v5250 = vunpack.c.l.bf16 %v5224
      %v5251 = vunpack.c.l.bf16 %v5225
      %v5252 = vunpack.c.l.bf16 %v5226
      %v5253 = vunpack.c.l.bf16 %v5227
      %v5254 = vmul.f32 %v5228, %v4256
      %v5255 = vmul.f32 %v5229, %v4258
      %v5256 = vmul.f32 %v5230, %v4260
      %v5257 = vmul.f32 %v5231, %v4262
      %v5258 = vmul.f32 %v5232, %v4264
      %v5259 = vmul.f32 %v5233, %v4266
      %v5260 = vmul.f32 %v5234, %v4268
      %v5261 = vmul.f32 %v5235, %v4270
      %v5262 = vmul.f32 %v5236, %v4272
      %v5263 = vmul.f32 %v5237, %v4274
      %v5264 = vmul.f32 %v5238, %v4276
      %v5265 = vmul.f32 %v5239, %v4278
      %v5266 = vmul.f32 %v5240, %v4280
      %v5267 = vmul.f32 %v5241, %v4282
      %v5268 = vmul.f32 %v5242, %v4284
      %v5269 = vmul.f32 %v5243, %v4286
      %v5270 = vmul.f32 %v5244, %v4288
      %v5271 = vmul.f32 %v5245, %v4290
      %v5272 = vmul.f32 %v5246, %v4292
      %v5273 = vmul.f32 %v5247, %v4294
      %v5274 = vmul.f32 %v5248, %v4296
      %v5275 = vmul.f32 %v5249, %v4298
      %v5276 = vmul.f32 %v5250, %v4300
      %v5277 = vmul.f32 %v5251, %v4302
      %v5278 = vmul.f32 %v5252, %v4304
      %v5279 = vmul.f32 %v5253, %v4303
      %v5280 = vpack.c.bf16 %v5255, %v5254
      %v5281 = vpack.c.bf16 %v5257, %v5256
      %v5282 = vpack.c.bf16 %v5259, %v5258
      %v5283 = vpack.c.bf16 %v5261, %v5260
      %v5284 = vpack.c.bf16 %v5263, %v5262
      %v5285 = vpack.c.bf16 %v5265, %v5264
      %v5286 = vpack.c.bf16 %v5267, %v5266
      %v5287 = vpack.c.bf16 %v5269, %v5268
      %v5288 = vpack.c.bf16 %v5271, %v5270
      %v5289 = vpack.c.bf16 %v5273, %v5272
      %v5290 = vpack.c.bf16 %v5275, %v5274
      %v5291 = vpack.c.bf16 %v5277, %v5276
      %v5292 = vpack.c.bf16 %v5279, %v5278
      %s5293 = scalar_lea.vmem %s3, 192
      %v5294 = vld [vmem:[%s5293] sm:$0xf]
      %v5295 = vld [vmem:[%s5293 + $0x4] sm:$0xf]
      %v5296 = vld [vmem:[%s5293 + $0x8] sm:$0xf]
      %v5297 = vld [vmem:[%s5293 + $0xc] sm:$0xf]
      %v5298 = vld [vmem:[%s5293 + $0x10] sm:$0xf]
      %v5299 = vld [vmem:[%s5293 + $0x14] sm:$0xf]
      %v5300 = vld [vmem:[%s5293 + $0x18] sm:$0xf]
      %v5301 = vld [vmem:[%s5293 + $0x1c] sm:$0xf]
      %v5303 = vshrl.u32 %v5280, 16
      %v5305 = vrot.slane %v5303, 3
      %v5306 = vshll.u32 %v5280, 16
      %v5308 = vrot.slane %v5306, 4
      %v5309 = vor.u32 %v5305, %v5308
      %v5311 = vshrl.u32 %v5281, 16
      %v5313 = vrot.slane %v5311, 3
      %v5314 = vshll.u32 %v5281, 16
      %v5316 = vrot.slane %v5314, 4
      %v5317 = vor.u32 %v5313, %v5316
      %v5318 = vsel %vm2729, %v5309, %v5317
      %v5320 = vshrl.u32 %v5282, 16
      %v5322 = vrot.slane %v5320, 3
      %v5323 = vshll.u32 %v5282, 16
      %v5325 = vrot.slane %v5323, 4
      %v5326 = vor.u32 %v5322, %v5325
      %v5327 = vsel %vm2729, %v5317, %v5326
      %v5329 = vshrl.u32 %v5283, 16
      %v5331 = vrot.slane %v5329, 3
      %v5332 = vshll.u32 %v5283, 16
      %v5334 = vrot.slane %v5332, 4
      %v5335 = vor.u32 %v5331, %v5334
      %v5336 = vsel %vm2729, %v5326, %v5335
      %v5338 = vshrl.u32 %v5284, 16
      %v5340 = vrot.slane %v5338, 3
      %v5341 = vshll.u32 %v5284, 16
      %v5343 = vrot.slane %v5341, 4
      %v5344 = vor.u32 %v5340, %v5343
      %v5345 = vsel %vm2729, %v5335, %v5344
      %v5347 = vshrl.u32 %v5285, 16
      %v5349 = vrot.slane %v5347, 3
      %v5350 = vshll.u32 %v5285, 16
      %v5352 = vrot.slane %v5350, 4
      %v5353 = vor.u32 %v5349, %v5352
      %v5354 = vsel %vm2729, %v5344, %v5353
      %v5356 = vshrl.u32 %v5286, 16
      %v5358 = vrot.slane %v5356, 3
      %v5359 = vshll.u32 %v5286, 16
      %v5361 = vrot.slane %v5359, 4
      %v5362 = vor.u32 %v5358, %v5361
      %v5363 = vsel %vm2729, %v5353, %v5362
      %v5365 = vshrl.u32 %v5287, 16
      %v5367 = vrot.slane %v5365, 3
      %v5368 = vshll.u32 %v5287, 16
      %v5370 = vrot.slane %v5368, 4
      %v5371 = vor.u32 %v5367, %v5370
      %v5372 = vsel %vm2729, %v5362, %v5371
      %v5374 = vshrl.u32 %v5288, 16
      %v5376 = vrot.slane %v5374, 3
      %v5377 = vshll.u32 %v5288, 16
      %v5379 = vrot.slane %v5377, 4
      %v5380 = vor.u32 %v5376, %v5379
      %v5381 = vsel %vm2729, %v5371, %v5380
      %v5383 = vshrl.u32 %v5289, 16
      %v5385 = vrot.slane %v5383, 3
      %v5386 = vshll.u32 %v5289, 16
      %v5388 = vrot.slane %v5386, 4
      %v5389 = vor.u32 %v5385, %v5388
      %v5390 = vsel %vm2729, %v5380, %v5389
      %v5392 = vshrl.u32 %v5290, 16
      %v5394 = vrot.slane %v5392, 3
      %v5395 = vshll.u32 %v5290, 16
      %v5397 = vrot.slane %v5395, 4
      %v5398 = vor.u32 %v5394, %v5397
      %v5399 = vsel %vm2729, %v5389, %v5398
      %v5401 = vshrl.u32 %v5291, 16
      %v5403 = vrot.slane %v5401, 3
      %v5404 = vshll.u32 %v5291, 16
      %v5406 = vrot.slane %v5404, 4
      %v5407 = vor.u32 %v5403, %v5406
      %v5408 = vsel %vm2729, %v5398, %v5407
      %v5410 = vshrl.u32 %v5292, 16
      %v5412 = vrot.slane %v5410, 3
      %v5413 = vshll.u32 %v5292, 16
      %v5415 = vrot.slane %v5413, 4
      %v5416 = vor.u32 %v5412, %v5415
      %v5417 = vsel %vm2729, %v5407, %v5416
      %v5426 = vunpack.c.l.b16 %v5294
      %v5427 = vunpack.c.l.b16 %v5295
      %v5428 = vunpack.c.l.b16 %v5296
      %v5429 = vunpack.c.l.b16 %v5297
      %v5430 = vunpack.c.l.b16 %v5298
      %v5431 = vunpack.c.l.b16 %v5299
      %v5432 = vunpack.c.l.b16 %v5300
      %v5433 = vunpack.c.l.b16 %v5301
      %v5434 = vpack.c.b16 %v5427, %v5426
      %v5435 = vpack.c.b16 %v5429, %v5428
      %v5436 = vpack.c.b16 %v5431, %v5430
      %v5437 = vpack.c.b16 %v5433, %v5432
      %v5443 = vsel %vm1876, %v5318, 0
      %v5446 = vsel %vm1876, %v5327, 0
      %v5449 = vsel %vm1876, %v5336, 0
      %v5452 = vsel %vm1876, %v5345, 0
      %v5455 = vsel %vm1876, %v5354, 0
      %v5458 = vsel %vm1876, %v5363, 0
      %v5461 = vsel %vm1876, %v5372, 0
      %v5464 = vsel %vm1876, %v5381, 0
      %v5467 = vsel %vm1876, %v5390, 0
      %v5470 = vsel %vm1876, %v5399, 0
      %v5473 = vsel %vm1876, %v5408, 0
      %v5476 = vsel %vm1876, %v5417, 0
      %v5479 = vsel %vm1876, %v5416, 0
      %5481 = vmatpush.bf16.msra.mxu0 0
      %5482 = vmatpush.bf16.msra.mxu0 0
      %5483 = vmatpush.bf16.msra.mxu0 0
      %5484 = vmatpush.bf16.msra.mxu0 0
      %5485 = vmatpush.bf16.msra.mxu0 %v5437
      %5486 = vmatpush.bf16.msra.mxu0 %v5436
      %5487 = vmatpush.bf16.msra.mxu0 %v5435
      %5488 = vmatpush.bf16.msra.mxu0 %v5434
      %5489 = vmatmul.bf16.gmra.mxu0 %v5443
      %v5490 = vpop.f32.mrf.mxu0
      %v5491 = vadd.f32 0.0, %v5490
      %v5492 = vpop.f32.mrf.mxu0
      %v5493 = vadd.f32 0.0, %v5492
      %5494 = vmatmul.bf16.gmra.mxu0 %v5446
      %v5495 = vpop.f32.mrf.mxu0
      %v5496 = vadd.f32 0.0, %v5495
      %v5497 = vpop.f32.mrf.mxu0
      %v5498 = vadd.f32 0.0, %v5497
      %5499 = vmatmul.bf16.gmra.mxu0 %v5449
      %v5500 = vpop.f32.mrf.mxu0
      %v5501 = vadd.f32 0.0, %v5500
      %v5502 = vpop.f32.mrf.mxu0
      %v5503 = vadd.f32 0.0, %v5502
      %5504 = vmatmul.bf16.gmra.mxu0 %v5452
      %v5505 = vpop.f32.mrf.mxu0
      %v5506 = vadd.f32 0.0, %v5505
      %v5507 = vpop.f32.mrf.mxu0
      %v5508 = vadd.f32 0.0, %v5507
      %5509 = vmatmul.bf16.gmra.mxu0 %v5455
      %v5510 = vpop.f32.mrf.mxu0
      %v5511 = vadd.f32 0.0, %v5510
      %v5512 = vpop.f32.mrf.mxu0
      %v5513 = vadd.f32 0.0, %v5512
      %5514 = vmatmul.bf16.gmra.mxu0 %v5458
      %v5515 = vpop.f32.mrf.mxu0
      %v5516 = vadd.f32 0.0, %v5515
      %v5517 = vpop.f32.mrf.mxu0
      %v5518 = vadd.f32 0.0, %v5517
      %5519 = vmatmul.bf16.gmra.mxu0 %v5461
      %v5520 = vpop.f32.mrf.mxu0
      %v5521 = vadd.f32 0.0, %v5520
      %v5522 = vpop.f32.mrf.mxu0
      %v5523 = vadd.f32 0.0, %v5522
      %5524 = vmatmul.bf16.gmra.mxu0 %v5464
      %v5525 = vpop.f32.mrf.mxu0
      %v5526 = vadd.f32 0.0, %v5525
      %v5527 = vpop.f32.mrf.mxu0
      %v5528 = vadd.f32 0.0, %v5527
      %5529 = vmatmul.bf16.gmra.mxu0 %v5467
      %v5530 = vpop.f32.mrf.mxu0
      %v5531 = vadd.f32 0.0, %v5530
      %v5532 = vpop.f32.mrf.mxu0
      %v5533 = vadd.f32 0.0, %v5532
      %5534 = vmatmul.bf16.gmra.mxu0 %v5470
      %v5535 = vpop.f32.mrf.mxu0
      %v5536 = vadd.f32 0.0, %v5535
      %v5537 = vpop.f32.mrf.mxu0
      %v5538 = vadd.f32 0.0, %v5537
      %5539 = vmatmul.bf16.gmra.mxu0 %v5473
      %v5540 = vpop.f32.mrf.mxu0
      %v5541 = vadd.f32 0.0, %v5540
      %v5542 = vpop.f32.mrf.mxu0
      %v5543 = vadd.f32 0.0, %v5542
      %5544 = vmatmul.bf16.gmra.mxu0 %v5476
      %v5545 = vpop.f32.mrf.mxu0
      %v5546 = vadd.f32 0.0, %v5545
      %v5547 = vpop.f32.mrf.mxu0
      %v5548 = vadd.f32 0.0, %v5547
      %5549 = vmatmul.bf16.gmra.mxu0 %v5479
      %v5550 = vpop.f32.mrf.mxu0
      %v5551 = vadd.f32 0.0, %v5550
      %v5552 = vpop.f32.mrf.mxu0
      %5553 = vdwg.mxu0
      %v5554 = vadd.f32 %v5177, %v5491
      %v5555 = vadd.f32 %v5178, %v5493
      %v5556 = vadd.f32 %v5179, %v5496
      %v5557 = vadd.f32 %v5180, %v5498
      %v5558 = vadd.f32 %v5181, %v5501
      %v5559 = vadd.f32 %v5182, %v5503
      %v5560 = vadd.f32 %v5183, %v5506
      %v5561 = vadd.f32 %v5184, %v5508
      %v5562 = vadd.f32 %v5185, %v5511
      %v5563 = vadd.f32 %v5186, %v5513
      %v5564 = vadd.f32 %v5187, %v5516
      %v5565 = vadd.f32 %v5188, %v5518
      %v5566 = vadd.f32 %v5189, %v5521
      %v5567 = vadd.f32 %v5190, %v5523
      %v5568 = vadd.f32 %v5191, %v5526
      %v5569 = vadd.f32 %v5192, %v5528
      %v5570 = vadd.f32 %v5193, %v5531
      %v5571 = vadd.f32 %v5194, %v5533
      %v5572 = vadd.f32 %v5195, %v5536
      %v5573 = vadd.f32 %v5196, %v5538
      %v5574 = vadd.f32 %v5197, %v5541
      %v5575 = vadd.f32 %v5198, %v5543
      %v5576 = vadd.f32 %v5199, %v5546
      %v5577 = vadd.f32 %v5200, %v5548
      %v5578 = vadd.f32 %v5201, %v5551
      %s5579 = scalar_lea.vmem %s3, 224
      %v5580 = vld [vmem:[%s5579] sm:$0xf]
      %v5581 = vld [vmem:[%s5579 + $0x4] sm:$0xf]
      %v5582 = vld [vmem:[%s5579 + $0x8] sm:$0xf]
      %v5583 = vld [vmem:[%s5579 + $0xc] sm:$0xf]
      %v5584 = vld [vmem:[%s5579 + $0x10] sm:$0xf]
      %v5585 = vld [vmem:[%s5579 + $0x14] sm:$0xf]
      %v5586 = vld [vmem:[%s5579 + $0x18] sm:$0xf]
      %v5587 = vld [vmem:[%s5579 + $0x1c] sm:$0xf]
      %v5613 = vunpack.c.l.b16 %v5203
      %v5614 = vunpack.c.l.b16 %v5204
      %v5615 = vunpack.c.l.b16 %v5205
      %v5616 = vunpack.c.l.b16 %v5206
      %v5617 = vunpack.c.l.b16 %v5207
      %v5618 = vunpack.c.l.b16 %v5208
      %v5619 = vunpack.c.l.b16 %v5209
      %v5620 = vunpack.c.l.b16 %v5210
      %v5621 = vunpack.c.l.b16 %v5211
      %v5622 = vunpack.c.l.b16 %v5212
      %v5623 = vunpack.c.l.b16 %v5213
      %v5624 = vunpack.c.l.b16 %v5214
      %v5625 = vunpack.c.l.b16 %v5215
      %v5626 = vunpack.c.l.b16 %v5216
      %v5627 = vunpack.c.l.b16 %v5217
      %v5628 = vunpack.c.l.b16 %v5218
      %v5629 = vunpack.c.l.b16 %v5219
      %v5630 = vunpack.c.l.b16 %v5220
      %v5631 = vunpack.c.l.b16 %v5221
      %v5632 = vunpack.c.l.b16 %v5222
      %v5633 = vunpack.c.l.b16 %v5223
      %v5634 = vunpack.c.l.b16 %v5224
      %v5635 = vunpack.c.l.b16 %v5225
      %v5636 = vunpack.c.l.b16 %v5226
      %v5637 = vunpack.c.l.b16 %v5227
      %v5638 = vpack.c.b16 %v5614, %v5613
      %v5639 = vpack.c.b16 %v5616, %v5615
      %v5640 = vpack.c.b16 %v5618, %v5617
      %v5641 = vpack.c.b16 %v5620, %v5619
      %v5642 = vpack.c.b16 %v5622, %v5621
      %v5643 = vpack.c.b16 %v5624, %v5623
      %v5644 = vpack.c.b16 %v5626, %v5625
      %v5645 = vpack.c.b16 %v5628, %v5627
      %v5646 = vpack.c.b16 %v5630, %v5629
      %v5647 = vpack.c.b16 %v5632, %v5631
      %v5648 = vpack.c.b16 %v5634, %v5633
      %v5649 = vpack.c.b16 %v5636, %v5635
      %v5650 = vpack.c.b16 %v5637, %v5637
      %v5659 = vunpack.c.l.b16 %v5580
      %v5660 = vunpack.c.l.b16 %v5581
      %v5661 = vunpack.c.l.b16 %v5582
      %v5662 = vunpack.c.l.b16 %v5583
      %v5663 = vunpack.c.l.b16 %v5584
      %v5664 = vunpack.c.l.b16 %v5585
      %v5665 = vunpack.c.l.b16 %v5586
      %v5666 = vunpack.c.l.b16 %v5587
      %v5667 = vpack.c.b16 %v5660, %v5659
      %v5668 = vpack.c.b16 %v5662, %v5661
      %v5669 = vpack.c.b16 %v5664, %v5663
      %v5670 = vpack.c.b16 %v5666, %v5665
      %v5676 = vsel %vm1876, %v5638, 0
      %v5679 = vsel %vm1876, %v5639, 0
      %v5682 = vsel %vm1876, %v5640, 0
      %v5685 = vsel %vm1876, %v5641, 0
      %v5688 = vsel %vm1876, %v5642, 0
      %v5691 = vsel %vm1876, %v5643, 0
      %v5694 = vsel %vm1876, %v5644, 0
      %v5697 = vsel %vm1876, %v5645, 0
      %v5700 = vsel %vm1876, %v5646, 0
      %v5703 = vsel %vm1876, %v5647, 0
      %v5706 = vsel %vm1876, %v5648, 0
      %v5709 = vsel %vm1876, %v5649, 0
      %v5712 = vsel %vm1876, %v5650, 0
      %5714 = vmatpush.bf16.msra.mxu0 0
      %5715 = vmatpush.bf16.msra.mxu0 0
      %5716 = vmatpush.bf16.msra.mxu0 0
      %5717 = vmatpush.bf16.msra.mxu0 0
      %5718 = vmatpush.bf16.msra.mxu0 %v5670
      %5719 = vmatpush.bf16.msra.mxu0 %v5669
      %5720 = vmatpush.bf16.msra.mxu0 %v5668
      %5721 = vmatpush.bf16.msra.mxu0 %v5667
      %5722 = vmatmul.bf16.gmra.mxu0 %v5676
      %v5723 = vpop.f32.mrf.mxu0
      %v5724 = vadd.f32 0.0, %v5723
      %v5725 = vpop.f32.mrf.mxu0
      %v5726 = vadd.f32 0.0, %v5725
      %5727 = vmatmul.bf16.gmra.mxu0 %v5679
      %v5728 = vpop.f32.mrf.mxu0
      %v5729 = vadd.f32 0.0, %v5728
      %v5730 = vpop.f32.mrf.mxu0
      %v5731 = vadd.f32 0.0, %v5730
      %5732 = vmatmul.bf16.gmra.mxu0 %v5682
      %v5733 = vpop.f32.mrf.mxu0
      %v5734 = vadd.f32 0.0, %v5733
      %v5735 = vpop.f32.mrf.mxu0
      %v5736 = vadd.f32 0.0, %v5735
      %5737 = vmatmul.bf16.gmra.mxu0 %v5685
      %v5738 = vpop.f32.mrf.mxu0
      %v5739 = vadd.f32 0.0, %v5738
      %v5740 = vpop.f32.mrf.mxu0
      %v5741 = vadd.f32 0.0, %v5740
      %5742 = vmatmul.bf16.gmra.mxu0 %v5688
      %v5743 = vpop.f32.mrf.mxu0
      %v5744 = vadd.f32 0.0, %v5743
      %v5745 = vpop.f32.mrf.mxu0
      %v5746 = vadd.f32 0.0, %v5745
      %5747 = vmatmul.bf16.gmra.mxu0 %v5691
      %v5748 = vpop.f32.mrf.mxu0
      %v5749 = vadd.f32 0.0, %v5748
      %v5750 = vpop.f32.mrf.mxu0
      %v5751 = vadd.f32 0.0, %v5750
      %5752 = vmatmul.bf16.gmra.mxu0 %v5694
      %v5753 = vpop.f32.mrf.mxu0
      %v5754 = vadd.f32 0.0, %v5753
      %v5755 = vpop.f32.mrf.mxu0
      %v5756 = vadd.f32 0.0, %v5755
      %5757 = vmatmul.bf16.gmra.mxu0 %v5697
      %v5758 = vpop.f32.mrf.mxu0
      %v5759 = vadd.f32 0.0, %v5758
      %v5760 = vpop.f32.mrf.mxu0
      %v5761 = vadd.f32 0.0, %v5760
      %5762 = vmatmul.bf16.gmra.mxu0 %v5700
      %v5763 = vpop.f32.mrf.mxu0
      %v5764 = vadd.f32 0.0, %v5763
      %v5765 = vpop.f32.mrf.mxu0
      %v5766 = vadd.f32 0.0, %v5765
      %5767 = vmatmul.bf16.gmra.mxu0 %v5703
      %v5768 = vpop.f32.mrf.mxu0
      %v5769 = vadd.f32 0.0, %v5768
      %v5770 = vpop.f32.mrf.mxu0
      %v5771 = vadd.f32 0.0, %v5770
      %5772 = vmatmul.bf16.gmra.mxu0 %v5706
      %v5773 = vpop.f32.mrf.mxu0
      %v5774 = vadd.f32 0.0, %v5773
      %v5775 = vpop.f32.mrf.mxu0
      %v5776 = vadd.f32 0.0, %v5775
      %5777 = vmatmul.bf16.gmra.mxu0 %v5709
      %v5778 = vpop.f32.mrf.mxu0
      %v5779 = vadd.f32 0.0, %v5778
      %v5780 = vpop.f32.mrf.mxu0
      %v5781 = vadd.f32 0.0, %v5780
      %5782 = vmatmul.bf16.gmra.mxu0 %v5712
      %v5783 = vpop.f32.mrf.mxu0
      %v5784 = vadd.f32 0.0, %v5783
      %v5785 = vpop.f32.mrf.mxu0
      %5786 = vdwg.mxu0
      %v5787 = vadd.f32 %v5554, %v5724
      %v5788 = vadd.f32 %v5555, %v5726
      %v5789 = vadd.f32 %v5556, %v5729
      %v5790 = vadd.f32 %v5557, %v5731
      %v5791 = vadd.f32 %v5558, %v5734
      %v5792 = vadd.f32 %v5559, %v5736
      %v5793 = vadd.f32 %v5560, %v5739
      %v5794 = vadd.f32 %v5561, %v5741
      %v5795 = vadd.f32 %v5562, %v5744
      %v5796 = vadd.f32 %v5563, %v5746
      %v5797 = vadd.f32 %v5564, %v5749
      %v5798 = vadd.f32 %v5565, %v5751
      %v5799 = vadd.f32 %v5566, %v5754
      %v5800 = vadd.f32 %v5567, %v5756
      %v5801 = vadd.f32 %v5568, %v5759
      %v5802 = vadd.f32 %v5569, %v5761
      %v5803 = vadd.f32 %v5570, %v5764
      %v5804 = vadd.f32 %v5571, %v5766
      %v5805 = vadd.f32 %v5572, %v5769
      %v5806 = vadd.f32 %v5573, %v5771
      %v5807 = vadd.f32 %v5574, %v5774
      %v5808 = vadd.f32 %v5575, %v5776
      %v5809 = vadd.f32 %v5576, %v5779
      %v5810 = vadd.f32 %v5577, %v5781
      %v5811 = vadd.f32 %v5578, %v5784
      %v5812 = vld [vmem:[#allocation4 + $0x68] sm:$0x7]
      %v5813 = vunpack.c.l.bf16 %v5812
      %v5814 = vmul.f32 %v5229, %v1494
      %v5815 = vmul.f32 %v5230, %v1496
      %v5816 = vmul.f32 %v5231, %v1498
      %v5817 = vmul.f32 %v5232, %v1500
      %v5818 = vmul.f32 %v5233, %v1502
      %v5819 = vmul.f32 %v5234, %v1504
      %v5820 = vmul.f32 %v5235, %v1506
      %v5821 = vmul.f32 %v5236, %v1508
      %v5822 = vmul.f32 %v5237, %v1510
      %v5823 = vmul.f32 %v5238, %v1512
      %v5824 = vmul.f32 %v5239, %v1514
      %v5825 = vmul.f32 %v5240, %v1516
      %v5826 = vmul.f32 %v5241, %v1518
      %v5827 = vmul.f32 %v5242, %v1520
      %v5828 = vmul.f32 %v5243, %v1522
      %v5829 = vmul.f32 %v5244, %v1524
      %v5830 = vmul.f32 %v5245, %v1526
      %v5831 = vmul.f32 %v5246, %v1528
      %v5832 = vmul.f32 %v5247, %v1530
      %v5833 = vmul.f32 %v5248, %v1532
      %v5834 = vmul.f32 %v5249, %v1534
      %v5835 = vmul.f32 %v5250, %v1536
      %v5836 = vmul.f32 %v5251, %v1538
      %v5837 = vmul.f32 %v5252, %v1540
      %v5838 = vmul.f32 %v5813, %v1542
      %v5839 = vpack.c.bf16 %v5815, %v5814
      %v5840 = vpack.c.bf16 %v5817, %v5816
      %v5841 = vpack.c.bf16 %v5819, %v5818
      %v5842 = vpack.c.bf16 %v5821, %v5820
      %v5843 = vpack.c.bf16 %v5823, %v5822
      %v5844 = vpack.c.bf16 %v5825, %v5824
      %v5845 = vpack.c.bf16 %v5827, %v5826
      %v5846 = vpack.c.bf16 %v5829, %v5828
      %v5847 = vpack.c.bf16 %v5831, %v5830
      %v5848 = vpack.c.bf16 %v5833, %v5832
      %v5849 = vpack.c.bf16 %v5835, %v5834
      %v5850 = vpack.c.bf16 %v5837, %v5836
      %v5851 = vpack.c.bf16 %v5838, %v5838
      %s5852 = scalar_lea.vmem %s3, 256
      %v5853 = vld [vmem:[%s5852] sm:$0xf]
      %v5854 = vld [vmem:[%s5852 + $0x4] sm:$0xf]
      %v5855 = vld [vmem:[%s5852 + $0x8] sm:$0xf]
      %v5856 = vld [vmem:[%s5852 + $0xc] sm:$0xf]
      %v5857 = vld [vmem:[%s5852 + $0x10] sm:$0xf]
      %v5858 = vld [vmem:[%s5852 + $0x14] sm:$0xf]
      %v5859 = vld [vmem:[%s5852 + $0x18] sm:$0xf]
      %v5860 = vld [vmem:[%s5852 + $0x1c] sm:$0xf]
      %v5862 = vshrl.u32 %v5839, 16
      %v5864 = vshll.u32 %v5839, 16
      %v5866 = vrot.slane %v5864, 1
      %v5867 = vor.u32 %v5862, %v5866
      %v5869 = vshll.u32 %v5840, 16
      %v5871 = vrot.slane %v5869, 1
      %v5872 = vsel %vm1748, %v5867, %v5871
      %v5873 = vshrl.u32 %v5840, 16
      %v5875 = vor.u32 %v5873, %v5871
      %v5877 = vshll.u32 %v5841, 16
      %v5879 = vrot.slane %v5877, 1
      %v5880 = vsel %vm1748, %v5875, %v5879
      %v5881 = vshrl.u32 %v5841, 16
      %v5883 = vor.u32 %v5881, %v5879
      %v5885 = vshll.u32 %v5842, 16
      %v5887 = vrot.slane %v5885, 1
      %v5888 = vsel %vm1748, %v5883, %v5887
      %v5889 = vshrl.u32 %v5842, 16
      %v5891 = vor.u32 %v5889, %v5887
      %v5893 = vshll.u32 %v5843, 16
      %v5895 = vrot.slane %v5893, 1
      %v5896 = vsel %vm1748, %v5891, %v5895
      %v5897 = vshrl.u32 %v5843, 16
      %v5899 = vor.u32 %v5897, %v5895
      %v5901 = vshll.u32 %v5844, 16
      %v5903 = vrot.slane %v5901, 1
      %v5904 = vsel %vm1748, %v5899, %v5903
      %v5905 = vshrl.u32 %v5844, 16
      %v5907 = vor.u32 %v5905, %v5903
      %v5909 = vshll.u32 %v5845, 16
      %v5911 = vrot.slane %v5909, 1
      %v5912 = vsel %vm1748, %v5907, %v5911
      %v5913 = vshrl.u32 %v5845, 16
      %v5915 = vor.u32 %v5913, %v5911
      %v5917 = vshll.u32 %v5846, 16
      %v5919 = vrot.slane %v5917, 1
      %v5920 = vsel %vm1748, %v5915, %v5919
      %v5921 = vshrl.u32 %v5846, 16
      %v5923 = vor.u32 %v5921, %v5919
      %v5925 = vshll.u32 %v5847, 16
      %v5927 = vrot.slane %v5925, 1
      %v5928 = vsel %vm1748, %v5923, %v5927
      %v5929 = vshrl.u32 %v5847, 16
      %v5931 = vor.u32 %v5929, %v5927
      %v5933 = vshll.u32 %v5848, 16
      %v5935 = vrot.slane %v5933, 1
      %v5936 = vsel %vm1748, %v5931, %v5935
      %v5937 = vshrl.u32 %v5848, 16
      %v5939 = vor.u32 %v5937, %v5935
      %v5941 = vshll.u32 %v5849, 16
      %v5943 = vrot.slane %v5941, 1
      %v5944 = vsel %vm1748, %v5939, %v5943
      %v5945 = vshrl.u32 %v5849, 16
      %v5947 = vor.u32 %v5945, %v5943
      %v5949 = vshll.u32 %v5850, 16
      %v5951 = vrot.slane %v5949, 1
      %v5952 = vsel %vm1748, %v5947, %v5951
      %v5953 = vshrl.u32 %v5850, 16
      %v5955 = vor.u32 %v5953, %v5951
      %v5957 = vshll.u32 %v5851, 16
      %v5959 = vrot.slane %v5957, 1
      %v5960 = vsel %vm1748, %v5955, %v5959
      %v5961 = vshrl.u32 %v5851, 16
      %v5963 = vor.u32 %v5961, %v5959
      %v5972 = vunpack.c.l.b16 %v5853
      %v5973 = vunpack.c.l.b16 %v5854
      %v5974 = vunpack.c.l.b16 %v5855
      %v5975 = vunpack.c.l.b16 %v5856
      %v5976 = vunpack.c.l.b16 %v5857
      %v5977 = vunpack.c.l.b16 %v5858
      %v5978 = vunpack.c.l.b16 %v5859
      %v5979 = vunpack.c.l.b16 %v5860
      %v5980 = vpack.c.b16 %v5973, %v5972
      %v5981 = vpack.c.b16 %v5975, %v5974
      %v5982 = vpack.c.b16 %v5977, %v5976
      %v5983 = vpack.c.b16 %v5979, %v5978
      %v5989 = vsel %vm1876, %v5872, 0
      %v5992 = vsel %vm1876, %v5880, 0
      %v5995 = vsel %vm1876, %v5888, 0
      %v5998 = vsel %vm1876, %v5896, 0
      %v6001 = vsel %vm1876, %v5904, 0
      %v6004 = vsel %vm1876, %v5912, 0
      %v6007 = vsel %vm1876, %v5920, 0
      %v6010 = vsel %vm1876, %v5928, 0
      %v6013 = vsel %vm1876, %v5936, 0
      %v6016 = vsel %vm1876, %v5944, 0
      %v6019 = vsel %vm1876, %v5952, 0
      %v6022 = vsel %vm1876, %v5960, 0
      %v6025 = vsel %vm1876, %v5963, 0
      %6027 = vmatpush.bf16.msra.mxu0 0
      %6028 = vmatpush.bf16.msra.mxu0 0
      %6029 = vmatpush.bf16.msra.mxu0 0
      %6030 = vmatpush.bf16.msra.mxu0 0
      %6031 = vmatpush.bf16.msra.mxu0 %v5983
      %6032 = vmatpush.bf16.msra.mxu0 %v5982
      %6033 = vmatpush.bf16.msra.mxu0 %v5981
      %6034 = vmatpush.bf16.msra.mxu0 %v5980
      %6035 = vmatmul.bf16.gmra.mxu0 %v5989
      %v6036 = vpop.f32.mrf.mxu0
      %v6037 = vadd.f32 0.0, %v6036
      %v6038 = vpop.f32.mrf.mxu0
      %v6039 = vadd.f32 0.0, %v6038
      %6040 = vmatmul.bf16.gmra.mxu0 %v5992
      %v6041 = vpop.f32.mrf.mxu0
      %v6042 = vadd.f32 0.0, %v6041
      %v6043 = vpop.f32.mrf.mxu0
      %v6044 = vadd.f32 0.0, %v6043
      %6045 = vmatmul.bf16.gmra.mxu0 %v5995
      %v6046 = vpop.f32.mrf.mxu0
      %v6047 = vadd.f32 0.0, %v6046
      %v6048 = vpop.f32.mrf.mxu0
      %v6049 = vadd.f32 0.0, %v6048
      %6050 = vmatmul.bf16.gmra.mxu0 %v5998
      %v6051 = vpop.f32.mrf.mxu0
      %v6052 = vadd.f32 0.0, %v6051
      %v6053 = vpop.f32.mrf.mxu0
      %v6054 = vadd.f32 0.0, %v6053
      %6055 = vmatmul.bf16.gmra.mxu0 %v6001
      %v6056 = vpop.f32.mrf.mxu0
      %v6057 = vadd.f32 0.0, %v6056
      %v6058 = vpop.f32.mrf.mxu0
      %v6059 = vadd.f32 0.0, %v6058
      %6060 = vmatmul.bf16.gmra.mxu0 %v6004
      %v6061 = vpop.f32.mrf.mxu0
      %v6062 = vadd.f32 0.0, %v6061
      %v6063 = vpop.f32.mrf.mxu0
      %v6064 = vadd.f32 0.0, %v6063
      %6065 = vmatmul.bf16.gmra.mxu0 %v6007
      %v6066 = vpop.f32.mrf.mxu0
      %v6067 = vadd.f32 0.0, %v6066
      %v6068 = vpop.f32.mrf.mxu0
      %v6069 = vadd.f32 0.0, %v6068
      %6070 = vmatmul.bf16.gmra.mxu0 %v6010
      %v6071 = vpop.f32.mrf.mxu0
      %v6072 = vadd.f32 0.0, %v6071
      %v6073 = vpop.f32.mrf.mxu0
      %v6074 = vadd.f32 0.0, %v6073
      %6075 = vmatmul.bf16.gmra.mxu0 %v6013
      %v6076 = vpop.f32.mrf.mxu0
      %v6077 = vadd.f32 0.0, %v6076
      %v6078 = vpop.f32.mrf.mxu0
      %v6079 = vadd.f32 0.0, %v6078
      %6080 = vmatmul.bf16.gmra.mxu0 %v6016
      %v6081 = vpop.f32.mrf.mxu0
      %v6082 = vadd.f32 0.0, %v6081
      %v6083 = vpop.f32.mrf.mxu0
      %v6084 = vadd.f32 0.0, %v6083
      %6085 = vmatmul.bf16.gmra.mxu0 %v6019
      %v6086 = vpop.f32.mrf.mxu0
      %v6087 = vadd.f32 0.0, %v6086
      %v6088 = vpop.f32.mrf.mxu0
      %v6089 = vadd.f32 0.0, %v6088
      %6090 = vmatmul.bf16.gmra.mxu0 %v6022
      %v6091 = vpop.f32.mrf.mxu0
      %v6092 = vadd.f32 0.0, %v6091
      %v6093 = vpop.f32.mrf.mxu0
      %v6094 = vadd.f32 0.0, %v6093
      %6095 = vmatmul.bf16.gmra.mxu0 %v6025
      %v6096 = vpop.f32.mrf.mxu0
      %v6097 = vadd.f32 0.0, %v6096
      %v6098 = vpop.f32.mrf.mxu0
      %6099 = vdwg.mxu0
      %v6100 = vadd.f32 %v5787, %v6037
      %v6101 = vadd.f32 %v5788, %v6039
      %v6102 = vadd.f32 %v5789, %v6042
      %v6103 = vadd.f32 %v5790, %v6044
      %v6104 = vadd.f32 %v5791, %v6047
      %v6105 = vadd.f32 %v5792, %v6049
      %v6106 = vadd.f32 %v5793, %v6052
      %v6107 = vadd.f32 %v5794, %v6054
      %v6108 = vadd.f32 %v5795, %v6057
      %v6109 = vadd.f32 %v5796, %v6059
      %v6110 = vadd.f32 %v5797, %v6062
      %v6111 = vadd.f32 %v5798, %v6064
      %v6112 = vadd.f32 %v5799, %v6067
      %v6113 = vadd.f32 %v5800, %v6069
      %v6114 = vadd.f32 %v5801, %v6072
      %v6115 = vadd.f32 %v5802, %v6074
      %v6116 = vadd.f32 %v5803, %v6077
      %v6117 = vadd.f32 %v5804, %v6079
      %v6118 = vadd.f32 %v5805, %v6082
      %v6119 = vadd.f32 %v5806, %v6084
      %v6120 = vadd.f32 %v5807, %v6087
      %v6121 = vadd.f32 %v5808, %v6089
      %v6122 = vadd.f32 %v5809, %v6092
      %v6123 = vadd.f32 %v5810, %v6094
      %v6124 = vadd.f32 %v5811, %v6097
      %v6125 = vld [vmem:[#allocation3 + $0xc] sm:$0xc]
      %v6126 = vld [vmem:[#allocation3 + $0x10] sm:$0xf]
      %v6127 = vld [vmem:[#allocation3 + $0x14] sm:$0xf]
      %v6128 = vld [vmem:[#allocation3 + $0x18] sm:$0xf]
      %v6129 = vld [vmem:[#allocation3 + $0x1c] sm:$0xf]
      %v6130 = vld [vmem:[#allocation3 + $0x20] sm:$0xf]
      %v6131 = vld [vmem:[#allocation3 + $0x24] sm:$0xf]
      %v6132 = vld [vmem:[#allocation3 + $0x28] sm:$0xf]
      %v6133 = vld [vmem:[#allocation3 + $0x2c] sm:$0xf]
      %v6134 = vld [vmem:[#allocation3 + $0x30] sm:$0xf]
      %v6135 = vld [vmem:[#allocation3 + $0x34] sm:$0xf]
      %v6136 = vld [vmem:[#allocation3 + $0x38] sm:$0xf]
      %v6137 = vld [vmem:[#allocation3 + $0x3c] sm:$0xf]
      %v6138 = vld [vmem:[#allocation3 + $0x40] sm:$0xf]
      %v6139 = vld [vmem:[#allocation3 + $0x44] sm:$0xf]
      %v6140 = vld [vmem:[#allocation3 + $0x48] sm:$0xf]
      %v6141 = vld [vmem:[#allocation3 + $0x4c] sm:$0xf]
      %v6142 = vld [vmem:[#allocation3 + $0x50] sm:$0xf]
      %v6143 = vld [vmem:[#allocation3 + $0x54] sm:$0xf]
      %v6144 = vld [vmem:[#allocation3 + $0x58] sm:$0xf]
      %v6145 = vld [vmem:[#allocation3 + $0x5c] sm:$0xf]
      %v6146 = vld [vmem:[#allocation3 + $0x60] sm:$0xf]
      %v6147 = vld [vmem:[#allocation3 + $0x64] sm:$0xf]
      %v6148 = vld [vmem:[#allocation3 + $0x68] sm:$0xf]
      %v6149 = vld [vmem:[#allocation3 + $0x6c] sm:$0xf]
      %v6150 = vld [vmem:[#allocation3 + $0x70] sm:$0x1]
      %v6151 = vunpack.c.l.bf16 %v6125
      %v6152 = vunpack.c.l.bf16 %v6126
      %v6153 = vunpack.c.l.bf16 %v6127
      %v6154 = vunpack.c.l.bf16 %v6128
      %v6155 = vunpack.c.l.bf16 %v6129
      %v6156 = vunpack.c.l.bf16 %v6130
      %v6157 = vunpack.c.l.bf16 %v6131
      %v6158 = vunpack.c.l.bf16 %v6132
      %v6159 = vunpack.c.l.bf16 %v6133
      %v6160 = vunpack.c.l.bf16 %v6134
      %v6161 = vunpack.c.l.bf16 %v6135
      %v6162 = vunpack.c.l.bf16 %v6136
      %v6163 = vunpack.c.l.bf16 %v6137
      %v6164 = vunpack.c.l.bf16 %v6138
      %v6165 = vunpack.c.l.bf16 %v6139
      %v6166 = vunpack.c.l.bf16 %v6140
      %v6167 = vunpack.c.l.bf16 %v6141
      %v6168 = vunpack.c.l.bf16 %v6142
      %v6169 = vunpack.c.l.bf16 %v6143
      %v6170 = vunpack.c.l.bf16 %v6144
      %v6171 = vunpack.c.l.bf16 %v6145
      %v6172 = vunpack.c.l.bf16 %v6146
      %v6173 = vunpack.c.l.bf16 %v6147
      %v6174 = vunpack.c.l.bf16 %v6148
      %v6175 = vunpack.c.l.bf16 %v6149
      %v6176 = vunpack.c.l.bf16 %v6150
      %vm6177 = vcmask 1044480
      %v6178 = vrot.slane %v3157, 3
      %v6179 = vrot.slane %v3158, 3
      %v6180 = vsel %vm6177, %v6178, %v6179
      %v6181 = vrot.slane %v3159, 3
      %v6182 = vsel %vm6177, %v6179, %v6181
      %v6183 = vrot.slane %v3160, 3
      %v6184 = vsel %vm6177, %v6181, %v6183
      %v6185 = vrot.slane %v3161, 3
      %v6186 = vsel %vm6177, %v6183, %v6185
      %v6187 = vrot.slane %v3162, 3
      %v6188 = vsel %vm6177, %v6185, %v6187
      %v6189 = vrot.slane %v3163, 3
      %v6190 = vsel %vm6177, %v6187, %v6189
      %v6191 = vrot.slane %v3164, 3
      %v6192 = vsel %vm6177, %v6189, %v6191
      %v6193 = vrot.slane %v3165, 3
      %v6194 = vsel %vm6177, %v6191, %v6193
      %v6195 = vrot.slane %v3166, 3
      %v6196 = vsel %vm6177, %v6193, %v6195
      %v6197 = vrot.slane %v3167, 3
      %v6198 = vsel %vm6177, %v6195, %v6197
      %v6199 = vrot.slane %v3168, 3
      %v6200 = vsel %vm6177, %v6197, %v6199
      %v6201 = vrot.slane %v3169, 3
      %v6202 = vsel %vm6177, %v6199, %v6201
      %v6203 = vrot.slane %v3170, 3
      %v6204 = vsel %vm6177, %v6201, %v6203
      %v6205 = vrot.slane %v3171, 3
      %v6206 = vsel %vm6177, %v6203, %v6205
      %v6207 = vrot.slane %v3172, 3
      %v6208 = vsel %vm6177, %v6205, %v6207
      %v6209 = vrot.slane %v3173, 3
      %v6210 = vsel %vm6177, %v6207, %v6209
      %v6211 = vrot.slane %v3174, 3
      %v6212 = vsel %vm6177, %v6209, %v6211
      %v6213 = vrot.slane %v3175, 3
      %v6214 = vsel %vm6177, %v6211, %v6213
      %v6215 = vrot.slane %v3176, 3
      %v6216 = vsel %vm6177, %v6213, %v6215
      %v6217 = vrot.slane %v3177, 3
      %v6218 = vsel %vm6177, %v6215, %v6217
      %v6219 = vrot.slane %v3178, 3
      %v6220 = vsel %vm6177, %v6217, %v6219
      %v6221 = vrot.slane %v3179, 3
      %v6222 = vsel %vm6177, %v6219, %v6221
      %v6223 = vrot.slane %v3180, 3
      %v6224 = vsel %vm6177, %v6221, %v6223
      %v6225 = vrot.slane %v3181, 3
      %v6226 = vsel %vm6177, %v6223, %v6225
      %v6253 = vmul.f32 %v6151, %v6178
      %v6254 = vmul.f32 %v6152, %v6180
      %v6255 = vmul.f32 %v6153, %v6182
      %v6256 = vmul.f32 %v6154, %v6184
      %v6257 = vmul.f32 %v6155, %v6186
      %v6258 = vmul.f32 %v6156, %v6188
      %v6259 = vmul.f32 %v6157, %v6190
      %v6260 = vmul.f32 %v6158, %v6192
      %v6261 = vmul.f32 %v6159, %v6194
      %v6262 = vmul.f32 %v6160, %v6196
      %v6263 = vmul.f32 %v6161, %v6198
      %v6264 = vmul.f32 %v6162, %v6200
      %v6265 = vmul.f32 %v6163, %v6202
      %v6266 = vmul.f32 %v6164, %v6204
      %v6267 = vmul.f32 %v6165, %v6206
      %v6268 = vmul.f32 %v6166, %v6208
      %v6269 = vmul.f32 %v6167, %v6210
      %v6270 = vmul.f32 %v6168, %v6212
      %v6271 = vmul.f32 %v6169, %v6214
      %v6272 = vmul.f32 %v6170, %v6216
      %v6273 = vmul.f32 %v6171, %v6218
      %v6274 = vmul.f32 %v6172, %v6220
      %v6275 = vmul.f32 %v6173, %v6222
      %v6276 = vmul.f32 %v6174, %v6224
      %v6277 = vmul.f32 %v6175, %v6226
      %v6278 = vmul.f32 %v6176, %v6225
      %v6279 = vpack.c.bf16 %v6254, %v6253
      %v6280 = vpack.c.bf16 %v6256, %v6255
      %v6281 = vpack.c.bf16 %v6258, %v6257
      %v6282 = vpack.c.bf16 %v6260, %v6259
      %v6283 = vpack.c.bf16 %v6262, %v6261
      %v6284 = vpack.c.bf16 %v6264, %v6263
      %v6285 = vpack.c.bf16 %v6266, %v6265
      %v6286 = vpack.c.bf16 %v6268, %v6267
      %v6287 = vpack.c.bf16 %v6270, %v6269
      %v6288 = vpack.c.bf16 %v6272, %v6271
      %v6289 = vpack.c.bf16 %v6274, %v6273
      %v6290 = vpack.c.bf16 %v6276, %v6275
      %v6291 = vpack.c.bf16 %v6278, %v6277
      %s6292 = scalar_lea.vmem %s3, 288
      %v6293 = vld [vmem:[%s6292] sm:$0xf]
      %v6294 = vld [vmem:[%s6292 + $0x4] sm:$0xf]
      %v6295 = vld [vmem:[%s6292 + $0x8] sm:$0xf]
      %v6296 = vld [vmem:[%s6292 + $0xc] sm:$0xf]
      %v6297 = vld [vmem:[%s6292 + $0x10] sm:$0xf]
      %v6298 = vld [vmem:[%s6292 + $0x14] sm:$0xf]
      %v6299 = vld [vmem:[%s6292 + $0x18] sm:$0xf]
      %v6300 = vld [vmem:[%s6292 + $0x1c] sm:$0xf]
      %vm6301 = vsmask.f32 5376
      %v6303 = vshrl.u32 %v6279, 16
      %v6305 = vrot.slane %v6303, 2
      %v6306 = vshll.u32 %v6279, 16
      %v6308 = vrot.slane %v6306, 3
      %v6309 = vor.u32 %v6305, %v6308
      %v6311 = vshrl.u32 %v6280, 16
      %v6313 = vrot.slane %v6311, 2
      %v6314 = vshll.u32 %v6280, 16
      %v6316 = vrot.slane %v6314, 3
      %v6317 = vor.u32 %v6313, %v6316
      %v6318 = vsel %vm6301, %v6309, %v6317
      %v6320 = vshrl.u32 %v6281, 16
      %v6322 = vrot.slane %v6320, 2
      %v6323 = vshll.u32 %v6281, 16
      %v6325 = vrot.slane %v6323, 3
      %v6326 = vor.u32 %v6322, %v6325
      %v6327 = vsel %vm6301, %v6317, %v6326
      %v6329 = vshrl.u32 %v6282, 16
      %v6331 = vrot.slane %v6329, 2
      %v6332 = vshll.u32 %v6282, 16
      %v6334 = vrot.slane %v6332, 3
      %v6335 = vor.u32 %v6331, %v6334
      %v6336 = vsel %vm6301, %v6326, %v6335
      %v6338 = vshrl.u32 %v6283, 16
      %v6340 = vrot.slane %v6338, 2
      %v6341 = vshll.u32 %v6283, 16
      %v6343 = vrot.slane %v6341, 3
      %v6344 = vor.u32 %v6340, %v6343
      %v6345 = vsel %vm6301, %v6335, %v6344
      %v6347 = vshrl.u32 %v6284, 16
      %v6349 = vrot.slane %v6347, 2
      %v6350 = vshll.u32 %v6284, 16
      %v6352 = vrot.slane %v6350, 3
      %v6353 = vor.u32 %v6349, %v6352
      %v6354 = vsel %vm6301, %v6344, %v6353
      %v6356 = vshrl.u32 %v6285, 16
      %v6358 = vrot.slane %v6356, 2
      %v6359 = vshll.u32 %v6285, 16
      %v6361 = vrot.slane %v6359, 3
      %v6362 = vor.u32 %v6358, %v6361
      %v6363 = vsel %vm6301, %v6353, %v6362
      %v6365 = vshrl.u32 %v6286, 16
      %v6367 = vrot.slane %v6365, 2
      %v6368 = vshll.u32 %v6286, 16
      %v6370 = vrot.slane %v6368, 3
      %v6371 = vor.u32 %v6367, %v6370
      %v6372 = vsel %vm6301, %v6362, %v6371
      %v6374 = vshrl.u32 %v6287, 16
      %v6376 = vrot.slane %v6374, 2
      %v6377 = vshll.u32 %v6287, 16
      %v6379 = vrot.slane %v6377, 3
      %v6380 = vor.u32 %v6376, %v6379
      %v6381 = vsel %vm6301, %v6371, %v6380
      %v6383 = vshrl.u32 %v6288, 16
      %v6385 = vrot.slane %v6383, 2
      %v6386 = vshll.u32 %v6288, 16
      %v6388 = vrot.slane %v6386, 3
      %v6389 = vor.u32 %v6385, %v6388
      %v6390 = vsel %vm6301, %v6380, %v6389
      %v6392 = vshrl.u32 %v6289, 16
      %v6394 = vrot.slane %v6392, 2
      %v6395 = vshll.u32 %v6289, 16
      %v6397 = vrot.slane %v6395, 3
      %v6398 = vor.u32 %v6394, %v6397
      %v6399 = vsel %vm6301, %v6389, %v6398
      %v6401 = vshrl.u32 %v6290, 16
      %v6403 = vrot.slane %v6401, 2
      %v6404 = vshll.u32 %v6290, 16
      %v6406 = vrot.slane %v6404, 3
      %v6407 = vor.u32 %v6403, %v6406
      %v6408 = vsel %vm6301, %v6398, %v6407
      %v6410 = vshrl.u32 %v6291, 16
      %v6412 = vrot.slane %v6410, 2
      %v6413 = vshll.u32 %v6291, 16
      %v6415 = vrot.slane %v6413, 3
      %v6416 = vor.u32 %v6412, %v6415
      %v6417 = vsel %vm6301, %v6407, %v6416
      %v6426 = vunpack.c.l.b16 %v6293
      %v6427 = vunpack.c.l.b16 %v6294
      %v6428 = vunpack.c.l.b16 %v6295
      %v6429 = vunpack.c.l.b16 %v6296
      %v6430 = vunpack.c.l.b16 %v6297
      %v6431 = vunpack.c.l.b16 %v6298
      %v6432 = vunpack.c.l.b16 %v6299
      %v6433 = vunpack.c.l.b16 %v6300
      %v6434 = vpack.c.b16 %v6427, %v6426
      %v6435 = vpack.c.b16 %v6429, %v6428
      %v6436 = vpack.c.b16 %v6431, %v6430
      %v6437 = vpack.c.b16 %v6433, %v6432
      %v6443 = vsel %vm1876, %v6318, 0
      %v6446 = vsel %vm1876, %v6327, 0
      %v6449 = vsel %vm1876, %v6336, 0
      %v6452 = vsel %vm1876, %v6345, 0
      %v6455 = vsel %vm1876, %v6354, 0
      %v6458 = vsel %vm1876, %v6363, 0
      %v6461 = vsel %vm1876, %v6372, 0
      %v6464 = vsel %vm1876, %v6381, 0
      %v6467 = vsel %vm1876, %v6390, 0
      %v6470 = vsel %vm1876, %v6399, 0
      %v6473 = vsel %vm1876, %v6408, 0
      %v6476 = vsel %vm1876, %v6417, 0
      %v6479 = vsel %vm1876, %v6416, 0
      %6481 = vmatpush.bf16.msra.mxu0 0
      %6482 = vmatpush.bf16.msra.mxu0 0
      %6483 = vmatpush.bf16.msra.mxu0 0
      %6484 = vmatpush.bf16.msra.mxu0 0
      %6485 = vmatpush.bf16.msra.mxu0 %v6437
      %6486 = vmatpush.bf16.msra.mxu0 %v6436
      %6487 = vmatpush.bf16.msra.mxu0 %v6435
      %6488 = vmatpush.bf16.msra.mxu0 %v6434
      %6489 = vmatmul.bf16.gmra.mxu0 %v6443
      %v6490 = vpop.f32.mrf.mxu0
      %v6491 = vadd.f32 0.0, %v6490
      %v6492 = vpop.f32.mrf.mxu0
      %v6493 = vadd.f32 0.0, %v6492
      %6494 = vmatmul.bf16.gmra.mxu0 %v6446
      %v6495 = vpop.f32.mrf.mxu0
      %v6496 = vadd.f32 0.0, %v6495
      %v6497 = vpop.f32.mrf.mxu0
      %v6498 = vadd.f32 0.0, %v6497
      %6499 = vmatmul.bf16.gmra.mxu0 %v6449
      %v6500 = vpop.f32.mrf.mxu0
      %v6501 = vadd.f32 0.0, %v6500
      %v6502 = vpop.f32.mrf.mxu0
      %v6503 = vadd.f32 0.0, %v6502
      %6504 = vmatmul.bf16.gmra.mxu0 %v6452
      %v6505 = vpop.f32.mrf.mxu0
      %v6506 = vadd.f32 0.0, %v6505
      %v6507 = vpop.f32.mrf.mxu0
      %v6508 = vadd.f32 0.0, %v6507
      %6509 = vmatmul.bf16.gmra.mxu0 %v6455
      %v6510 = vpop.f32.mrf.mxu0
      %v6511 = vadd.f32 0.0, %v6510
      %v6512 = vpop.f32.mrf.mxu0
      %v6513 = vadd.f32 0.0, %v6512
      %6514 = vmatmul.bf16.gmra.mxu0 %v6458
      %v6515 = vpop.f32.mrf.mxu0
      %v6516 = vadd.f32 0.0, %v6515
      %v6517 = vpop.f32.mrf.mxu0
      %v6518 = vadd.f32 0.0, %v6517
      %6519 = vmatmul.bf16.gmra.mxu0 %v6461
      %v6520 = vpop.f32.mrf.mxu0
      %v6521 = vadd.f32 0.0, %v6520
      %v6522 = vpop.f32.mrf.mxu0
      %v6523 = vadd.f32 0.0, %v6522
      %6524 = vmatmul.bf16.gmra.mxu0 %v6464
      %v6525 = vpop.f32.mrf.mxu0
      %v6526 = vadd.f32 0.0, %v6525
      %v6527 = vpop.f32.mrf.mxu0
      %v6528 = vadd.f32 0.0, %v6527
      %6529 = vmatmul.bf16.gmra.mxu0 %v6467
      %v6530 = vpop.f32.mrf.mxu0
      %v6531 = vadd.f32 0.0, %v6530
      %v6532 = vpop.f32.mrf.mxu0
      %v6533 = vadd.f32 0.0, %v6532
      %6534 = vmatmul.bf16.gmra.mxu0 %v6470
      %v6535 = vpop.f32.mrf.mxu0
      %v6536 = vadd.f32 0.0, %v6535
      %v6537 = vpop.f32.mrf.mxu0
      %v6538 = vadd.f32 0.0, %v6537
      %6539 = vmatmul.bf16.gmra.mxu0 %v6473
      %v6540 = vpop.f32.mrf.mxu0
      %v6541 = vadd.f32 0.0, %v6540
      %v6542 = vpop.f32.mrf.mxu0
      %v6543 = vadd.f32 0.0, %v6542
      %6544 = vmatmul.bf16.gmra.mxu0 %v6476
      %v6545 = vpop.f32.mrf.mxu0
      %v6546 = vadd.f32 0.0, %v6545
      %v6547 = vpop.f32.mrf.mxu0
      %v6548 = vadd.f32 0.0, %v6547
      %6549 = vmatmul.bf16.gmra.mxu0 %v6479
      %v6550 = vpop.f32.mrf.mxu0
      %v6551 = vadd.f32 0.0, %v6550
      %v6552 = vpop.f32.mrf.mxu0
      %6553 = vdwg.mxu0
      %v6554 = vadd.f32 %v6100, %v6491
      %v6555 = vadd.f32 %v6101, %v6493
      %v6556 = vadd.f32 %v6102, %v6496
      %v6557 = vadd.f32 %v6103, %v6498
      %v6558 = vadd.f32 %v6104, %v6501
      %v6559 = vadd.f32 %v6105, %v6503
      %v6560 = vadd.f32 %v6106, %v6506
      %v6561 = vadd.f32 %v6107, %v6508
      %v6562 = vadd.f32 %v6108, %v6511
      %v6563 = vadd.f32 %v6109, %v6513
      %v6564 = vadd.f32 %v6110, %v6516
      %v6565 = vadd.f32 %v6111, %v6518
      %v6566 = vadd.f32 %v6112, %v6521
      %v6567 = vadd.f32 %v6113, %v6523
      %v6568 = vadd.f32 %v6114, %v6526
      %v6569 = vadd.f32 %v6115, %v6528
      %v6570 = vadd.f32 %v6116, %v6531
      %v6571 = vadd.f32 %v6117, %v6533
      %v6572 = vadd.f32 %v6118, %v6536
      %v6573 = vadd.f32 %v6119, %v6538
      %v6574 = vadd.f32 %v6120, %v6541
      %v6575 = vadd.f32 %v6121, %v6543
      %v6576 = vadd.f32 %v6122, %v6546
      %v6577 = vadd.f32 %v6123, %v6548
      %v6578 = vadd.f32 %v6124, %v6551
      %v6579 = vld [vmem:[#allocation3 + $0xc] sm:$0x8]
      %s6580 = scalar_lea.vmem %s3, 320
      %v6581 = vld [vmem:[%s6580] sm:$0xf]
      %v6582 = vld [vmem:[%s6580 + $0x4] sm:$0xf]
      %v6583 = vld [vmem:[%s6580 + $0x8] sm:$0xf]
      %v6584 = vld [vmem:[%s6580 + $0xc] sm:$0xf]
      %v6585 = vld [vmem:[%s6580 + $0x10] sm:$0xf]
      %v6586 = vld [vmem:[%s6580 + $0x14] sm:$0xf]
      %v6587 = vld [vmem:[%s6580 + $0x18] sm:$0xf]
      %v6588 = vld [vmem:[%s6580 + $0x1c] sm:$0xf]
      %v6615 = vunpack.c.l.b16 %v6579
      %v6616 = vunpack.c.l.b16 %v6126
      %v6617 = vunpack.c.l.b16 %v6127
      %v6618 = vunpack.c.l.b16 %v6128
      %v6619 = vunpack.c.l.b16 %v6129
      %v6620 = vunpack.c.l.b16 %v6130
      %v6621 = vunpack.c.l.b16 %v6131
      %v6622 = vunpack.c.l.b16 %v6132
      %v6623 = vunpack.c.l.b16 %v6133
      %v6624 = vunpack.c.l.b16 %v6134
      %v6625 = vunpack.c.l.b16 %v6135
      %v6626 = vunpack.c.l.b16 %v6136
      %v6627 = vunpack.c.l.b16 %v6137
      %v6628 = vunpack.c.l.b16 %v6138
      %v6629 = vunpack.c.l.b16 %v6139
      %v6630 = vunpack.c.l.b16 %v6140
      %v6631 = vunpack.c.l.b16 %v6141
      %v6632 = vunpack.c.l.b16 %v6142
      %v6633 = vunpack.c.l.b16 %v6143
      %v6634 = vunpack.c.l.b16 %v6144
      %v6635 = vunpack.c.l.b16 %v6145
      %v6636 = vunpack.c.l.b16 %v6146
      %v6637 = vunpack.c.l.b16 %v6147
      %v6638 = vunpack.c.l.b16 %v6148
      %v6639 = vunpack.c.l.b16 %v6149
      %v6640 = vunpack.c.l.b16 %v6150
      %v6641 = vpack.c.b16 %v6616, %v6615
      %v6642 = vpack.c.b16 %v6618, %v6617
      %v6643 = vpack.c.b16 %v6620, %v6619
      %v6644 = vpack.c.b16 %v6622, %v6621
      %v6645 = vpack.c.b16 %v6624, %v6623
      %v6646 = vpack.c.b16 %v6626, %v6625
      %v6647 = vpack.c.b16 %v6628, %v6627
      %v6648 = vpack.c.b16 %v6630, %v6629
      %v6649 = vpack.c.b16 %v6632, %v6631
      %v6650 = vpack.c.b16 %v6634, %v6633
      %v6651 = vpack.c.b16 %v6636, %v6635
      %v6652 = vpack.c.b16 %v6638, %v6637
      %v6653 = vpack.c.b16 %v6640, %v6639
      %v6654 = vrot.slane %v6641, 3
      %v6655 = vrot.slane %v6642, 3
      %v6656 = vsel %vm2533, %v6654, %v6655
      %v6657 = vrot.slane %v6643, 3
      %v6658 = vsel %vm2533, %v6655, %v6657
      %v6659 = vrot.slane %v6644, 3
      %v6660 = vsel %vm2533, %v6657, %v6659
      %v6661 = vrot.slane %v6645, 3
      %v6662 = vsel %vm2533, %v6659, %v6661
      %v6663 = vrot.slane %v6646, 3
      %v6664 = vsel %vm2533, %v6661, %v6663
      %v6665 = vrot.slane %v6647, 3
      %v6666 = vsel %vm2533, %v6663, %v6665
      %v6667 = vrot.slane %v6648, 3
      %v6668 = vsel %vm2533, %v6665, %v6667
      %v6669 = vrot.slane %v6649, 3
      %v6670 = vsel %vm2533, %v6667, %v6669
      %v6671 = vrot.slane %v6650, 3
      %v6672 = vsel %vm2533, %v6669, %v6671
      %v6673 = vrot.slane %v6651, 3
      %v6674 = vsel %vm2533, %v6671, %v6673
      %v6675 = vrot.slane %v6652, 3
      %v6676 = vsel %vm2533, %v6673, %v6675
      %v6677 = vrot.slane %v6653, 3
      %v6678 = vsel %vm2533, %v6675, %v6677
      %v6687 = vunpack.c.l.b16 %v6581
      %v6688 = vunpack.c.l.b16 %v6582
      %v6689 = vunpack.c.l.b16 %v6583
      %v6690 = vunpack.c.l.b16 %v6584
      %v6691 = vunpack.c.l.b16 %v6585
      %v6692 = vunpack.c.l.b16 %v6586
      %v6693 = vunpack.c.l.b16 %v6587
      %v6694 = vunpack.c.l.b16 %v6588
      %v6695 = vpack.c.b16 %v6688, %v6687
      %v6696 = vpack.c.b16 %v6690, %v6689
      %v6697 = vpack.c.b16 %v6692, %v6691
      %v6698 = vpack.c.b16 %v6694, %v6693
      %v6704 = vsel %vm1876, %v6656, 0
      %v6707 = vsel %vm1876, %v6658, 0
      %v6710 = vsel %vm1876, %v6660, 0
      %v6713 = vsel %vm1876, %v6662, 0
      %v6716 = vsel %vm1876, %v6664, 0
      %v6719 = vsel %vm1876, %v6666, 0
      %v6722 = vsel %vm1876, %v6668, 0
      %v6725 = vsel %vm1876, %v6670, 0
      %v6728 = vsel %vm1876, %v6672, 0
      %v6731 = vsel %vm1876, %v6674, 0
      %v6734 = vsel %vm1876, %v6676, 0
      %v6737 = vsel %vm1876, %v6678, 0
      %v6740 = vsel %vm1876, %v6677, 0
      %6742 = vmatpush.bf16.msra.mxu0 0
      %6743 = vmatpush.bf16.msra.mxu0 0
      %6744 = vmatpush.bf16.msra.mxu0 0
      %6745 = vmatpush.bf16.msra.mxu0 0
      %6746 = vmatpush.bf16.msra.mxu0 %v6698
      %6747 = vmatpush.bf16.msra.mxu0 %v6697
      %6748 = vmatpush.bf16.msra.mxu0 %v6696
      %6749 = vmatpush.bf16.msra.mxu0 %v6695
      %6750 = vmatmul.bf16.gmra.mxu0 %v6704
      %v6751 = vpop.f32.mrf.mxu0
      %v6752 = vadd.f32 0.0, %v6751
      %v6753 = vpop.f32.mrf.mxu0
      %v6754 = vadd.f32 0.0, %v6753
      %6755 = vmatmul.bf16.gmra.mxu0 %v6707
      %v6756 = vpop.f32.mrf.mxu0
      %v6757 = vadd.f32 0.0, %v6756
      %v6758 = vpop.f32.mrf.mxu0
      %v6759 = vadd.f32 0.0, %v6758
      %6760 = vmatmul.bf16.gmra.mxu0 %v6710
      %v6761 = vpop.f32.mrf.mxu0
      %v6762 = vadd.f32 0.0, %v6761
      %v6763 = vpop.f32.mrf.mxu0
      %v6764 = vadd.f32 0.0, %v6763
      %6765 = vmatmul.bf16.gmra.mxu0 %v6713
      %v6766 = vpop.f32.mrf.mxu0
      %v6767 = vadd.f32 0.0, %v6766
      %v6768 = vpop.f32.mrf.mxu0
      %v6769 = vadd.f32 0.0, %v6768
      %6770 = vmatmul.bf16.gmra.mxu0 %v6716
      %v6771 = vpop.f32.mrf.mxu0
      %v6772 = vadd.f32 0.0, %v6771
      %v6773 = vpop.f32.mrf.mxu0
      %v6774 = vadd.f32 0.0, %v6773
      %6775 = vmatmul.bf16.gmra.mxu0 %v6719
      %v6776 = vpop.f32.mrf.mxu0
      %v6777 = vadd.f32 0.0, %v6776
      %v6778 = vpop.f32.mrf.mxu0
      %v6779 = vadd.f32 0.0, %v6778
      %6780 = vmatmul.bf16.gmra.mxu0 %v6722
      %v6781 = vpop.f32.mrf.mxu0
      %v6782 = vadd.f32 0.0, %v6781
      %v6783 = vpop.f32.mrf.mxu0
      %v6784 = vadd.f32 0.0, %v6783
      %6785 = vmatmul.bf16.gmra.mxu0 %v6725
      %v6786 = vpop.f32.mrf.mxu0
      %v6787 = vadd.f32 0.0, %v6786
      %v6788 = vpop.f32.mrf.mxu0
      %v6789 = vadd.f32 0.0, %v6788
      %6790 = vmatmul.bf16.gmra.mxu0 %v6728
      %v6791 = vpop.f32.mrf.mxu0
      %v6792 = vadd.f32 0.0, %v6791
      %v6793 = vpop.f32.mrf.mxu0
      %v6794 = vadd.f32 0.0, %v6793
      %6795 = vmatmul.bf16.gmra.mxu0 %v6731
      %v6796 = vpop.f32.mrf.mxu0
      %v6797 = vadd.f32 0.0, %v6796
      %v6798 = vpop.f32.mrf.mxu0
      %v6799 = vadd.f32 0.0, %v6798
      %6800 = vmatmul.bf16.gmra.mxu0 %v6734
      %v6801 = vpop.f32.mrf.mxu0
      %v6802 = vadd.f32 0.0, %v6801
      %v6803 = vpop.f32.mrf.mxu0
      %v6804 = vadd.f32 0.0, %v6803
      %6805 = vmatmul.bf16.gmra.mxu0 %v6737
      %v6806 = vpop.f32.mrf.mxu0
      %v6807 = vadd.f32 0.0, %v6806
      %v6808 = vpop.f32.mrf.mxu0
      %v6809 = vadd.f32 0.0, %v6808
      %6810 = vmatmul.bf16.gmra.mxu0 %v6740
      %v6811 = vpop.f32.mrf.mxu0
      %v6812 = vadd.f32 0.0, %v6811
      %v6813 = vpop.f32.mrf.mxu0
      %6814 = vdwg.mxu0
      %v6815 = vadd.f32 %v6554, %v6752
      %v6816 = vadd.f32 %v6555, %v6754
      %v6817 = vadd.f32 %v6556, %v6757
      %v6818 = vadd.f32 %v6557, %v6759
      %v6819 = vadd.f32 %v6558, %v6762
      %v6820 = vadd.f32 %v6559, %v6764
      %v6821 = vadd.f32 %v6560, %v6767
      %v6822 = vadd.f32 %v6561, %v6769
      %v6823 = vadd.f32 %v6562, %v6772
      %v6824 = vadd.f32 %v6563, %v6774
      %v6825 = vadd.f32 %v6564, %v6777
      %v6826 = vadd.f32 %v6565, %v6779
      %v6827 = vadd.f32 %v6566, %v6782
      %v6828 = vadd.f32 %v6567, %v6784
      %v6829 = vadd.f32 %v6568, %v6787
      %v6830 = vadd.f32 %v6569, %v6789
      %v6831 = vadd.f32 %v6570, %v6792
      %v6832 = vadd.f32 %v6571, %v6794
      %v6833 = vadd.f32 %v6572, %v6797
      %v6834 = vadd.f32 %v6573, %v6799
      %v6835 = vadd.f32 %v6574, %v6802
      %v6836 = vadd.f32 %v6575, %v6804
      %v6837 = vadd.f32 %v6576, %v6807
      %v6838 = vadd.f32 %v6577, %v6809
      %v6839 = vadd.f32 %v6578, %v6812
      %v6840 = vld [vmem:[#allocation3 + $0x70] sm:$0x3]
      %v6841 = vunpack.c.l.bf16 %v6579
      %v6842 = vunpack.c.l.bf16 %v6840
      %v6843 = vmul.f32 %v6841, %v1616
      %v6844 = vmul.f32 %v6152, %v1618
      %v6845 = vmul.f32 %v6153, %v1620
      %v6846 = vmul.f32 %v6154, %v1622
      %v6847 = vmul.f32 %v6155, %v1624
      %v6848 = vmul.f32 %v6156, %v1626
      %v6849 = vmul.f32 %v6157, %v1628
      %v6850 = vmul.f32 %v6158, %v1630
      %v6851 = vmul.f32 %v6159, %v1632
      %v6852 = vmul.f32 %v6160, %v1634
      %v6853 = vmul.f32 %v6161, %v1636
      %v6854 = vmul.f32 %v6162, %v1638
      %v6855 = vmul.f32 %v6163, %v1640
      %v6856 = vmul.f32 %v6164, %v1642
      %v6857 = vmul.f32 %v6165, %v1644
      %v6858 = vmul.f32 %v6166, %v1646
      %v6859 = vmul.f32 %v6167, %v1648
      %v6860 = vmul.f32 %v6168, %v1650
      %v6861 = vmul.f32 %v6169, %v1652
      %v6862 = vmul.f32 %v6170, %v1654
      %v6863 = vmul.f32 %v6171, %v1656
      %v6864 = vmul.f32 %v6172, %v1658
      %v6865 = vmul.f32 %v6173, %v1660
      %v6866 = vmul.f32 %v6174, %v1662
      %v6867 = vmul.f32 %v6175, %v1664
      %v6868 = vmul.f32 %v6842, %v1663
      %v6869 = vpack.c.bf16 %v6844, %v6843
      %v6870 = vpack.c.bf16 %v6846, %v6845
      %v6871 = vpack.c.bf16 %v6848, %v6847
      %v6872 = vpack.c.bf16 %v6850, %v6849
      %v6873 = vpack.c.bf16 %v6852, %v6851
      %v6874 = vpack.c.bf16 %v6854, %v6853
      %v6875 = vpack.c.bf16 %v6856, %v6855
      %v6876 = vpack.c.bf16 %v6858, %v6857
      %v6877 = vpack.c.bf16 %v6860, %v6859
      %v6878 = vpack.c.bf16 %v6862, %v6861
      %v6879 = vpack.c.bf16 %v6864, %v6863
      %v6880 = vpack.c.bf16 %v6866, %v6865
      %v6881 = vpack.c.bf16 %v6868, %v6867
      %s6882 = scalar_lea.vmem %s3, 352
      %v6883 = vld [vmem:[%s6882] sm:$0xf]
      %v6884 = vld [vmem:[%s6882 + $0x4] sm:$0xf]
      %v6885 = vld [vmem:[%s6882 + $0x8] sm:$0xf]
      %v6886 = vld [vmem:[%s6882 + $0xc] sm:$0xf]
      %v6887 = vld [vmem:[%s6882 + $0x10] sm:$0xf]
      %v6888 = vld [vmem:[%s6882 + $0x14] sm:$0xf]
      %v6889 = vld [vmem:[%s6882 + $0x18] sm:$0xf]
      %v6890 = vld [vmem:[%s6882 + $0x1c] sm:$0xf]
      %v6892 = vshrl.u32 %v6869, 16
      %v6894 = vrot.slane %v6892, 3
      %v6895 = vshll.u32 %v6869, 16
      %v6897 = vrot.slane %v6895, 4
      %v6898 = vor.u32 %v6894, %v6897
      %v6900 = vshrl.u32 %v6870, 16
      %v6902 = vrot.slane %v6900, 3
      %v6903 = vshll.u32 %v6870, 16
      %v6905 = vrot.slane %v6903, 4
      %v6906 = vor.u32 %v6902, %v6905
      %v6907 = vsel %vm2729, %v6898, %v6906
      %v6909 = vshrl.u32 %v6871, 16
      %v6911 = vrot.slane %v6909, 3
      %v6912 = vshll.u32 %v6871, 16
      %v6914 = vrot.slane %v6912, 4
      %v6915 = vor.u32 %v6911, %v6914
      %v6916 = vsel %vm2729, %v6906, %v6915
      %v6918 = vshrl.u32 %v6872, 16
      %v6920 = vrot.slane %v6918, 3
      %v6921 = vshll.u32 %v6872, 16
      %v6923 = vrot.slane %v6921, 4
      %v6924 = vor.u32 %v6920, %v6923
      %v6925 = vsel %vm2729, %v6915, %v6924
      %v6927 = vshrl.u32 %v6873, 16
      %v6929 = vrot.slane %v6927, 3
      %v6930 = vshll.u32 %v6873, 16
      %v6932 = vrot.slane %v6930, 4
      %v6933 = vor.u32 %v6929, %v6932
      %v6934 = vsel %vm2729, %v6924, %v6933
      %v6936 = vshrl.u32 %v6874, 16
      %v6938 = vrot.slane %v6936, 3
      %v6939 = vshll.u32 %v6874, 16
      %v6941 = vrot.slane %v6939, 4
      %v6942 = vor.u32 %v6938, %v6941
      %v6943 = vsel %vm2729, %v6933, %v6942
      %v6945 = vshrl.u32 %v6875, 16
      %v6947 = vrot.slane %v6945, 3
      %v6948 = vshll.u32 %v6875, 16
      %v6950 = vrot.slane %v6948, 4
      %v6951 = vor.u32 %v6947, %v6950
      %v6952 = vsel %vm2729, %v6942, %v6951
      %v6954 = vshrl.u32 %v6876, 16
      %v6956 = vrot.slane %v6954, 3
      %v6957 = vshll.u32 %v6876, 16
      %v6959 = vrot.slane %v6957, 4
      %v6960 = vor.u32 %v6956, %v6959
      %v6961 = vsel %vm2729, %v6951, %v6960
      %v6963 = vshrl.u32 %v6877, 16
      %v6965 = vrot.slane %v6963, 3
      %v6966 = vshll.u32 %v6877, 16
      %v6968 = vrot.slane %v6966, 4
      %v6969 = vor.u32 %v6965, %v6968
      %v6970 = vsel %vm2729, %v6960, %v6969
      %v6972 = vshrl.u32 %v6878, 16
      %v6974 = vrot.slane %v6972, 3
      %v6975 = vshll.u32 %v6878, 16
      %v6977 = vrot.slane %v6975, 4
      %v6978 = vor.u32 %v6974, %v6977
      %v6979 = vsel %vm2729, %v6969, %v6978
      %v6981 = vshrl.u32 %v6879, 16
      %v6983 = vrot.slane %v6981, 3
      %v6984 = vshll.u32 %v6879, 16
      %v6986 = vrot.slane %v6984, 4
      %v6987 = vor.u32 %v6983, %v6986
      %v6988 = vsel %vm2729, %v6978, %v6987
      %v6990 = vshrl.u32 %v6880, 16
      %v6992 = vrot.slane %v6990, 3
      %v6993 = vshll.u32 %v6880, 16
      %v6995 = vrot.slane %v6993, 4
      %v6996 = vor.u32 %v6992, %v6995
      %v6997 = vsel %vm2729, %v6987, %v6996
      %v6999 = vshrl.u32 %v6881, 16
      %v7001 = vrot.slane %v6999, 3
      %v7002 = vshll.u32 %v6881, 16
      %v7004 = vrot.slane %v7002, 4
      %v7005 = vor.u32 %v7001, %v7004
      %v7006 = vsel %vm2729, %v6996, %v7005
      %v7015 = vunpack.c.l.b16 %v6883
      %v7016 = vunpack.c.l.b16 %v6884
      %v7017 = vunpack.c.l.b16 %v6885
      %v7018 = vunpack.c.l.b16 %v6886
      %v7019 = vunpack.c.l.b16 %v6887
      %v7020 = vunpack.c.l.b16 %v6888
      %v7021 = vunpack.c.l.b16 %v6889
      %v7022 = vunpack.c.l.b16 %v6890
      %v7023 = vpack.c.b16 %v7016, %v7015
      %v7024 = vpack.c.b16 %v7018, %v7017
      %v7025 = vpack.c.b16 %v7020, %v7019
      %v7026 = vpack.c.b16 %v7022, %v7021
      %v7032 = vsel %vm1876, %v6907, 0
      %v7035 = vsel %vm1876, %v6916, 0
      %v7038 = vsel %vm1876, %v6925, 0
      %v7041 = vsel %vm1876, %v6934, 0
      %v7044 = vsel %vm1876, %v6943, 0
      %v7047 = vsel %vm1876, %v6952, 0
      %v7050 = vsel %vm1876, %v6961, 0
      %v7053 = vsel %vm1876, %v6970, 0
      %v7056 = vsel %vm1876, %v6979, 0
      %v7059 = vsel %vm1876, %v6988, 0
      %v7062 = vsel %vm1876, %v6997, 0
      %v7065 = vsel %vm1876, %v7006, 0
      %v7068 = vsel %vm1876, %v7005, 0
      %7070 = vmatpush.bf16.msra.mxu0 0
      %7071 = vmatpush.bf16.msra.mxu0 0
      %7072 = vmatpush.bf16.msra.mxu0 0
      %7073 = vmatpush.bf16.msra.mxu0 0
      %7074 = vmatpush.bf16.msra.mxu0 %v7026
      %7075 = vmatpush.bf16.msra.mxu0 %v7025
      %7076 = vmatpush.bf16.msra.mxu0 %v7024
      %7077 = vmatpush.bf16.msra.mxu0 %v7023
      %7078 = vmatmul.bf16.gmra.mxu0 %v7032
      %v7079 = vpop.f32.mrf.mxu0
      %v7080 = vadd.f32 0.0, %v7079
      %v7081 = vpop.f32.mrf.mxu0
      %v7082 = vadd.f32 0.0, %v7081
      %7083 = vmatmul.bf16.gmra.mxu0 %v7035
      %v7084 = vpop.f32.mrf.mxu0
      %v7085 = vadd.f32 0.0, %v7084
      %v7086 = vpop.f32.mrf.mxu0
      %v7087 = vadd.f32 0.0, %v7086
      %7088 = vmatmul.bf16.gmra.mxu0 %v7038
      %v7089 = vpop.f32.mrf.mxu0
      %v7090 = vadd.f32 0.0, %v7089
      %v7091 = vpop.f32.mrf.mxu0
      %v7092 = vadd.f32 0.0, %v7091
      %7093 = vmatmul.bf16.gmra.mxu0 %v7041
      %v7094 = vpop.f32.mrf.mxu0
      %v7095 = vadd.f32 0.0, %v7094
      %v7096 = vpop.f32.mrf.mxu0
      %v7097 = vadd.f32 0.0, %v7096
      %7098 = vmatmul.bf16.gmra.mxu0 %v7044
      %v7099 = vpop.f32.mrf.mxu0
      %v7100 = vadd.f32 0.0, %v7099
      %v7101 = vpop.f32.mrf.mxu0
      %v7102 = vadd.f32 0.0, %v7101
      %7103 = vmatmul.bf16.gmra.mxu0 %v7047
      %v7104 = vpop.f32.mrf.mxu0
      %v7105 = vadd.f32 0.0, %v7104
      %v7106 = vpop.f32.mrf.mxu0
      %v7107 = vadd.f32 0.0, %v7106
      %7108 = vmatmul.bf16.gmra.mxu0 %v7050
      %v7109 = vpop.f32.mrf.mxu0
      %v7110 = vadd.f32 0.0, %v7109
      %v7111 = vpop.f32.mrf.mxu0
      %v7112 = vadd.f32 0.0, %v7111
      %7113 = vmatmul.bf16.gmra.mxu0 %v7053
      %v7114 = vpop.f32.mrf.mxu0
      %v7115 = vadd.f32 0.0, %v7114
      %v7116 = vpop.f32.mrf.mxu0
      %v7117 = vadd.f32 0.0, %v7116
      %7118 = vmatmul.bf16.gmra.mxu0 %v7056
      %v7119 = vpop.f32.mrf.mxu0
      %v7120 = vadd.f32 0.0, %v7119
      %v7121 = vpop.f32.mrf.mxu0
      %v7122 = vadd.f32 0.0, %v7121
      %7123 = vmatmul.bf16.gmra.mxu0 %v7059
      %v7124 = vpop.f32.mrf.mxu0
      %v7125 = vadd.f32 0.0, %v7124
      %v7126 = vpop.f32.mrf.mxu0
      %v7127 = vadd.f32 0.0, %v7126
      %7128 = vmatmul.bf16.gmra.mxu0 %v7062
      %v7129 = vpop.f32.mrf.mxu0
      %v7130 = vadd.f32 0.0, %v7129
      %v7131 = vpop.f32.mrf.mxu0
      %v7132 = vadd.f32 0.0, %v7131
      %7133 = vmatmul.bf16.gmra.mxu0 %v7065
      %v7134 = vpop.f32.mrf.mxu0
      %v7135 = vadd.f32 0.0, %v7134
      %v7136 = vpop.f32.mrf.mxu0
      %v7137 = vadd.f32 0.0, %v7136
      %7138 = vmatmul.bf16.gmra.mxu0 %v7068
      %v7139 = vpop.f32.mrf.mxu0
      %v7140 = vadd.f32 0.0, %v7139
      %v7141 = vpop.f32.mrf.mxu0
      %7142 = vdwg.mxu0
      %v7143 = vadd.f32 %v6815, %v7080
      %v7144 = vadd.f32 %v6816, %v7082
      %v7145 = vadd.f32 %v6817, %v7085
      %v7146 = vadd.f32 %v6818, %v7087
      %v7147 = vadd.f32 %v6819, %v7090
      %v7148 = vadd.f32 %v6820, %v7092
      %v7149 = vadd.f32 %v6821, %v7095
      %v7150 = vadd.f32 %v6822, %v7097
      %v7151 = vadd.f32 %v6823, %v7100
      %v7152 = vadd.f32 %v6824, %v7102
      %v7153 = vadd.f32 %v6825, %v7105
      %v7154 = vadd.f32 %v6826, %v7107
      %v7155 = vadd.f32 %v6827, %v7110
      %v7156 = vadd.f32 %v6828, %v7112
      %v7157 = vadd.f32 %v6829, %v7115
      %v7158 = vadd.f32 %v6830, %v7117
      %v7159 = vadd.f32 %v6831, %v7120
      %v7160 = vadd.f32 %v6832, %v7122
      %v7161 = vadd.f32 %v6833, %v7125
      %v7162 = vadd.f32 %v6834, %v7127
      %v7163 = vadd.f32 %v6835, %v7130
      %v7164 = vadd.f32 %v6836, %v7132
      %v7165 = vadd.f32 %v6837, %v7135
      %v7166 = vadd.f32 %v6838, %v7137
      %v7167 = vadd.f32 %v6839, %v7140
      %v7168 = vld [vmem:[%s4] sm:$0x1]
      %v7170 = vperm.slane %v7168, 0
      %v7172 = vadd.f32 %v7143, %v7170
      %v7173 = vadd.f32 %v7144, %v7170
      %v7174 = vadd.f32 %v7145, %v7170
      %v7175 = vadd.f32 %v7146, %v7170
      %v7176 = vadd.f32 %v7147, %v7170
      %v7177 = vadd.f32 %v7148, %v7170
      %v7178 = vadd.f32 %v7149, %v7170
      %v7179 = vadd.f32 %v7150, %v7170
      %v7180 = vadd.f32 %v7151, %v7170
      %v7181 = vadd.f32 %v7152, %v7170
      %v7182 = vadd.f32 %v7153, %v7170
      %v7183 = vadd.f32 %v7154, %v7170
      %v7184 = vadd.f32 %v7155, %v7170
      %v7185 = vadd.f32 %v7156, %v7170
      %v7186 = vadd.f32 %v7157, %v7170
      %v7187 = vadd.f32 %v7158, %v7170
      %v7188 = vadd.f32 %v7159, %v7170
      %v7189 = vadd.f32 %v7160, %v7170
      %v7190 = vadd.f32 %v7161, %v7170
      %v7191 = vadd.f32 %v7162, %v7170
      %v7192 = vadd.f32 %v7163, %v7170
      %v7193 = vadd.f32 %v7164, %v7170
      %v7194 = vadd.f32 %v7165, %v7170
      %v7195 = vadd.f32 %v7166, %v7170
      %v7196 = vadd.f32 %v7167, %v7170
      %v7197 = vsub.f32 0.0, %v7172
      %v7198 = vsub.f32 0.0, %v7173
      %v7199 = vsub.f32 0.0, %v7174
      %v7200 = vsub.f32 0.0, %v7175
      %v7201 = vsub.f32 0.0, %v7176
      %v7202 = vsub.f32 0.0, %v7177
      %v7203 = vsub.f32 0.0, %v7178
      %v7204 = vsub.f32 0.0, %v7179
      %v7205 = vsub.f32 0.0, %v7180
      %v7206 = vsub.f32 0.0, %v7181
      %v7207 = vsub.f32 0.0, %v7182
      %v7208 = vsub.f32 0.0, %v7183
      %v7209 = vsub.f32 0.0, %v7184
      %v7210 = vsub.f32 0.0, %v7185
      %v7211 = vsub.f32 0.0, %v7186
      %v7212 = vsub.f32 0.0, %v7187
      %v7213 = vsub.f32 0.0, %v7188
      %v7214 = vsub.f32 0.0, %v7189
      %v7215 = vsub.f32 0.0, %v7190
      %v7216 = vsub.f32 0.0, %v7191
      %v7217 = vsub.f32 0.0, %v7192
      %v7218 = vsub.f32 0.0, %v7193
      %v7219 = vsub.f32 0.0, %v7194
      %v7220 = vsub.f32 0.0, %v7195
      %v7221 = vsub.f32 0.0, %v7196
      %v7222 = vmul.f32 %v7197, 1.442695
      %v7223 = vpow.pop %v7222
      %v7224 = vmul.f32 %v7198, 1.442695
      %v7225 = vpow.pop %v7224
      %v7226 = vmul.f32 %v7199, 1.442695
      %v7227 = vpow.pop %v7226
      %v7228 = vmul.f32 %v7200, 1.442695
      %v7229 = vpow.pop %v7228
      %v7230 = vmul.f32 %v7201, 1.442695
      %v7231 = vpow.pop %v7230
      %v7232 = vmul.f32 %v7202, 1.442695
      %v7233 = vpow.pop %v7232
      %v7234 = vmul.f32 %v7203, 1.442695
      %v7235 = vpow.pop %v7234
      %v7236 = vmul.f32 %v7204, 1.442695
      %v7237 = vpow.pop %v7236
      %v7238 = vmul.f32 %v7205, 1.442695
      %v7239 = vpow.pop %v7238
      %v7240 = vmul.f32 %v7206, 1.442695
      %v7241 = vpow.pop %v7240
      %v7242 = vmul.f32 %v7207, 1.442695
      %v7243 = vpow.pop %v7242
      %v7244 = vmul.f32 %v7208, 1.442695
      %v7245 = vpow.pop %v7244
      %v7246 = vmul.f32 %v7209, 1.442695
      %v7247 = vpow.pop %v7246
      %v7248 = vmul.f32 %v7210, 1.442695
      %v7249 = vpow.pop %v7248
      %v7250 = vmul.f32 %v7211, 1.442695
      %v7251 = vpow.pop %v7250
      %v7252 = vmul.f32 %v7212, 1.442695
      %v7253 = vpow.pop %v7252
      %v7254 = vmul.f32 %v7213, 1.442695
      %v7255 = vpow.pop %v7254
      %v7256 = vmul.f32 %v7214, 1.442695
      %v7257 = vpow.pop %v7256
      %v7258 = vmul.f32 %v7215, 1.442695
      %v7259 = vpow.pop %v7258
      %v7260 = vmul.f32 %v7216, 1.442695
      %v7261 = vpow.pop %v7260
      %v7262 = vmul.f32 %v7217, 1.442695
      %v7263 = vpow.pop %v7262
      %v7264 = vmul.f32 %v7218, 1.442695
      %v7265 = vpow.pop %v7264
      %v7266 = vmul.f32 %v7219, 1.442695
      %v7267 = vpow.pop %v7266
      %v7268 = vmul.f32 %v7220, 1.442695
      %v7269 = vpow.pop %v7268
      %v7270 = vmul.f32 %v7221, 1.442695
      %v7271 = vpow.pop %v7270
      %v7272 = vadd.f32 %v7223, 1.0
      %v7273 = vadd.f32 %v7225, 1.0
      %v7274 = vadd.f32 %v7227, 1.0
      %v7275 = vadd.f32 %v7229, 1.0
      %v7276 = vadd.f32 %v7231, 1.0
      %v7277 = vadd.f32 %v7233, 1.0
      %v7278 = vadd.f32 %v7235, 1.0
      %v7279 = vadd.f32 %v7237, 1.0
      %v7280 = vadd.f32 %v7239, 1.0
      %v7281 = vadd.f32 %v7241, 1.0
      %v7282 = vadd.f32 %v7243, 1.0
      %v7283 = vadd.f32 %v7245, 1.0
      %v7284 = vadd.f32 %v7247, 1.0
      %v7285 = vadd.f32 %v7249, 1.0
      %v7286 = vadd.f32 %v7251, 1.0
      %v7287 = vadd.f32 %v7253, 1.0
      %v7288 = vadd.f32 %v7255, 1.0
      %v7289 = vadd.f32 %v7257, 1.0
      %v7290 = vadd.f32 %v7259, 1.0
      %v7291 = vadd.f32 %v7261, 1.0
      %v7292 = vadd.f32 %v7263, 1.0
      %v7293 = vadd.f32 %v7265, 1.0
      %v7294 = vadd.f32 %v7267, 1.0
      %v7295 = vadd.f32 %v7269, 1.0
      %v7296 = vadd.f32 %v7271, 1.0
      %v7297 = vrcp.pop %v7272
      %v7298 = vmul.f32 %v7272, %v7297
      %v7299 = vsub.f32 1.0, %v7298
      %v7300 = vmul.f32 %v7297, %v7299
      %v7301 = vadd.f32 %v7297, %v7300
      %vm7302 = vweird.f32 %v7272
      %vm7303 = vweird.f32 %v7297
      %vm7304 = vmor %vm7302, %vm7303
      %v7305 = vsel %vm7304, %v7297, %v7301
      %v7306 = vand.u32 2147483647, %v7272
      %vm7307 = vcmp.eq.f32.partialorder %v7306, 8.507059e+37
      %v7308 = vand.u32 %v7272, 2147483648
      %v7309 = vor.u32 1.1754944e-38, %v7308
      %v7310 = vsel %vm7307, %v7309, %v7305
      %v7311 = vmul.f32 1.0, %v7310
      %v7312 = vrcp.pop %v7273
      %v7313 = vmul.f32 %v7273, %v7312
      %v7314 = vsub.f32 1.0, %v7313
      %v7315 = vmul.f32 %v7312, %v7314
      %v7316 = vadd.f32 %v7312, %v7315
      %vm7317 = vweird.f32 %v7273
      %vm7318 = vweird.f32 %v7312
      %vm7319 = vmor %vm7317, %vm7318
      %v7320 = vsel %vm7319, %v7312, %v7316
      %v7321 = vand.u32 2147483647, %v7273
      %vm7322 = vcmp.eq.f32.partialorder %v7321, 8.507059e+37
      %v7323 = vand.u32 %v7273, 2147483648
      %v7324 = vor.u32 1.1754944e-38, %v7323
      %v7325 = vsel %vm7322, %v7324, %v7320
      %v7326 = vmul.f32 1.0, %v7325
      %v7327 = vrcp.pop %v7274
      %v7328 = vmul.f32 %v7274, %v7327
      %v7329 = vsub.f32 1.0, %v7328
      %v7330 = vmul.f32 %v7327, %v7329
      %v7331 = vadd.f32 %v7327, %v7330
      %vm7332 = vweird.f32 %v7274
      %vm7333 = vweird.f32 %v7327
      %vm7334 = vmor %vm7332, %vm7333
      %v7335 = vsel %vm7334, %v7327, %v7331
      %v7336 = vand.u32 2147483647, %v7274
      %vm7337 = vcmp.eq.f32.partialorder %v7336, 8.507059e+37
      %v7338 = vand.u32 %v7274, 2147483648
      %v7339 = vor.u32 1.1754944e-38, %v7338
      %v7340 = vsel %vm7337, %v7339, %v7335
      %v7341 = vmul.f32 1.0, %v7340
      %v7342 = vrcp.pop %v7275
      %v7343 = vmul.f32 %v7275, %v7342
      %v7344 = vsub.f32 1.0, %v7343
      %v7345 = vmul.f32 %v7342, %v7344
      %v7346 = vadd.f32 %v7342, %v7345
      %vm7347 = vweird.f32 %v7275
      %vm7348 = vweird.f32 %v7342
      %vm7349 = vmor %vm7347, %vm7348
      %v7350 = vsel %vm7349, %v7342, %v7346
      %v7351 = vand.u32 2147483647, %v7275
      %vm7352 = vcmp.eq.f32.partialorder %v7351, 8.507059e+37
      %v7353 = vand.u32 %v7275, 2147483648
      %v7354 = vor.u32 1.1754944e-38, %v7353
      %v7355 = vsel %vm7352, %v7354, %v7350
      %v7356 = vmul.f32 1.0, %v7355
      %v7357 = vrcp.pop %v7276
      %v7358 = vmul.f32 %v7276, %v7357
      %v7359 = vsub.f32 1.0, %v7358
      %v7360 = vmul.f32 %v7357, %v7359
      %v7361 = vadd.f32 %v7357, %v7360
      %vm7362 = vweird.f32 %v7276
      %vm7363 = vweird.f32 %v7357
      %vm7364 = vmor %vm7362, %vm7363
      %v7365 = vsel %vm7364, %v7357, %v7361
      %v7366 = vand.u32 2147483647, %v7276
      %vm7367 = vcmp.eq.f32.partialorder %v7366, 8.507059e+37
      %v7368 = vand.u32 %v7276, 2147483648
      %v7369 = vor.u32 1.1754944e-38, %v7368
      %v7370 = vsel %vm7367, %v7369, %v7365
      %v7371 = vmul.f32 1.0, %v7370
      %v7372 = vrcp.pop %v7277
      %v7373 = vmul.f32 %v7277, %v7372
      %v7374 = vsub.f32 1.0, %v7373
      %v7375 = vmul.f32 %v7372, %v7374
      %v7376 = vadd.f32 %v7372, %v7375
      %vm7377 = vweird.f32 %v7277
      %vm7378 = vweird.f32 %v7372
      %vm7379 = vmor %vm7377, %vm7378
      %v7380 = vsel %vm7379, %v7372, %v7376
      %v7381 = vand.u32 2147483647, %v7277
      %vm7382 = vcmp.eq.f32.partialorder %v7381, 8.507059e+37
      %v7383 = vand.u32 %v7277, 2147483648
      %v7384 = vor.u32 1.1754944e-38, %v7383
      %v7385 = vsel %vm7382, %v7384, %v7380
      %v7386 = vmul.f32 1.0, %v7385
      %v7387 = vrcp.pop %v7278
      %v7388 = vmul.f32 %v7278, %v7387
      %v7389 = vsub.f32 1.0, %v7388
      %v7390 = vmul.f32 %v7387, %v7389
      %v7391 = vadd.f32 %v7387, %v7390
      %vm7392 = vweird.f32 %v7278
      %vm7393 = vweird.f32 %v7387
      %vm7394 = vmor %vm7392, %vm7393
      %v7395 = vsel %vm7394, %v7387, %v7391
      %v7396 = vand.u32 2147483647, %v7278
      %vm7397 = vcmp.eq.f32.partialorder %v7396, 8.507059e+37
      %v7398 = vand.u32 %v7278, 2147483648
      %v7399 = vor.u32 1.1754944e-38, %v7398
      %v7400 = vsel %vm7397, %v7399, %v7395
      %v7401 = vmul.f32 1.0, %v7400
      %v7402 = vrcp.pop %v7279
      %v7403 = vmul.f32 %v7279, %v7402
      %v7404 = vsub.f32 1.0, %v7403
      %v7405 = vmul.f32 %v7402, %v7404
      %v7406 = vadd.f32 %v7402, %v7405
      %vm7407 = vweird.f32 %v7279
      %vm7408 = vweird.f32 %v7402
      %vm7409 = vmor %vm7407, %vm7408
      %v7410 = vsel %vm7409, %v7402, %v7406
      %v7411 = vand.u32 2147483647, %v7279
      %vm7412 = vcmp.eq.f32.partialorder %v7411, 8.507059e+37
      %v7413 = vand.u32 %v7279, 2147483648
      %v7414 = vor.u32 1.1754944e-38, %v7413
      %v7415 = vsel %vm7412, %v7414, %v7410
      %v7416 = vmul.f32 1.0, %v7415
      %v7417 = vrcp.pop %v7280
      %v7418 = vmul.f32 %v7280, %v7417
      %v7419 = vsub.f32 1.0, %v7418
      %v7420 = vmul.f32 %v7417, %v7419
      %v7421 = vadd.f32 %v7417, %v7420
      %vm7422 = vweird.f32 %v7280
      %vm7423 = vweird.f32 %v7417
      %vm7424 = vmor %vm7422, %vm7423
      %v7425 = vsel %vm7424, %v7417, %v7421
      %v7426 = vand.u32 2147483647, %v7280
      %vm7427 = vcmp.eq.f32.partialorder %v7426, 8.507059e+37
      %v7428 = vand.u32 %v7280, 2147483648
      %v7429 = vor.u32 1.1754944e-38, %v7428
      %v7430 = vsel %vm7427, %v7429, %v7425
      %v7431 = vmul.f32 1.0, %v7430
      %v7432 = vrcp.pop %v7281
      %v7433 = vmul.f32 %v7281, %v7432
      %v7434 = vsub.f32 1.0, %v7433
      %v7435 = vmul.f32 %v7432, %v7434
      %v7436 = vadd.f32 %v7432, %v7435
      %vm7437 = vweird.f32 %v7281
      %vm7438 = vweird.f32 %v7432
      %vm7439 = vmor %vm7437, %vm7438
      %v7440 = vsel %vm7439, %v7432, %v7436
      %v7441 = vand.u32 2147483647, %v7281
      %vm7442 = vcmp.eq.f32.partialorder %v7441, 8.507059e+37
      %v7443 = vand.u32 %v7281, 2147483648
      %v7444 = vor.u32 1.1754944e-38, %v7443
      %v7445 = vsel %vm7442, %v7444, %v7440
      %v7446 = vmul.f32 1.0, %v7445
      %v7447 = vrcp.pop %v7282
      %v7448 = vmul.f32 %v7282, %v7447
      %v7449 = vsub.f32 1.0, %v7448
      %v7450 = vmul.f32 %v7447, %v7449
      %v7451 = vadd.f32 %v7447, %v7450
      %vm7452 = vweird.f32 %v7282
      %vm7453 = vweird.f32 %v7447
      %vm7454 = vmor %vm7452, %vm7453
      %v7455 = vsel %vm7454, %v7447, %v7451
      %v7456 = vand.u32 2147483647, %v7282
      %vm7457 = vcmp.eq.f32.partialorder %v7456, 8.507059e+37
      %v7458 = vand.u32 %v7282, 2147483648
      %v7459 = vor.u32 1.1754944e-38, %v7458
      %v7460 = vsel %vm7457, %v7459, %v7455
      %v7461 = vmul.f32 1.0, %v7460
      %v7462 = vrcp.pop %v7283
      %v7463 = vmul.f32 %v7283, %v7462
      %v7464 = vsub.f32 1.0, %v7463
      %v7465 = vmul.f32 %v7462, %v7464
      %v7466 = vadd.f32 %v7462, %v7465
      %vm7467 = vweird.f32 %v7283
      %vm7468 = vweird.f32 %v7462
      %vm7469 = vmor %vm7467, %vm7468
      %v7470 = vsel %vm7469, %v7462, %v7466
      %v7471 = vand.u32 2147483647, %v7283
      %vm7472 = vcmp.eq.f32.partialorder %v7471, 8.507059e+37
      %v7473 = vand.u32 %v7283, 2147483648
      %v7474 = vor.u32 1.1754944e-38, %v7473
      %v7475 = vsel %vm7472, %v7474, %v7470
      %v7476 = vmul.f32 1.0, %v7475
      %v7477 = vrcp.pop %v7284
      %v7478 = vmul.f32 %v7284, %v7477
      %v7479 = vsub.f32 1.0, %v7478
      %v7480 = vmul.f32 %v7477, %v7479
      %v7481 = vadd.f32 %v7477, %v7480
      %vm7482 = vweird.f32 %v7284
      %vm7483 = vweird.f32 %v7477
      %vm7484 = vmor %vm7482, %vm7483
      %v7485 = vsel %vm7484, %v7477, %v7481
      %v7486 = vand.u32 2147483647, %v7284
      %vm7487 = vcmp.eq.f32.partialorder %v7486, 8.507059e+37
      %v7488 = vand.u32 %v7284, 2147483648
      %v7489 = vor.u32 1.1754944e-38, %v7488
      %v7490 = vsel %vm7487, %v7489, %v7485
      %v7491 = vmul.f32 1.0, %v7490
      %v7492 = vrcp.pop %v7285
      %v7493 = vmul.f32 %v7285, %v7492
      %v7494 = vsub.f32 1.0, %v7493
      %v7495 = vmul.f32 %v7492, %v7494
      %v7496 = vadd.f32 %v7492, %v7495
      %vm7497 = vweird.f32 %v7285
      %vm7498 = vweird.f32 %v7492
      %vm7499 = vmor %vm7497, %vm7498
      %v7500 = vsel %vm7499, %v7492, %v7496
      %v7501 = vand.u32 2147483647, %v7285
      %vm7502 = vcmp.eq.f32.partialorder %v7501, 8.507059e+37
      %v7503 = vand.u32 %v7285, 2147483648
      %v7504 = vor.u32 1.1754944e-38, %v7503
      %v7505 = vsel %vm7502, %v7504, %v7500
      %v7506 = vmul.f32 1.0, %v7505
      %v7507 = vrcp.pop %v7286
      %v7508 = vmul.f32 %v7286, %v7507
      %v7509 = vsub.f32 1.0, %v7508
      %v7510 = vmul.f32 %v7507, %v7509
      %v7511 = vadd.f32 %v7507, %v7510
      %vm7512 = vweird.f32 %v7286
      %vm7513 = vweird.f32 %v7507
      %vm7514 = vmor %vm7512, %vm7513
      %v7515 = vsel %vm7514, %v7507, %v7511
      %v7516 = vand.u32 2147483647, %v7286
      %vm7517 = vcmp.eq.f32.partialorder %v7516, 8.507059e+37
      %v7518 = vand.u32 %v7286, 2147483648
      %v7519 = vor.u32 1.1754944e-38, %v7518
      %v7520 = vsel %vm7517, %v7519, %v7515
      %v7521 = vmul.f32 1.0, %v7520
      %v7522 = vrcp.pop %v7287
      %v7523 = vmul.f32 %v7287, %v7522
      %v7524 = vsub.f32 1.0, %v7523
      %v7525 = vmul.f32 %v7522, %v7524
      %v7526 = vadd.f32 %v7522, %v7525
      %vm7527 = vweird.f32 %v7287
      %vm7528 = vweird.f32 %v7522
      %vm7529 = vmor %vm7527, %vm7528
      %v7530 = vsel %vm7529, %v7522, %v7526
      %v7531 = vand.u32 2147483647, %v7287
      %vm7532 = vcmp.eq.f32.partialorder %v7531, 8.507059e+37
      %v7533 = vand.u32 %v7287, 2147483648
      %v7534 = vor.u32 1.1754944e-38, %v7533
      %v7535 = vsel %vm7532, %v7534, %v7530
      %v7536 = vmul.f32 1.0, %v7535
      %v7537 = vrcp.pop %v7288
      %v7538 = vmul.f32 %v7288, %v7537
      %v7539 = vsub.f32 1.0, %v7538
      %v7540 = vmul.f32 %v7537, %v7539
      %v7541 = vadd.f32 %v7537, %v7540
      %vm7542 = vweird.f32 %v7288
      %vm7543 = vweird.f32 %v7537
      %vm7544 = vmor %vm7542, %vm7543
      %v7545 = vsel %vm7544, %v7537, %v7541
      %v7546 = vand.u32 2147483647, %v7288
      %vm7547 = vcmp.eq.f32.partialorder %v7546, 8.507059e+37
      %v7548 = vand.u32 %v7288, 2147483648
      %v7549 = vor.u32 1.1754944e-38, %v7548
      %v7550 = vsel %vm7547, %v7549, %v7545
      %v7551 = vmul.f32 1.0, %v7550
      %v7552 = vrcp.pop %v7289
      %v7553 = vmul.f32 %v7289, %v7552
      %v7554 = vsub.f32 1.0, %v7553
      %v7555 = vmul.f32 %v7552, %v7554
      %v7556 = vadd.f32 %v7552, %v7555
      %vm7557 = vweird.f32 %v7289
      %vm7558 = vweird.f32 %v7552
      %vm7559 = vmor %vm7557, %vm7558
      %v7560 = vsel %vm7559, %v7552, %v7556
      %v7561 = vand.u32 2147483647, %v7289
      %vm7562 = vcmp.eq.f32.partialorder %v7561, 8.507059e+37
      %v7563 = vand.u32 %v7289, 2147483648
      %v7564 = vor.u32 1.1754944e-38, %v7563
      %v7565 = vsel %vm7562, %v7564, %v7560
      %v7566 = vmul.f32 1.0, %v7565
      %v7567 = vrcp.pop %v7290
      %v7568 = vmul.f32 %v7290, %v7567
      %v7569 = vsub.f32 1.0, %v7568
      %v7570 = vmul.f32 %v7567, %v7569
      %v7571 = vadd.f32 %v7567, %v7570
      %vm7572 = vweird.f32 %v7290
      %vm7573 = vweird.f32 %v7567
      %vm7574 = vmor %vm7572, %vm7573
      %v7575 = vsel %vm7574, %v7567, %v7571
      %v7576 = vand.u32 2147483647, %v7290
      %vm7577 = vcmp.eq.f32.partialorder %v7576, 8.507059e+37
      %v7578 = vand.u32 %v7290, 2147483648
      %v7579 = vor.u32 1.1754944e-38, %v7578
      %v7580 = vsel %vm7577, %v7579, %v7575
      %v7581 = vmul.f32 1.0, %v7580
      %v7582 = vrcp.pop %v7291
      %v7583 = vmul.f32 %v7291, %v7582
      %v7584 = vsub.f32 1.0, %v7583
      %v7585 = vmul.f32 %v7582, %v7584
      %v7586 = vadd.f32 %v7582, %v7585
      %vm7587 = vweird.f32 %v7291
      %vm7588 = vweird.f32 %v7582
      %vm7589 = vmor %vm7587, %vm7588
      %v7590 = vsel %vm7589, %v7582, %v7586
      %v7591 = vand.u32 2147483647, %v7291
      %vm7592 = vcmp.eq.f32.partialorder %v7591, 8.507059e+37
      %v7593 = vand.u32 %v7291, 2147483648
      %v7594 = vor.u32 1.1754944e-38, %v7593
      %v7595 = vsel %vm7592, %v7594, %v7590
      %v7596 = vmul.f32 1.0, %v7595
      %v7597 = vrcp.pop %v7292
      %v7598 = vmul.f32 %v7292, %v7597
      %v7599 = vsub.f32 1.0, %v7598
      %v7600 = vmul.f32 %v7597, %v7599
      %v7601 = vadd.f32 %v7597, %v7600
      %vm7602 = vweird.f32 %v7292
      %vm7603 = vweird.f32 %v7597
      %vm7604 = vmor %vm7602, %vm7603
      %v7605 = vsel %vm7604, %v7597, %v7601
      %v7606 = vand.u32 2147483647, %v7292
      %vm7607 = vcmp.eq.f32.partialorder %v7606, 8.507059e+37
      %v7608 = vand.u32 %v7292, 2147483648
      %v7609 = vor.u32 1.1754944e-38, %v7608
      %v7610 = vsel %vm7607, %v7609, %v7605
      %v7611 = vmul.f32 1.0, %v7610
      %v7612 = vrcp.pop %v7293
      %v7613 = vmul.f32 %v7293, %v7612
      %v7614 = vsub.f32 1.0, %v7613
      %v7615 = vmul.f32 %v7612, %v7614
      %v7616 = vadd.f32 %v7612, %v7615
      %vm7617 = vweird.f32 %v7293
      %vm7618 = vweird.f32 %v7612
      %vm7619 = vmor %vm7617, %vm7618
      %v7620 = vsel %vm7619, %v7612, %v7616
      %v7621 = vand.u32 2147483647, %v7293
      %vm7622 = vcmp.eq.f32.partialorder %v7621, 8.507059e+37
      %v7623 = vand.u32 %v7293, 2147483648
      %v7624 = vor.u32 1.1754944e-38, %v7623
      %v7625 = vsel %vm7622, %v7624, %v7620
      %v7626 = vmul.f32 1.0, %v7625
      %v7627 = vrcp.pop %v7294
      %v7628 = vmul.f32 %v7294, %v7627
      %v7629 = vsub.f32 1.0, %v7628
      %v7630 = vmul.f32 %v7627, %v7629
      %v7631 = vadd.f32 %v7627, %v7630
      %vm7632 = vweird.f32 %v7294
      %vm7633 = vweird.f32 %v7627
      %vm7634 = vmor %vm7632, %vm7633
      %v7635 = vsel %vm7634, %v7627, %v7631
      %v7636 = vand.u32 2147483647, %v7294
      %vm7637 = vcmp.eq.f32.partialorder %v7636, 8.507059e+37
      %v7638 = vand.u32 %v7294, 2147483648
      %v7639 = vor.u32 1.1754944e-38, %v7638
      %v7640 = vsel %vm7637, %v7639, %v7635
      %v7641 = vmul.f32 1.0, %v7640
      %v7642 = vrcp.pop %v7295
      %v7643 = vmul.f32 %v7295, %v7642
      %v7644 = vsub.f32 1.0, %v7643
      %v7645 = vmul.f32 %v7642, %v7644
      %v7646 = vadd.f32 %v7642, %v7645
      %vm7647 = vweird.f32 %v7295
      %vm7648 = vweird.f32 %v7642
      %vm7649 = vmor %vm7647, %vm7648
      %v7650 = vsel %vm7649, %v7642, %v7646
      %v7651 = vand.u32 2147483647, %v7295
      %vm7652 = vcmp.eq.f32.partialorder %v7651, 8.507059e+37
      %v7653 = vand.u32 %v7295, 2147483648
      %v7654 = vor.u32 1.1754944e-38, %v7653
      %v7655 = vsel %vm7652, %v7654, %v7650
      %v7656 = vmul.f32 1.0, %v7655
      %v7657 = vrcp.pop %v7296
      %v7658 = vmul.f32 %v7296, %v7657
      %v7659 = vsub.f32 1.0, %v7658
      %v7660 = vmul.f32 %v7657, %v7659
      %v7661 = vadd.f32 %v7657, %v7660
      %vm7662 = vweird.f32 %v7296
      %vm7663 = vweird.f32 %v7657
      %vm7664 = vmor %vm7662, %vm7663
      %v7665 = vsel %vm7664, %v7657, %v7661
      %v7666 = vand.u32 2147483647, %v7296
      %vm7667 = vcmp.eq.f32.partialorder %v7666, 8.507059e+37
      %v7668 = vand.u32 %v7296, 2147483648
      %v7669 = vor.u32 1.1754944e-38, %v7668
      %v7670 = vsel %vm7667, %v7669, %v7665
      %v7671 = vmul.f32 1.0, %v7670
      %vm7672 = vcmask 31744
      %7673 = vst.msk [vmem:[%s224] sm:$0xff] %vm7672, %v7311
      %7674 = vst.msk [vmem:[%s224 + $0x8] sm:$0xff] %vm7672, %v7326
      %7675 = vst.msk [vmem:[%s224 + $0x10] sm:$0xff] %vm7672, %v7341
      %7676 = vst.msk [vmem:[%s224 + $0x18] sm:$0xff] %vm7672, %v7356
      %7677 = vst.msk [vmem:[%s224 + $0x20] sm:$0xff] %vm7672, %v7371
      %7678 = vst.msk [vmem:[%s224 + $0x28] sm:$0xff] %vm7672, %v7386
      %7679 = vst.msk [vmem:[%s224 + $0x30] sm:$0xff] %vm7672, %v7401
      %7680 = vst.msk [vmem:[%s224 + $0x38] sm:$0xff] %vm7672, %v7416
      %7681 = vst.msk [vmem:[%s224 + $0x40] sm:$0xff] %vm7672, %v7431
      %7682 = vst.msk [vmem:[%s224 + $0x48] sm:$0xff] %vm7672, %v7446
      %7683 = vst.msk [vmem:[%s224 + $0x50] sm:$0xff] %vm7672, %v7461
      %7684 = vst.msk [vmem:[%s224 + $0x58] sm:$0xff] %vm7672, %v7476
      %7685 = vst.msk [vmem:[%s224 + $0x60] sm:$0xff] %vm7672, %v7491
      %7686 = vst.msk [vmem:[%s224 + $0x68] sm:$0xff] %vm7672, %v7506
      %7687 = vst.msk [vmem:[%s224 + $0x70] sm:$0xff] %vm7672, %v7521
      %7688 = vst.msk [vmem:[%s224 + $0x78] sm:$0xff] %vm7672, %v7536
      %7689 = vst.msk [vmem:[%s224 + $0x80] sm:$0xff] %vm7672, %v7551
      %7690 = vst.msk [vmem:[%s224 + $0x88] sm:$0xff] %vm7672, %v7566
      %7691 = vst.msk [vmem:[%s224 + $0x90] sm:$0xff] %vm7672, %v7581
      %7692 = vst.msk [vmem:[%s224 + $0x98] sm:$0xff] %vm7672, %v7596
      %7693 = vst.msk [vmem:[%s224 + $0xa0] sm:$0xff] %vm7672, %v7611
      %7694 = vst.msk [vmem:[%s224 + $0xa8] sm:$0xff] %vm7672, %v7626
      %7695 = vst.msk [vmem:[%s224 + $0xb0] sm:$0xff] %vm7672, %v7641
      %7696 = vst.msk [vmem:[%s224 + $0xb8] sm:$0xff] %vm7672, %v7656
      %vm7697 = vcmask 27648
      %7698 = vst.msk [vmem:[%s224 + $0xc0] sm:$0xf] %vm7697, %v7671
      %p7699 = scmp.lt.s32.totalorder %s16, 1
      %s7700 = scalar_select %p7699, %s16, 1
      %s7701 = smul.addr %s7700, 25
      %s7702 = smul.addr %s7701, 8
      %s7703 = scalar_lea.vmem %s5, %s7702
      // Predicated region
      $region41: #{decoder_forward.3} parent=39 // pred_check
        %p7704 = pneg %p144
      $region42: #{decoder_forward.3} parent=39 // pred_check_branch
        %7706 = sbr.rel (%p7704) target = $region44
      $region43: #{decoder_forward.3} parent=39 // pred_region
        _
      $region44: #{decoder_forward.3} parent=39 // pred_fallthru
        _
    $region40: #{decoder_forward.3} parent=5 // pred_fallthru
      _
    %p7707 = scmp.le.s32.totalorder 2, %s11
    // Predicated region
    $region45: #{decoder_forward.3} parent=5 // pred_check
      %p7708 = pneg %p7707
    $region46: #{decoder_forward.3} parent=5 // pred_check_branch
      %7710 = sbr.rel (%p7708) target = $region48
    $region47: #{decoder_forward.3} parent=5 // pred_region
      %s7711 = ssub.s32 %s11, 2
      // Predicated region
      $region49: #{decoder_forward.3} parent=47 // pred_check
        %p7712 = pneg %p150
      $region50: #{decoder_forward.3} parent=47 // pred_check_branch
        %7714 = sbr.rel (%p7712) target = $region52
      $region51: #{decoder_forward.3} parent=47 // pred_region
        %p7715 = scmp.lt.s32.totalorder %s17, 1
        %s7716 = scalar_select %p7715, %s17, 1
        %s7717 = smul.addr %s7716, 25
        %s7718 = smul.addr %s7717, 8
        %s7719 = scalar_lea.vmem %s5, %s7718
      $region52: #{decoder_forward.3} parent=47 // pred_fallthru
        _
    $region48: #{decoder_forward.3} parent=5 // pred_fallthru
      _
  $region6: #{decoder_forward.3} parent=0 // loop_footer
    %s15 = sadd.s32 1, %s11
  $region7: #{decoder_forward.3} parent=0 // loop_footer_branch
    %10 = sbr.rel target = $region3
  $region8: #{decoder_forward.3} parent=0 // loop_exit
    _

</llo_original>
